<compile_context>
chip_gen: v6e
topology: v6e:2x2x1
jax: 0.10.0
libtpu: 0.0.40
codegen_flags: <defaults>
</compile_context>

<pallas_src>
import functools

import jax
import jax.numpy as jnp
from jax.experimental import pallas as pl
from jax.experimental.pallas import tpu as pltpu


_TM_TARGET = 512                       # ~85% of HBM roofline per the tiling doc
_VMEM_LIMIT = 32 * 1024 * 1024         # explicit, safe on v5e/v6e/v7x
_FULL_VMEM = pl.BlockSpec(memory_space=pltpu.MemorySpace.VMEM)


def _round_up(x, m):
    return (x + m - 1) // m * m


# ----------------------------------------------------------------------------
# Pallas kernels
# ----------------------------------------------------------------------------
def conv_stats_kernel(p_ref, w_ref, b_ref, y_ref, stats_ref, *,
                      m_total, tm, needs_mask):
    """Conv (im2col matmul, bf16 operands / f32 acc) + LeakyReLU(0.2) + per-
    channel sum / sum-of-squares accumulation across the M grid axis.

    p_ref:     (tm, K)  bf16 im2col patch tile
    w_ref:     (K, C)   bf16 conv weight (matmul form)
    b_ref:     (1, C)   f32 conv bias
    y_ref:     (tm, C)  f32 pre-BN activation tile (output)
    stats_ref: (2, C)   f32 [sum; sum_of_squares] accumulator (resident output)
    """
    i = pl.program_id(0)

    y = jnp.dot(p_ref[...], w_ref[...], preferred_element_type=jnp.float32)
    y = y + b_ref[...]
    y = jnp.where(y > 0, y, 0.2 * y)          # LeakyReLU(0.2)
    y_ref[...] = y

    if needs_mask:
        # Rows beyond the true M (padding to a tile multiple) must not pollute
        # the batch statistics.
        row = jax.lax.broadcasted_iota(jnp.int32, (tm, 1), 0) + i * tm
        valid = (row < m_total).astype(jnp.float32)
        ym = y * valid
    else:
        ym = y

    s = jnp.sum(ym, axis=0, keepdims=True)
    ss = jnp.sum(ym * ym, axis=0, keepdims=True)

    @pl.when(i == 0)
    def _init():
        stats_ref[...] = jnp.zeros_like(stats_ref)

    stats_ref[...] += jnp.concatenate([s, ss], axis=0)


def bn_apply_kernel(y_ref, stats_ref, gamma_ref, beta_ref, o_ref, *,
                    m_total, eps):
    """BatchNorm2d (training-mode, biased batch stats) applied per tile."""
    st = stats_ref[...]                       # (2, C)
    inv_m = 1.0 / m_total                     # static python float
    mean = st[0:1, :] * inv_m
    var = st[1:2, :] * inv_m - mean * mean    # biased variance
    inv_std = jax.lax.rsqrt(var + eps)

    y = y_ref[...]
    z = (y - mean) * inv_std * gamma_ref[...] + beta_ref[...]
    o_ref[...] = z.astype(o_ref.dtype)


def adv_head_kernel(x_ref, w_ref, b_ref, o_ref):
    """Linear(F -> 1) as a VPU row-reduce + exact Sigmoid (f32)."""
    x = x_ref[...].astype(jnp.float32)        # (N, F)
    w = w_ref[...]                            # (1, F) f32
    y = jnp.sum(x * w, axis=-1, keepdims=True) + b_ref[...]
    o_ref[...] = 1.0 / (1.0 + jnp.exp(-y))


# ----------------------------------------------------------------------------
# Wrappers (glue: padding / im2col / reshapes stay in plain JAX)
# ----------------------------------------------------------------------------
def _im2col(x, ksize=3, stride=2, pad=1):
    """x: (N, H, W, C) -> patches (N*OH*OW, ksize*ksize*C), plus (OH, OW)."""
    n, h, w, c = x.shape
    xp = jnp.pad(x, ((0, 0), (pad, pad), (pad, pad), (0, 0)))
    oh = (h + 2 * pad - ksize) // stride + 1
    ow = (w + 2 * pad - ksize) // stride + 1
    taps = []
    for kh in range(ksize):
        for kw in range(ksize):
            taps.append(xp[:, kh:kh + stride * oh:stride,
                           kw:kw + stride * ow:stride, :])
    # (N, OH, OW, 9, C): K ordering is (kh, kw, ci), matching the weight layout.
    patches = jnp.stack(taps, axis=3)
    return patches.reshape(n * oh * ow, ksize * ksize * c), oh, ow


def conv_block(x, w, b, gamma, beta, eps=0.8):
    """x: (N,H,W,Cin); w: (3,3,Cin,Cout).  Returns (N, H//2, W//2, Cout) bf16."""
    n = x.shape[0]
    cout = w.shape[-1]

    patches, oh, ow = _im2col(x.astype(jnp.bfloat16))
    m, k = patches.shape

    tm = min(_TM_TARGET, _round_up(m, 8))
    m_pad = _round_up(m, tm)
    k_pad = _round_up(k, 8)                   # only block 1 (K=27) gets padded
    if (m_pad, k_pad) != (m, k):
        patches = jnp.pad(patches, ((0, m_pad - m), (0, k_pad - k)))

    w2 = w.reshape(k, cout)
    if k_pad != k:
        w2 = jnp.pad(w2, ((0, k_pad - k), (0, 0)))
    w2 = w2.astype(jnp.bfloat16)

    num_tiles = m_pad // tm

    # Pass 1: conv + LeakyReLU tiles, accumulate per-channel sum / sumsq.
    y, stats = pl.pallas_call(
        functools.partial(conv_stats_kernel, m_total=m, tm=tm,
                          needs_mask=(m_pad != m)),
        grid=(num_tiles,),
        in_specs=[
            pl.BlockSpec((tm, k_pad), lambda i: (i, 0)),
            pl.BlockSpec((k_pad, cout), lambda i: (0, 0)),
            pl.BlockSpec((1, cout), lambda i: (0, 0)),
        ],
        out_specs=[
            pl.BlockSpec((tm, cout), lambda i: (i, 0)),
            pl.BlockSpec((2, cout), lambda i: (0, 0)),   # resident accumulator
        ],
        out_shape=[
            jax.ShapeDtypeStruct((m_pad, cout), jnp.float32),
            jax.ShapeDtypeStruct((2, cout), jnp.float32),
        ],
        compiler_params=pltpu.CompilerParams(
            dimension_semantics=("arbitrary",),
            vmem_limit_bytes=_VMEM_LIMIT),
    )(patches, w2, b.reshape(1, cout).astype(jnp.float32))

    # Pass 2: normalize tiles with the full-batch statistics.
    z = pl.pallas_call(
        functools.partial(bn_apply_kernel, m_total=m, eps=eps),
        grid=(num_tiles,),
        in_specs=[
            pl.BlockSpec((tm, cout), lambda i: (i, 0)),
            pl.BlockSpec((2, cout), lambda i: (0, 0)),
            pl.BlockSpec((1, cout), lambda i: (0, 0)),
            pl.BlockSpec((1, cout), lambda i: (0, 0)),
        ],
        out_specs=pl.BlockSpec((tm, cout), lambda i: (i, 0)),
        out_shape=jax.ShapeDtypeStruct((m_pad, cout), jnp.bfloat16),
        compiler_params=pltpu.CompilerParams(
            dimension_semantics=("parallel",),     # 2x TCs on v7x
            vmem_limit_bytes=_VMEM_LIMIT),
    )(y, stats, gamma.reshape(1, cout), beta.reshape(1, cout))

    return z[:m].reshape(n, oh, ow, cout)


def adv_head(x_flat, w_row, b):
    """x_flat: (N, F) bf16; w_row: (1, F) f32; b: (1, 1) f32."""
    n, _ = x_flat.shape
    return pl.pallas_call(
        adv_head_kernel,
        out_shape=jax.ShapeDtypeStruct((n, 1), jnp.float32),
        in_specs=[_FULL_VMEM] * 3,
        out_specs=_FULL_VMEM,
        compiler_params=pltpu.CompilerParams(vmem_limit_bytes=_VMEM_LIMIT),
    )(x_flat, w_row, b)


# ----------------------------------------------------------------------------
# Parameter init (deterministic, matches module shapes: xavier_uniform weights,
# zero biases, default BN affine params gamma=1 / beta=0).
# ----------------------------------------------------------------------------
def _xavier_uniform(key, shape, fan_in, fan_out):
    bound = (6.0 / (fan_in + fan_out)) ** 0.5
    return jax.random.uniform(key, shape, jnp.float32, -bound, bound)


def init_params(key, img_h=32, img_w=32):
    channels = [3, 32, 64, 128, 256, 512]
    params = {"blocks": []}
    for i in range(5):
        cin, cout = channels[i], channels[i + 1]
        key, wk = jax.random.split(key)
        # Conv weight stored directly in (kh, kw, Cin, Cout) layout.
        # (PyTorch checkpoints are (Cout,Cin,kh,kw): transpose if loading.)
        w = _xavier_uniform(wk, (3, 3, cin, cout), cin * 9, cout * 9)
        params["blocks"].append({
            "w": w,
            "b": jnp.zeros((cout,), jnp.float32),
            "gamma": jnp.ones((cout,), jnp.float32),
            "beta": jnp.zeros((cout,), jnp.float32),
        })
    key, wk = jax.random.split(key)
    feat = 512 * (img_h // 32) * (img_w // 32)
    # Stored in PyTorch NCHW-flatten row order; re-ordered to NHWC at use site.
    params["adv_w"] = _xavier_uniform(wk, (feat, 1), feat, 1)
    params["adv_b"] = jnp.zeros((1, 1), jnp.float32)
    return params


def discriminator_forward(params, x_nchw):
    """x_nchw: (N, 3, H, W) float32, H and W divisible by 32."""
    out = jnp.transpose(x_nchw, (0, 2, 3, 1))      # NCHW -> NHWC, once
    for blk in params["blocks"]:
        out = conv_block(out, blk["w"], blk["b"], blk["gamma"], blk["beta"])

    n, dh, dw, c = out.shape
    feat = dh * dw * c
    x_flat = out.reshape(n, feat)                  # NHWC flatten (no transpose)

    # Fold PyTorch's NCHW flatten order into the head weights (one-time (F,1)
    # permutation instead of a runtime activation transpose).
    w_pt = params["adv_w"]                                     # (feat, 1)
    w_row = jnp.transpose(w_pt.reshape(c, dh, dw, 1),
                          (1, 2, 0, 3)).reshape(1, feat)       # NHWC order

    return adv_head(x_flat, w_row, params["adv_b"])


# ----------------------------------------------------------------------------
if __name__ == "__main__":
    key = jax.random.PRNGKey(0)
    pkey, xkey = jax.random.split(key)

    params = init_params(pkey, img_h=32, img_w=32)
    # Smallest spatial size compatible with 5 stride-2 downsamplings: 32x32.
    x = jax.random.normal(xkey, (2, 3, 32, 32), jnp.float32)

    fwd = jax.jit(discriminator_forward)
    validity = fwd(params, x)
    jax.block_until_ready(validity)

    assert validity.shape == (2, 1)
    assert bool(jnp.all((validity >= 0.0) & (validity <= 1.0)))
    print("KERNEL_OK")
</pallas_src>

<mosaic_0001>
module attributes {stable_mosaic.version = 11 : i64} {
  func.func @bn_apply_kernel(%arg0: i32, %arg1: memref<512x32xf32, #tpu.memory_space<vmem>>, %arg2: memref<2x32xf32, #tpu.memory_space<vmem>>, %arg3: memref<1x32xf32, #tpu.memory_space<vmem>>, %arg4: memref<1x32xf32, #tpu.memory_space<vmem>>, %arg5: memref<512x32xbf16, #tpu.memory_space<vmem>>) attributes {dimension_semantics = [#tpu.dimension_semantics<parallel>], iteration_bounds = array<i64: 1>, scalar_prefetch = 0 : i64, scratch_operands = 0 : i64, tpu.core_type = #tpu.core_type<tc>, window_params = [{transform_indices = @transform_0, window_bounds = array<i64: 512, 32>}, {pipeline_mode = #tpu.pipeline_mode<synchronous>, transform_indices = @transform_1, window_bounds = array<i64: 2, 32>}, {pipeline_mode = #tpu.pipeline_mode<synchronous>, transform_indices = @transform_2, window_bounds = array<i64: 1, 32>}, {pipeline_mode = #tpu.pipeline_mode<synchronous>, transform_indices = @transform_3, window_bounds = array<i64: 1, 32>}, {transform_indices = @transform_4, window_bounds = array<i64: 512, 32>}]} {
    %c0 = arith.constant 0 : index
    %c0_0 = arith.constant 0 : index
    %0 = vector.load %arg2[%c0, %c0_0] : memref<2x32xf32, #tpu.memory_space<vmem>>, vector<2x32xf32>
    %1 = vector.extract_strided_slice %0 {offsets = [0, 0], sizes = [1, 32], strides = [1, 1]} : vector<2x32xf32> to vector<1x32xf32>
    %cst = arith.constant 0.001953125 : f32
    %2 = vector.broadcast %cst : f32 to vector<1x32xf32>
    %3 = arith.mulf %1, %2 : vector<1x32xf32>
    %4 = vector.extract_strided_slice %0 {offsets = [1, 0], sizes = [1, 32], strides = [1, 1]} : vector<2x32xf32> to vector<1x32xf32>
    %cst_1 = arith.constant 0.001953125 : f32
    %5 = vector.broadcast %cst_1 : f32 to vector<1x32xf32>
    %6 = arith.mulf %4, %5 : vector<1x32xf32>
    %7 = arith.mulf %3, %3 : vector<1x32xf32>
    %8 = arith.subf %6, %7 : vector<1x32xf32>
    %cst_2 = arith.constant 8.000000e-01 : f32
    %9 = vector.broadcast %cst_2 : f32 to vector<1x32xf32>
    %10 = arith.addf %8, %9 : vector<1x32xf32>
    %11 = math.rsqrt %10 : vector<1x32xf32>
    %c0_3 = arith.constant 0 : index
    %c0_4 = arith.constant 0 : index
    %12 = vector.load %arg1[%c0_3, %c0_4] : memref<512x32xf32, #tpu.memory_space<vmem>>, vector<512x32xf32>
    %13 = vector.broadcast %3 : vector<1x32xf32> to vector<512x32xf32>
    %14 = arith.subf %12, %13 : vector<512x32xf32>
    %15 = vector.broadcast %11 : vector<1x32xf32> to vector<512x32xf32>
    %16 = arith.mulf %14, %15 : vector<512x32xf32>
    %c0_5 = arith.constant 0 : index
    %c0_6 = arith.constant 0 : index
    %17 = vector.load %arg3[%c0_5, %c0_6] : memref<1x32xf32, #tpu.memory_space<vmem>>, vector<1x32xf32>
    %18 = vector.broadcast %17 : vector<1x32xf32> to vector<512x32xf32>
    %19 = arith.mulf %16, %18 : vector<512x32xf32>
    %c0_7 = arith.constant 0 : index
    %c0_8 = arith.constant 0 : index
    %20 = vector.load %arg4[%c0_7, %c0_8] : memref<1x32xf32, #tpu.memory_space<vmem>>, vector<1x32xf32>
    %21 = vector.broadcast %20 : vector<1x32xf32> to vector<512x32xf32>
    %22 = arith.addf %19, %21 : vector<512x32xf32>
    %23 = arith.truncf %22 : vector<512x32xf32> to vector<512x32xbf16>
    %c0_9 = arith.constant 0 : index
    %c0_10 = arith.constant 0 : index
    %24 = vector.load %arg5[%c0_9, %c0_10] : memref<512x32xbf16, #tpu.memory_space<vmem>>, vector<512x32xbf16>
    tpu.vector_store %arg5[%c0_9, %c0_10], %23 {strides = array<i32>} : memref<512x32xbf16, #tpu.memory_space<vmem>>, vector<512x32xbf16>,
    return
  }
  func.func @transform_0(%arg0: i32) -> (i32, i32) {
    %c0_i32 = arith.constant 0 : i32
    %c0_i32_0 = arith.constant 0 : i32
    return %arg0, %c0_i32 : i32, i32
  }
  func.func @transform_1(%arg0: i32) -> (i32, i32) {
    %c0_i32 = arith.constant 0 : i32
    %c0_i32_0 = arith.constant 0 : i32
    %c0_i32_1 = arith.constant 0 : i32
    return %c0_i32, %c0_i32_0 : i32, i32
  }
  func.func @transform_2(%arg0: i32) -> (i32, i32) {
    %c0_i32 = arith.constant 0 : i32
    %c0_i32_0 = arith.constant 0 : i32
    %c0_i32_1 = arith.constant 0 : i32
    return %c0_i32, %c0_i32_0 : i32, i32
  }
  func.func @transform_3(%arg0: i32) -> (i32, i32) {
    %c0_i32 = arith.constant 0 : i32
    %c0_i32_0 = arith.constant 0 : i32
    %c0_i32_1 = arith.constant 0 : i32
    return %c0_i32, %c0_i32_0 : i32, i32
  }
  func.func @transform_4(%arg0: i32) -> (i32, i32) {
    %c0_i32 = arith.constant 0 : i32
    %c0_i32_0 = arith.constant 0 : i32
    return %arg0, %c0_i32 : i32, i32
  }
}

module attributes {stable_mosaic.version = 11 : i64} {
  func.func @conv_stats_kernel(%arg0: i32, %arg1: memref<512x32xbf16, #tpu.memory_space<vmem>>, %arg2: memref<32x32xbf16, #tpu.memory_space<vmem>>, %arg3: memref<1x32xf32, #tpu.memory_space<vmem>>, %arg4: memref<512x32xf32, #tpu.memory_space<vmem>>, %arg5: memref<2x32xf32, #tpu.memory_space<vmem>>) attributes {dimension_semantics = [#tpu.dimension_semantics<arbitrary>], iteration_bounds = array<i64: 1>, scalar_prefetch = 0 : i64, scratch_operands = 0 : i64, tpu.core_type = #tpu.core_type<tc>, window_params = [{transform_indices = @transform_0, window_bounds = array<i64: 512, 32>}, {pipeline_mode = #tpu.pipeline_mode<synchronous>, transform_indices = @transform_1, window_bounds = array<i64: 32, 32>}, {pipeline_mode = #tpu.pipeline_mode<synchronous>, transform_indices = @transform_2, window_bounds = array<i64: 1, 32>}, {transform_indices = @transform_3, window_bounds = array<i64: 512, 32>}, {pipeline_mode = #tpu.pipeline_mode<synchronous>, transform_indices = @transform_4, window_bounds = array<i64: 2, 32>}]} {
    %c0 = arith.constant 0 : index
    %c0_0 = arith.constant 0 : index
    %0 = vector.load %arg1[%c0, %c0_0] : memref<512x32xbf16, #tpu.memory_space<vmem>>, vector<512x32xbf16>
    %c0_1 = arith.constant 0 : index
    %c0_2 = arith.constant 0 : index
    %1 = vector.load %arg2[%c0_1, %c0_2] : memref<32x32xbf16, #tpu.memory_space<vmem>>, vector<32x32xbf16>
    %cst = arith.constant dense<0.000000e+00> : vector<512x32xf32>
    %2 = tpu.matmul %0, %1, %cst {dimension_numbers = #tpu.dot_dimension_numbers<[1], [0], [0], [1], [0, 0, 1, 1], [], []>} : vector<512x32xbf16>, vector<32x32xbf16>, vector<512x32xf32> -> vector<512x32xf32>
    %c0_3 = arith.constant 0 : index
    %c0_4 = arith.constant 0 : index
    %3 = vector.load %arg3[%c0_3, %c0_4] : memref<1x32xf32, #tpu.memory_space<vmem>>, vector<1x32xf32>
    %4 = vector.broadcast %3 : vector<1x32xf32> to vector<512x32xf32>
    %5 = arith.addf %2, %4 : vector<512x32xf32>
    %cst_5 = arith.constant 0.000000e+00 : f32
    %6 = vector.broadcast %cst_5 : f32 to vector<512x32xf32>
    %7 = arith.cmpf ogt, %5, %6 : vector<512x32xf32>
    %cst_6 = arith.constant 2.000000e-01 : f32
    %8 = vector.broadcast %cst_6 : f32 to vector<512x32xf32>
    %9 = arith.mulf %8, %5 : vector<512x32xf32>
    %10 = arith.select %7, %5, %9 : vector<512x32xi1>, vector<512x32xf32>
    %c0_7 = arith.constant 0 : index
    %c0_8 = arith.constant 0 : index
    %11 = vector.load %arg4[%c0_7, %c0_8] : memref<512x32xf32, #tpu.memory_space<vmem>>, vector<512x32xf32>
    tpu.vector_store %arg4[%c0_7, %c0_8], %10 {strides = array<i32>} : memref<512x32xf32, #tpu.memory_space<vmem>>, vector<512x32xf32>,
    %cst_9 = arith.constant dense<0.000000e+00> : vector<32xf32>
    %12 = vector.multi_reduction <add>, %10, %cst_9 [0] : vector<512x32xf32> to vector<32xf32>
    %13 = vector.shape_cast %12 : vector<32xf32> to vector<1x32xf32>
    %14 = arith.mulf %10, %10 : vector<512x32xf32>
    %cst_10 = arith.constant dense<0.000000e+00> : vector<32xf32>
    %15 = vector.multi_reduction <add>, %14, %cst_10 [0] : vector<512x32xf32> to vector<32xf32>
    %16 = vector.shape_cast %15 : vector<32xf32> to vector<1x32xf32>
    %c0_i32 = arith.constant 0 : i32
    %17 = arith.cmpi eq, %arg0, %c0_i32 : i32
    %18 = arith.extui %17 : i1 to i32
    %c0_i32_11 = arith.constant 0 : i32
    %19 = arith.cmpi ne, %18, %c0_i32_11 : i32
    scf.if %19 {
      %cst_16 = arith.constant 0.000000e+00 : f32
      %24 = vector.broadcast %cst_16 : f32 to vector<2x32xf32>
      %c0_17 = arith.constant 0 : index
      %c0_18 = arith.constant 0 : index
      %25 = vector.load %arg5[%c0_17, %c0_18] : memref<2x32xf32, #tpu.memory_space<vmem>>, vector<2x32xf32>
      tpu.vector_store %arg5[%c0_17, %c0_18], %24 {strides = array<i32>} : memref<2x32xf32, #tpu.memory_space<vmem>>, vector<2x32xf32>,
    } else {
    }
    %c0_12 = arith.constant 0 : index
    %c0_13 = arith.constant 0 : index
    %20 = vector.load %arg5[%c0_12, %c0_13] : memref<2x32xf32, #tpu.memory_space<vmem>>, vector<2x32xf32>
    %21 = tpu.concatenate %13, %16 in 0 : vector<1x32xf32>, vector<1x32xf32> -> vector<2x32xf32>
    %22 = arith.addf %20, %21 : vector<2x32xf32>
    %c0_14 = arith.constant 0 : index
    %c0_15 = arith.constant 0 : index
    %23 = vector.load %arg5[%c0_14, %c0_15] : memref<2x32xf32, #tpu.memory_space<vmem>>, vector<2x32xf32>
    tpu.vector_store %arg5[%c0_14, %c0_15], %22 {strides = array<i32>} : memref<2x32xf32, #tpu.memory_space<vmem>>, vector<2x32xf32>,
    return
  }
  func.func @transform_0(%arg0: i32) -> (i32, i32) {
    %c0_i32 = arith.constant 0 : i32
    %c0_i32_0 = arith.constant 0 : i32
    return %arg0, %c0_i32 : i32, i32
  }
  func.func @transform_1(%arg0: i32) -> (i32, i32) {
    %c0_i32 = arith.constant 0 : i32
    %c0_i32_0 = arith.constant 0 : i32
    %c0_i32_1 = arith.constant 0 : i32
    return %c0_i32, %c0_i32_0 : i32, i32
  }
  func.func @transform_2(%arg0: i32) -> (i32, i32) {
    %c0_i32 = arith.constant 0 : i32
    %c0_i32_0 = arith.constant 0 : i32
    %c0_i32_1 = arith.constant 0 : i32
    return %c0_i32, %c0_i32_0 : i32, i32
  }
  func.func @transform_3(%arg0: i32) -> (i32, i32) {
    %c0_i32 = arith.constant 0 : i32
    %c0_i32_0 = arith.constant 0 : i32
    return %arg0, %c0_i32 : i32, i32
  }
  func.func @transform_4(%arg0: i32) -> (i32, i32) {
    %c0_i32 = arith.constant 0 : i32
    %c0_i32_0 = arith.constant 0 : i32
    %c0_i32_1 = arith.constant 0 : i32
    return %c0_i32, %c0_i32_0 : i32, i32
  }
}

module attributes {stable_mosaic.version = 11 : i64} {
  func.func @bn_apply_kernel(%arg0: i32, %arg1: memref<128x64xf32, #tpu.memory_space<vmem>>, %arg2: memref<2x64xf32, #tpu.memory_space<vmem>>, %arg3: memref<1x64xf32, #tpu.memory_space<vmem>>, %arg4: memref<1x64xf32, #tpu.memory_space<vmem>>, %arg5: memref<128x64xbf16, #tpu.memory_space<vmem>>) attributes {dimension_semantics = [#tpu.dimension_semantics<parallel>], iteration_bounds = array<i64: 1>, scalar_prefetch = 0 : i64, scratch_operands = 0 : i64, tpu.core_type = #tpu.core_type<tc>, window_params = [{transform_indices = @transform_0, window_bounds = array<i64: 128, 64>}, {pipeline_mode = #tpu.pipeline_mode<synchronous>, transform_indices = @transform_1, window_bounds = array<i64: 2, 64>}, {pipeline_mode = #tpu.pipeline_mode<synchronous>, transform_indices = @transform_2, window_bounds = array<i64: 1, 64>}, {pipeline_mode = #tpu.pipeline_mode<synchronous>, transform_indices = @transform_3, window_bounds = array<i64: 1, 64>}, {transform_indices = @transform_4, window_bounds = array<i64: 128, 64>}]} {
    %c0 = arith.constant 0 : index
    %c0_0 = arith.constant 0 : index
    %0 = vector.load %arg2[%c0, %c0_0] : memref<2x64xf32, #tpu.memory_space<vmem>>, vector<2x64xf32>
    %1 = vector.extract_strided_slice %0 {offsets = [0, 0], sizes = [1, 64], strides = [1, 1]} : vector<2x64xf32> to vector<1x64xf32>
    %cst = arith.constant 7.812500e-03 : f32
    %2 = vector.broadcast %cst : f32 to vector<1x64xf32>
    %3 = arith.mulf %1, %2 : vector<1x64xf32>
    %4 = vector.extract_strided_slice %0 {offsets = [1, 0], sizes = [1, 64], strides = [1, 1]} : vector<2x64xf32> to vector<1x64xf32>
    %cst_1 = arith.constant 7.812500e-03 : f32
    %5 = vector.broadcast %cst_1 : f32 to vector<1x64xf32>
    %6 = arith.mulf %4, %5 : vector<1x64xf32>
    %7 = arith.mulf %3, %3 : vector<1x64xf32>
    %8 = arith.subf %6, %7 : vector<1x64xf32>
    %cst_2 = arith.constant 8.000000e-01 : f32
    %9 = vector.broadcast %cst_2 : f32 to vector<1x64xf32>
    %10 = arith.addf %8, %9 : vector<1x64xf32>
    %11 = math.rsqrt %10 : vector<1x64xf32>
    %c0_3 = arith.constant 0 : index
    %c0_4 = arith.constant 0 : index
    %12 = vector.load %arg1[%c0_3, %c0_4] : memref<128x64xf32, #tpu.memory_space<vmem>>, vector<128x64xf32>
    %13 = vector.broadcast %3 : vector<1x64xf32> to vector<128x64xf32>
    %14 = arith.subf %12, %13 : vector<128x64xf32>
    %15 = vector.broadcast %11 : vector<1x64xf32> to vector<128x64xf32>
    %16 = arith.mulf %14, %15 : vector<128x64xf32>
    %c0_5 = arith.constant 0 : index
    %c0_6 = arith.constant 0 : index
    %17 = vector.load %arg3[%c0_5, %c0_6] : memref<1x64xf32, #tpu.memory_space<vmem>>, vector<1x64xf32>
    %18 = vector.broadcast %17 : vector<1x64xf32> to vector<128x64xf32>
    %19 = arith.mulf %16, %18 : vector<128x64xf32>
    %c0_7 = arith.constant 0 : index
    %c0_8 = arith.constant 0 : index
    %20 = vector.load %arg4[%c0_7, %c0_8] : memref<1x64xf32, #tpu.memory_space<vmem>>, vector<1x64xf32>
    %21 = vector.broadcast %20 : vector<1x64xf32> to vector<128x64xf32>
    %22 = arith.addf %19, %21 : vector<128x64xf32>
    %23 = arith.truncf %22 : vector<128x64xf32> to vector<128x64xbf16>
    %c0_9 = arith.constant 0 : index
    %c0_10 = arith.constant 0 : index
    %24 = vector.load %arg5[%c0_9, %c0_10] : memref<128x64xbf16, #tpu.memory_space<vmem>>, vector<128x64xbf16>
    tpu.vector_store %arg5[%c0_9, %c0_10], %23 {strides = array<i32>} : memref<128x64xbf16, #tpu.memory_space<vmem>>, vector<128x64xbf16>,
    return
  }
  func.func @transform_0(%arg0: i32) -> (i32, i32) {
    %c0_i32 = arith.constant 0 : i32
    %c0_i32_0 = arith.constant 0 : i32
    return %arg0, %c0_i32 : i32, i32
  }
  func.func @transform_1(%arg0: i32) -> (i32, i32) {
    %c0_i32 = arith.constant 0 : i32
    %c0_i32_0 = arith.constant 0 : i32
    %c0_i32_1 = arith.constant 0 : i32
    return %c0_i32, %c0_i32_0 : i32, i32
  }
  func.func @transform_2(%arg0: i32) -> (i32, i32) {
    %c0_i32 = arith.constant 0 : i32
    %c0_i32_0 = arith.constant 0 : i32
    %c0_i32_1 = arith.constant 0 : i32
    return %c0_i32, %c0_i32_0 : i32, i32
  }
  func.func @transform_3(%arg0: i32) -> (i32, i32) {
    %c0_i32 = arith.constant 0 : i32
    %c0_i32_0 = arith.constant 0 : i32
    %c0_i32_1 = arith.constant 0 : i32
    return %c0_i32, %c0_i32_0 : i32, i32
  }
  func.func @transform_4(%arg0: i32) -> (i32, i32) {
    %c0_i32 = arith.constant 0 : i32
    %c0_i32_0 = arith.constant 0 : i32
    return %arg0, %c0_i32 : i32, i32
  }
}

module attributes {stable_mosaic.version = 11 : i64} {
  func.func @conv_stats_kernel(%arg0: i32, %arg1: memref<128x288xbf16, #tpu.memory_space<vmem>>, %arg2: memref<288x64xbf16, #tpu.memory_space<vmem>>, %arg3: memref<1x64xf32, #tpu.memory_space<vmem>>, %arg4: memref<128x64xf32, #tpu.memory_space<vmem>>, %arg5: memref<2x64xf32, #tpu.memory_space<vmem>>) attributes {dimension_semantics = [#tpu.dimension_semantics<arbitrary>], iteration_bounds = array<i64: 1>, scalar_prefetch = 0 : i64, scratch_operands = 0 : i64, tpu.core_type = #tpu.core_type<tc>, window_params = [{transform_indices = @transform_0, window_bounds = array<i64: 128, 288>}, {pipeline_mode = #tpu.pipeline_mode<synchronous>, transform_indices = @transform_1, window_bounds = array<i64: 288, 64>}, {pipeline_mode = #tpu.pipeline_mode<synchronous>, transform_indices = @transform_2, window_bounds = array<i64: 1, 64>}, {transform_indices = @transform_3, window_bounds = array<i64: 128, 64>}, {pipeline_mode = #tpu.pipeline_mode<synchronous>, transform_indices = @transform_4, window_bounds = array<i64: 2, 64>}]} {
    %c0 = arith.constant 0 : index
    %c0_0 = arith.constant 0 : index
    %0 = vector.load %arg1[%c0, %c0_0] : memref<128x288xbf16, #tpu.memory_space<vmem>>, vector<128x288xbf16>
    %c0_1 = arith.constant 0 : index
    %c0_2 = arith.constant 0 : index
    %1 = vector.load %arg2[%c0_1, %c0_2] : memref<288x64xbf16, #tpu.memory_space<vmem>>, vector<288x64xbf16>
    %cst = arith.constant dense<0.000000e+00> : vector<128x64xf32>
    %2 = tpu.matmul %0, %1, %cst {dimension_numbers = #tpu.dot_dimension_numbers<[1], [0], [0], [1], [0, 0, 1, 1], [], []>} : vector<128x288xbf16>, vector<288x64xbf16>, vector<128x64xf32> -> vector<128x64xf32>
    %c0_3 = arith.constant 0 : index
    %c0_4 = arith.constant 0 : index
    %3 = vector.load %arg3[%c0_3, %c0_4] : memref<1x64xf32, #tpu.memory_space<vmem>>, vector<1x64xf32>
    %4 = vector.broadcast %3 : vector<1x64xf32> to vector<128x64xf32>
    %5 = arith.addf %2, %4 : vector<128x64xf32>
    %cst_5 = arith.constant 0.000000e+00 : f32
    %6 = vector.broadcast %cst_5 : f32 to vector<128x64xf32>
    %7 = arith.cmpf ogt, %5, %6 : vector<128x64xf32>
    %cst_6 = arith.constant 2.000000e-01 : f32
    %8 = vector.broadcast %cst_6 : f32 to vector<128x64xf32>
    %9 = arith.mulf %8, %5 : vector<128x64xf32>
    %10 = arith.select %7, %5, %9 : vector<128x64xi1>, vector<128x64xf32>
    %c0_7 = arith.constant 0 : index
    %c0_8 = arith.constant 0 : index
    %11 = vector.load %arg4[%c0_7, %c0_8] : memref<128x64xf32, #tpu.memory_space<vmem>>, vector<128x64xf32>
    tpu.vector_store %arg4[%c0_7, %c0_8], %10 {strides = array<i32>} : memref<128x64xf32, #tpu.memory_space<vmem>>, vector<128x64xf32>,
    %cst_9 = arith.constant dense<0.000000e+00> : vector<64xf32>
    %12 = vector.multi_reduction <add>, %10, %cst_9 [0] : vector<128x64xf32> to vector<64xf32>
    %13 = vector.shape_cast %12 : vector<64xf32> to vector<1x64xf32>
    %14 = arith.mulf %10, %10 : vector<128x64xf32>
    %cst_10 = arith.constant dense<0.000000e+00> : vector<64xf32>
    %15 = vector.multi_reduction <add>, %14, %cst_10 [0] : vector<128x64xf32> to vector<64xf32>
    %16 = vector.shape_cast %15 : vector<64xf32> to vector<1x64xf32>
    %c0_i32 = arith.constant 0 : i32
    %17 = arith.cmpi eq, %arg0, %c0_i32 : i32
    %18 = arith.extui %17 : i1 to i32
    %c0_i32_11 = arith.constant 0 : i32
    %19 = arith.cmpi ne, %18, %c0_i32_11 : i32
    scf.if %19 {
      %cst_16 = arith.constant 0.000000e+00 : f32
      %24 = vector.broadcast %cst_16 : f32 to vector<2x64xf32>
      %c0_17 = arith.constant 0 : index
      %c0_18 = arith.constant 0 : index
      %25 = vector.load %arg5[%c0_17, %c0_18] : memref<2x64xf32, #tpu.memory_space<vmem>>, vector<2x64xf32>
      tpu.vector_store %arg5[%c0_17, %c0_18], %24 {strides = array<i32>} : memref<2x64xf32, #tpu.memory_space<vmem>>, vector<2x64xf32>,
    } else {
    }
    %c0_12 = arith.constant 0 : index
    %c0_13 = arith.constant 0 : index
    %20 = vector.load %arg5[%c0_12, %c0_13] : memref<2x64xf32, #tpu.memory_space<vmem>>, vector<2x64xf32>
    %21 = tpu.concatenate %13, %16 in 0 : vector<1x64xf32>, vector<1x64xf32> -> vector<2x64xf32>
    %22 = arith.addf %20, %21 : vector<2x64xf32>
    %c0_14 = arith.constant 0 : index
    %c0_15 = arith.constant 0 : index
    %23 = vector.load %arg5[%c0_14, %c0_15] : memref<2x64xf32, #tpu.memory_space<vmem>>, vector<2x64xf32>
    tpu.vector_store %arg5[%c0_14, %c0_15], %22 {strides = array<i32>} : memref<2x64xf32, #tpu.memory_space<vmem>>, vector<2x64xf32>,
    return
  }
  func.func @transform_0(%arg0: i32) -> (i32, i32) {
    %c0_i32 = arith.constant 0 : i32
    %c0_i32_0 = arith.constant 0 : i32
    return %arg0, %c0_i32 : i32, i32
  }
  func.func @transform_1(%arg0: i32) -> (i32, i32) {
    %c0_i32 = arith.constant 0 : i32
    %c0_i32_0 = arith.constant 0 : i32
    %c0_i32_1 = arith.constant 0 : i32
    return %c0_i32, %c0_i32_0 : i32, i32
  }
  func.func @transform_2(%arg0: i32) -> (i32, i32) {
    %c0_i32 = arith.constant 0 : i32
    %c0_i32_0 = arith.constant 0 : i32
    %c0_i32_1 = arith.constant 0 : i32
    return %c0_i32, %c0_i32_0 : i32, i32
  }
  func.func @transform_3(%arg0: i32) -> (i32, i32) {
    %c0_i32 = arith.constant 0 : i32
    %c0_i32_0 = arith.constant 0 : i32
    return %arg0, %c0_i32 : i32, i32
  }
  func.func @transform_4(%arg0: i32) -> (i32, i32) {
    %c0_i32 = arith.constant 0 : i32
    %c0_i32_0 = arith.constant 0 : i32
    %c0_i32_1 = arith.constant 0 : i32
    return %c0_i32, %c0_i32_0 : i32, i32
  }
}

module attributes {stable_mosaic.version = 11 : i64} {
  func.func @conv_stats_kernel(%arg0: i32, %arg1: memref<32x576xbf16, #tpu.memory_space<vmem>>, %arg2: memref<576x128xbf16, #tpu.memory_space<vmem>>, %arg3: memref<1x128xf32, #tpu.memory_space<vmem>>, %arg4: memref<32x128xf32, #tpu.memory_space<vmem>>, %arg5: memref<2x128xf32, #tpu.memory_space<vmem>>) attributes {dimension_semantics = [#tpu.dimension_semantics<arbitrary>], iteration_bounds = array<i64: 1>, scalar_prefetch = 0 : i64, scratch_operands = 0 : i64, tpu.core_type = #tpu.core_type<tc>, window_params = [{transform_indices = @transform_0, window_bounds = array<i64: 32, 576>}, {pipeline_mode = #tpu.pipeline_mode<synchronous>, transform_indices = @transform_1, window_bounds = array<i64: 576, 128>}, {pipeline_mode = #tpu.pipeline_mode<synchronous>, transform_indices = @transform_2, window_bounds = array<i64: 1, 128>}, {transform_indices = @transform_3, window_bounds = array<i64: 32, 128>}, {pipeline_mode = #tpu.pipeline_mode<synchronous>, transform_indices = @transform_4, window_bounds = array<i64: 2, 128>}]} {
    %c0 = arith.constant 0 : index
    %c0_0 = arith.constant 0 : index
    %0 = vector.load %arg1[%c0, %c0_0] : memref<32x576xbf16, #tpu.memory_space<vmem>>, vector<32x576xbf16>
    %c0_1 = arith.constant 0 : index
    %c0_2 = arith.constant 0 : index
    %1 = vector.load %arg2[%c0_1, %c0_2] : memref<576x128xbf16, #tpu.memory_space<vmem>>, vector<576x128xbf16>
    %cst = arith.constant dense<0.000000e+00> : vector<32x128xf32>
    %2 = tpu.matmul %0, %1, %cst {dimension_numbers = #tpu.dot_dimension_numbers<[1], [0], [0], [1], [0, 0, 1, 1], [], []>} : vector<32x576xbf16>, vector<576x128xbf16>, vector<32x128xf32> -> vector<32x128xf32>
    %c0_3 = arith.constant 0 : index
    %c0_4 = arith.constant 0 : index
    %3 = vector.load %arg3[%c0_3, %c0_4] : memref<1x128xf32, #tpu.memory_space<vmem>>, vector<1x128xf32>
    %4 = vector.broadcast %3 : vector<1x128xf32> to vector<32x128xf32>
    %5 = arith.addf %2, %4 : vector<32x128xf32>
    %cst_5 = arith.constant 0.000000e+00 : f32
    %6 = vector.broadcast %cst_5 : f32 to vector<32x128xf32>
    %7 = arith.cmpf ogt, %5, %6 : vector<32x128xf32>
    %cst_6 = arith.constant 2.000000e-01 : f32
    %8 = vector.broadcast %cst_6 : f32 to vector<32x128xf32>
    %9 = arith.mulf %8, %5 : vector<32x128xf32>
    %10 = arith.select %7, %5, %9 : vector<32x128xi1>, vector<32x128xf32>
    %c0_7 = arith.constant 0 : index
    %c0_8 = arith.constant 0 : index
    %11 = vector.load %arg4[%c0_7, %c0_8] : memref<32x128xf32, #tpu.memory_space<vmem>>, vector<32x128xf32>
    tpu.vector_store %arg4[%c0_7, %c0_8], %10 {strides = array<i32>} : memref<32x128xf32, #tpu.memory_space<vmem>>, vector<32x128xf32>,
    %cst_9 = arith.constant dense<0.000000e+00> : vector<128xf32>
    %12 = vector.multi_reduction <add>, %10, %cst_9 [0] : vector<32x128xf32> to vector<128xf32>
    %13 = vector.shape_cast %12 : vector<128xf32> to vector<1x128xf32>
    %14 = arith.mulf %10, %10 : vector<32x128xf32>
    %cst_10 = arith.constant dense<0.000000e+00> : vector<128xf32>
    %15 = vector.multi_reduction <add>, %14, %cst_10 [0] : vector<32x128xf32> to vector<128xf32>
    %16 = vector.shape_cast %15 : vector<128xf32> to vector<1x128xf32>
    %c0_i32 = arith.constant 0 : i32
    %17 = arith.cmpi eq, %arg0, %c0_i32 : i32
    %18 = arith.extui %17 : i1 to i32
    %c0_i32_11 = arith.constant 0 : i32
    %19 = arith.cmpi ne, %18, %c0_i32_11 : i32
    scf.if %19 {
      %cst_16 = arith.constant 0.000000e+00 : f32
      %24 = vector.broadcast %cst_16 : f32 to vector<2x128xf32>
      %c0_17 = arith.constant 0 : index
      %c0_18 = arith.constant 0 : index
      %25 = vector.load %arg5[%c0_17, %c0_18] : memref<2x128xf32, #tpu.memory_space<vmem>>, vector<2x128xf32>
      tpu.vector_store %arg5[%c0_17, %c0_18], %24 {strides = array<i32>} : memref<2x128xf32, #tpu.memory_space<vmem>>, vector<2x128xf32>,
    } else {
    }
    %c0_12 = arith.constant 0 : index
    %c0_13 = arith.constant 0 : index
    %20 = vector.load %arg5[%c0_12, %c0_13] : memref<2x128xf32, #tpu.memory_space<vmem>>, vector<2x128xf32>
    %21 = tpu.concatenate %13, %16 in 0 : vector<1x128xf32>, vector<1x128xf32> -> vector<2x128xf32>
    %22 = arith.addf %20, %21 : vector<2x128xf32>
    %c0_14 = arith.constant 0 : index
    %c0_15 = arith.constant 0 : index
    %23 = vector.load %arg5[%c0_14, %c0_15] : memref<2x128xf32, #tpu.memory_space<vmem>>, vector<2x128xf32>
    tpu.vector_store %arg5[%c0_14, %c0_15], %22 {strides = array<i32>} : memref<2x128xf32, #tpu.memory_space<vmem>>, vector<2x128xf32>,
    return
  }
  func.func @transform_0(%arg0: i32) -> (i32, i32) {
    %c0_i32 = arith.constant 0 : i32
    %c0_i32_0 = arith.constant 0 : i32
    return %arg0, %c0_i32 : i32, i32
  }
  func.func @transform_1(%arg0: i32) -> (i32, i32) {
    %c0_i32 = arith.constant 0 : i32
    %c0_i32_0 = arith.constant 0 : i32
    %c0_i32_1 = arith.constant 0 : i32
    return %c0_i32, %c0_i32_0 : i32, i32
  }
  func.func @transform_2(%arg0: i32) -> (i32, i32) {
    %c0_i32 = arith.constant 0 : i32
    %c0_i32_0 = arith.constant 0 : i32
    %c0_i32_1 = arith.constant 0 : i32
    return %c0_i32, %c0_i32_0 : i32, i32
  }
  func.func @transform_3(%arg0: i32) -> (i32, i32) {
    %c0_i32 = arith.constant 0 : i32
    %c0_i32_0 = arith.constant 0 : i32
    return %arg0, %c0_i32 : i32, i32
  }
  func.func @transform_4(%arg0: i32) -> (i32, i32) {
    %c0_i32 = arith.constant 0 : i32
    %c0_i32_0 = arith.constant 0 : i32
    %c0_i32_1 = arith.constant 0 : i32
    return %c0_i32, %c0_i32_0 : i32, i32
  }
}

module attributes {stable_mosaic.version = 11 : i64} {
  func.func @bn_apply_kernel(%arg0: i32, %arg1: memref<32x128xf32, #tpu.memory_space<vmem>>, %arg2: memref<2x128xf32, #tpu.memory_space<vmem>>, %arg3: memref<1x128xf32, #tpu.memory_space<vmem>>, %arg4: memref<1x128xf32, #tpu.memory_space<vmem>>, %arg5: memref<32x128xbf16, #tpu.memory_space<vmem>>) attributes {dimension_semantics = [#tpu.dimension_semantics<parallel>], iteration_bounds = array<i64: 1>, scalar_prefetch = 0 : i64, scratch_operands = 0 : i64, tpu.core_type = #tpu.core_type<tc>, window_params = [{transform_indices = @transform_0, window_bounds = array<i64: 32, 128>}, {pipeline_mode = #tpu.pipeline_mode<synchronous>, transform_indices = @transform_1, window_bounds = array<i64: 2, 128>}, {pipeline_mode = #tpu.pipeline_mode<synchronous>, transform_indices = @transform_2, window_bounds = array<i64: 1, 128>}, {pipeline_mode = #tpu.pipeline_mode<synchronous>, transform_indices = @transform_3, window_bounds = array<i64: 1, 128>}, {transform_indices = @transform_4, window_bounds = array<i64: 32, 128>}]} {
    %c0 = arith.constant 0 : index
    %c0_0 = arith.constant 0 : index
    %0 = vector.load %arg2[%c0, %c0_0] : memref<2x128xf32, #tpu.memory_space<vmem>>, vector<2x128xf32>
    %1 = vector.extract_strided_slice %0 {offsets = [0, 0], sizes = [1, 128], strides = [1, 1]} : vector<2x128xf32> to vector<1x128xf32>
    %cst = arith.constant 3.125000e-02 : f32
    %2 = vector.broadcast %cst : f32 to vector<1x128xf32>
    %3 = arith.mulf %1, %2 : vector<1x128xf32>
    %4 = vector.extract_strided_slice %0 {offsets = [1, 0], sizes = [1, 128], strides = [1, 1]} : vector<2x128xf32> to vector<1x128xf32>
    %cst_1 = arith.constant 3.125000e-02 : f32
    %5 = vector.broadcast %cst_1 : f32 to vector<1x128xf32>
    %6 = arith.mulf %4, %5 : vector<1x128xf32>
    %7 = arith.mulf %3, %3 : vector<1x128xf32>
    %8 = arith.subf %6, %7 : vector<1x128xf32>
    %cst_2 = arith.constant 8.000000e-01 : f32
    %9 = vector.broadcast %cst_2 : f32 to vector<1x128xf32>
    %10 = arith.addf %8, %9 : vector<1x128xf32>
    %11 = math.rsqrt %10 : vector<1x128xf32>
    %c0_3 = arith.constant 0 : index
    %c0_4 = arith.constant 0 : index
    %12 = vector.load %arg1[%c0_3, %c0_4] : memref<32x128xf32, #tpu.memory_space<vmem>>, vector<32x128xf32>
    %13 = vector.broadcast %3 : vector<1x128xf32> to vector<32x128xf32>
    %14 = arith.subf %12, %13 : vector<32x128xf32>
    %15 = vector.broadcast %11 : vector<1x128xf32> to vector<32x128xf32>
    %16 = arith.mulf %14, %15 : vector<32x128xf32>
    %c0_5 = arith.constant 0 : index
    %c0_6 = arith.constant 0 : index
    %17 = vector.load %arg3[%c0_5, %c0_6] : memref<1x128xf32, #tpu.memory_space<vmem>>, vector<1x128xf32>
    %18 = vector.broadcast %17 : vector<1x128xf32> to vector<32x128xf32>
    %19 = arith.mulf %16, %18 : vector<32x128xf32>
    %c0_7 = arith.constant 0 : index
    %c0_8 = arith.constant 0 : index
    %20 = vector.load %arg4[%c0_7, %c0_8] : memref<1x128xf32, #tpu.memory_space<vmem>>, vector<1x128xf32>
    %21 = vector.broadcast %20 : vector<1x128xf32> to vector<32x128xf32>
    %22 = arith.addf %19, %21 : vector<32x128xf32>
    %23 = arith.truncf %22 : vector<32x128xf32> to vector<32x128xbf16>
    %c0_9 = arith.constant 0 : index
    %c0_10 = arith.constant 0 : index
    %24 = vector.load %arg5[%c0_9, %c0_10] : memref<32x128xbf16, #tpu.memory_space<vmem>>, vector<32x128xbf16>
    tpu.vector_store %arg5[%c0_9, %c0_10], %23 {strides = array<i32>} : memref<32x128xbf16, #tpu.memory_space<vmem>>, vector<32x128xbf16>,
    return
  }
  func.func @transform_0(%arg0: i32) -> (i32, i32) {
    %c0_i32 = arith.constant 0 : i32
    %c0_i32_0 = arith.constant 0 : i32
    return %arg0, %c0_i32 : i32, i32
  }
  func.func @transform_1(%arg0: i32) -> (i32, i32) {
    %c0_i32 = arith.constant 0 : i32
    %c0_i32_0 = arith.constant 0 : i32
    %c0_i32_1 = arith.constant 0 : i32
    return %c0_i32, %c0_i32_0 : i32, i32
  }
  func.func @transform_2(%arg0: i32) -> (i32, i32) {
    %c0_i32 = arith.constant 0 : i32
    %c0_i32_0 = arith.constant 0 : i32
    %c0_i32_1 = arith.constant 0 : i32
    return %c0_i32, %c0_i32_0 : i32, i32
  }
  func.func @transform_3(%arg0: i32) -> (i32, i32) {
    %c0_i32 = arith.constant 0 : i32
    %c0_i32_0 = arith.constant 0 : i32
    %c0_i32_1 = arith.constant 0 : i32
    return %c0_i32, %c0_i32_0 : i32, i32
  }
  func.func @transform_4(%arg0: i32) -> (i32, i32) {
    %c0_i32 = arith.constant 0 : i32
    %c0_i32_0 = arith.constant 0 : i32
    return %arg0, %c0_i32 : i32, i32
  }
}

module attributes {stable_mosaic.version = 11 : i64} {
  func.func @bn_apply_kernel(%arg0: i32, %arg1: memref<8x256xf32, #tpu.memory_space<vmem>>, %arg2: memref<2x256xf32, #tpu.memory_space<vmem>>, %arg3: memref<1x256xf32, #tpu.memory_space<vmem>>, %arg4: memref<1x256xf32, #tpu.memory_space<vmem>>, %arg5: memref<8x256xbf16, #tpu.memory_space<vmem>>) attributes {dimension_semantics = [#tpu.dimension_semantics<parallel>], iteration_bounds = array<i64: 1>, scalar_prefetch = 0 : i64, scratch_operands = 0 : i64, tpu.core_type = #tpu.core_type<tc>, window_params = [{transform_indices = @transform_0, window_bounds = array<i64: 8, 256>}, {pipeline_mode = #tpu.pipeline_mode<synchronous>, transform_indices = @transform_1, window_bounds = array<i64: 2, 256>}, {pipeline_mode = #tpu.pipeline_mode<synchronous>, transform_indices = @transform_2, window_bounds = array<i64: 1, 256>}, {pipeline_mode = #tpu.pipeline_mode<synchronous>, transform_indices = @transform_3, window_bounds = array<i64: 1, 256>}, {transform_indices = @transform_4, window_bounds = array<i64: 8, 256>}]} {
    %c0 = arith.constant 0 : index
    %c0_0 = arith.constant 0 : index
    %0 = vector.load %arg2[%c0, %c0_0] : memref<2x256xf32, #tpu.memory_space<vmem>>, vector<2x256xf32>
    %1 = vector.extract_strided_slice %0 {offsets = [0, 0], sizes = [1, 256], strides = [1, 1]} : vector<2x256xf32> to vector<1x256xf32>
    %cst = arith.constant 1.250000e-01 : f32
    %2 = vector.broadcast %cst : f32 to vector<1x256xf32>
    %3 = arith.mulf %1, %2 : vector<1x256xf32>
    %4 = vector.extract_strided_slice %0 {offsets = [1, 0], sizes = [1, 256], strides = [1, 1]} : vector<2x256xf32> to vector<1x256xf32>
    %cst_1 = arith.constant 1.250000e-01 : f32
    %5 = vector.broadcast %cst_1 : f32 to vector<1x256xf32>
    %6 = arith.mulf %4, %5 : vector<1x256xf32>
    %7 = arith.mulf %3, %3 : vector<1x256xf32>
    %8 = arith.subf %6, %7 : vector<1x256xf32>
    %cst_2 = arith.constant 8.000000e-01 : f32
    %9 = vector.broadcast %cst_2 : f32 to vector<1x256xf32>
    %10 = arith.addf %8, %9 : vector<1x256xf32>
    %11 = math.rsqrt %10 : vector<1x256xf32>
    %c0_3 = arith.constant 0 : index
    %c0_4 = arith.constant 0 : index
    %12 = vector.load %arg1[%c0_3, %c0_4] : memref<8x256xf32, #tpu.memory_space<vmem>>, vector<8x256xf32>
    %13 = vector.broadcast %3 : vector<1x256xf32> to vector<8x256xf32>
    %14 = arith.subf %12, %13 : vector<8x256xf32>
    %15 = vector.broadcast %11 : vector<1x256xf32> to vector<8x256xf32>
    %16 = arith.mulf %14, %15 : vector<8x256xf32>
    %c0_5 = arith.constant 0 : index
    %c0_6 = arith.constant 0 : index
    %17 = vector.load %arg3[%c0_5, %c0_6] : memref<1x256xf32, #tpu.memory_space<vmem>>, vector<1x256xf32>
    %18 = vector.broadcast %17 : vector<1x256xf32> to vector<8x256xf32>
    %19 = arith.mulf %16, %18 : vector<8x256xf32>
    %c0_7 = arith.constant 0 : index
    %c0_8 = arith.constant 0 : index
    %20 = vector.load %arg4[%c0_7, %c0_8] : memref<1x256xf32, #tpu.memory_space<vmem>>, vector<1x256xf32>
    %21 = vector.broadcast %20 : vector<1x256xf32> to vector<8x256xf32>
    %22 = arith.addf %19, %21 : vector<8x256xf32>
    %23 = arith.truncf %22 : vector<8x256xf32> to vector<8x256xbf16>
    %c0_9 = arith.constant 0 : index
    %c0_10 = arith.constant 0 : index
    %24 = vector.load %arg5[%c0_9, %c0_10] : memref<8x256xbf16, #tpu.memory_space<vmem>>, vector<8x256xbf16>
    tpu.vector_store %arg5[%c0_9, %c0_10], %23 {strides = array<i32>} : memref<8x256xbf16, #tpu.memory_space<vmem>>, vector<8x256xbf16>,
    return
  }
  func.func @transform_0(%arg0: i32) -> (i32, i32) {
    %c0_i32 = arith.constant 0 : i32
    %c0_i32_0 = arith.constant 0 : i32
    return %arg0, %c0_i32 : i32, i32
  }
  func.func @transform_1(%arg0: i32) -> (i32, i32) {
    %c0_i32 = arith.constant 0 : i32
    %c0_i32_0 = arith.constant 0 : i32
    %c0_i32_1 = arith.constant 0 : i32
    return %c0_i32, %c0_i32_0 : i32, i32
  }
  func.func @transform_2(%arg0: i32) -> (i32, i32) {
    %c0_i32 = arith.constant 0 : i32
    %c0_i32_0 = arith.constant 0 : i32
    %c0_i32_1 = arith.constant 0 : i32
    return %c0_i32, %c0_i32_0 : i32, i32
  }
  func.func @transform_3(%arg0: i32) -> (i32, i32) {
    %c0_i32 = arith.constant 0 : i32
    %c0_i32_0 = arith.constant 0 : i32
    %c0_i32_1 = arith.constant 0 : i32
    return %c0_i32, %c0_i32_0 : i32, i32
  }
  func.func @transform_4(%arg0: i32) -> (i32, i32) {
    %c0_i32 = arith.constant 0 : i32
    %c0_i32_0 = arith.constant 0 : i32
    return %arg0, %c0_i32 : i32, i32
  }
}

module attributes {stable_mosaic.version = 11 : i64} {
  func.func @conv_stats_kernel(%arg0: i32, %arg1: memref<8x1152xbf16, #tpu.memory_space<vmem>>, %arg2: memref<1152x256xbf16, #tpu.memory_space<vmem>>, %arg3: memref<1x256xf32, #tpu.memory_space<vmem>>, %arg4: memref<8x256xf32, #tpu.memory_space<vmem>>, %arg5: memref<2x256xf32, #tpu.memory_space<vmem>>) attributes {dimension_semantics = [#tpu.dimension_semantics<arbitrary>], iteration_bounds = array<i64: 1>, scalar_prefetch = 0 : i64, scratch_operands = 0 : i64, tpu.core_type = #tpu.core_type<tc>, window_params = [{transform_indices = @transform_0, window_bounds = array<i64: 8, 1152>}, {pipeline_mode = #tpu.pipeline_mode<synchronous>, transform_indices = @transform_1, window_bounds = array<i64: 1152, 256>}, {pipeline_mode = #tpu.pipeline_mode<synchronous>, transform_indices = @transform_2, window_bounds = array<i64: 1, 256>}, {transform_indices = @transform_3, window_bounds = array<i64: 8, 256>}, {pipeline_mode = #tpu.pipeline_mode<synchronous>, transform_indices = @transform_4, window_bounds = array<i64: 2, 256>}]} {
    %c0 = arith.constant 0 : index
    %c0_0 = arith.constant 0 : index
    %0 = vector.load %arg1[%c0, %c0_0] : memref<8x1152xbf16, #tpu.memory_space<vmem>>, vector<8x1152xbf16>
    %c0_1 = arith.constant 0 : index
    %c0_2 = arith.constant 0 : index
    %1 = vector.load %arg2[%c0_1, %c0_2] : memref<1152x256xbf16, #tpu.memory_space<vmem>>, vector<1152x256xbf16>
    %cst = arith.constant dense<0.000000e+00> : vector<8x256xf32>
    %2 = tpu.matmul %0, %1, %cst {dimension_numbers = #tpu.dot_dimension_numbers<[1], [0], [0], [1], [0, 0, 1, 1], [], []>} : vector<8x1152xbf16>, vector<1152x256xbf16>, vector<8x256xf32> -> vector<8x256xf32>
    %c0_3 = arith.constant 0 : index
    %c0_4 = arith.constant 0 : index
    %3 = vector.load %arg3[%c0_3, %c0_4] : memref<1x256xf32, #tpu.memory_space<vmem>>, vector<1x256xf32>
    %4 = vector.broadcast %3 : vector<1x256xf32> to vector<8x256xf32>
    %5 = arith.addf %2, %4 : vector<8x256xf32>
    %cst_5 = arith.constant 0.000000e+00 : f32
    %6 = vector.broadcast %cst_5 : f32 to vector<8x256xf32>
    %7 = arith.cmpf ogt, %5, %6 : vector<8x256xf32>
    %cst_6 = arith.constant 2.000000e-01 : f32
    %8 = vector.broadcast %cst_6 : f32 to vector<8x256xf32>
    %9 = arith.mulf %8, %5 : vector<8x256xf32>
    %10 = arith.select %7, %5, %9 : vector<8x256xi1>, vector<8x256xf32>
    %c0_7 = arith.constant 0 : index
    %c0_8 = arith.constant 0 : index
    %11 = vector.load %arg4[%c0_7, %c0_8] : memref<8x256xf32, #tpu.memory_space<vmem>>, vector<8x256xf32>
    tpu.vector_store %arg4[%c0_7, %c0_8], %10 {strides = array<i32>} : memref<8x256xf32, #tpu.memory_space<vmem>>, vector<8x256xf32>,
    %cst_9 = arith.constant dense<0.000000e+00> : vector<256xf32>
    %12 = vector.multi_reduction <add>, %10, %cst_9 [0] : vector<8x256xf32> to vector<256xf32>
    %13 = vector.shape_cast %12 : vector<256xf32> to vector<1x256xf32>
    %14 = arith.mulf %10, %10 : vector<8x256xf32>
    %cst_10 = arith.constant dense<0.000000e+00> : vector<256xf32>
    %15 = vector.multi_reduction <add>, %14, %cst_10 [0] : vector<8x256xf32> to vector<256xf32>
    %16 = vector.shape_cast %15 : vector<256xf32> to vector<1x256xf32>
    %c0_i32 = arith.constant 0 : i32
    %17 = arith.cmpi eq, %arg0, %c0_i32 : i32
    %18 = arith.extui %17 : i1 to i32
    %c0_i32_11 = arith.constant 0 : i32
    %19 = arith.cmpi ne, %18, %c0_i32_11 : i32
    scf.if %19 {
      %cst_16 = arith.constant 0.000000e+00 : f32
      %24 = vector.broadcast %cst_16 : f32 to vector<2x256xf32>
      %c0_17 = arith.constant 0 : index
      %c0_18 = arith.constant 0 : index
      %25 = vector.load %arg5[%c0_17, %c0_18] : memref<2x256xf32, #tpu.memory_space<vmem>>, vector<2x256xf32>
      tpu.vector_store %arg5[%c0_17, %c0_18], %24 {strides = array<i32>} : memref<2x256xf32, #tpu.memory_space<vmem>>, vector<2x256xf32>,
    } else {
    }
    %c0_12 = arith.constant 0 : index
    %c0_13 = arith.constant 0 : index
    %20 = vector.load %arg5[%c0_12, %c0_13] : memref<2x256xf32, #tpu.memory_space<vmem>>, vector<2x256xf32>
    %21 = tpu.concatenate %13, %16 in 0 : vector<1x256xf32>, vector<1x256xf32> -> vector<2x256xf32>
    %22 = arith.addf %20, %21 : vector<2x256xf32>
    %c0_14 = arith.constant 0 : index
    %c0_15 = arith.constant 0 : index
    %23 = vector.load %arg5[%c0_14, %c0_15] : memref<2x256xf32, #tpu.memory_space<vmem>>, vector<2x256xf32>
    tpu.vector_store %arg5[%c0_14, %c0_15], %22 {strides = array<i32>} : memref<2x256xf32, #tpu.memory_space<vmem>>, vector<2x256xf32>,
    return
  }
  func.func @transform_0(%arg0: i32) -> (i32, i32) {
    %c0_i32 = arith.constant 0 : i32
    %c0_i32_0 = arith.constant 0 : i32
    return %arg0, %c0_i32 : i32, i32
  }
  func.func @transform_1(%arg0: i32) -> (i32, i32) {
    %c0_i32 = arith.constant 0 : i32
    %c0_i32_0 = arith.constant 0 : i32
    %c0_i32_1 = arith.constant 0 : i32
    return %c0_i32, %c0_i32_0 : i32, i32
  }
  func.func @transform_2(%arg0: i32) -> (i32, i32) {
    %c0_i32 = arith.constant 0 : i32
    %c0_i32_0 = arith.constant 0 : i32
    %c0_i32_1 = arith.constant 0 : i32
    return %c0_i32, %c0_i32_0 : i32, i32
  }
  func.func @transform_3(%arg0: i32) -> (i32, i32) {
    %c0_i32 = arith.constant 0 : i32
    %c0_i32_0 = arith.constant 0 : i32
    return %arg0, %c0_i32 : i32, i32
  }
  func.func @transform_4(%arg0: i32) -> (i32, i32) {
    %c0_i32 = arith.constant 0 : i32
    %c0_i32_0 = arith.constant 0 : i32
    %c0_i32_1 = arith.constant 0 : i32
    return %c0_i32, %c0_i32_0 : i32, i32
  }
}

module attributes {stable_mosaic.version = 11 : i64} {
  func.func @conv_stats_kernel(%arg0: i32, %arg1: memref<8x2304xbf16, #tpu.memory_space<vmem>>, %arg2: memref<2304x512xbf16, #tpu.memory_space<vmem>>, %arg3: memref<1x512xf32, #tpu.memory_space<vmem>>, %arg4: memref<8x512xf32, #tpu.memory_space<vmem>>, %arg5: memref<2x512xf32, #tpu.memory_space<vmem>>) attributes {dimension_semantics = [#tpu.dimension_semantics<arbitrary>], iteration_bounds = array<i64: 1>, scalar_prefetch = 0 : i64, scratch_operands = 0 : i64, tpu.core_type = #tpu.core_type<tc>, window_params = [{transform_indices = @transform_0, window_bounds = array<i64: 8, 2304>}, {pipeline_mode = #tpu.pipeline_mode<synchronous>, transform_indices = @transform_1, window_bounds = array<i64: 2304, 512>}, {pipeline_mode = #tpu.pipeline_mode<synchronous>, transform_indices = @transform_2, window_bounds = array<i64: 1, 512>}, {transform_indices = @transform_3, window_bounds = array<i64: 8, 512>}, {pipeline_mode = #tpu.pipeline_mode<synchronous>, transform_indices = @transform_4, window_bounds = array<i64: 2, 512>}]} {
    %c0 = arith.constant 0 : index
    %c0_0 = arith.constant 0 : index
    %0 = vector.load %arg1[%c0, %c0_0] : memref<8x2304xbf16, #tpu.memory_space<vmem>>, vector<8x2304xbf16>
    %c0_1 = arith.constant 0 : index
    %c0_2 = arith.constant 0 : index
    %1 = vector.load %arg2[%c0_1, %c0_2] : memref<2304x512xbf16, #tpu.memory_space<vmem>>, vector<2304x512xbf16>
    %cst = arith.constant dense<0.000000e+00> : vector<8x512xf32>
    %2 = tpu.matmul %0, %1, %cst {dimension_numbers = #tpu.dot_dimension_numbers<[1], [0], [0], [1], [0, 0, 1, 1], [], []>} : vector<8x2304xbf16>, vector<2304x512xbf16>, vector<8x512xf32> -> vector<8x512xf32>
    %c0_3 = arith.constant 0 : index
    %c0_4 = arith.constant 0 : index
    %3 = vector.load %arg3[%c0_3, %c0_4] : memref<1x512xf32, #tpu.memory_space<vmem>>, vector<1x512xf32>
    %4 = vector.broadcast %3 : vector<1x512xf32> to vector<8x512xf32>
    %5 = arith.addf %2, %4 : vector<8x512xf32>
    %cst_5 = arith.constant 0.000000e+00 : f32
    %6 = vector.broadcast %cst_5 : f32 to vector<8x512xf32>
    %7 = arith.cmpf ogt, %5, %6 : vector<8x512xf32>
    %cst_6 = arith.constant 2.000000e-01 : f32
    %8 = vector.broadcast %cst_6 : f32 to vector<8x512xf32>
    %9 = arith.mulf %8, %5 : vector<8x512xf32>
    %10 = arith.select %7, %5, %9 : vector<8x512xi1>, vector<8x512xf32>
    %c0_7 = arith.constant 0 : index
    %c0_8 = arith.constant 0 : index
    %11 = vector.load %arg4[%c0_7, %c0_8] : memref<8x512xf32, #tpu.memory_space<vmem>>, vector<8x512xf32>
    tpu.vector_store %arg4[%c0_7, %c0_8], %10 {strides = array<i32>} : memref<8x512xf32, #tpu.memory_space<vmem>>, vector<8x512xf32>,
    %12 = tpu.iota {dimensions = array<i32: 0>} : vector<8x1xi32>
    %c8_i32 = arith.constant 8 : i32
    %13 = arith.muli %arg0, %c8_i32 : i32
    %14 = vector.broadcast %13 : i32 to vector<8x1xi32>
    %15 = arith.addi %12, %14 : vector<8x1xi32>
    %c2_i32 = arith.constant 2 : i32
    %16 = vector.broadcast %c2_i32 : i32 to vector<8x1xi32>
    %17 = arith.cmpi slt, %15, %16 : vector<8x1xi32>
    %18 = arith.extui %17 : vector<8x1xi1> to vector<8x1xi32>
    %19 = arith.sitofp %18 : vector<8x1xi32> to vector<8x1xf32>
    %20 = vector.broadcast %19 : vector<8x1xf32> to vector<8x512xf32>
    %21 = arith.mulf %10, %20 : vector<8x512xf32>
    %cst_9 = arith.constant dense<0.000000e+00> : vector<512xf32>
    %22 = vector.multi_reduction <add>, %21, %cst_9 [0] : vector<8x512xf32> to vector<512xf32>
    %23 = vector.shape_cast %22 : vector<512xf32> to vector<1x512xf32>
    %24 = arith.mulf %21, %21 : vector<8x512xf32>
    %cst_10 = arith.constant dense<0.000000e+00> : vector<512xf32>
    %25 = vector.multi_reduction <add>, %24, %cst_10 [0] : vector<8x512xf32> to vector<512xf32>
    %26 = vector.shape_cast %25 : vector<512xf32> to vector<1x512xf32>
    %c0_i32 = arith.constant 0 : i32
    %27 = arith.cmpi eq, %arg0, %c0_i32 : i32
    %28 = arith.extui %27 : i1 to i32
    %c0_i32_11 = arith.constant 0 : i32
    %29 = arith.cmpi ne, %28, %c0_i32_11 : i32
    scf.if %29 {
      %cst_16 = arith.constant 0.000000e+00 : f32
      %34 = vector.broadcast %cst_16 : f32 to vector<2x512xf32>
      %c0_17 = arith.constant 0 : index
      %c0_18 = arith.constant 0 : index
      %35 = vector.load %arg5[%c0_17, %c0_18] : memref<2x512xf32, #tpu.memory_space<vmem>>, vector<2x512xf32>
      tpu.vector_store %arg5[%c0_17, %c0_18], %34 {strides = array<i32>} : memref<2x512xf32, #tpu.memory_space<vmem>>, vector<2x512xf32>,
    } else {
    }
    %c0_12 = arith.constant 0 : index
    %c0_13 = arith.constant 0 : index
    %30 = vector.load %arg5[%c0_12, %c0_13] : memref<2x512xf32, #tpu.memory_space<vmem>>, vector<2x512xf32>
    %31 = tpu.concatenate %23, %26 in 0 : vector<1x512xf32>, vector<1x512xf32> -> vector<2x512xf32>
    %32 = arith.addf %30, %31 : vector<2x512xf32>
    %c0_14 = arith.constant 0 : index
    %c0_15 = arith.constant 0 : index
    %33 = vector.load %arg5[%c0_14, %c0_15] : memref<2x512xf32, #tpu.memory_space<vmem>>, vector<2x512xf32>
    tpu.vector_store %arg5[%c0_14, %c0_15], %32 {strides = array<i32>} : memref<2x512xf32, #tpu.memory_space<vmem>>, vector<2x512xf32>,
    return
  }
  func.func @transform_0(%arg0: i32) -> (i32, i32) {
    %c0_i32 = arith.constant 0 : i32
    %c0_i32_0 = arith.constant 0 : i32
    return %arg0, %c0_i32 : i32, i32
  }
  func.func @transform_1(%arg0: i32) -> (i32, i32) {
    %c0_i32 = arith.constant 0 : i32
    %c0_i32_0 = arith.constant 0 : i32
    %c0_i32_1 = arith.constant 0 : i32
    return %c0_i32, %c0_i32_0 : i32, i32
  }
  func.func @transform_2(%arg0: i32) -> (i32, i32) {
    %c0_i32 = arith.constant 0 : i32
    %c0_i32_0 = arith.constant 0 : i32
    %c0_i32_1 = arith.constant 0 : i32
    return %c0_i32, %c0_i32_0 : i32, i32
  }
  func.func @transform_3(%arg0: i32) -> (i32, i32) {
    %c0_i32 = arith.constant 0 : i32
    %c0_i32_0 = arith.constant 0 : i32
    return %arg0, %c0_i32 : i32, i32
  }
  func.func @transform_4(%arg0: i32) -> (i32, i32) {
    %c0_i32 = arith.constant 0 : i32
    %c0_i32_0 = arith.constant 0 : i32
    %c0_i32_1 = arith.constant 0 : i32
    return %c0_i32, %c0_i32_0 : i32, i32
  }
}

module attributes {stable_mosaic.version = 11 : i64} {
  func.func @bn_apply_kernel(%arg0: i32, %arg1: memref<8x512xf32, #tpu.memory_space<vmem>>, %arg2: memref<2x512xf32, #tpu.memory_space<vmem>>, %arg3: memref<1x512xf32, #tpu.memory_space<vmem>>, %arg4: memref<1x512xf32, #tpu.memory_space<vmem>>, %arg5: memref<8x512xbf16, #tpu.memory_space<vmem>>) attributes {dimension_semantics = [#tpu.dimension_semantics<parallel>], iteration_bounds = array<i64: 1>, scalar_prefetch = 0 : i64, scratch_operands = 0 : i64, tpu.core_type = #tpu.core_type<tc>, window_params = [{transform_indices = @transform_0, window_bounds = array<i64: 8, 512>}, {pipeline_mode = #tpu.pipeline_mode<synchronous>, transform_indices = @transform_1, window_bounds = array<i64: 2, 512>}, {pipeline_mode = #tpu.pipeline_mode<synchronous>, transform_indices = @transform_2, window_bounds = array<i64: 1, 512>}, {pipeline_mode = #tpu.pipeline_mode<synchronous>, transform_indices = @transform_3, window_bounds = array<i64: 1, 512>}, {transform_indices = @transform_4, window_bounds = array<i64: 8, 512>}]} {
    %c0 = arith.constant 0 : index
    %c0_0 = arith.constant 0 : index
    %0 = vector.load %arg2[%c0, %c0_0] : memref<2x512xf32, #tpu.memory_space<vmem>>, vector<2x512xf32>
    %1 = vector.extract_strided_slice %0 {offsets = [0, 0], sizes = [1, 512], strides = [1, 1]} : vector<2x512xf32> to vector<1x512xf32>
    %cst = arith.constant 5.000000e-01 : f32
    %2 = vector.broadcast %cst : f32 to vector<1x512xf32>
    %3 = arith.mulf %1, %2 : vector<1x512xf32>
    %4 = vector.extract_strided_slice %0 {offsets = [1, 0], sizes = [1, 512], strides = [1, 1]} : vector<2x512xf32> to vector<1x512xf32>
    %cst_1 = arith.constant 5.000000e-01 : f32
    %5 = vector.broadcast %cst_1 : f32 to vector<1x512xf32>
    %6 = arith.mulf %4, %5 : vector<1x512xf32>
    %7 = arith.mulf %3, %3 : vector<1x512xf32>
    %8 = arith.subf %6, %7 : vector<1x512xf32>
    %cst_2 = arith.constant 8.000000e-01 : f32
    %9 = vector.broadcast %cst_2 : f32 to vector<1x512xf32>
    %10 = arith.addf %8, %9 : vector<1x512xf32>
    %11 = math.rsqrt %10 : vector<1x512xf32>
    %c0_3 = arith.constant 0 : index
    %c0_4 = arith.constant 0 : index
    %12 = vector.load %arg1[%c0_3, %c0_4] : memref<8x512xf32, #tpu.memory_space<vmem>>, vector<8x512xf32>
    %13 = vector.broadcast %3 : vector<1x512xf32> to vector<8x512xf32>
    %14 = arith.subf %12, %13 : vector<8x512xf32>
    %15 = vector.broadcast %11 : vector<1x512xf32> to vector<8x512xf32>
    %16 = arith.mulf %14, %15 : vector<8x512xf32>
    %c0_5 = arith.constant 0 : index
    %c0_6 = arith.constant 0 : index
    %17 = vector.load %arg3[%c0_5, %c0_6] : memref<1x512xf32, #tpu.memory_space<vmem>>, vector<1x512xf32>
    %18 = vector.broadcast %17 : vector<1x512xf32> to vector<8x512xf32>
    %19 = arith.mulf %16, %18 : vector<8x512xf32>
    %c0_7 = arith.constant 0 : index
    %c0_8 = arith.constant 0 : index
    %20 = vector.load %arg4[%c0_7, %c0_8] : memref<1x512xf32, #tpu.memory_space<vmem>>, vector<1x512xf32>
    %21 = vector.broadcast %20 : vector<1x512xf32> to vector<8x512xf32>
    %22 = arith.addf %19, %21 : vector<8x512xf32>
    %23 = arith.truncf %22 : vector<8x512xf32> to vector<8x512xbf16>
    %c0_9 = arith.constant 0 : index
    %c0_10 = arith.constant 0 : index
    %24 = vector.load %arg5[%c0_9, %c0_10] : memref<8x512xbf16, #tpu.memory_space<vmem>>, vector<8x512xbf16>
    tpu.vector_store %arg5[%c0_9, %c0_10], %23 {strides = array<i32>} : memref<8x512xbf16, #tpu.memory_space<vmem>>, vector<8x512xbf16>,
    return
  }
  func.func @transform_0(%arg0: i32) -> (i32, i32) {
    %c0_i32 = arith.constant 0 : i32
    %c0_i32_0 = arith.constant 0 : i32
    return %arg0, %c0_i32 : i32, i32
  }
  func.func @transform_1(%arg0: i32) -> (i32, i32) {
    %c0_i32 = arith.constant 0 : i32
    %c0_i32_0 = arith.constant 0 : i32
    %c0_i32_1 = arith.constant 0 : i32
    return %c0_i32, %c0_i32_0 : i32, i32
  }
  func.func @transform_2(%arg0: i32) -> (i32, i32) {
    %c0_i32 = arith.constant 0 : i32
    %c0_i32_0 = arith.constant 0 : i32
    %c0_i32_1 = arith.constant 0 : i32
    return %c0_i32, %c0_i32_0 : i32, i32
  }
  func.func @transform_3(%arg0: i32) -> (i32, i32) {
    %c0_i32 = arith.constant 0 : i32
    %c0_i32_0 = arith.constant 0 : i32
    %c0_i32_1 = arith.constant 0 : i32
    return %c0_i32, %c0_i32_0 : i32, i32
  }
  func.func @transform_4(%arg0: i32) -> (i32, i32) {
    %c0_i32 = arith.constant 0 : i32
    %c0_i32_0 = arith.constant 0 : i32
    return %arg0, %c0_i32 : i32, i32
  }
}

module attributes {stable_mosaic.version = 11 : i64} {
  func.func @adv_head_kernel(%arg0: memref<2x512xbf16, #tpu.memory_space<vmem>>, %arg1: memref<1x512xf32, #tpu.memory_space<vmem>>, %arg2: memref<1x1xf32, #tpu.memory_space<vmem>>, %arg3: memref<2x1xf32, #tpu.memory_space<vmem>>) attributes {dimension_semantics = [], scalar_prefetch = 0 : i64, scratch_operands = 0 : i64, tpu.core_type = #tpu.core_type<tc>} {
    %c0 = arith.constant 0 : index
    %c0_0 = arith.constant 0 : index
    %0 = vector.load %arg0[%c0, %c0_0] : memref<2x512xbf16, #tpu.memory_space<vmem>>, vector<2x512xbf16>
    %1 = arith.extf %0 : vector<2x512xbf16> to vector<2x512xf32>
    %c0_1 = arith.constant 0 : index
    %c0_2 = arith.constant 0 : index
    %2 = vector.load %arg1[%c0_1, %c0_2] : memref<1x512xf32, #tpu.memory_space<vmem>>, vector<1x512xf32>
    %3 = vector.broadcast %2 : vector<1x512xf32> to vector<2x512xf32>
    %4 = arith.mulf %1, %3 : vector<2x512xf32>
    %cst = arith.constant dense<0.000000e+00> : vector<2xf32>
    %5 = vector.multi_reduction <add>, %4, %cst [1] : vector<2x512xf32> to vector<2xf32>
    %6 = vector.shape_cast %5 : vector<2xf32> to vector<2x1xf32>
    %c0_3 = arith.constant 0 : index
    %c0_4 = arith.constant 0 : index
    %7 = vector.load %arg2[%c0_3, %c0_4] : memref<1x1xf32, #tpu.memory_space<vmem>>, vector<1x1xf32>
    %8 = vector.broadcast %7 : vector<1x1xf32> to vector<2x1xf32>
    %9 = arith.addf %6, %8 : vector<2x1xf32>
    %cst_5 = arith.constant 0.000000e+00 : f32
    %10 = vector.broadcast %cst_5 : f32 to vector<2x1xf32>
    %11 = arith.subf %10, %9 : vector<2x1xf32>
    %12 = math.exp %11 : vector<2x1xf32>
    %cst_6 = arith.constant 1.000000e+00 : f32
    %13 = vector.broadcast %cst_6 : f32 to vector<2x1xf32>
    %14 = arith.addf %13, %12 : vector<2x1xf32>
    %cst_7 = arith.constant 1.000000e+00 : f32
    %15 = vector.broadcast %cst_7 : f32 to vector<2x1xf32>
    %16 = arith.divf %15, %14 : vector<2x1xf32>
    %c0_8 = arith.constant 0 : index
    %c0_9 = arith.constant 0 : index
    %17 = vector.load %arg3[%c0_8, %c0_9] : memref<2x1xf32, #tpu.memory_space<vmem>>, vector<2x1xf32>
    tpu.vector_store %arg3[%c0_8, %c0_9], %16 {strides = array<i32>} : memref<2x1xf32, #tpu.memory_space<vmem>>, vector<2x1xf32>,
    return
  }
}

</mosaic_0001>

<llo_original>
// kernel: discriminator_forward.12
$region0: #{discriminator_forward.12}
  #allocation0 [shape = 'u32[]', space=smem, size = 0x4, offset = 0x4, fixed_abs, tag = 'smem constant byte address 0x4 - core index']
  #allocation1 [shape = 'u32[144,128]{1,0:T(1,128)}', space=vmem, size = 0x12000, scoped, tag = 'internal scratch']
  %s0 = inlined_call_operand.vmem [shape: f32[512,32], index: 0, kind: input, shape index: {}]
  %s1 = inlined_call_operand.vmem [shape: f32[2,32], index: 1, kind: input, shape index: {}]
  %s2 = inlined_call_operand.vmem [shape: f32[1,32], index: 2, kind: input, shape index: {}]
  %s3 = inlined_call_operand.vmem [shape: f32[1,32], index: 3, kind: input, shape index: {}]
  %s4 = inlined_call_operand.vmem [shape: bf16[512,32], index: 4, kind: output, shape index: {}]
  %s5 = sld [smem:[#allocation0]]
  $region26: #{discriminator_forward.12} parent=0
    _
  %s7 = ssub.s32 1, %s5
  %s8 = scalar_select 0, %s7, %s5
  // Predicated region
  $region2: #{discriminator_forward.12} parent=0 // pred_check
    _
  $region3: #{discriminator_forward.12} parent=0 // pred_check_branch
    %10 = sbr.rel (0) target = $region5
  $region4: #{discriminator_forward.12} parent=0 // pred_region
    _
  $region5: #{discriminator_forward.12} parent=0 // pred_fallthru
    _
  // Predicated region
  $region6: #{discriminator_forward.12} parent=0 // pred_check
    _
  $region7: #{discriminator_forward.12} parent=0 // pred_check_branch
    %12 = sbr.rel (0) target = $region9
  $region8: #{discriminator_forward.12} parent=0 // pred_region
    _
  $region9: #{discriminator_forward.12} parent=0 // pred_fallthru
    _
  // Predicated region
  $region10: #{discriminator_forward.12} parent=0 // pred_check
    _
  $region11: #{discriminator_forward.12} parent=0 // pred_check_branch
    %14 = sbr.rel (0) target = $region13
  $region12: #{discriminator_forward.12} parent=0 // pred_region
    _
  $region13: #{discriminator_forward.12} parent=0 // pred_fallthru
    _
  // Predicated region
  $region14: #{discriminator_forward.12} parent=0 // pred_check
    _
  $region15: #{discriminator_forward.12} parent=0 // pred_check_branch
    %16 = sbr.rel (0) target = $region17
  $region16: #{discriminator_forward.12} parent=0 // pred_region
    _
  $region17: #{discriminator_forward.12} parent=0 // pred_fallthru
    _
  %v17 = vld [vmem:[%s1] sm:$0x3]
  %v18 = vmul.f32 %v17, 0.001953125
  %v19 = vmul.f32 %v18, %v18
  %v21 = vrot.slane %v19, 7
  %v23 = vsub.f32 %v18, %v21
  %v24 = vadd.f32 %v23, 0.8
  %v25 = vrsqrt.pop %v24
  %v26 = vld [vmem:[%s0] sm:$0xff]
  %v27 = vld [vmem:[%s0 + $0x8] sm:$0xff]
  %v28 = vld [vmem:[%s0 + $0x10] sm:$0xff]
  %v29 = vld [vmem:[%s0 + $0x18] sm:$0xff]
  %v30 = vld [vmem:[%s0 + $0x20] sm:$0xff]
  %v31 = vld [vmem:[%s0 + $0x28] sm:$0xff]
  %v32 = vld [vmem:[%s0 + $0x30] sm:$0xff]
  %v33 = vld [vmem:[%s0 + $0x38] sm:$0xff]
  %v34 = vld [vmem:[%s0 + $0x40] sm:$0xff]
  %v35 = vld [vmem:[%s0 + $0x48] sm:$0xff]
  %v36 = vld [vmem:[%s0 + $0x50] sm:$0xff]
  %v37 = vld [vmem:[%s0 + $0x58] sm:$0xff]
  %v38 = vld [vmem:[%s0 + $0x60] sm:$0xff]
  %v39 = vld [vmem:[%s0 + $0x68] sm:$0xff]
  %v40 = vld [vmem:[%s0 + $0x70] sm:$0xff]
  %v41 = vld [vmem:[%s0 + $0x78] sm:$0xff]
  %v42 = vld [vmem:[%s0 + $0x80] sm:$0xff]
  %v43 = vld [vmem:[%s0 + $0x88] sm:$0xff]
  %v44 = vld [vmem:[%s0 + $0x90] sm:$0xff]
  %v45 = vld [vmem:[%s0 + $0x98] sm:$0xff]
  %v46 = vld [vmem:[%s0 + $0xa0] sm:$0xff]
  %v47 = vld [vmem:[%s0 + $0xa8] sm:$0xff]
  %v48 = vld [vmem:[%s0 + $0xb0] sm:$0xff]
  %v49 = vld [vmem:[%s0 + $0xb8] sm:$0xff]
  %v50 = vld [vmem:[%s0 + $0xc0] sm:$0xff]
  %v51 = vld [vmem:[%s0 + $0xc8] sm:$0xff]
  %v52 = vld [vmem:[%s0 + $0xd0] sm:$0xff]
  %v53 = vld [vmem:[%s0 + $0xd8] sm:$0xff]
  %v54 = vld [vmem:[%s0 + $0xe0] sm:$0xff]
  %v55 = vld [vmem:[%s0 + $0xe8] sm:$0xff]
  %v56 = vld [vmem:[%s0 + $0xf0] sm:$0xff]
  %v57 = vld [vmem:[%s0 + $0xf8] sm:$0xff]
  %v58 = vld [vmem:[%s0 + $0x100] sm:$0xff]
  %v59 = vld [vmem:[%s0 + $0x108] sm:$0xff]
  %v60 = vld [vmem:[%s0 + $0x110] sm:$0xff]
  %v61 = vld [vmem:[%s0 + $0x118] sm:$0xff]
  %v62 = vld [vmem:[%s0 + $0x120] sm:$0xff]
  %v63 = vld [vmem:[%s0 + $0x128] sm:$0xff]
  %v64 = vld [vmem:[%s0 + $0x130] sm:$0xff]
  %v65 = vld [vmem:[%s0 + $0x138] sm:$0xff]
  %v66 = vld [vmem:[%s0 + $0x140] sm:$0xff]
  %v67 = vld [vmem:[%s0 + $0x148] sm:$0xff]
  %v68 = vld [vmem:[%s0 + $0x150] sm:$0xff]
  %v69 = vld [vmem:[%s0 + $0x158] sm:$0xff]
  %v70 = vld [vmem:[%s0 + $0x160] sm:$0xff]
  %v71 = vld [vmem:[%s0 + $0x168] sm:$0xff]
  %v72 = vld [vmem:[%s0 + $0x170] sm:$0xff]
  %v73 = vld [vmem:[%s0 + $0x178] sm:$0xff]
  %v74 = vld [vmem:[%s0 + $0x180] sm:$0xff]
  %v75 = vld [vmem:[%s0 + $0x188] sm:$0xff]
  %v76 = vld [vmem:[%s0 + $0x190] sm:$0xff]
  %v77 = vld [vmem:[%s0 + $0x198] sm:$0xff]
  %v78 = vld [vmem:[%s0 + $0x1a0] sm:$0xff]
  %v79 = vld [vmem:[%s0 + $0x1a8] sm:$0xff]
  %v80 = vld [vmem:[%s0 + $0x1b0] sm:$0xff]
  %v81 = vld [vmem:[%s0 + $0x1b8] sm:$0xff]
  %v82 = vld [vmem:[%s0 + $0x1c0] sm:$0xff]
  %v83 = vld [vmem:[%s0 + $0x1c8] sm:$0xff]
  %v84 = vld [vmem:[%s0 + $0x1d0] sm:$0xff]
  %v85 = vld [vmem:[%s0 + $0x1d8] sm:$0xff]
  %v86 = vld [vmem:[%s0 + $0x1e0] sm:$0xff]
  %v87 = vld [vmem:[%s0 + $0x1e8] sm:$0xff]
  %v88 = vld [vmem:[%s0 + $0x1f0] sm:$0xff]
  %v89 = vld [vmem:[%s0 + $0x1f8] sm:$0xff]
  %v90 = vlaneseq
  %v91 = vshrl.u32 %v90, 7
  %v92 = vsub.s32 0, %v91
  %v93 = vrot.slane %v18, %v92
  %v94 = vsub.f32 %v26, %v93
  %v95 = vsub.f32 %v27, %v93
  %v96 = vsub.f32 %v28, %v93
  %v97 = vsub.f32 %v29, %v93
  %v98 = vsub.f32 %v30, %v93
  %v99 = vsub.f32 %v31, %v93
  %v100 = vsub.f32 %v32, %v93
  %v101 = vsub.f32 %v33, %v93
  %v102 = vsub.f32 %v34, %v93
  %v103 = vsub.f32 %v35, %v93
  %v104 = vsub.f32 %v36, %v93
  %v105 = vsub.f32 %v37, %v93
  %v106 = vsub.f32 %v38, %v93
  %v107 = vsub.f32 %v39, %v93
  %v108 = vsub.f32 %v40, %v93
  %v109 = vsub.f32 %v41, %v93
  %v110 = vsub.f32 %v42, %v93
  %v111 = vsub.f32 %v43, %v93
  %v112 = vsub.f32 %v44, %v93
  %v113 = vsub.f32 %v45, %v93
  %v114 = vsub.f32 %v46, %v93
  %v115 = vsub.f32 %v47, %v93
  %v116 = vsub.f32 %v48, %v93
  %v117 = vsub.f32 %v49, %v93
  %v118 = vsub.f32 %v50, %v93
  %v119 = vsub.f32 %v51, %v93
  %v120 = vsub.f32 %v52, %v93
  %v121 = vsub.f32 %v53, %v93
  %v122 = vsub.f32 %v54, %v93
  %v123 = vsub.f32 %v55, %v93
  %v124 = vsub.f32 %v56, %v93
  %v125 = vsub.f32 %v57, %v93
  %v126 = vsub.f32 %v58, %v93
  %v127 = vsub.f32 %v59, %v93
  %v128 = vsub.f32 %v60, %v93
  %v129 = vsub.f32 %v61, %v93
  %v130 = vsub.f32 %v62, %v93
  %v131 = vsub.f32 %v63, %v93
  %v132 = vsub.f32 %v64, %v93
  %v133 = vsub.f32 %v65, %v93
  %v134 = vsub.f32 %v66, %v93
  %v135 = vsub.f32 %v67, %v93
  %v136 = vsub.f32 %v68, %v93
  %v137 = vsub.f32 %v69, %v93
  %v138 = vsub.f32 %v70, %v93
  %v139 = vsub.f32 %v71, %v93
  %v140 = vsub.f32 %v72, %v93
  %v141 = vsub.f32 %v73, %v93
  %v142 = vsub.f32 %v74, %v93
  %v143 = vsub.f32 %v75, %v93
  %v144 = vsub.f32 %v76, %v93
  %v145 = vsub.f32 %v77, %v93
  %v146 = vsub.f32 %v78, %v93
  %v147 = vsub.f32 %v79, %v93
  %v148 = vsub.f32 %v80, %v93
  %v149 = vsub.f32 %v81, %v93
  %v150 = vsub.f32 %v82, %v93
  %v151 = vsub.f32 %v83, %v93
  %v152 = vsub.f32 %v84, %v93
  %v153 = vsub.f32 %v85, %v93
  %v154 = vsub.f32 %v86, %v93
  %v155 = vsub.f32 %v87, %v93
  %v156 = vsub.f32 %v88, %v93
  %v157 = vsub.f32 %v89, %v93
  %v158 = vlaneseq
  %v159 = vshrl.u32 %v158, 7
  %v160 = vsub.s32 1, %v159
  %v161 = vrot.slane %v25, %v160
  %v162 = vmul.f32 %v94, %v161
  %v163 = vmul.f32 %v95, %v161
  %v164 = vmul.f32 %v96, %v161
  %v165 = vmul.f32 %v97, %v161
  %v166 = vmul.f32 %v98, %v161
  %v167 = vmul.f32 %v99, %v161
  %v168 = vmul.f32 %v100, %v161
  %v169 = vmul.f32 %v101, %v161
  %v170 = vmul.f32 %v102, %v161
  %v171 = vmul.f32 %v103, %v161
  %v172 = vmul.f32 %v104, %v161
  %v173 = vmul.f32 %v105, %v161
  %v174 = vmul.f32 %v106, %v161
  %v175 = vmul.f32 %v107, %v161
  %v176 = vmul.f32 %v108, %v161
  %v177 = vmul.f32 %v109, %v161
  %v178 = vmul.f32 %v110, %v161
  %v179 = vmul.f32 %v111, %v161
  %v180 = vmul.f32 %v112, %v161
  %v181 = vmul.f32 %v113, %v161
  %v182 = vmul.f32 %v114, %v161
  %v183 = vmul.f32 %v115, %v161
  %v184 = vmul.f32 %v116, %v161
  %v185 = vmul.f32 %v117, %v161
  %v186 = vmul.f32 %v118, %v161
  %v187 = vmul.f32 %v119, %v161
  %v188 = vmul.f32 %v120, %v161
  %v189 = vmul.f32 %v121, %v161
  %v190 = vmul.f32 %v122, %v161
  %v191 = vmul.f32 %v123, %v161
  %v192 = vmul.f32 %v124, %v161
  %v193 = vmul.f32 %v125, %v161
  %v194 = vmul.f32 %v126, %v161
  %v195 = vmul.f32 %v127, %v161
  %v196 = vmul.f32 %v128, %v161
  %v197 = vmul.f32 %v129, %v161
  %v198 = vmul.f32 %v130, %v161
  %v199 = vmul.f32 %v131, %v161
  %v200 = vmul.f32 %v132, %v161
  %v201 = vmul.f32 %v133, %v161
  %v202 = vmul.f32 %v134, %v161
  %v203 = vmul.f32 %v135, %v161
  %v204 = vmul.f32 %v136, %v161
  %v205 = vmul.f32 %v137, %v161
  %v206 = vmul.f32 %v138, %v161
  %v207 = vmul.f32 %v139, %v161
  %v208 = vmul.f32 %v140, %v161
  %v209 = vmul.f32 %v141, %v161
  %v210 = vmul.f32 %v142, %v161
  %v211 = vmul.f32 %v143, %v161
  %v212 = vmul.f32 %v144, %v161
  %v213 = vmul.f32 %v145, %v161
  %v214 = vmul.f32 %v146, %v161
  %v215 = vmul.f32 %v147, %v161
  %v216 = vmul.f32 %v148, %v161
  %v217 = vmul.f32 %v149, %v161
  %v218 = vmul.f32 %v150, %v161
  %v219 = vmul.f32 %v151, %v161
  %v220 = vmul.f32 %v152, %v161
  %v221 = vmul.f32 %v153, %v161
  %v222 = vmul.f32 %v154, %v161
  %v223 = vmul.f32 %v155, %v161
  %v224 = vmul.f32 %v156, %v161
  %v225 = vmul.f32 %v157, %v161
  %v226 = vld [vmem:[%s2] sm:$0x1]
  %v228 = vlaneseq
  %v229 = vshrl.u32 %v228, 7
  %v230 = vsub.s32 0, %v229
  %v231 = vrot.slane %v226, %v230
  %v233 = vmul.f32 %v162, %v231
  %v234 = vmul.f32 %v163, %v231
  %v235 = vmul.f32 %v164, %v231
  %v236 = vmul.f32 %v165, %v231
  %v237 = vmul.f32 %v166, %v231
  %v238 = vmul.f32 %v167, %v231
  %v239 = vmul.f32 %v168, %v231
  %v240 = vmul.f32 %v169, %v231
  %v241 = vmul.f32 %v170, %v231
  %v242 = vmul.f32 %v171, %v231
  %v243 = vmul.f32 %v172, %v231
  %v244 = vmul.f32 %v173, %v231
  %v245 = vmul.f32 %v174, %v231
  %v246 = vmul.f32 %v175, %v231
  %v247 = vmul.f32 %v176, %v231
  %v248 = vmul.f32 %v177, %v231
  %v249 = vmul.f32 %v178, %v231
  %v250 = vmul.f32 %v179, %v231
  %v251 = vmul.f32 %v180, %v231
  %v252 = vmul.f32 %v181, %v231
  %v253 = vmul.f32 %v182, %v231
  %v254 = vmul.f32 %v183, %v231
  %v255 = vmul.f32 %v184, %v231
  %v256 = vmul.f32 %v185, %v231
  %v257 = vmul.f32 %v186, %v231
  %v258 = vmul.f32 %v187, %v231
  %v259 = vmul.f32 %v188, %v231
  %v260 = vmul.f32 %v189, %v231
  %v261 = vmul.f32 %v190, %v231
  %v262 = vmul.f32 %v191, %v231
  %v263 = vmul.f32 %v192, %v231
  %v264 = vmul.f32 %v193, %v231
  %v265 = vmul.f32 %v194, %v231
  %v266 = vmul.f32 %v195, %v231
  %v267 = vmul.f32 %v196, %v231
  %v268 = vmul.f32 %v197, %v231
  %v269 = vmul.f32 %v198, %v231
  %v270 = vmul.f32 %v199, %v231
  %v271 = vmul.f32 %v200, %v231
  %v272 = vmul.f32 %v201, %v231
  %v273 = vmul.f32 %v202, %v231
  %v274 = vmul.f32 %v203, %v231
  %v275 = vmul.f32 %v204, %v231
  %v276 = vmul.f32 %v205, %v231
  %v277 = vmul.f32 %v206, %v231
  %v278 = vmul.f32 %v207, %v231
  %v279 = vmul.f32 %v208, %v231
  %v280 = vmul.f32 %v209, %v231
  %v281 = vmul.f32 %v210, %v231
  %v282 = vmul.f32 %v211, %v231
  %v283 = vmul.f32 %v212, %v231
  %v284 = vmul.f32 %v213, %v231
  %v285 = vmul.f32 %v214, %v231
  %v286 = vmul.f32 %v215, %v231
  %v287 = vmul.f32 %v216, %v231
  %v288 = vmul.f32 %v217, %v231
  %v289 = vmul.f32 %v218, %v231
  %v290 = vmul.f32 %v219, %v231
  %v291 = vmul.f32 %v220, %v231
  %v292 = vmul.f32 %v221, %v231
  %v293 = vmul.f32 %v222, %v231
  %v294 = vmul.f32 %v223, %v231
  %v295 = vmul.f32 %v224, %v231
  %v296 = vmul.f32 %v225, %v231
  %v297 = vld [vmem:[%s3] sm:$0x1]
  %v299 = vlaneseq
  %v300 = vshrl.u32 %v299, 7
  %v301 = vsub.s32 0, %v300
  %v302 = vrot.slane %v297, %v301
  %v304 = vadd.f32 %v233, %v302
  %v305 = vadd.f32 %v234, %v302
  %v306 = vadd.f32 %v235, %v302
  %v307 = vadd.f32 %v236, %v302
  %v308 = vadd.f32 %v237, %v302
  %v309 = vadd.f32 %v238, %v302
  %v310 = vadd.f32 %v239, %v302
  %v311 = vadd.f32 %v240, %v302
  %v312 = vadd.f32 %v241, %v302
  %v313 = vadd.f32 %v242, %v302
  %v314 = vadd.f32 %v243, %v302
  %v315 = vadd.f32 %v244, %v302
  %v316 = vadd.f32 %v245, %v302
  %v317 = vadd.f32 %v246, %v302
  %v318 = vadd.f32 %v247, %v302
  %v319 = vadd.f32 %v248, %v302
  %v320 = vadd.f32 %v249, %v302
  %v321 = vadd.f32 %v250, %v302
  %v322 = vadd.f32 %v251, %v302
  %v323 = vadd.f32 %v252, %v302
  %v324 = vadd.f32 %v253, %v302
  %v325 = vadd.f32 %v254, %v302
  %v326 = vadd.f32 %v255, %v302
  %v327 = vadd.f32 %v256, %v302
  %v328 = vadd.f32 %v257, %v302
  %v329 = vadd.f32 %v258, %v302
  %v330 = vadd.f32 %v259, %v302
  %v331 = vadd.f32 %v260, %v302
  %v332 = vadd.f32 %v261, %v302
  %v333 = vadd.f32 %v262, %v302
  %v334 = vadd.f32 %v263, %v302
  %v335 = vadd.f32 %v264, %v302
  %v336 = vadd.f32 %v265, %v302
  %v337 = vadd.f32 %v266, %v302
  %v338 = vadd.f32 %v267, %v302
  %v339 = vadd.f32 %v268, %v302
  %v340 = vadd.f32 %v269, %v302
  %v341 = vadd.f32 %v270, %v302
  %v342 = vadd.f32 %v271, %v302
  %v343 = vadd.f32 %v272, %v302
  %v344 = vadd.f32 %v273, %v302
  %v345 = vadd.f32 %v274, %v302
  %v346 = vadd.f32 %v275, %v302
  %v347 = vadd.f32 %v276, %v302
  %v348 = vadd.f32 %v277, %v302
  %v349 = vadd.f32 %v278, %v302
  %v350 = vadd.f32 %v279, %v302
  %v351 = vadd.f32 %v280, %v302
  %v352 = vadd.f32 %v281, %v302
  %v353 = vadd.f32 %v282, %v302
  %v354 = vadd.f32 %v283, %v302
  %v355 = vadd.f32 %v284, %v302
  %v356 = vadd.f32 %v285, %v302
  %v357 = vadd.f32 %v286, %v302
  %v358 = vadd.f32 %v287, %v302
  %v359 = vadd.f32 %v288, %v302
  %v360 = vadd.f32 %v289, %v302
  %v361 = vadd.f32 %v290, %v302
  %v362 = vadd.f32 %v291, %v302
  %v363 = vadd.f32 %v292, %v302
  %v364 = vadd.f32 %v293, %v302
  %v365 = vadd.f32 %v294, %v302
  %v366 = vadd.f32 %v295, %v302
  %v367 = vadd.f32 %v296, %v302
  %v368 = vpack.c.bf16 %v305, %v304
  %v369 = vpack.c.bf16 %v307, %v306
  %v370 = vpack.c.bf16 %v309, %v308
  %v371 = vpack.c.bf16 %v311, %v310
  %v372 = vpack.c.bf16 %v313, %v312
  %v373 = vpack.c.bf16 %v315, %v314
  %v374 = vpack.c.bf16 %v317, %v316
  %v375 = vpack.c.bf16 %v319, %v318
  %v376 = vpack.c.bf16 %v321, %v320
  %v377 = vpack.c.bf16 %v323, %v322
  %v378 = vpack.c.bf16 %v325, %v324
  %v379 = vpack.c.bf16 %v327, %v326
  %v380 = vpack.c.bf16 %v329, %v328
  %v381 = vpack.c.bf16 %v331, %v330
  %v382 = vpack.c.bf16 %v333, %v332
  %v383 = vpack.c.bf16 %v335, %v334
  %v384 = vpack.c.bf16 %v337, %v336
  %v385 = vpack.c.bf16 %v339, %v338
  %v386 = vpack.c.bf16 %v341, %v340
  %v387 = vpack.c.bf16 %v343, %v342
  %v388 = vpack.c.bf16 %v345, %v344
  %v389 = vpack.c.bf16 %v347, %v346
  %v390 = vpack.c.bf16 %v349, %v348
  %v391 = vpack.c.bf16 %v351, %v350
  %v392 = vpack.c.bf16 %v353, %v352
  %v393 = vpack.c.bf16 %v355, %v354
  %v394 = vpack.c.bf16 %v357, %v356
  %v395 = vpack.c.bf16 %v359, %v358
  %v396 = vpack.c.bf16 %v361, %v360
  %v397 = vpack.c.bf16 %v363, %v362
  %v398 = vpack.c.bf16 %v365, %v364
  %v399 = vpack.c.bf16 %v367, %v366
  %v432 = vunpack.c.l.b16 %v368
  %v433 = vunpack.c.h.b16 %v368
  %v434 = vunpack.c.l.b16 %v369
  %v435 = vunpack.c.h.b16 %v369
  %v436 = vunpack.c.l.b16 %v370
  %v437 = vunpack.c.h.b16 %v370
  %v438 = vunpack.c.l.b16 %v371
  %v439 = vunpack.c.h.b16 %v371
  %v440 = vunpack.c.l.b16 %v372
  %v441 = vunpack.c.h.b16 %v372
  %v442 = vunpack.c.l.b16 %v373
  %v443 = vunpack.c.h.b16 %v373
  %v444 = vunpack.c.l.b16 %v374
  %v445 = vunpack.c.h.b16 %v374
  %v446 = vunpack.c.l.b16 %v375
  %v447 = vunpack.c.h.b16 %v375
  %v448 = vunpack.c.l.b16 %v376
  %v449 = vunpack.c.h.b16 %v376
  %v450 = vunpack.c.l.b16 %v377
  %v451 = vunpack.c.h.b16 %v377
  %v452 = vunpack.c.l.b16 %v378
  %v453 = vunpack.c.h.b16 %v378
  %v454 = vunpack.c.l.b16 %v379
  %v455 = vunpack.c.h.b16 %v379
  %v456 = vunpack.c.l.b16 %v380
  %v457 = vunpack.c.h.b16 %v380
  %v458 = vunpack.c.l.b16 %v381
  %v459 = vunpack.c.h.b16 %v381
  %v460 = vunpack.c.l.b16 %v382
  %v461 = vunpack.c.h.b16 %v382
  %v462 = vunpack.c.l.b16 %v383
  %v463 = vunpack.c.h.b16 %v383
  %v464 = vunpack.c.l.b16 %v384
  %v465 = vunpack.c.h.b16 %v384
  %v466 = vunpack.c.l.b16 %v385
  %v467 = vunpack.c.h.b16 %v385
  %v468 = vunpack.c.l.b16 %v386
  %v469 = vunpack.c.h.b16 %v386
  %v470 = vunpack.c.l.b16 %v387
  %v471 = vunpack.c.h.b16 %v387
  %v472 = vunpack.c.l.b16 %v388
  %v473 = vunpack.c.h.b16 %v388
  %v474 = vunpack.c.l.b16 %v389
  %v475 = vunpack.c.h.b16 %v389
  %v476 = vunpack.c.l.b16 %v390
  %v477 = vunpack.c.h.b16 %v390
  %v478 = vunpack.c.l.b16 %v391
  %v479 = vunpack.c.h.b16 %v391
  %v480 = vunpack.c.l.b16 %v392
  %v481 = vunpack.c.h.b16 %v392
  %v482 = vunpack.c.l.b16 %v393
  %v483 = vunpack.c.h.b16 %v393
  %v484 = vunpack.c.l.b16 %v394
  %v485 = vunpack.c.h.b16 %v394
  %v486 = vunpack.c.l.b16 %v395
  %v487 = vunpack.c.h.b16 %v395
  %v488 = vunpack.c.l.b16 %v396
  %v489 = vunpack.c.h.b16 %v396
  %v490 = vunpack.c.l.b16 %v397
  %v491 = vunpack.c.h.b16 %v397
  %v492 = vunpack.c.l.b16 %v398
  %v493 = vunpack.c.h.b16 %v398
  %v494 = vunpack.c.l.b16 %v399
  %v495 = vunpack.c.h.b16 %v399
  %v496 = vpack.c.b16 %v432, %v432
  %v497 = vpack.c.b16 %v433, %v433
  %v498 = vpack.c.b16 %v434, %v434
  %v499 = vpack.c.b16 %v435, %v435
  %v500 = vpack.c.b16 %v436, %v436
  %v501 = vpack.c.b16 %v437, %v437
  %v502 = vpack.c.b16 %v438, %v438
  %v503 = vpack.c.b16 %v439, %v439
  %v504 = vpack.c.b16 %v440, %v440
  %v505 = vpack.c.b16 %v441, %v441
  %v506 = vpack.c.b16 %v442, %v442
  %v507 = vpack.c.b16 %v443, %v443
  %v508 = vpack.c.b16 %v444, %v444
  %v509 = vpack.c.b16 %v445, %v445
  %v510 = vpack.c.b16 %v446, %v446
  %v511 = vpack.c.b16 %v447, %v447
  %v512 = vpack.c.b16 %v448, %v448
  %v513 = vpack.c.b16 %v449, %v449
  %v514 = vpack.c.b16 %v450, %v450
  %v515 = vpack.c.b16 %v451, %v451
  %v516 = vpack.c.b16 %v452, %v452
  %v517 = vpack.c.b16 %v453, %v453
  %v518 = vpack.c.b16 %v454, %v454
  %v519 = vpack.c.b16 %v455, %v455
  %v520 = vpack.c.b16 %v456, %v456
  %v521 = vpack.c.b16 %v457, %v457
  %v522 = vpack.c.b16 %v458, %v458
  %v523 = vpack.c.b16 %v459, %v459
  %v524 = vpack.c.b16 %v460, %v460
  %v525 = vpack.c.b16 %v461, %v461
  %v526 = vpack.c.b16 %v462, %v462
  %v527 = vpack.c.b16 %v463, %v463
  %v528 = vpack.c.b16 %v464, %v464
  %v529 = vpack.c.b16 %v465, %v465
  %v530 = vpack.c.b16 %v466, %v466
  %v531 = vpack.c.b16 %v467, %v467
  %v532 = vpack.c.b16 %v468, %v468
  %v533 = vpack.c.b16 %v469, %v469
  %v534 = vpack.c.b16 %v470, %v470
  %v535 = vpack.c.b16 %v471, %v471
  %v536 = vpack.c.b16 %v472, %v472
  %v537 = vpack.c.b16 %v473, %v473
  %v538 = vpack.c.b16 %v474, %v474
  %v539 = vpack.c.b16 %v475, %v475
  %v540 = vpack.c.b16 %v476, %v476
  %v541 = vpack.c.b16 %v477, %v477
  %v542 = vpack.c.b16 %v478, %v478
  %v543 = vpack.c.b16 %v479, %v479
  %v544 = vpack.c.b16 %v480, %v480
  %v545 = vpack.c.b16 %v481, %v481
  %v546 = vpack.c.b16 %v482, %v482
  %v547 = vpack.c.b16 %v483, %v483
  %v548 = vpack.c.b16 %v484, %v484
  %v549 = vpack.c.b16 %v485, %v485
  %v550 = vpack.c.b16 %v486, %v486
  %v551 = vpack.c.b16 %v487, %v487
  %v552 = vpack.c.b16 %v488, %v488
  %v553 = vpack.c.b16 %v489, %v489
  %v554 = vpack.c.b16 %v490, %v490
  %v555 = vpack.c.b16 %v491, %v491
  %v556 = vpack.c.b16 %v492, %v492
  %v557 = vpack.c.b16 %v493, %v493
  %v558 = vpack.c.b16 %v494, %v494
  %v559 = vpack.c.b16 %v495, %v495
  %vm624 = vcmask 257024
  %625 = vst.msk [vmem:[%s4] sm:$0xf] %vm624, %v496
  %626 = vst.msk [vmem:[%s4 + $0x4] sm:$0xf] %vm624, %v497
  %627 = vst.msk [vmem:[%s4 + $0x8] sm:$0xf] %vm624, %v498
  %628 = vst.msk [vmem:[%s4 + $0xc] sm:$0xf] %vm624, %v499
  %629 = vst.msk [vmem:[%s4 + $0x10] sm:$0xf] %vm624, %v500
  %630 = vst.msk [vmem:[%s4 + $0x14] sm:$0xf] %vm624, %v501
  %631 = vst.msk [vmem:[%s4 + $0x18] sm:$0xf] %vm624, %v502
  %632 = vst.msk [vmem:[%s4 + $0x1c] sm:$0xf] %vm624, %v503
  %633 = vst.msk [vmem:[%s4 + $0x20] sm:$0xf] %vm624, %v504
  %634 = vst.msk [vmem:[%s4 + $0x24] sm:$0xf] %vm624, %v505
  %635 = vst.msk [vmem:[%s4 + $0x28] sm:$0xf] %vm624, %v506
  %636 = vst.msk [vmem:[%s4 + $0x2c] sm:$0xf] %vm624, %v507
  %637 = vst.msk [vmem:[%s4 + $0x30] sm:$0xf] %vm624, %v508
  %638 = vst.msk [vmem:[%s4 + $0x34] sm:$0xf] %vm624, %v509
  %639 = vst.msk [vmem:[%s4 + $0x38] sm:$0xf] %vm624, %v510
  %640 = vst.msk [vmem:[%s4 + $0x3c] sm:$0xf] %vm624, %v511
  %641 = vst.msk [vmem:[%s4 + $0x40] sm:$0xf] %vm624, %v512
  %642 = vst.msk [vmem:[%s4 + $0x44] sm:$0xf] %vm624, %v513
  %643 = vst.msk [vmem:[%s4 + $0x48] sm:$0xf] %vm624, %v514
  %644 = vst.msk [vmem:[%s4 + $0x4c] sm:$0xf] %vm624, %v515
  %645 = vst.msk [vmem:[%s4 + $0x50] sm:$0xf] %vm624, %v516
  %646 = vst.msk [vmem:[%s4 + $0x54] sm:$0xf] %vm624, %v517
  %647 = vst.msk [vmem:[%s4 + $0x58] sm:$0xf] %vm624, %v518
  %648 = vst.msk [vmem:[%s4 + $0x5c] sm:$0xf] %vm624, %v519
  %649 = vst.msk [vmem:[%s4 + $0x60] sm:$0xf] %vm624, %v520
  %650 = vst.msk [vmem:[%s4 + $0x64] sm:$0xf] %vm624, %v521
  %651 = vst.msk [vmem:[%s4 + $0x68] sm:$0xf] %vm624, %v522
  %652 = vst.msk [vmem:[%s4 + $0x6c] sm:$0xf] %vm624, %v523
  %653 = vst.msk [vmem:[%s4 + $0x70] sm:$0xf] %vm624, %v524
  %654 = vst.msk [vmem:[%s4 + $0x74] sm:$0xf] %vm624, %v525
  %655 = vst.msk [vmem:[%s4 + $0x78] sm:$0xf] %vm624, %v526
  %656 = vst.msk [vmem:[%s4 + $0x7c] sm:$0xf] %vm624, %v527
  %657 = vst.msk [vmem:[%s4 + $0x80] sm:$0xf] %vm624, %v528
  %658 = vst.msk [vmem:[%s4 + $0x84] sm:$0xf] %vm624, %v529
  %659 = vst.msk [vmem:[%s4 + $0x88] sm:$0xf] %vm624, %v530
  %660 = vst.msk [vmem:[%s4 + $0x8c] sm:$0xf] %vm624, %v531
  %661 = vst.msk [vmem:[%s4 + $0x90] sm:$0xf] %vm624, %v532
  %662 = vst.msk [vmem:[%s4 + $0x94] sm:$0xf] %vm624, %v533
  %663 = vst.msk [vmem:[%s4 + $0x98] sm:$0xf] %vm624, %v534
  %664 = vst.msk [vmem:[%s4 + $0x9c] sm:$0xf] %vm624, %v535
  %665 = vst.msk [vmem:[%s4 + $0xa0] sm:$0xf] %vm624, %v536
  %666 = vst.msk [vmem:[%s4 + $0xa4] sm:$0xf] %vm624, %v537
  %667 = vst.msk [vmem:[%s4 + $0xa8] sm:$0xf] %vm624, %v538
  %668 = vst.msk [vmem:[%s4 + $0xac] sm:$0xf] %vm624, %v539
  %669 = vst.msk [vmem:[%s4 + $0xb0] sm:$0xf] %vm624, %v540
  %670 = vst.msk [vmem:[%s4 + $0xb4] sm:$0xf] %vm624, %v541
  %671 = vst.msk [vmem:[%s4 + $0xb8] sm:$0xf] %vm624, %v542
  %672 = vst.msk [vmem:[%s4 + $0xbc] sm:$0xf] %vm624, %v543
  %673 = vst.msk [vmem:[%s4 + $0xc0] sm:$0xf] %vm624, %v544
  %674 = vst.msk [vmem:[%s4 + $0xc4] sm:$0xf] %vm624, %v545
  %675 = vst.msk [vmem:[%s4 + $0xc8] sm:$0xf] %vm624, %v546
  %676 = vst.msk [vmem:[%s4 + $0xcc] sm:$0xf] %vm624, %v547
  %677 = vst.msk [vmem:[%s4 + $0xd0] sm:$0xf] %vm624, %v548
  %678 = vst.msk [vmem:[%s4 + $0xd4] sm:$0xf] %vm624, %v549
  %679 = vst.msk [vmem:[%s4 + $0xd8] sm:$0xf] %vm624, %v550
  %680 = vst.msk [vmem:[%s4 + $0xdc] sm:$0xf] %vm624, %v551
  %681 = vst.msk [vmem:[%s4 + $0xe0] sm:$0xf] %vm624, %v552
  %682 = vst.msk [vmem:[%s4 + $0xe4] sm:$0xf] %vm624, %v553
  %683 = vst.msk [vmem:[%s4 + $0xe8] sm:$0xf] %vm624, %v554
  %684 = vst.msk [vmem:[%s4 + $0xec] sm:$0xf] %vm624, %v555
  %685 = vst.msk [vmem:[%s4 + $0xf0] sm:$0xf] %vm624, %v556
  %686 = vst.msk [vmem:[%s4 + $0xf4] sm:$0xf] %vm624, %v557
  %687 = vst.msk [vmem:[%s4 + $0xf8] sm:$0xf] %vm624, %v558
  %688 = vst.msk [vmem:[%s4 + $0xfc] sm:$0xf] %vm624, %v559
  // Predicated region
  $region18: #{discriminator_forward.12} parent=0 // pred_check
    _
  $region19: #{discriminator_forward.12} parent=0 // pred_check_branch
    %690 = sbr.rel (0) target = $region21
  $region20: #{discriminator_forward.12} parent=0 // pred_region
    _
  $region21: #{discriminator_forward.12} parent=0 // pred_fallthru
    _
  // Predicated region
  $region22: #{discriminator_forward.12} parent=0 // pred_check
    _
  $region23: #{discriminator_forward.12} parent=0 // pred_check_branch
    %692 = sbr.rel (0) target = $region25
  $region24: #{discriminator_forward.12} parent=0 // pred_region
    _
  $region25: #{discriminator_forward.12} parent=0 // pred_fallthru
    _

// kernel: discriminator_forward.11
$region0: #{discriminator_forward.11}
  #allocation0 [shape = 'u32[]', space=smem, size = 0x4, offset = 0x4, fixed_abs, tag = 'smem constant byte address 0x4 - core index']
  #allocation1 [shape = 'u32[144,128]{1,0:T(1,128)}', space=vmem, size = 0x12000, scoped, tag = 'internal scratch']
  %s0 = inlined_call_operand.vmem [shape: bf16[512,32], index: 0, kind: input, shape index: {}]
  %s1 = inlined_call_operand.vmem [shape: bf16[32,32], index: 1, kind: input, shape index: {}]
  %s2 = inlined_call_operand.hbm [shape: f32[1,32], index: 2, kind: input, shape index: {}]
  %s3 = inlined_call_operand.vmem [shape: f32[512,32], index: 3, kind: output, shape index: {0}]
  %s4 = inlined_call_operand.vmem [shape: f32[2,32], index: 4, kind: output, shape index: {1}]
  %5 = xla_tuple %s3, %s4
  %s6 = sld [smem:[#allocation0]]
  $region38: #{discriminator_forward.11} parent=0
    _
  %s8 = ssub.s32 1, %s6
  %s9 = scalar_select 0, %s8, %s6
  $region1: #{discriminator_forward.11} parent=0
    #allocation2 [shape = 'u8[512]{0}', space=vmem, size = 0x400, scoped, tag = 'input window, operand 2, single buffered']
    #allocation3 [shape = 's32[1]{0}', space=sflag, size = 0x4, scoped, tag = 'scoped memory for discriminator_forward.11']
    %10 = vsyncpa [#allocation3], 0
    // Predicated region
    $region2: #{discriminator_forward.11} parent=1 // pred_check
      _
    $region3: #{discriminator_forward.11} parent=1 // pred_check_branch
      %12 = sbr.rel (0) target = $region5
    $region4: #{discriminator_forward.11} parent=1 // pred_region
      _
    $region5: #{discriminator_forward.11} parent=1 // pred_fallthru
      _
    // Predicated region
    $region6: #{discriminator_forward.11} parent=1 // pred_check
      _
    $region7: #{discriminator_forward.11} parent=1 // pred_check_branch
      %14 = sbr.rel (0) target = $region9
    $region8: #{discriminator_forward.11} parent=1 // pred_region
      _
    $region9: #{discriminator_forward.11} parent=1 // pred_fallthru
      _
    // Predicated region
    $region10: #{discriminator_forward.11} parent=1 // pred_check
      _
    $region11: #{discriminator_forward.11} parent=1 // pred_check_branch
      %16 = sbr.rel (0) target = $region13
    $region12: #{discriminator_forward.11} parent=1 // pred_region
      %s18 = ssub.s32 16, 16
      %19 = vsyncadd [#allocation3], %s18
      %s21 = sshll.u32 [#allocation2], 4
      %s22 = int_to_ptr.vmem [resolvable:$true] %s21
      %24 = dma.hbm_to_vmem [thread:$0]  %s2, 16, %s22, [#allocation3]
    $region13: #{discriminator_forward.11} parent=1 // pred_fallthru
      _
    // Predicated region
    $region14: #{discriminator_forward.11} parent=1 // pred_check
      _
    $region15: #{discriminator_forward.11} parent=1 // pred_check_branch
      %26 = sbr.rel (0) target = $region17
    $region16: #{discriminator_forward.11} parent=1 // pred_region
      %27 = dma.done [#allocation3], 16
    $region17: #{discriminator_forward.11} parent=1 // pred_fallthru
      _
    %v29 = vld [vmem:[%s0] sm:$0xf]
    %v30 = vld [vmem:[%s0 + $0x4] sm:$0xf]
    %v31 = vld [vmem:[%s0 + $0x8] sm:$0xf]
    %v32 = vld [vmem:[%s0 + $0xc] sm:$0xf]
    %v33 = vld [vmem:[%s0 + $0x10] sm:$0xf]
    %v34 = vld [vmem:[%s0 + $0x14] sm:$0xf]
    %v35 = vld [vmem:[%s0 + $0x18] sm:$0xf]
    %v36 = vld [vmem:[%s0 + $0x1c] sm:$0xf]
    %v37 = vld [vmem:[%s0 + $0x20] sm:$0xf]
    %v38 = vld [vmem:[%s0 + $0x24] sm:$0xf]
    %v39 = vld [vmem:[%s0 + $0x28] sm:$0xf]
    %v40 = vld [vmem:[%s0 + $0x2c] sm:$0xf]
    %v41 = vld [vmem:[%s0 + $0x30] sm:$0xf]
    %v42 = vld [vmem:[%s0 + $0x34] sm:$0xf]
    %v43 = vld [vmem:[%s0 + $0x38] sm:$0xf]
    %v44 = vld [vmem:[%s0 + $0x3c] sm:$0xf]
    %v45 = vld [vmem:[%s0 + $0x40] sm:$0xf]
    %v46 = vld [vmem:[%s0 + $0x44] sm:$0xf]
    %v47 = vld [vmem:[%s0 + $0x48] sm:$0xf]
    %v48 = vld [vmem:[%s0 + $0x4c] sm:$0xf]
    %v49 = vld [vmem:[%s0 + $0x50] sm:$0xf]
    %v50 = vld [vmem:[%s0 + $0x54] sm:$0xf]
    %v51 = vld [vmem:[%s0 + $0x58] sm:$0xf]
    %v52 = vld [vmem:[%s0 + $0x5c] sm:$0xf]
    %v53 = vld [vmem:[%s0 + $0x60] sm:$0xf]
    %v54 = vld [vmem:[%s0 + $0x64] sm:$0xf]
    %v55 = vld [vmem:[%s0 + $0x68] sm:$0xf]
    %v56 = vld [vmem:[%s0 + $0x6c] sm:$0xf]
    %v57 = vld [vmem:[%s0 + $0x70] sm:$0xf]
    %v58 = vld [vmem:[%s0 + $0x74] sm:$0xf]
    %v59 = vld [vmem:[%s0 + $0x78] sm:$0xf]
    %v60 = vld [vmem:[%s0 + $0x7c] sm:$0xf]
    %v61 = vld [vmem:[%s0 + $0x80] sm:$0xf]
    %v62 = vld [vmem:[%s0 + $0x84] sm:$0xf]
    %v63 = vld [vmem:[%s0 + $0x88] sm:$0xf]
    %v64 = vld [vmem:[%s0 + $0x8c] sm:$0xf]
    %v65 = vld [vmem:[%s0 + $0x90] sm:$0xf]
    %v66 = vld [vmem:[%s0 + $0x94] sm:$0xf]
    %v67 = vld [vmem:[%s0 + $0x98] sm:$0xf]
    %v68 = vld [vmem:[%s0 + $0x9c] sm:$0xf]
    %v69 = vld [vmem:[%s0 + $0xa0] sm:$0xf]
    %v70 = vld [vmem:[%s0 + $0xa4] sm:$0xf]
    %v71 = vld [vmem:[%s0 + $0xa8] sm:$0xf]
    %v72 = vld [vmem:[%s0 + $0xac] sm:$0xf]
    %v73 = vld [vmem:[%s0 + $0xb0] sm:$0xf]
    %v74 = vld [vmem:[%s0 + $0xb4] sm:$0xf]
    %v75 = vld [vmem:[%s0 + $0xb8] sm:$0xf]
    %v76 = vld [vmem:[%s0 + $0xbc] sm:$0xf]
    %v77 = vld [vmem:[%s0 + $0xc0] sm:$0xf]
    %v78 = vld [vmem:[%s0 + $0xc4] sm:$0xf]
    %v79 = vld [vmem:[%s0 + $0xc8] sm:$0xf]
    %v80 = vld [vmem:[%s0 + $0xcc] sm:$0xf]
    %v81 = vld [vmem:[%s0 + $0xd0] sm:$0xf]
    %v82 = vld [vmem:[%s0 + $0xd4] sm:$0xf]
    %v83 = vld [vmem:[%s0 + $0xd8] sm:$0xf]
    %v84 = vld [vmem:[%s0 + $0xdc] sm:$0xf]
    %v85 = vld [vmem:[%s0 + $0xe0] sm:$0xf]
    %v86 = vld [vmem:[%s0 + $0xe4] sm:$0xf]
    %v87 = vld [vmem:[%s0 + $0xe8] sm:$0xf]
    %v88 = vld [vmem:[%s0 + $0xec] sm:$0xf]
    %v89 = vld [vmem:[%s0 + $0xf0] sm:$0xf]
    %v90 = vld [vmem:[%s0 + $0xf4] sm:$0xf]
    %v91 = vld [vmem:[%s0 + $0xf8] sm:$0xf]
    %v92 = vld [vmem:[%s0 + $0xfc] sm:$0xf]
    %v93 = vld [vmem:[%s1] sm:$0xf]
    %v94 = vld [vmem:[%s1 + $0x4] sm:$0xf]
    %v95 = vld [vmem:[%s1 + $0x8] sm:$0xf]
    %v96 = vld [vmem:[%s1 + $0xc] sm:$0xf]
    %v97 = vld [vmem:[#allocation2] sm:$0x1]
    %v99 = vlaneseq
    %v100 = vshrl.u32 %v99, 7
    %v101 = vsub.s32 0, %v100
    %v102 = vrot.slane %v97, %v101
    %v168 = vunpack.c.l.b16 %v29
    %v169 = vunpack.c.l.b16 %v30
    %v170 = vunpack.c.l.b16 %v31
    %v171 = vunpack.c.l.b16 %v32
    %v172 = vunpack.c.l.b16 %v33
    %v173 = vunpack.c.l.b16 %v34
    %v174 = vunpack.c.l.b16 %v35
    %v175 = vunpack.c.l.b16 %v36
    %v176 = vunpack.c.l.b16 %v37
    %v177 = vunpack.c.l.b16 %v38
    %v178 = vunpack.c.l.b16 %v39
    %v179 = vunpack.c.l.b16 %v40
    %v180 = vunpack.c.l.b16 %v41
    %v181 = vunpack.c.l.b16 %v42
    %v182 = vunpack.c.l.b16 %v43
    %v183 = vunpack.c.l.b16 %v44
    %v184 = vunpack.c.l.b16 %v45
    %v185 = vunpack.c.l.b16 %v46
    %v186 = vunpack.c.l.b16 %v47
    %v187 = vunpack.c.l.b16 %v48
    %v188 = vunpack.c.l.b16 %v49
    %v189 = vunpack.c.l.b16 %v50
    %v190 = vunpack.c.l.b16 %v51
    %v191 = vunpack.c.l.b16 %v52
    %v192 = vunpack.c.l.b16 %v53
    %v193 = vunpack.c.l.b16 %v54
    %v194 = vunpack.c.l.b16 %v55
    %v195 = vunpack.c.l.b16 %v56
    %v196 = vunpack.c.l.b16 %v57
    %v197 = vunpack.c.l.b16 %v58
    %v198 = vunpack.c.l.b16 %v59
    %v199 = vunpack.c.l.b16 %v60
    %v200 = vunpack.c.l.b16 %v61
    %v201 = vunpack.c.l.b16 %v62
    %v202 = vunpack.c.l.b16 %v63
    %v203 = vunpack.c.l.b16 %v64
    %v204 = vunpack.c.l.b16 %v65
    %v205 = vunpack.c.l.b16 %v66
    %v206 = vunpack.c.l.b16 %v67
    %v207 = vunpack.c.l.b16 %v68
    %v208 = vunpack.c.l.b16 %v69
    %v209 = vunpack.c.l.b16 %v70
    %v210 = vunpack.c.l.b16 %v71
    %v211 = vunpack.c.l.b16 %v72
    %v212 = vunpack.c.l.b16 %v73
    %v213 = vunpack.c.l.b16 %v74
    %v214 = vunpack.c.l.b16 %v75
    %v215 = vunpack.c.l.b16 %v76
    %v216 = vunpack.c.l.b16 %v77
    %v217 = vunpack.c.l.b16 %v78
    %v218 = vunpack.c.l.b16 %v79
    %v219 = vunpack.c.l.b16 %v80
    %v220 = vunpack.c.l.b16 %v81
    %v221 = vunpack.c.l.b16 %v82
    %v222 = vunpack.c.l.b16 %v83
    %v223 = vunpack.c.l.b16 %v84
    %v224 = vunpack.c.l.b16 %v85
    %v225 = vunpack.c.l.b16 %v86
    %v226 = vunpack.c.l.b16 %v87
    %v227 = vunpack.c.l.b16 %v88
    %v228 = vunpack.c.l.b16 %v89
    %v229 = vunpack.c.l.b16 %v90
    %v230 = vunpack.c.l.b16 %v91
    %v231 = vunpack.c.l.b16 %v92
    %v232 = vpack.c.b16 %v169, %v168
    %v233 = vpack.c.b16 %v171, %v170
    %v234 = vpack.c.b16 %v173, %v172
    %v235 = vpack.c.b16 %v175, %v174
    %v236 = vpack.c.b16 %v177, %v176
    %v237 = vpack.c.b16 %v179, %v178
    %v238 = vpack.c.b16 %v181, %v180
    %v239 = vpack.c.b16 %v183, %v182
    %v240 = vpack.c.b16 %v185, %v184
    %v241 = vpack.c.b16 %v187, %v186
    %v242 = vpack.c.b16 %v189, %v188
    %v243 = vpack.c.b16 %v191, %v190
    %v244 = vpack.c.b16 %v193, %v192
    %v245 = vpack.c.b16 %v195, %v194
    %v246 = vpack.c.b16 %v197, %v196
    %v247 = vpack.c.b16 %v199, %v198
    %v248 = vpack.c.b16 %v201, %v200
    %v249 = vpack.c.b16 %v203, %v202
    %v250 = vpack.c.b16 %v205, %v204
    %v251 = vpack.c.b16 %v207, %v206
    %v252 = vpack.c.b16 %v209, %v208
    %v253 = vpack.c.b16 %v211, %v210
    %v254 = vpack.c.b16 %v213, %v212
    %v255 = vpack.c.b16 %v215, %v214
    %v256 = vpack.c.b16 %v217, %v216
    %v257 = vpack.c.b16 %v219, %v218
    %v258 = vpack.c.b16 %v221, %v220
    %v259 = vpack.c.b16 %v223, %v222
    %v260 = vpack.c.b16 %v225, %v224
    %v261 = vpack.c.b16 %v227, %v226
    %v262 = vpack.c.b16 %v229, %v228
    %v263 = vpack.c.b16 %v231, %v230
    %v268 = vunpack.c.l.b16 %v93
    %v269 = vunpack.c.l.b16 %v94
    %v270 = vunpack.c.l.b16 %v95
    %v271 = vunpack.c.l.b16 %v96
    %v272 = vpack.c.b16 %v269, %v268
    %v273 = vpack.c.b16 %v271, %v270
    %vm276 = vcmask 261120
    %v278 = vsel %vm276, %v232, 0
    %v281 = vsel %vm276, %v233, 0
    %v284 = vsel %vm276, %v234, 0
    %v287 = vsel %vm276, %v235, 0
    %v290 = vsel %vm276, %v236, 0
    %v293 = vsel %vm276, %v237, 0
    %v296 = vsel %vm276, %v238, 0
    %v299 = vsel %vm276, %v239, 0
    %v302 = vsel %vm276, %v240, 0
    %v305 = vsel %vm276, %v241, 0
    %v308 = vsel %vm276, %v242, 0
    %v311 = vsel %vm276, %v243, 0
    %v314 = vsel %vm276, %v244, 0
    %v317 = vsel %vm276, %v245, 0
    %v320 = vsel %vm276, %v246, 0
    %v323 = vsel %vm276, %v247, 0
    %v326 = vsel %vm276, %v248, 0
    %v329 = vsel %vm276, %v249, 0
    %v332 = vsel %vm276, %v250, 0
    %v335 = vsel %vm276, %v251, 0
    %v338 = vsel %vm276, %v252, 0
    %v341 = vsel %vm276, %v253, 0
    %v344 = vsel %vm276, %v254, 0
    %v347 = vsel %vm276, %v255, 0
    %v350 = vsel %vm276, %v256, 0
    %v353 = vsel %vm276, %v257, 0
    %v356 = vsel %vm276, %v258, 0
    %v359 = vsel %vm276, %v259, 0
    %v362 = vsel %vm276, %v260, 0
    %v365 = vsel %vm276, %v261, 0
    %v368 = vsel %vm276, %v262, 0
    %v371 = vsel %vm276, %v263, 0
    %373 = vmatprep.subr.bf16.mxu0 0
    %374 = vmatpush1.bf16.msra.mxu0 0
    %375 = vmatprep.subr.bf16.mxu0 0
    %376 = vmatpush1.bf16.msra.mxu0 0
    %377 = vmatprep.subr.bf16.mxu0 0
    %378 = vmatpush1.bf16.msra.mxu0 0
    %379 = vmatprep.subr.bf16.mxu0 0
    %380 = vmatpush1.bf16.msra.mxu0 0
    %381 = vmatprep.subr.bf16.mxu0 0
    %382 = vmatpush1.bf16.msra.mxu0 0
    %383 = vmatprep.subr.bf16.mxu0 0
    %384 = vmatpush1.bf16.msra.mxu0 0
    %385 = vmatprep.subr.bf16.mxu0 0
    %386 = vmatpush1.bf16.msra.mxu0 %v273
    %387 = vmatprep.subr.bf16.mxu0 0
    %388 = vmatpush1.bf16.msra.mxu0 %v272
    %389 = vmatprep.subr.bf16.mxu0 0
    %390 = vmatpush2.bf16.msra.mxu0 0
    %391 = vmatprep.subr.bf16.mxu0 0
    %392 = vmatpush2.bf16.msra.mxu0 0
    %393 = vmatprep.subr.bf16.mxu0 0
    %394 = vmatpush2.bf16.msra.mxu0 0
    %395 = vmatprep.subr.bf16.mxu0 0
    %396 = vmatpush2.bf16.msra.mxu0 0
    %397 = vmatprep.subr.bf16.mxu0 0
    %398 = vmatpush2.bf16.msra.mxu0 0
    %399 = vmatprep.subr.bf16.mxu0 0
    %400 = vmatpush2.bf16.msra.mxu0 0
    %401 = vmatprep.subr.bf16.mxu0 0
    %402 = vmatpush2.bf16.msra.mxu0 0
    %403 = vmatprep.subr.bf16.mxu0 0
    %404 = vmatpush2.bf16.msra.mxu0 0
    %405 = vmatprep.mubr.bf16.mxu0 0
    %406 = vmatmul.mubr.bf16.gmra.mxu0 %v278
    %v407 = vpop.f32.mrf.mxu0
    %v408 = vadd.f32 %v102, %v407
    %v409 = vpop.f32.mrf.mxu0
    %v410 = vpop.f32.mrf.mxu0
    %v411 = vadd.f32 %v102, %v410
    %v412 = vpop.f32.mrf.mxu0
    %413 = vmatprep.mubr.bf16.mxu0 0
    %414 = vmatmul.mubr.bf16.gmra.mxu0 %v281
    %v415 = vpop.f32.mrf.mxu0
    %v416 = vadd.f32 %v102, %v415
    %v417 = vpop.f32.mrf.mxu0
    %v418 = vpop.f32.mrf.mxu0
    %v419 = vadd.f32 %v102, %v418
    %v420 = vpop.f32.mrf.mxu0
    %421 = vmatprep.mubr.bf16.mxu0 0
    %422 = vmatmul.mubr.bf16.gmra.mxu0 %v284
    %v423 = vpop.f32.mrf.mxu0
    %v424 = vadd.f32 %v102, %v423
    %v425 = vpop.f32.mrf.mxu0
    %v426 = vpop.f32.mrf.mxu0
    %v427 = vadd.f32 %v102, %v426
    %v428 = vpop.f32.mrf.mxu0
    %429 = vmatprep.mubr.bf16.mxu0 0
    %430 = vmatmul.mubr.bf16.gmra.mxu0 %v287
    %v431 = vpop.f32.mrf.mxu0
    %v432 = vadd.f32 %v102, %v431
    %v433 = vpop.f32.mrf.mxu0
    %v434 = vpop.f32.mrf.mxu0
    %v435 = vadd.f32 %v102, %v434
    %v436 = vpop.f32.mrf.mxu0
    %437 = vmatprep.mubr.bf16.mxu0 0
    %438 = vmatmul.mubr.bf16.gmra.mxu0 %v290
    %v439 = vpop.f32.mrf.mxu0
    %v440 = vadd.f32 %v102, %v439
    %v441 = vpop.f32.mrf.mxu0
    %v442 = vpop.f32.mrf.mxu0
    %v443 = vadd.f32 %v102, %v442
    %v444 = vpop.f32.mrf.mxu0
    %445 = vmatprep.mubr.bf16.mxu0 0
    %446 = vmatmul.mubr.bf16.gmra.mxu0 %v293
    %v447 = vpop.f32.mrf.mxu0
    %v448 = vadd.f32 %v102, %v447
    %v449 = vpop.f32.mrf.mxu0
    %v450 = vpop.f32.mrf.mxu0
    %v451 = vadd.f32 %v102, %v450
    %v452 = vpop.f32.mrf.mxu0
    %453 = vmatprep.mubr.bf16.mxu0 0
    %454 = vmatmul.mubr.bf16.gmra.mxu0 %v296
    %v455 = vpop.f32.mrf.mxu0
    %v456 = vadd.f32 %v102, %v455
    %v457 = vpop.f32.mrf.mxu0
    %v458 = vpop.f32.mrf.mxu0
    %v459 = vadd.f32 %v102, %v458
    %v460 = vpop.f32.mrf.mxu0
    %461 = vmatprep.mubr.bf16.mxu0 0
    %462 = vmatmul.mubr.bf16.gmra.mxu0 %v299
    %v463 = vpop.f32.mrf.mxu0
    %v464 = vadd.f32 %v102, %v463
    %v465 = vpop.f32.mrf.mxu0
    %v466 = vpop.f32.mrf.mxu0
    %v467 = vadd.f32 %v102, %v466
    %v468 = vpop.f32.mrf.mxu0
    %469 = vmatprep.mubr.bf16.mxu0 0
    %470 = vmatmul.mubr.bf16.gmra.mxu0 %v302
    %v471 = vpop.f32.mrf.mxu0
    %v472 = vadd.f32 %v102, %v471
    %v473 = vpop.f32.mrf.mxu0
    %v474 = vpop.f32.mrf.mxu0
    %v475 = vadd.f32 %v102, %v474
    %v476 = vpop.f32.mrf.mxu0
    %477 = vmatprep.mubr.bf16.mxu0 0
    %478 = vmatmul.mubr.bf16.gmra.mxu0 %v305
    %v479 = vpop.f32.mrf.mxu0
    %v480 = vadd.f32 %v102, %v479
    %v481 = vpop.f32.mrf.mxu0
    %v482 = vpop.f32.mrf.mxu0
    %v483 = vadd.f32 %v102, %v482
    %v484 = vpop.f32.mrf.mxu0
    %485 = vmatprep.mubr.bf16.mxu0 0
    %486 = vmatmul.mubr.bf16.gmra.mxu0 %v308
    %v487 = vpop.f32.mrf.mxu0
    %v488 = vadd.f32 %v102, %v487
    %v489 = vpop.f32.mrf.mxu0
    %v490 = vpop.f32.mrf.mxu0
    %v491 = vadd.f32 %v102, %v490
    %v492 = vpop.f32.mrf.mxu0
    %493 = vmatprep.mubr.bf16.mxu0 0
    %494 = vmatmul.mubr.bf16.gmra.mxu0 %v311
    %v495 = vpop.f32.mrf.mxu0
    %v496 = vadd.f32 %v102, %v495
    %v497 = vpop.f32.mrf.mxu0
    %v498 = vpop.f32.mrf.mxu0
    %v499 = vadd.f32 %v102, %v498
    %v500 = vpop.f32.mrf.mxu0
    %501 = vmatprep.mubr.bf16.mxu0 0
    %502 = vmatmul.mubr.bf16.gmra.mxu0 %v314
    %v503 = vpop.f32.mrf.mxu0
    %v504 = vadd.f32 %v102, %v503
    %v505 = vpop.f32.mrf.mxu0
    %v506 = vpop.f32.mrf.mxu0
    %v507 = vadd.f32 %v102, %v506
    %v508 = vpop.f32.mrf.mxu0
    %509 = vmatprep.mubr.bf16.mxu0 0
    %510 = vmatmul.mubr.bf16.gmra.mxu0 %v317
    %v511 = vpop.f32.mrf.mxu0
    %v512 = vadd.f32 %v102, %v511
    %v513 = vpop.f32.mrf.mxu0
    %v514 = vpop.f32.mrf.mxu0
    %v515 = vadd.f32 %v102, %v514
    %v516 = vpop.f32.mrf.mxu0
    %517 = vmatprep.mubr.bf16.mxu0 0
    %518 = vmatmul.mubr.bf16.gmra.mxu0 %v320
    %v519 = vpop.f32.mrf.mxu0
    %v520 = vadd.f32 %v102, %v519
    %v521 = vpop.f32.mrf.mxu0
    %v522 = vpop.f32.mrf.mxu0
    %v523 = vadd.f32 %v102, %v522
    %v524 = vpop.f32.mrf.mxu0
    %525 = vmatprep.mubr.bf16.mxu0 0
    %526 = vmatmul.mubr.bf16.gmra.mxu0 %v323
    %v527 = vpop.f32.mrf.mxu0
    %v528 = vadd.f32 %v102, %v527
    %v529 = vpop.f32.mrf.mxu0
    %v530 = vpop.f32.mrf.mxu0
    %v531 = vadd.f32 %v102, %v530
    %v532 = vpop.f32.mrf.mxu0
    %533 = vmatprep.mubr.bf16.mxu0 0
    %534 = vmatmul.mubr.bf16.gmra.mxu0 %v326
    %v535 = vpop.f32.mrf.mxu0
    %v536 = vadd.f32 %v102, %v535
    %v537 = vpop.f32.mrf.mxu0
    %v538 = vpop.f32.mrf.mxu0
    %v539 = vadd.f32 %v102, %v538
    %v540 = vpop.f32.mrf.mxu0
    %541 = vmatprep.mubr.bf16.mxu0 0
    %542 = vmatmul.mubr.bf16.gmra.mxu0 %v329
    %v543 = vpop.f32.mrf.mxu0
    %v544 = vadd.f32 %v102, %v543
    %v545 = vpop.f32.mrf.mxu0
    %v546 = vpop.f32.mrf.mxu0
    %v547 = vadd.f32 %v102, %v546
    %v548 = vpop.f32.mrf.mxu0
    %549 = vmatprep.mubr.bf16.mxu0 0
    %550 = vmatmul.mubr.bf16.gmra.mxu0 %v332
    %v551 = vpop.f32.mrf.mxu0
    %v552 = vadd.f32 %v102, %v551
    %v553 = vpop.f32.mrf.mxu0
    %v554 = vpop.f32.mrf.mxu0
    %v555 = vadd.f32 %v102, %v554
    %v556 = vpop.f32.mrf.mxu0
    %557 = vmatprep.mubr.bf16.mxu0 0
    %558 = vmatmul.mubr.bf16.gmra.mxu0 %v335
    %v559 = vpop.f32.mrf.mxu0
    %v560 = vadd.f32 %v102, %v559
    %v561 = vpop.f32.mrf.mxu0
    %v562 = vpop.f32.mrf.mxu0
    %v563 = vadd.f32 %v102, %v562
    %v564 = vpop.f32.mrf.mxu0
    %565 = vmatprep.mubr.bf16.mxu0 0
    %566 = vmatmul.mubr.bf16.gmra.mxu0 %v338
    %v567 = vpop.f32.mrf.mxu0
    %v568 = vadd.f32 %v102, %v567
    %v569 = vpop.f32.mrf.mxu0
    %v570 = vpop.f32.mrf.mxu0
    %v571 = vadd.f32 %v102, %v570
    %v572 = vpop.f32.mrf.mxu0
    %573 = vmatprep.mubr.bf16.mxu0 0
    %574 = vmatmul.mubr.bf16.gmra.mxu0 %v341
    %v575 = vpop.f32.mrf.mxu0
    %v576 = vadd.f32 %v102, %v575
    %v577 = vpop.f32.mrf.mxu0
    %v578 = vpop.f32.mrf.mxu0
    %v579 = vadd.f32 %v102, %v578
    %v580 = vpop.f32.mrf.mxu0
    %581 = vmatprep.mubr.bf16.mxu0 0
    %582 = vmatmul.mubr.bf16.gmra.mxu0 %v344
    %v583 = vpop.f32.mrf.mxu0
    %v584 = vadd.f32 %v102, %v583
    %v585 = vpop.f32.mrf.mxu0
    %v586 = vpop.f32.mrf.mxu0
    %v587 = vadd.f32 %v102, %v586
    %v588 = vpop.f32.mrf.mxu0
    %589 = vmatprep.mubr.bf16.mxu0 0
    %590 = vmatmul.mubr.bf16.gmra.mxu0 %v347
    %v591 = vpop.f32.mrf.mxu0
    %v592 = vadd.f32 %v102, %v591
    %v593 = vpop.f32.mrf.mxu0
    %v594 = vpop.f32.mrf.mxu0
    %v595 = vadd.f32 %v102, %v594
    %v596 = vpop.f32.mrf.mxu0
    %597 = vmatprep.mubr.bf16.mxu0 0
    %598 = vmatmul.mubr.bf16.gmra.mxu0 %v350
    %v599 = vpop.f32.mrf.mxu0
    %v600 = vadd.f32 %v102, %v599
    %v601 = vpop.f32.mrf.mxu0
    %v602 = vpop.f32.mrf.mxu0
    %v603 = vadd.f32 %v102, %v602
    %v604 = vpop.f32.mrf.mxu0
    %605 = vmatprep.mubr.bf16.mxu0 0
    %606 = vmatmul.mubr.bf16.gmra.mxu0 %v353
    %v607 = vpop.f32.mrf.mxu0
    %v608 = vadd.f32 %v102, %v607
    %v609 = vpop.f32.mrf.mxu0
    %v610 = vpop.f32.mrf.mxu0
    %v611 = vadd.f32 %v102, %v610
    %v612 = vpop.f32.mrf.mxu0
    %613 = vmatprep.mubr.bf16.mxu0 0
    %614 = vmatmul.mubr.bf16.gmra.mxu0 %v356
    %v615 = vpop.f32.mrf.mxu0
    %v616 = vadd.f32 %v102, %v615
    %v617 = vpop.f32.mrf.mxu0
    %v618 = vpop.f32.mrf.mxu0
    %v619 = vadd.f32 %v102, %v618
    %v620 = vpop.f32.mrf.mxu0
    %621 = vmatprep.mubr.bf16.mxu0 0
    %622 = vmatmul.mubr.bf16.gmra.mxu0 %v359
    %v623 = vpop.f32.mrf.mxu0
    %v624 = vadd.f32 %v102, %v623
    %v625 = vpop.f32.mrf.mxu0
    %v626 = vpop.f32.mrf.mxu0
    %v627 = vadd.f32 %v102, %v626
    %v628 = vpop.f32.mrf.mxu0
    %629 = vmatprep.mubr.bf16.mxu0 0
    %630 = vmatmul.mubr.bf16.gmra.mxu0 %v362
    %v631 = vpop.f32.mrf.mxu0
    %v632 = vadd.f32 %v102, %v631
    %v633 = vpop.f32.mrf.mxu0
    %v634 = vpop.f32.mrf.mxu0
    %v635 = vadd.f32 %v102, %v634
    %v636 = vpop.f32.mrf.mxu0
    %637 = vmatprep.mubr.bf16.mxu0 0
    %638 = vmatmul.mubr.bf16.gmra.mxu0 %v365
    %v639 = vpop.f32.mrf.mxu0
    %v640 = vadd.f32 %v102, %v639
    %v641 = vpop.f32.mrf.mxu0
    %v642 = vpop.f32.mrf.mxu0
    %v643 = vadd.f32 %v102, %v642
    %v644 = vpop.f32.mrf.mxu0
    %645 = vmatprep.mubr.bf16.mxu0 0
    %646 = vmatmul.mubr.bf16.gmra.mxu0 %v368
    %v647 = vpop.f32.mrf.mxu0
    %v648 = vadd.f32 %v102, %v647
    %v649 = vpop.f32.mrf.mxu0
    %v650 = vpop.f32.mrf.mxu0
    %v651 = vadd.f32 %v102, %v650
    %v652 = vpop.f32.mrf.mxu0
    %653 = vmatprep.mubr.bf16.mxu0 0
    %654 = vmatmul.mubr.bf16.gmra.mxu0 %v371
    %v655 = vpop.f32.mrf.mxu0
    %v656 = vadd.f32 %v102, %v655
    %v657 = vpop.f32.mrf.mxu0
    %v658 = vpop.f32.mrf.mxu0
    %v659 = vadd.f32 %v102, %v658
    %v660 = vpop.f32.mrf.mxu0
    %661 = vdwg.mxu0
    %vm662 = vcmp.gt.f32.partialorder %v408, 0.0
    %vm663 = vcmp.gt.f32.partialorder %v411, 0.0
    %vm664 = vcmp.gt.f32.partialorder %v416, 0.0
    %vm665 = vcmp.gt.f32.partialorder %v419, 0.0
    %vm666 = vcmp.gt.f32.partialorder %v424, 0.0
    %vm667 = vcmp.gt.f32.partialorder %v427, 0.0
    %vm668 = vcmp.gt.f32.partialorder %v432, 0.0
    %vm669 = vcmp.gt.f32.partialorder %v435, 0.0
    %vm670 = vcmp.gt.f32.partialorder %v440, 0.0
    %vm671 = vcmp.gt.f32.partialorder %v443, 0.0
    %vm672 = vcmp.gt.f32.partialorder %v448, 0.0
    %vm673 = vcmp.gt.f32.partialorder %v451, 0.0
    %vm674 = vcmp.gt.f32.partialorder %v456, 0.0
    %vm675 = vcmp.gt.f32.partialorder %v459, 0.0
    %vm676 = vcmp.gt.f32.partialorder %v464, 0.0
    %vm677 = vcmp.gt.f32.partialorder %v467, 0.0
    %vm678 = vcmp.gt.f32.partialorder %v472, 0.0
    %vm679 = vcmp.gt.f32.partialorder %v475, 0.0
    %vm680 = vcmp.gt.f32.partialorder %v480, 0.0
    %vm681 = vcmp.gt.f32.partialorder %v483, 0.0
    %vm682 = vcmp.gt.f32.partialorder %v488, 0.0
    %vm683 = vcmp.gt.f32.partialorder %v491, 0.0
    %vm684 = vcmp.gt.f32.partialorder %v496, 0.0
    %vm685 = vcmp.gt.f32.partialorder %v499, 0.0
    %vm686 = vcmp.gt.f32.partialorder %v504, 0.0
    %vm687 = vcmp.gt.f32.partialorder %v507, 0.0
    %vm688 = vcmp.gt.f32.partialorder %v512, 0.0
    %vm689 = vcmp.gt.f32.partialorder %v515, 0.0
    %vm690 = vcmp.gt.f32.partialorder %v520, 0.0
    %vm691 = vcmp.gt.f32.partialorder %v523, 0.0
    %vm692 = vcmp.gt.f32.partialorder %v528, 0.0
    %vm693 = vcmp.gt.f32.partialorder %v531, 0.0
    %vm694 = vcmp.gt.f32.partialorder %v536, 0.0
    %vm695 = vcmp.gt.f32.partialorder %v539, 0.0
    %vm696 = vcmp.gt.f32.partialorder %v544, 0.0
    %vm697 = vcmp.gt.f32.partialorder %v547, 0.0
    %vm698 = vcmp.gt.f32.partialorder %v552, 0.0
    %vm699 = vcmp.gt.f32.partialorder %v555, 0.0
    %vm700 = vcmp.gt.f32.partialorder %v560, 0.0
    %vm701 = vcmp.gt.f32.partialorder %v563, 0.0
    %vm702 = vcmp.gt.f32.partialorder %v568, 0.0
    %vm703 = vcmp.gt.f32.partialorder %v571, 0.0
    %vm704 = vcmp.gt.f32.partialorder %v576, 0.0
    %vm705 = vcmp.gt.f32.partialorder %v579, 0.0
    %vm706 = vcmp.gt.f32.partialorder %v584, 0.0
    %vm707 = vcmp.gt.f32.partialorder %v587, 0.0
    %vm708 = vcmp.gt.f32.partialorder %v592, 0.0
    %vm709 = vcmp.gt.f32.partialorder %v595, 0.0
    %vm710 = vcmp.gt.f32.partialorder %v600, 0.0
    %vm711 = vcmp.gt.f32.partialorder %v603, 0.0
    %vm712 = vcmp.gt.f32.partialorder %v608, 0.0
    %vm713 = vcmp.gt.f32.partialorder %v611, 0.0
    %vm714 = vcmp.gt.f32.partialorder %v616, 0.0
    %vm715 = vcmp.gt.f32.partialorder %v619, 0.0
    %vm716 = vcmp.gt.f32.partialorder %v624, 0.0
    %vm717 = vcmp.gt.f32.partialorder %v627, 0.0
    %vm718 = vcmp.gt.f32.partialorder %v632, 0.0
    %vm719 = vcmp.gt.f32.partialorder %v635, 0.0
    %vm720 = vcmp.gt.f32.partialorder %v640, 0.0
    %vm721 = vcmp.gt.f32.partialorder %v643, 0.0
    %vm722 = vcmp.gt.f32.partialorder %v648, 0.0
    %vm723 = vcmp.gt.f32.partialorder %v651, 0.0
    %vm724 = vcmp.gt.f32.partialorder %v656, 0.0
    %vm725 = vcmp.gt.f32.partialorder %v659, 0.0
    %v726 = vmul.f32 %v408, 0.2
    %v727 = vmul.f32 %v411, 0.2
    %v728 = vmul.f32 %v416, 0.2
    %v729 = vmul.f32 %v419, 0.2
    %v730 = vmul.f32 %v424, 0.2
    %v731 = vmul.f32 %v427, 0.2
    %v732 = vmul.f32 %v432, 0.2
    %v733 = vmul.f32 %v435, 0.2
    %v734 = vmul.f32 %v440, 0.2
    %v735 = vmul.f32 %v443, 0.2
    %v736 = vmul.f32 %v448, 0.2
    %v737 = vmul.f32 %v451, 0.2
    %v738 = vmul.f32 %v456, 0.2
    %v739 = vmul.f32 %v459, 0.2
    %v740 = vmul.f32 %v464, 0.2
    %v741 = vmul.f32 %v467, 0.2
    %v742 = vmul.f32 %v472, 0.2
    %v743 = vmul.f32 %v475, 0.2
    %v744 = vmul.f32 %v480, 0.2
    %v745 = vmul.f32 %v483, 0.2
    %v746 = vmul.f32 %v488, 0.2
    %v747 = vmul.f32 %v491, 0.2
    %v748 = vmul.f32 %v496, 0.2
    %v749 = vmul.f32 %v499, 0.2
    %v750 = vmul.f32 %v504, 0.2
    %v751 = vmul.f32 %v507, 0.2
    %v752 = vmul.f32 %v512, 0.2
    %v753 = vmul.f32 %v515, 0.2
    %v754 = vmul.f32 %v520, 0.2
    %v755 = vmul.f32 %v523, 0.2
    %v756 = vmul.f32 %v528, 0.2
    %v757 = vmul.f32 %v531, 0.2
    %v758 = vmul.f32 %v536, 0.2
    %v759 = vmul.f32 %v539, 0.2
    %v760 = vmul.f32 %v544, 0.2
    %v761 = vmul.f32 %v547, 0.2
    %v762 = vmul.f32 %v552, 0.2
    %v763 = vmul.f32 %v555, 0.2
    %v764 = vmul.f32 %v560, 0.2
    %v765 = vmul.f32 %v563, 0.2
    %v766 = vmul.f32 %v568, 0.2
    %v767 = vmul.f32 %v571, 0.2
    %v768 = vmul.f32 %v576, 0.2
    %v769 = vmul.f32 %v579, 0.2
    %v770 = vmul.f32 %v584, 0.2
    %v771 = vmul.f32 %v587, 0.2
    %v772 = vmul.f32 %v592, 0.2
    %v773 = vmul.f32 %v595, 0.2
    %v774 = vmul.f32 %v600, 0.2
    %v775 = vmul.f32 %v603, 0.2
    %v776 = vmul.f32 %v608, 0.2
    %v777 = vmul.f32 %v611, 0.2
    %v778 = vmul.f32 %v616, 0.2
    %v779 = vmul.f32 %v619, 0.2
    %v780 = vmul.f32 %v624, 0.2
    %v781 = vmul.f32 %v627, 0.2
    %v782 = vmul.f32 %v632, 0.2
    %v783 = vmul.f32 %v635, 0.2
    %v784 = vmul.f32 %v640, 0.2
    %v785 = vmul.f32 %v643, 0.2
    %v786 = vmul.f32 %v648, 0.2
    %v787 = vmul.f32 %v651, 0.2
    %v788 = vmul.f32 %v656, 0.2
    %v789 = vmul.f32 %v659, 0.2
    %v790 = vsel %vm662, %v408, %v726
    %v791 = vsel %vm663, %v411, %v727
    %v792 = vsel %vm664, %v416, %v728
    %v793 = vsel %vm665, %v419, %v729
    %v794 = vsel %vm666, %v424, %v730
    %v795 = vsel %vm667, %v427, %v731
    %v796 = vsel %vm668, %v432, %v732
    %v797 = vsel %vm669, %v435, %v733
    %v798 = vsel %vm670, %v440, %v734
    %v799 = vsel %vm671, %v443, %v735
    %v800 = vsel %vm672, %v448, %v736
    %v801 = vsel %vm673, %v451, %v737
    %v802 = vsel %vm674, %v456, %v738
    %v803 = vsel %vm675, %v459, %v739
    %v804 = vsel %vm676, %v464, %v740
    %v805 = vsel %vm677, %v467, %v741
    %v806 = vsel %vm678, %v472, %v742
    %v807 = vsel %vm679, %v475, %v743
    %v808 = vsel %vm680, %v480, %v744
    %v809 = vsel %vm681, %v483, %v745
    %v810 = vsel %vm682, %v488, %v746
    %v811 = vsel %vm683, %v491, %v747
    %v812 = vsel %vm684, %v496, %v748
    %v813 = vsel %vm685, %v499, %v749
    %v814 = vsel %vm686, %v504, %v750
    %v815 = vsel %vm687, %v507, %v751
    %v816 = vsel %vm688, %v512, %v752
    %v817 = vsel %vm689, %v515, %v753
    %v818 = vsel %vm690, %v520, %v754
    %v819 = vsel %vm691, %v523, %v755
    %v820 = vsel %vm692, %v528, %v756
    %v821 = vsel %vm693, %v531, %v757
    %v822 = vsel %vm694, %v536, %v758
    %v823 = vsel %vm695, %v539, %v759
    %v824 = vsel %vm696, %v544, %v760
    %v825 = vsel %vm697, %v547, %v761
    %v826 = vsel %vm698, %v552, %v762
    %v827 = vsel %vm699, %v555, %v763
    %v828 = vsel %vm700, %v560, %v764
    %v829 = vsel %vm701, %v563, %v765
    %v830 = vsel %vm702, %v568, %v766
    %v831 = vsel %vm703, %v571, %v767
    %v832 = vsel %vm704, %v576, %v768
    %v833 = vsel %vm705, %v579, %v769
    %v834 = vsel %vm706, %v584, %v770
    %v835 = vsel %vm707, %v587, %v771
    %v836 = vsel %vm708, %v592, %v772
    %v837 = vsel %vm709, %v595, %v773
    %v838 = vsel %vm710, %v600, %v774
    %v839 = vsel %vm711, %v603, %v775
    %v840 = vsel %vm712, %v608, %v776
    %v841 = vsel %vm713, %v611, %v777
    %v842 = vsel %vm714, %v616, %v778
    %v843 = vsel %vm715, %v619, %v779
    %v844 = vsel %vm716, %v624, %v780
    %v845 = vsel %vm717, %v627, %v781
    %v846 = vsel %vm718, %v632, %v782
    %v847 = vsel %vm719, %v635, %v783
    %v848 = vsel %vm720, %v640, %v784
    %v849 = vsel %vm721, %v643, %v785
    %v850 = vsel %vm722, %v648, %v786
    %v851 = vsel %vm723, %v651, %v787
    %v852 = vsel %vm724, %v656, %v788
    %v853 = vsel %vm725, %v659, %v789
    %854 = vst.msk [vmem:[%s3] sm:$0xff] %vm276, %v790
    %855 = vst.msk [vmem:[%s3 + $0x8] sm:$0xff] %vm276, %v791
    %856 = vst.msk [vmem:[%s3 + $0x10] sm:$0xff] %vm276, %v792
    %857 = vst.msk [vmem:[%s3 + $0x18] sm:$0xff] %vm276, %v793
    %858 = vst.msk [vmem:[%s3 + $0x20] sm:$0xff] %vm276, %v794
    %859 = vst.msk [vmem:[%s3 + $0x28] sm:$0xff] %vm276, %v795
    %860 = vst.msk [vmem:[%s3 + $0x30] sm:$0xff] %vm276, %v796
    %861 = vst.msk [vmem:[%s3 + $0x38] sm:$0xff] %vm276, %v797
    %862 = vst.msk [vmem:[%s3 + $0x40] sm:$0xff] %vm276, %v798
    %863 = vst.msk [vmem:[%s3 + $0x48] sm:$0xff] %vm276, %v799
    %864 = vst.msk [vmem:[%s3 + $0x50] sm:$0xff] %vm276, %v800
    %865 = vst.msk [vmem:[%s3 + $0x58] sm:$0xff] %vm276, %v801
    %866 = vst.msk [vmem:[%s3 + $0x60] sm:$0xff] %vm276, %v802
    %867 = vst.msk [vmem:[%s3 + $0x68] sm:$0xff] %vm276, %v803
    %868 = vst.msk [vmem:[%s3 + $0x70] sm:$0xff] %vm276, %v804
    %869 = vst.msk [vmem:[%s3 + $0x78] sm:$0xff] %vm276, %v805
    %870 = vst.msk [vmem:[%s3 + $0x80] sm:$0xff] %vm276, %v806
    %871 = vst.msk [vmem:[%s3 + $0x88] sm:$0xff] %vm276, %v807
    %872 = vst.msk [vmem:[%s3 + $0x90] sm:$0xff] %vm276, %v808
    %873 = vst.msk [vmem:[%s3 + $0x98] sm:$0xff] %vm276, %v809
    %874 = vst.msk [vmem:[%s3 + $0xa0] sm:$0xff] %vm276, %v810
    %875 = vst.msk [vmem:[%s3 + $0xa8] sm:$0xff] %vm276, %v811
    %876 = vst.msk [vmem:[%s3 + $0xb0] sm:$0xff] %vm276, %v812
    %877 = vst.msk [vmem:[%s3 + $0xb8] sm:$0xff] %vm276, %v813
    %878 = vst.msk [vmem:[%s3 + $0xc0] sm:$0xff] %vm276, %v814
    %879 = vst.msk [vmem:[%s3 + $0xc8] sm:$0xff] %vm276, %v815
    %880 = vst.msk [vmem:[%s3 + $0xd0] sm:$0xff] %vm276, %v816
    %881 = vst.msk [vmem:[%s3 + $0xd8] sm:$0xff] %vm276, %v817
    %882 = vst.msk [vmem:[%s3 + $0xe0] sm:$0xff] %vm276, %v818
    %883 = vst.msk [vmem:[%s3 + $0xe8] sm:$0xff] %vm276, %v819
    %884 = vst.msk [vmem:[%s3 + $0xf0] sm:$0xff] %vm276, %v820
    %885 = vst.msk [vmem:[%s3 + $0xf8] sm:$0xff] %vm276, %v821
    %886 = vst.msk [vmem:[%s3 + $0x100] sm:$0xff] %vm276, %v822
    %887 = vst.msk [vmem:[%s3 + $0x108] sm:$0xff] %vm276, %v823
    %888 = vst.msk [vmem:[%s3 + $0x110] sm:$0xff] %vm276, %v824
    %889 = vst.msk [vmem:[%s3 + $0x118] sm:$0xff] %vm276, %v825
    %890 = vst.msk [vmem:[%s3 + $0x120] sm:$0xff] %vm276, %v826
    %891 = vst.msk [vmem:[%s3 + $0x128] sm:$0xff] %vm276, %v827
    %892 = vst.msk [vmem:[%s3 + $0x130] sm:$0xff] %vm276, %v828
    %893 = vst.msk [vmem:[%s3 + $0x138] sm:$0xff] %vm276, %v829
    %894 = vst.msk [vmem:[%s3 + $0x140] sm:$0xff] %vm276, %v830
    %895 = vst.msk [vmem:[%s3 + $0x148] sm:$0xff] %vm276, %v831
    %896 = vst.msk [vmem:[%s3 + $0x150] sm:$0xff] %vm276, %v832
    %897 = vst.msk [vmem:[%s3 + $0x158] sm:$0xff] %vm276, %v833
    %898 = vst.msk [vmem:[%s3 + $0x160] sm:$0xff] %vm276, %v834
    %899 = vst.msk [vmem:[%s3 + $0x168] sm:$0xff] %vm276, %v835
    %900 = vst.msk [vmem:[%s3 + $0x170] sm:$0xff] %vm276, %v836
    %901 = vst.msk [vmem:[%s3 + $0x178] sm:$0xff] %vm276, %v837
    %902 = vst.msk [vmem:[%s3 + $0x180] sm:$0xff] %vm276, %v838
    %903 = vst.msk [vmem:[%s3 + $0x188] sm:$0xff] %vm276, %v839
    %904 = vst.msk [vmem:[%s3 + $0x190] sm:$0xff] %vm276, %v840
    %905 = vst.msk [vmem:[%s3 + $0x198] sm:$0xff] %vm276, %v841
    %906 = vst.msk [vmem:[%s3 + $0x1a0] sm:$0xff] %vm276, %v842
    %907 = vst.msk [vmem:[%s3 + $0x1a8] sm:$0xff] %vm276, %v843
    %908 = vst.msk [vmem:[%s3 + $0x1b0] sm:$0xff] %vm276, %v844
    %909 = vst.msk [vmem:[%s3 + $0x1b8] sm:$0xff] %vm276, %v845
    %910 = vst.msk [vmem:[%s3 + $0x1c0] sm:$0xff] %vm276, %v846
    %911 = vst.msk [vmem:[%s3 + $0x1c8] sm:$0xff] %vm276, %v847
    %912 = vst.msk [vmem:[%s3 + $0x1d0] sm:$0xff] %vm276, %v848
    %913 = vst.msk [vmem:[%s3 + $0x1d8] sm:$0xff] %vm276, %v849
    %914 = vst.msk [vmem:[%s3 + $0x1e0] sm:$0xff] %vm276, %v850
    %915 = vst.msk [vmem:[%s3 + $0x1e8] sm:$0xff] %vm276, %v851
    %916 = vst.msk [vmem:[%s3 + $0x1f0] sm:$0xff] %vm276, %v852
    %917 = vst.msk [vmem:[%s3 + $0x1f8] sm:$0xff] %vm276, %v853
    %v918 = vsel %vm276, %v790, 0.0
    %v919 = vsel %vm276, %v791, 0.0
    %v920 = vadd.f32 %v918, %v919
    %v921 = vsel %vm276, %v792, 0.0
    %v922 = vadd.f32 %v920, %v921
    %v923 = vsel %vm276, %v793, 0.0
    %v924 = vadd.f32 %v922, %v923
    %v925 = vsel %vm276, %v794, 0.0
    %v926 = vadd.f32 %v924, %v925
    %v927 = vsel %vm276, %v795, 0.0
    %v928 = vadd.f32 %v926, %v927
    %v929 = vsel %vm276, %v796, 0.0
    %v930 = vadd.f32 %v928, %v929
    %v931 = vsel %vm276, %v797, 0.0
    %v932 = vadd.f32 %v930, %v931
    %v933 = vsel %vm276, %v798, 0.0
    %v934 = vadd.f32 %v932, %v933
    %v935 = vsel %vm276, %v799, 0.0
    %v936 = vadd.f32 %v934, %v935
    %v937 = vsel %vm276, %v800, 0.0
    %v938 = vadd.f32 %v936, %v937
    %v939 = vsel %vm276, %v801, 0.0
    %v940 = vadd.f32 %v938, %v939
    %v941 = vsel %vm276, %v802, 0.0
    %v942 = vadd.f32 %v940, %v941
    %v943 = vsel %vm276, %v803, 0.0
    %v944 = vadd.f32 %v942, %v943
    %v945 = vsel %vm276, %v804, 0.0
    %v946 = vadd.f32 %v944, %v945
    %v947 = vsel %vm276, %v805, 0.0
    %v948 = vadd.f32 %v946, %v947
    %v949 = vsel %vm276, %v806, 0.0
    %v950 = vadd.f32 %v948, %v949
    %v951 = vsel %vm276, %v807, 0.0
    %v952 = vadd.f32 %v950, %v951
    %v953 = vsel %vm276, %v808, 0.0
    %v954 = vadd.f32 %v952, %v953
    %v955 = vsel %vm276, %v809, 0.0
    %v956 = vadd.f32 %v954, %v955
    %v957 = vsel %vm276, %v810, 0.0
    %v958 = vadd.f32 %v956, %v957
    %v959 = vsel %vm276, %v811, 0.0
    %v960 = vadd.f32 %v958, %v959
    %v961 = vsel %vm276, %v812, 0.0
    %v962 = vadd.f32 %v960, %v961
    %v963 = vsel %vm276, %v813, 0.0
    %v964 = vadd.f32 %v962, %v963
    %v965 = vsel %vm276, %v814, 0.0
    %v966 = vadd.f32 %v964, %v965
    %v967 = vsel %vm276, %v815, 0.0
    %v968 = vadd.f32 %v966, %v967
    %v969 = vsel %vm276, %v816, 0.0
    %v970 = vadd.f32 %v968, %v969
    %v971 = vsel %vm276, %v817, 0.0
    %v972 = vadd.f32 %v970, %v971
    %v973 = vsel %vm276, %v818, 0.0
    %v974 = vadd.f32 %v972, %v973
    %v975 = vsel %vm276, %v819, 0.0
    %v976 = vadd.f32 %v974, %v975
    %v977 = vsel %vm276, %v820, 0.0
    %v978 = vadd.f32 %v976, %v977
    %v979 = vsel %vm276, %v821, 0.0
    %v980 = vadd.f32 %v978, %v979
    %v981 = vsel %vm276, %v822, 0.0
    %v982 = vadd.f32 %v980, %v981
    %v983 = vsel %vm276, %v823, 0.0
    %v984 = vadd.f32 %v982, %v983
    %v985 = vsel %vm276, %v824, 0.0
    %v986 = vadd.f32 %v984, %v985
    %v987 = vsel %vm276, %v825, 0.0
    %v988 = vadd.f32 %v986, %v987
    %v989 = vsel %vm276, %v826, 0.0
    %v990 = vadd.f32 %v988, %v989
    %v991 = vsel %vm276, %v827, 0.0
    %v992 = vadd.f32 %v990, %v991
    %v993 = vsel %vm276, %v828, 0.0
    %v994 = vadd.f32 %v992, %v993
    %v995 = vsel %vm276, %v829, 0.0
    %v996 = vadd.f32 %v994, %v995
    %v997 = vsel %vm276, %v830, 0.0
    %v998 = vadd.f32 %v996, %v997
    %v999 = vsel %vm276, %v831, 0.0
    %v1000 = vadd.f32 %v998, %v999
    %v1001 = vsel %vm276, %v832, 0.0
    %v1002 = vadd.f32 %v1000, %v1001
    %v1003 = vsel %vm276, %v833, 0.0
    %v1004 = vadd.f32 %v1002, %v1003
    %v1005 = vsel %vm276, %v834, 0.0
    %v1006 = vadd.f32 %v1004, %v1005
    %v1007 = vsel %vm276, %v835, 0.0
    %v1008 = vadd.f32 %v1006, %v1007
    %v1009 = vsel %vm276, %v836, 0.0
    %v1010 = vadd.f32 %v1008, %v1009
    %v1011 = vsel %vm276, %v837, 0.0
    %v1012 = vadd.f32 %v1010, %v1011
    %v1013 = vsel %vm276, %v838, 0.0
    %v1014 = vadd.f32 %v1012, %v1013
    %v1015 = vsel %vm276, %v839, 0.0
    %v1016 = vadd.f32 %v1014, %v1015
    %v1017 = vsel %vm276, %v840, 0.0
    %v1018 = vadd.f32 %v1016, %v1017
    %v1019 = vsel %vm276, %v841, 0.0
    %v1020 = vadd.f32 %v1018, %v1019
    %v1021 = vsel %vm276, %v842, 0.0
    %v1022 = vadd.f32 %v1020, %v1021
    %v1023 = vsel %vm276, %v843, 0.0
    %v1024 = vadd.f32 %v1022, %v1023
    %v1025 = vsel %vm276, %v844, 0.0
    %v1026 = vadd.f32 %v1024, %v1025
    %v1027 = vsel %vm276, %v845, 0.0
    %v1028 = vadd.f32 %v1026, %v1027
    %v1029 = vsel %vm276, %v846, 0.0
    %v1030 = vadd.f32 %v1028, %v1029
    %v1031 = vsel %vm276, %v847, 0.0
    %v1032 = vadd.f32 %v1030, %v1031
    %v1033 = vsel %vm276, %v848, 0.0
    %v1034 = vadd.f32 %v1032, %v1033
    %v1035 = vsel %vm276, %v849, 0.0
    %v1036 = vadd.f32 %v1034, %v1035
    %v1037 = vsel %vm276, %v850, 0.0
    %v1038 = vadd.f32 %v1036, %v1037
    %v1039 = vsel %vm276, %v851, 0.0
    %v1040 = vadd.f32 %v1038, %v1039
    %v1041 = vsel %vm276, %v852, 0.0
    %v1042 = vadd.f32 %v1040, %v1041
    %v1043 = vsel %vm276, %v853, 0.0
    %v1044 = vadd.f32 %v1042, %v1043
    %v1045 = vrot.slane %v1044, 4
    %v1046 = vadd.f32 %v1044, %v1045
    %v1047 = vrot.slane %v1046, 2
    %v1048 = vadd.f32 %v1046, %v1047
    %v1049 = vrot.slane %v1048, 1
    %v1050 = vadd.f32 %v1048, %v1049
    %v1051 = vmul.f32 %v790, %v790
    %v1052 = vmul.f32 %v791, %v791
    %v1053 = vmul.f32 %v792, %v792
    %v1054 = vmul.f32 %v793, %v793
    %v1055 = vmul.f32 %v794, %v794
    %v1056 = vmul.f32 %v795, %v795
    %v1057 = vmul.f32 %v796, %v796
    %v1058 = vmul.f32 %v797, %v797
    %v1059 = vmul.f32 %v798, %v798
    %v1060 = vmul.f32 %v799, %v799
    %v1061 = vmul.f32 %v800, %v800
    %v1062 = vmul.f32 %v801, %v801
    %v1063 = vmul.f32 %v802, %v802
    %v1064 = vmul.f32 %v803, %v803
    %v1065 = vmul.f32 %v804, %v804
    %v1066 = vmul.f32 %v805, %v805
    %v1067 = vmul.f32 %v806, %v806
    %v1068 = vmul.f32 %v807, %v807
    %v1069 = vmul.f32 %v808, %v808
    %v1070 = vmul.f32 %v809, %v809
    %v1071 = vmul.f32 %v810, %v810
    %v1072 = vmul.f32 %v811, %v811
    %v1073 = vmul.f32 %v812, %v812
    %v1074 = vmul.f32 %v813, %v813
    %v1075 = vmul.f32 %v814, %v814
    %v1076 = vmul.f32 %v815, %v815
    %v1077 = vmul.f32 %v816, %v816
    %v1078 = vmul.f32 %v817, %v817
    %v1079 = vmul.f32 %v818, %v818
    %v1080 = vmul.f32 %v819, %v819
    %v1081 = vmul.f32 %v820, %v820
    %v1082 = vmul.f32 %v821, %v821
    %v1083 = vmul.f32 %v822, %v822
    %v1084 = vmul.f32 %v823, %v823
    %v1085 = vmul.f32 %v824, %v824
    %v1086 = vmul.f32 %v825, %v825
    %v1087 = vmul.f32 %v826, %v826
    %v1088 = vmul.f32 %v827, %v827
    %v1089 = vmul.f32 %v828, %v828
    %v1090 = vmul.f32 %v829, %v829
    %v1091 = vmul.f32 %v830, %v830
    %v1092 = vmul.f32 %v831, %v831
    %v1093 = vmul.f32 %v832, %v832
    %v1094 = vmul.f32 %v833, %v833
    %v1095 = vmul.f32 %v834, %v834
    %v1096 = vmul.f32 %v835, %v835
    %v1097 = vmul.f32 %v836, %v836
    %v1098 = vmul.f32 %v837, %v837
    %v1099 = vmul.f32 %v838, %v838
    %v1100 = vmul.f32 %v839, %v839
    %v1101 = vmul.f32 %v840, %v840
    %v1102 = vmul.f32 %v841, %v841
    %v1103 = vmul.f32 %v842, %v842
    %v1104 = vmul.f32 %v843, %v843
    %v1105 = vmul.f32 %v844, %v844
    %v1106 = vmul.f32 %v845, %v845
    %v1107 = vmul.f32 %v846, %v846
    %v1108 = vmul.f32 %v847, %v847
    %v1109 = vmul.f32 %v848, %v848
    %v1110 = vmul.f32 %v849, %v849
    %v1111 = vmul.f32 %v850, %v850
    %v1112 = vmul.f32 %v851, %v851
    %v1113 = vmul.f32 %v852, %v852
    %v1114 = vmul.f32 %v853, %v853
    %v1115 = vsel %vm276, %v1051, 0.0
    %v1116 = vsel %vm276, %v1052, 0.0
    %v1117 = vadd.f32 %v1115, %v1116
    %v1118 = vsel %vm276, %v1053, 0.0
    %v1119 = vadd.f32 %v1117, %v1118
    %v1120 = vsel %vm276, %v1054, 0.0
    %v1121 = vadd.f32 %v1119, %v1120
    %v1122 = vsel %vm276, %v1055, 0.0
    %v1123 = vadd.f32 %v1121, %v1122
    %v1124 = vsel %vm276, %v1056, 0.0
    %v1125 = vadd.f32 %v1123, %v1124
    %v1126 = vsel %vm276, %v1057, 0.0
    %v1127 = vadd.f32 %v1125, %v1126
    %v1128 = vsel %vm276, %v1058, 0.0
    %v1129 = vadd.f32 %v1127, %v1128
    %v1130 = vsel %vm276, %v1059, 0.0
    %v1131 = vadd.f32 %v1129, %v1130
    %v1132 = vsel %vm276, %v1060, 0.0
    %v1133 = vadd.f32 %v1131, %v1132
    %v1134 = vsel %vm276, %v1061, 0.0
    %v1135 = vadd.f32 %v1133, %v1134
    %v1136 = vsel %vm276, %v1062, 0.0
    %v1137 = vadd.f32 %v1135, %v1136
    %v1138 = vsel %vm276, %v1063, 0.0
    %v1139 = vadd.f32 %v1137, %v1138
    %v1140 = vsel %vm276, %v1064, 0.0
    %v1141 = vadd.f32 %v1139, %v1140
    %v1142 = vsel %vm276, %v1065, 0.0
    %v1143 = vadd.f32 %v1141, %v1142
    %v1144 = vsel %vm276, %v1066, 0.0
    %v1145 = vadd.f32 %v1143, %v1144
    %v1146 = vsel %vm276, %v1067, 0.0
    %v1147 = vadd.f32 %v1145, %v1146
    %v1148 = vsel %vm276, %v1068, 0.0
    %v1149 = vadd.f32 %v1147, %v1148
    %v1150 = vsel %vm276, %v1069, 0.0
    %v1151 = vadd.f32 %v1149, %v1150
    %v1152 = vsel %vm276, %v1070, 0.0
    %v1153 = vadd.f32 %v1151, %v1152
    %v1154 = vsel %vm276, %v1071, 0.0
    %v1155 = vadd.f32 %v1153, %v1154
    %v1156 = vsel %vm276, %v1072, 0.0
    %v1157 = vadd.f32 %v1155, %v1156
    %v1158 = vsel %vm276, %v1073, 0.0
    %v1159 = vadd.f32 %v1157, %v1158
    %v1160 = vsel %vm276, %v1074, 0.0
    %v1161 = vadd.f32 %v1159, %v1160
    %v1162 = vsel %vm276, %v1075, 0.0
    %v1163 = vadd.f32 %v1161, %v1162
    %v1164 = vsel %vm276, %v1076, 0.0
    %v1165 = vadd.f32 %v1163, %v1164
    %v1166 = vsel %vm276, %v1077, 0.0
    %v1167 = vadd.f32 %v1165, %v1166
    %v1168 = vsel %vm276, %v1078, 0.0
    %v1169 = vadd.f32 %v1167, %v1168
    %v1170 = vsel %vm276, %v1079, 0.0
    %v1171 = vadd.f32 %v1169, %v1170
    %v1172 = vsel %vm276, %v1080, 0.0
    %v1173 = vadd.f32 %v1171, %v1172
    %v1174 = vsel %vm276, %v1081, 0.0
    %v1175 = vadd.f32 %v1173, %v1174
    %v1176 = vsel %vm276, %v1082, 0.0
    %v1177 = vadd.f32 %v1175, %v1176
    %v1178 = vsel %vm276, %v1083, 0.0
    %v1179 = vadd.f32 %v1177, %v1178
    %v1180 = vsel %vm276, %v1084, 0.0
    %v1181 = vadd.f32 %v1179, %v1180
    %v1182 = vsel %vm276, %v1085, 0.0
    %v1183 = vadd.f32 %v1181, %v1182
    %v1184 = vsel %vm276, %v1086, 0.0
    %v1185 = vadd.f32 %v1183, %v1184
    %v1186 = vsel %vm276, %v1087, 0.0
    %v1187 = vadd.f32 %v1185, %v1186
    %v1188 = vsel %vm276, %v1088, 0.0
    %v1189 = vadd.f32 %v1187, %v1188
    %v1190 = vsel %vm276, %v1089, 0.0
    %v1191 = vadd.f32 %v1189, %v1190
    %v1192 = vsel %vm276, %v1090, 0.0
    %v1193 = vadd.f32 %v1191, %v1192
    %v1194 = vsel %vm276, %v1091, 0.0
    %v1195 = vadd.f32 %v1193, %v1194
    %v1196 = vsel %vm276, %v1092, 0.0
    %v1197 = vadd.f32 %v1195, %v1196
    %v1198 = vsel %vm276, %v1093, 0.0
    %v1199 = vadd.f32 %v1197, %v1198
    %v1200 = vsel %vm276, %v1094, 0.0
    %v1201 = vadd.f32 %v1199, %v1200
    %v1202 = vsel %vm276, %v1095, 0.0
    %v1203 = vadd.f32 %v1201, %v1202
    %v1204 = vsel %vm276, %v1096, 0.0
    %v1205 = vadd.f32 %v1203, %v1204
    %v1206 = vsel %vm276, %v1097, 0.0
    %v1207 = vadd.f32 %v1205, %v1206
    %v1208 = vsel %vm276, %v1098, 0.0
    %v1209 = vadd.f32 %v1207, %v1208
    %v1210 = vsel %vm276, %v1099, 0.0
    %v1211 = vadd.f32 %v1209, %v1210
    %v1212 = vsel %vm276, %v1100, 0.0
    %v1213 = vadd.f32 %v1211, %v1212
    %v1214 = vsel %vm276, %v1101, 0.0
    %v1215 = vadd.f32 %v1213, %v1214
    %v1216 = vsel %vm276, %v1102, 0.0
    %v1217 = vadd.f32 %v1215, %v1216
    %v1218 = vsel %vm276, %v1103, 0.0
    %v1219 = vadd.f32 %v1217, %v1218
    %v1220 = vsel %vm276, %v1104, 0.0
    %v1221 = vadd.f32 %v1219, %v1220
    %v1222 = vsel %vm276, %v1105, 0.0
    %v1223 = vadd.f32 %v1221, %v1222
    %v1224 = vsel %vm276, %v1106, 0.0
    %v1225 = vadd.f32 %v1223, %v1224
    %v1226 = vsel %vm276, %v1107, 0.0
    %v1227 = vadd.f32 %v1225, %v1226
    %v1228 = vsel %vm276, %v1108, 0.0
    %v1229 = vadd.f32 %v1227, %v1228
    %v1230 = vsel %vm276, %v1109, 0.0
    %v1231 = vadd.f32 %v1229, %v1230
    %v1232 = vsel %vm276, %v1110, 0.0
    %v1233 = vadd.f32 %v1231, %v1232
    %v1234 = vsel %vm276, %v1111, 0.0
    %v1235 = vadd.f32 %v1233, %v1234
    %v1236 = vsel %vm276, %v1112, 0.0
    %v1237 = vadd.f32 %v1235, %v1236
    %v1238 = vsel %vm276, %v1113, 0.0
    %v1239 = vadd.f32 %v1237, %v1238
    %v1240 = vsel %vm276, %v1114, 0.0
    %v1241 = vadd.f32 %v1239, %v1240
    %v1242 = vrot.slane %v1241, 4
    %v1243 = vadd.f32 %v1241, %v1242
    %v1244 = vrot.slane %v1243, 2
    %v1245 = vadd.f32 %v1243, %v1244
    %v1246 = vrot.slane %v1245, 1
    %v1247 = vadd.f32 %v1245, %v1246
    %p1248 = scmp.eq.s32.totalorder 0, 0
    // Predicated region
    $region18: #{discriminator_forward.11} parent=1 // pred_check
      %p1249 = pneg %p1248
    $region19: #{discriminator_forward.11} parent=1 // pred_check_branch
      %1251 = sbr.rel (%p1249) target = $region21
    $region20: #{discriminator_forward.11} parent=1 // pred_region
      %vm1252 = vcmask 254976
      %1253 = vst.msk [vmem:[%s4] sm:$0x3] %vm1252, 0.0
    $region21: #{discriminator_forward.11} parent=1 // pred_fallthru
      _
    %v1254 = vld [vmem:[%s4] sm:$0x3]
    %vm1255 = vcmask 1040384
    %v1256 = vsel %vm1255, %v1050, %v1247
    %v1257 = vadd.f32 %v1254, %v1256
    %vm1258 = vcmask 254976
    %1259 = vst.msk [vmem:[%s4] sm:$0x3] %vm1258, %v1257
    // Predicated region
    $region22: #{discriminator_forward.11} parent=1 // pred_check
      _
    $region23: #{discriminator_forward.11} parent=1 // pred_check_branch
      %1261 = sbr.rel (0) target = $region25
    $region24: #{discriminator_forward.11} parent=1 // pred_region
      _
    $region25: #{discriminator_forward.11} parent=1 // pred_fallthru
      _
    // Predicated region
    $region26: #{discriminator_forward.11} parent=1 // pred_check
      _
    $region27: #{discriminator_forward.11} parent=1 // pred_check_branch
      %1263 = sbr.rel (0) target = $region29
    $region28: #{discriminator_forward.11} parent=1 // pred_region
      _
    $region29: #{discriminator_forward.11} parent=1 // pred_fallthru
      _
    // Predicated region
    $region30: #{discriminator_forward.11} parent=1 // pred_check
      _
    $region31: #{discriminator_forward.11} parent=1 // pred_check_branch
      %1265 = sbr.rel (0) target = $region33
    $region32: #{discriminator_forward.11} parent=1 // pred_region
      _
    $region33: #{discriminator_forward.11} parent=1 // pred_fallthru
      _
    // Predicated region
    $region34: #{discriminator_forward.11} parent=1 // pred_check
      _
    $region35: #{discriminator_forward.11} parent=1 // pred_check_branch
      %1267 = sbr.rel (0) target = $region37
    $region36: #{discriminator_forward.11} parent=1 // pred_region
      _
    $region37: #{discriminator_forward.11} parent=1 // pred_fallthru
      _
    %1268 = vsyncpa [#allocation3], 1

// kernel: discriminator_forward.14
$region0: #{discriminator_forward.14}
  #allocation0 [shape = 'u32[]', space=smem, size = 0x4, offset = 0x4, fixed_abs, tag = 'smem constant byte address 0x4 - core index']
  #allocation1 [shape = 'u32[144,128]{1,0:T(1,128)}', space=vmem, size = 0x12000, scoped, tag = 'internal scratch']
  %s0 = inlined_call_operand.vmem [shape: f32[128,64], index: 0, kind: input, shape index: {}]
  %s1 = inlined_call_operand.vmem [shape: f32[2,64], index: 1, kind: input, shape index: {}]
  %s2 = inlined_call_operand.vmem [shape: f32[1,64], index: 2, kind: input, shape index: {}]
  %s3 = inlined_call_operand.vmem [shape: f32[1,64], index: 3, kind: input, shape index: {}]
  %s4 = inlined_call_operand.vmem [shape: bf16[128,64], index: 4, kind: output, shape index: {}]
  %s5 = sld [smem:[#allocation0]]
  $region26: #{discriminator_forward.14} parent=0
    _
  %s7 = ssub.s32 1, %s5
  %s8 = scalar_select 0, %s7, %s5
  // Predicated region
  $region2: #{discriminator_forward.14} parent=0 // pred_check
    _
  $region3: #{discriminator_forward.14} parent=0 // pred_check_branch
    %10 = sbr.rel (0) target = $region5
  $region4: #{discriminator_forward.14} parent=0 // pred_region
    _
  $region5: #{discriminator_forward.14} parent=0 // pred_fallthru
    _
  // Predicated region
  $region6: #{discriminator_forward.14} parent=0 // pred_check
    _
  $region7: #{discriminator_forward.14} parent=0 // pred_check_branch
    %12 = sbr.rel (0) target = $region9
  $region8: #{discriminator_forward.14} parent=0 // pred_region
    _
  $region9: #{discriminator_forward.14} parent=0 // pred_fallthru
    _
  // Predicated region
  $region10: #{discriminator_forward.14} parent=0 // pred_check
    _
  $region11: #{discriminator_forward.14} parent=0 // pred_check_branch
    %14 = sbr.rel (0) target = $region13
  $region12: #{discriminator_forward.14} parent=0 // pred_region
    _
  $region13: #{discriminator_forward.14} parent=0 // pred_fallthru
    _
  // Predicated region
  $region14: #{discriminator_forward.14} parent=0 // pred_check
    _
  $region15: #{discriminator_forward.14} parent=0 // pred_check_branch
    %16 = sbr.rel (0) target = $region17
  $region16: #{discriminator_forward.14} parent=0 // pred_region
    _
  $region17: #{discriminator_forward.14} parent=0 // pred_fallthru
    _
  %v17 = vld [vmem:[%s1] sm:$0x3]
  %v18 = vmul.f32 %v17, 0.0078125
  %v19 = vmul.f32 %v18, %v18
  %v21 = vrot.slane %v19, 7
  %v23 = vsub.f32 %v18, %v21
  %v24 = vadd.f32 %v23, 0.8
  %v25 = vrsqrt.pop %v24
  %v26 = vld [vmem:[%s0] sm:$0xff]
  %v27 = vld [vmem:[%s0 + $0x8] sm:$0xff]
  %v28 = vld [vmem:[%s0 + $0x10] sm:$0xff]
  %v29 = vld [vmem:[%s0 + $0x18] sm:$0xff]
  %v30 = vld [vmem:[%s0 + $0x20] sm:$0xff]
  %v31 = vld [vmem:[%s0 + $0x28] sm:$0xff]
  %v32 = vld [vmem:[%s0 + $0x30] sm:$0xff]
  %v33 = vld [vmem:[%s0 + $0x38] sm:$0xff]
  %v34 = vld [vmem:[%s0 + $0x40] sm:$0xff]
  %v35 = vld [vmem:[%s0 + $0x48] sm:$0xff]
  %v36 = vld [vmem:[%s0 + $0x50] sm:$0xff]
  %v37 = vld [vmem:[%s0 + $0x58] sm:$0xff]
  %v38 = vld [vmem:[%s0 + $0x60] sm:$0xff]
  %v39 = vld [vmem:[%s0 + $0x68] sm:$0xff]
  %v40 = vld [vmem:[%s0 + $0x70] sm:$0xff]
  %v41 = vld [vmem:[%s0 + $0x78] sm:$0xff]
  %v42 = vlaneseq
  %v43 = vshrl.u32 %v42, 7
  %v44 = vsub.s32 0, %v43
  %v45 = vrot.slane %v18, %v44
  %v46 = vsub.f32 %v26, %v45
  %v47 = vsub.f32 %v27, %v45
  %v48 = vsub.f32 %v28, %v45
  %v49 = vsub.f32 %v29, %v45
  %v50 = vsub.f32 %v30, %v45
  %v51 = vsub.f32 %v31, %v45
  %v52 = vsub.f32 %v32, %v45
  %v53 = vsub.f32 %v33, %v45
  %v54 = vsub.f32 %v34, %v45
  %v55 = vsub.f32 %v35, %v45
  %v56 = vsub.f32 %v36, %v45
  %v57 = vsub.f32 %v37, %v45
  %v58 = vsub.f32 %v38, %v45
  %v59 = vsub.f32 %v39, %v45
  %v60 = vsub.f32 %v40, %v45
  %v61 = vsub.f32 %v41, %v45
  %v62 = vlaneseq
  %v63 = vshrl.u32 %v62, 7
  %v64 = vsub.s32 1, %v63
  %v65 = vrot.slane %v25, %v64
  %v66 = vmul.f32 %v46, %v65
  %v67 = vmul.f32 %v47, %v65
  %v68 = vmul.f32 %v48, %v65
  %v69 = vmul.f32 %v49, %v65
  %v70 = vmul.f32 %v50, %v65
  %v71 = vmul.f32 %v51, %v65
  %v72 = vmul.f32 %v52, %v65
  %v73 = vmul.f32 %v53, %v65
  %v74 = vmul.f32 %v54, %v65
  %v75 = vmul.f32 %v55, %v65
  %v76 = vmul.f32 %v56, %v65
  %v77 = vmul.f32 %v57, %v65
  %v78 = vmul.f32 %v58, %v65
  %v79 = vmul.f32 %v59, %v65
  %v80 = vmul.f32 %v60, %v65
  %v81 = vmul.f32 %v61, %v65
  %v82 = vld [vmem:[%s2] sm:$0x1]
  %v84 = vlaneseq
  %v85 = vshrl.u32 %v84, 7
  %v86 = vsub.s32 0, %v85
  %v87 = vrot.slane %v82, %v86
  %v89 = vmul.f32 %v66, %v87
  %v90 = vmul.f32 %v67, %v87
  %v91 = vmul.f32 %v68, %v87
  %v92 = vmul.f32 %v69, %v87
  %v93 = vmul.f32 %v70, %v87
  %v94 = vmul.f32 %v71, %v87
  %v95 = vmul.f32 %v72, %v87
  %v96 = vmul.f32 %v73, %v87
  %v97 = vmul.f32 %v74, %v87
  %v98 = vmul.f32 %v75, %v87
  %v99 = vmul.f32 %v76, %v87
  %v100 = vmul.f32 %v77, %v87
  %v101 = vmul.f32 %v78, %v87
  %v102 = vmul.f32 %v79, %v87
  %v103 = vmul.f32 %v80, %v87
  %v104 = vmul.f32 %v81, %v87
  %v105 = vld [vmem:[%s3] sm:$0x1]
  %v107 = vlaneseq
  %v108 = vshrl.u32 %v107, 7
  %v109 = vsub.s32 0, %v108
  %v110 = vrot.slane %v105, %v109
  %v112 = vadd.f32 %v89, %v110
  %v113 = vadd.f32 %v90, %v110
  %v114 = vadd.f32 %v91, %v110
  %v115 = vadd.f32 %v92, %v110
  %v116 = vadd.f32 %v93, %v110
  %v117 = vadd.f32 %v94, %v110
  %v118 = vadd.f32 %v95, %v110
  %v119 = vadd.f32 %v96, %v110
  %v120 = vadd.f32 %v97, %v110
  %v121 = vadd.f32 %v98, %v110
  %v122 = vadd.f32 %v99, %v110
  %v123 = vadd.f32 %v100, %v110
  %v124 = vadd.f32 %v101, %v110
  %v125 = vadd.f32 %v102, %v110
  %v126 = vadd.f32 %v103, %v110
  %v127 = vadd.f32 %v104, %v110
  %v128 = vpack.c.bf16 %v113, %v112
  %v129 = vpack.c.bf16 %v115, %v114
  %v130 = vpack.c.bf16 %v117, %v116
  %v131 = vpack.c.bf16 %v119, %v118
  %v132 = vpack.c.bf16 %v121, %v120
  %v133 = vpack.c.bf16 %v123, %v122
  %v134 = vpack.c.bf16 %v125, %v124
  %v135 = vpack.c.bf16 %v127, %v126
  %v144 = vunpack.c.l.b16 %v128
  %v145 = vunpack.c.h.b16 %v128
  %v146 = vunpack.c.l.b16 %v129
  %v147 = vunpack.c.h.b16 %v129
  %v148 = vunpack.c.l.b16 %v130
  %v149 = vunpack.c.h.b16 %v130
  %v150 = vunpack.c.l.b16 %v131
  %v151 = vunpack.c.h.b16 %v131
  %v152 = vunpack.c.l.b16 %v132
  %v153 = vunpack.c.h.b16 %v132
  %v154 = vunpack.c.l.b16 %v133
  %v155 = vunpack.c.h.b16 %v133
  %v156 = vunpack.c.l.b16 %v134
  %v157 = vunpack.c.h.b16 %v134
  %v158 = vunpack.c.l.b16 %v135
  %v159 = vunpack.c.h.b16 %v135
  %v160 = vpack.c.b16 %v144, %v144
  %v161 = vpack.c.b16 %v145, %v145
  %v162 = vpack.c.b16 %v146, %v146
  %v163 = vpack.c.b16 %v147, %v147
  %v164 = vpack.c.b16 %v148, %v148
  %v165 = vpack.c.b16 %v149, %v149
  %v166 = vpack.c.b16 %v150, %v150
  %v167 = vpack.c.b16 %v151, %v151
  %v168 = vpack.c.b16 %v152, %v152
  %v169 = vpack.c.b16 %v153, %v153
  %v170 = vpack.c.b16 %v154, %v154
  %v171 = vpack.c.b16 %v155, %v155
  %v172 = vpack.c.b16 %v156, %v156
  %v173 = vpack.c.b16 %v157, %v157
  %v174 = vpack.c.b16 %v158, %v158
  %v175 = vpack.c.b16 %v159, %v159
  %vm192 = vcmask 519168
  %193 = vst.msk [vmem:[%s4] sm:$0xf] %vm192, %v160
  %194 = vst.msk [vmem:[%s4 + $0x4] sm:$0xf] %vm192, %v161
  %195 = vst.msk [vmem:[%s4 + $0x8] sm:$0xf] %vm192, %v162
  %196 = vst.msk [vmem:[%s4 + $0xc] sm:$0xf] %vm192, %v163
  %197 = vst.msk [vmem:[%s4 + $0x10] sm:$0xf] %vm192, %v164
  %198 = vst.msk [vmem:[%s4 + $0x14] sm:$0xf] %vm192, %v165
  %199 = vst.msk [vmem:[%s4 + $0x18] sm:$0xf] %vm192, %v166
  %200 = vst.msk [vmem:[%s4 + $0x1c] sm:$0xf] %vm192, %v167
  %201 = vst.msk [vmem:[%s4 + $0x20] sm:$0xf] %vm192, %v168
  %202 = vst.msk [vmem:[%s4 + $0x24] sm:$0xf] %vm192, %v169
  %203 = vst.msk [vmem:[%s4 + $0x28] sm:$0xf] %vm192, %v170
  %204 = vst.msk [vmem:[%s4 + $0x2c] sm:$0xf] %vm192, %v171
  %205 = vst.msk [vmem:[%s4 + $0x30] sm:$0xf] %vm192, %v172
  %206 = vst.msk [vmem:[%s4 + $0x34] sm:$0xf] %vm192, %v173
  %207 = vst.msk [vmem:[%s4 + $0x38] sm:$0xf] %vm192, %v174
  %208 = vst.msk [vmem:[%s4 + $0x3c] sm:$0xf] %vm192, %v175
  // Predicated region
  $region18: #{discriminator_forward.14} parent=0 // pred_check
    _
  $region19: #{discriminator_forward.14} parent=0 // pred_check_branch
    %210 = sbr.rel (0) target = $region21
  $region20: #{discriminator_forward.14} parent=0 // pred_region
    _
  $region21: #{discriminator_forward.14} parent=0 // pred_fallthru
    _
  // Predicated region
  $region22: #{discriminator_forward.14} parent=0 // pred_check
    _
  $region23: #{discriminator_forward.14} parent=0 // pred_check_branch
    %212 = sbr.rel (0) target = $region25
  $region24: #{discriminator_forward.14} parent=0 // pred_region
    _
  $region25: #{discriminator_forward.14} parent=0 // pred_fallthru
    _

// kernel: discriminator_forward.13
$region0: #{discriminator_forward.13}
  #allocation0 [shape = 'u32[]', space=smem, size = 0x4, offset = 0x4, fixed_abs, tag = 'smem constant byte address 0x4 - core index']
  #allocation1 [shape = 'u32[144,128]{1,0:T(1,128)}', space=vmem, size = 0x12000, scoped, tag = 'internal scratch']
  %s0 = inlined_call_operand.vmem [shape: bf16[128,288], index: 0, kind: input, shape index: {}]
  %s1 = inlined_call_operand.vmem [shape: bf16[288,64], index: 1, kind: input, shape index: {}]
  %s2 = inlined_call_operand.vmem [shape: f32[1,64], index: 2, kind: input, shape index: {}]
  %s3 = inlined_call_operand.vmem [shape: f32[128,64], index: 3, kind: output, shape index: {0}]
  %s4 = inlined_call_operand.vmem [shape: f32[2,64], index: 4, kind: output, shape index: {1}]
  %5 = xla_tuple %s3, %s4
  %s6 = sld [smem:[#allocation0]]
  $region34: #{discriminator_forward.13} parent=0
    _
  %s8 = ssub.s32 1, %s6
  %s9 = scalar_select 0, %s8, %s6
  // Predicated region
  $region2: #{discriminator_forward.13} parent=0 // pred_check
    _
  $region3: #{discriminator_forward.13} parent=0 // pred_check_branch
    %11 = sbr.rel (0) target = $region5
  $region4: #{discriminator_forward.13} parent=0 // pred_region
    _
  $region5: #{discriminator_forward.13} parent=0 // pred_fallthru
    _
  // Predicated region
  $region6: #{discriminator_forward.13} parent=0 // pred_check
    _
  $region7: #{discriminator_forward.13} parent=0 // pred_check_branch
    %13 = sbr.rel (0) target = $region9
  $region8: #{discriminator_forward.13} parent=0 // pred_region
    _
  $region9: #{discriminator_forward.13} parent=0 // pred_fallthru
    _
  // Predicated region
  $region10: #{discriminator_forward.13} parent=0 // pred_check
    _
  $region11: #{discriminator_forward.13} parent=0 // pred_check_branch
    %15 = sbr.rel (0) target = $region13
  $region12: #{discriminator_forward.13} parent=0 // pred_region
    _
  $region13: #{discriminator_forward.13} parent=0 // pred_fallthru
    _
  %v17 = vld [vmem:[%s0] sm:$0xff]
  %v18 = vld [vmem:[%s0 + $0x8] sm:$0xf]
  %v19 = vld [vmem:[%s0 + $0xc] sm:$0xff]
  %v20 = vld [vmem:[%s0 + $0x14] sm:$0xf]
  %v21 = vld [vmem:[%s0 + $0x18] sm:$0xff]
  %v22 = vld [vmem:[%s0 + $0x20] sm:$0xf]
  %v23 = vld [vmem:[%s0 + $0x24] sm:$0xff]
  %v24 = vld [vmem:[%s0 + $0x2c] sm:$0xf]
  %v25 = vld [vmem:[%s0 + $0x30] sm:$0xff]
  %v26 = vld [vmem:[%s0 + $0x38] sm:$0xf]
  %v27 = vld [vmem:[%s0 + $0x3c] sm:$0xff]
  %v28 = vld [vmem:[%s0 + $0x44] sm:$0xf]
  %v29 = vld [vmem:[%s0 + $0x48] sm:$0xff]
  %v30 = vld [vmem:[%s0 + $0x50] sm:$0xf]
  %v31 = vld [vmem:[%s0 + $0x54] sm:$0xff]
  %v32 = vld [vmem:[%s0 + $0x5c] sm:$0xf]
  %v33 = vld [vmem:[%s0 + $0x60] sm:$0xff]
  %v34 = vld [vmem:[%s0 + $0x68] sm:$0xf]
  %v35 = vld [vmem:[%s0 + $0x6c] sm:$0xff]
  %v36 = vld [vmem:[%s0 + $0x74] sm:$0xf]
  %v37 = vld [vmem:[%s0 + $0x78] sm:$0xff]
  %v38 = vld [vmem:[%s0 + $0x80] sm:$0xf]
  %v39 = vld [vmem:[%s0 + $0x84] sm:$0xff]
  %v40 = vld [vmem:[%s0 + $0x8c] sm:$0xf]
  %v41 = vld [vmem:[%s0 + $0x90] sm:$0xff]
  %v42 = vld [vmem:[%s0 + $0x98] sm:$0xf]
  %v43 = vld [vmem:[%s0 + $0x9c] sm:$0xff]
  %v44 = vld [vmem:[%s0 + $0xa4] sm:$0xf]
  %v45 = vld [vmem:[%s0 + $0xa8] sm:$0xff]
  %v46 = vld [vmem:[%s0 + $0xb0] sm:$0xf]
  %v47 = vld [vmem:[%s0 + $0xb4] sm:$0xff]
  %v48 = vld [vmem:[%s0 + $0xbc] sm:$0xf]
  %v49 = vld [vmem:[%s1] sm:$0xf]
  %v50 = vld [vmem:[%s1 + $0x4] sm:$0xf]
  %v51 = vld [vmem:[%s1 + $0x8] sm:$0xf]
  %v52 = vld [vmem:[%s1 + $0xc] sm:$0xf]
  %v53 = vld [vmem:[%s1 + $0x10] sm:$0xf]
  %v54 = vld [vmem:[%s1 + $0x14] sm:$0xf]
  %v55 = vld [vmem:[%s1 + $0x18] sm:$0xf]
  %v56 = vld [vmem:[%s1 + $0x1c] sm:$0xf]
  %v57 = vld [vmem:[%s1 + $0x20] sm:$0xf]
  %v58 = vld [vmem:[%s1 + $0x24] sm:$0xf]
  %v59 = vld [vmem:[%s1 + $0x28] sm:$0xf]
  %v60 = vld [vmem:[%s1 + $0x2c] sm:$0xf]
  %v61 = vld [vmem:[%s1 + $0x30] sm:$0xf]
  %v62 = vld [vmem:[%s1 + $0x34] sm:$0xf]
  %v63 = vld [vmem:[%s1 + $0x38] sm:$0xf]
  %v64 = vld [vmem:[%s1 + $0x3c] sm:$0xf]
  %v65 = vld [vmem:[%s1 + $0x40] sm:$0xf]
  %v66 = vld [vmem:[%s1 + $0x44] sm:$0xf]
  %v67 = vld [vmem:[%s1 + $0x48] sm:$0xf]
  %v68 = vld [vmem:[%s1 + $0x4c] sm:$0xf]
  %v69 = vld [vmem:[%s1 + $0x50] sm:$0xf]
  %v70 = vld [vmem:[%s1 + $0x54] sm:$0xf]
  %v71 = vld [vmem:[%s1 + $0x58] sm:$0xf]
  %v72 = vld [vmem:[%s1 + $0x5c] sm:$0xf]
  %v73 = vld [vmem:[%s1 + $0x60] sm:$0xf]
  %v74 = vld [vmem:[%s1 + $0x64] sm:$0xf]
  %v75 = vld [vmem:[%s1 + $0x68] sm:$0xf]
  %v76 = vld [vmem:[%s1 + $0x6c] sm:$0xf]
  %v77 = vld [vmem:[%s1 + $0x70] sm:$0xf]
  %v78 = vld [vmem:[%s1 + $0x74] sm:$0xf]
  %v79 = vld [vmem:[%s1 + $0x78] sm:$0xf]
  %v80 = vld [vmem:[%s1 + $0x7c] sm:$0xf]
  %v81 = vld [vmem:[%s1 + $0x80] sm:$0xf]
  %v82 = vld [vmem:[%s1 + $0x84] sm:$0xf]
  %v83 = vld [vmem:[%s1 + $0x88] sm:$0xf]
  %v84 = vld [vmem:[%s1 + $0x8c] sm:$0xf]
  %v85 = vld [vmem:[%s2] sm:$0x1]
  %v87 = vlaneseq
  %v88 = vshrl.u32 %v87, 7
  %v89 = vsub.s32 0, %v88
  %v90 = vrot.slane %v85, %v89
  %v124 = vunpack.c.l.b16 %v17
  %v125 = vunpack.c.h.b16 %v17
  %v126 = vunpack.c.l.b16 %v18
  %v127 = vunpack.c.l.b16 %v19
  %v128 = vunpack.c.h.b16 %v19
  %v129 = vunpack.c.l.b16 %v20
  %v130 = vunpack.c.l.b16 %v21
  %v131 = vunpack.c.h.b16 %v21
  %v132 = vunpack.c.l.b16 %v22
  %v133 = vunpack.c.l.b16 %v23
  %v134 = vunpack.c.h.b16 %v23
  %v135 = vunpack.c.l.b16 %v24
  %v136 = vunpack.c.l.b16 %v25
  %v137 = vunpack.c.h.b16 %v25
  %v138 = vunpack.c.l.b16 %v26
  %v139 = vunpack.c.l.b16 %v27
  %v140 = vunpack.c.h.b16 %v27
  %v141 = vunpack.c.l.b16 %v28
  %v142 = vunpack.c.l.b16 %v29
  %v143 = vunpack.c.h.b16 %v29
  %v144 = vunpack.c.l.b16 %v30
  %v145 = vunpack.c.l.b16 %v31
  %v146 = vunpack.c.h.b16 %v31
  %v147 = vunpack.c.l.b16 %v32
  %v148 = vunpack.c.l.b16 %v33
  %v149 = vunpack.c.h.b16 %v33
  %v150 = vunpack.c.l.b16 %v34
  %v151 = vunpack.c.l.b16 %v35
  %v152 = vunpack.c.h.b16 %v35
  %v153 = vunpack.c.l.b16 %v36
  %v154 = vunpack.c.l.b16 %v37
  %v155 = vunpack.c.h.b16 %v37
  %v156 = vunpack.c.l.b16 %v38
  %v157 = vunpack.c.l.b16 %v39
  %v158 = vunpack.c.h.b16 %v39
  %v159 = vunpack.c.l.b16 %v40
  %v160 = vunpack.c.l.b16 %v41
  %v161 = vunpack.c.h.b16 %v41
  %v162 = vunpack.c.l.b16 %v42
  %v163 = vunpack.c.l.b16 %v43
  %v164 = vunpack.c.h.b16 %v43
  %v165 = vunpack.c.l.b16 %v44
  %v166 = vunpack.c.l.b16 %v45
  %v167 = vunpack.c.h.b16 %v45
  %v168 = vunpack.c.l.b16 %v46
  %v169 = vunpack.c.l.b16 %v47
  %v170 = vunpack.c.h.b16 %v47
  %v171 = vunpack.c.l.b16 %v48
  %v172 = vpack.c.b16 %v127, %v124
  %v173 = vpack.c.b16 %v128, %v125
  %v174 = vpack.c.b16 %v129, %v126
  %v175 = vpack.c.b16 %v133, %v130
  %v176 = vpack.c.b16 %v134, %v131
  %v177 = vpack.c.b16 %v135, %v132
  %v178 = vpack.c.b16 %v139, %v136
  %v179 = vpack.c.b16 %v140, %v137
  %v180 = vpack.c.b16 %v141, %v138
  %v181 = vpack.c.b16 %v145, %v142
  %v182 = vpack.c.b16 %v146, %v143
  %v183 = vpack.c.b16 %v147, %v144
  %v184 = vpack.c.b16 %v151, %v148
  %v185 = vpack.c.b16 %v152, %v149
  %v186 = vpack.c.b16 %v153, %v150
  %v187 = vpack.c.b16 %v157, %v154
  %v188 = vpack.c.b16 %v158, %v155
  %v189 = vpack.c.b16 %v159, %v156
  %v190 = vpack.c.b16 %v163, %v160
  %v191 = vpack.c.b16 %v164, %v161
  %v192 = vpack.c.b16 %v165, %v162
  %v193 = vpack.c.b16 %v169, %v166
  %v194 = vpack.c.b16 %v170, %v167
  %v195 = vpack.c.b16 %v171, %v168
  %v248 = vunpack.c.l.b16 %v49
  %v249 = vunpack.c.l.b16 %v50
  %v250 = vunpack.c.l.b16 %v51
  %v251 = vunpack.c.l.b16 %v52
  %v252 = vunpack.c.l.b16 %v53
  %v253 = vunpack.c.l.b16 %v54
  %v254 = vunpack.c.l.b16 %v55
  %v255 = vunpack.c.l.b16 %v56
  %v256 = vunpack.c.l.b16 %v57
  %v257 = vunpack.c.l.b16 %v58
  %v258 = vunpack.c.l.b16 %v59
  %v259 = vunpack.c.l.b16 %v60
  %v260 = vunpack.c.l.b16 %v61
  %v261 = vunpack.c.l.b16 %v62
  %v262 = vunpack.c.l.b16 %v63
  %v263 = vunpack.c.l.b16 %v64
  %v264 = vunpack.c.l.b16 %v65
  %v265 = vunpack.c.l.b16 %v66
  %v266 = vunpack.c.l.b16 %v67
  %v267 = vunpack.c.l.b16 %v68
  %v268 = vunpack.c.l.b16 %v69
  %v269 = vunpack.c.l.b16 %v70
  %v270 = vunpack.c.l.b16 %v71
  %v271 = vunpack.c.l.b16 %v72
  %v272 = vunpack.c.l.b16 %v73
  %v273 = vunpack.c.l.b16 %v74
  %v274 = vunpack.c.l.b16 %v75
  %v275 = vunpack.c.l.b16 %v76
  %v276 = vunpack.c.l.b16 %v77
  %v277 = vunpack.c.l.b16 %v78
  %v278 = vunpack.c.l.b16 %v79
  %v279 = vunpack.c.l.b16 %v80
  %v280 = vunpack.c.l.b16 %v81
  %v281 = vunpack.c.l.b16 %v82
  %v282 = vunpack.c.l.b16 %v83
  %v283 = vunpack.c.l.b16 %v84
  %v284 = vpack.c.b16 %v249, %v248
  %v285 = vpack.c.b16 %v251, %v250
  %v286 = vpack.c.b16 %v253, %v252
  %v287 = vpack.c.b16 %v255, %v254
  %v288 = vpack.c.b16 %v257, %v256
  %v289 = vpack.c.b16 %v259, %v258
  %v290 = vpack.c.b16 %v261, %v260
  %v291 = vpack.c.b16 %v263, %v262
  %v292 = vpack.c.b16 %v265, %v264
  %v293 = vpack.c.b16 %v267, %v266
  %v294 = vpack.c.b16 %v269, %v268
  %v295 = vpack.c.b16 %v271, %v270
  %v296 = vpack.c.b16 %v273, %v272
  %v297 = vpack.c.b16 %v275, %v274
  %v298 = vpack.c.b16 %v277, %v276
  %v299 = vpack.c.b16 %v279, %v278
  %v300 = vpack.c.b16 %v281, %v280
  %v301 = vpack.c.b16 %v283, %v282
  %vm320 = vcmask 261120
  %v322 = vsel %vm320, %v174, 0
  %v325 = vsel %vm320, %v177, 0
  %v328 = vsel %vm320, %v180, 0
  %v331 = vsel %vm320, %v183, 0
  %v334 = vsel %vm320, %v186, 0
  %v337 = vsel %vm320, %v189, 0
  %v340 = vsel %vm320, %v192, 0
  %v343 = vsel %vm320, %v195, 0
  %345 = vmatprep.subr.bf16.mxu0 0
  %346 = vmatpush1.bf16.msra.mxu0 %v291
  %347 = vmatprep.subr.bf16.mxu0 0
  %348 = vmatpush1.bf16.msra.mxu0 %v290
  %349 = vmatprep.subr.bf16.mxu0 0
  %350 = vmatpush1.bf16.msra.mxu0 %v289
  %351 = vmatprep.subr.bf16.mxu0 0
  %352 = vmatpush1.bf16.msra.mxu0 %v288
  %353 = vmatprep.subr.bf16.mxu0 0
  %354 = vmatpush1.bf16.msra.mxu0 %v287
  %355 = vmatprep.subr.bf16.mxu0 0
  %356 = vmatpush1.bf16.msra.mxu0 %v286
  %357 = vmatprep.subr.bf16.mxu0 0
  %358 = vmatpush1.bf16.msra.mxu0 %v285
  %359 = vmatprep.subr.bf16.mxu0 0
  %360 = vmatpush1.bf16.msra.mxu0 %v284
  %361 = vmatprep.subr.bf16.mxu0 0
  %362 = vmatpush2.bf16.msra.mxu0 %v299
  %363 = vmatprep.subr.bf16.mxu0 0
  %364 = vmatpush2.bf16.msra.mxu0 %v298
  %365 = vmatprep.subr.bf16.mxu0 0
  %366 = vmatpush2.bf16.msra.mxu0 %v297
  %367 = vmatprep.subr.bf16.mxu0 0
  %368 = vmatpush2.bf16.msra.mxu0 %v296
  %369 = vmatprep.subr.bf16.mxu0 0
  %370 = vmatpush2.bf16.msra.mxu0 %v295
  %371 = vmatprep.subr.bf16.mxu0 0
  %372 = vmatpush2.bf16.msra.mxu0 %v294
  %373 = vmatprep.subr.bf16.mxu0 0
  %374 = vmatpush2.bf16.msra.mxu0 %v293
  %375 = vmatprep.subr.bf16.mxu0 0
  %376 = vmatpush2.bf16.msra.mxu0 %v292
  %377 = vmatprep.mubr.bf16.mxu0 %v173
  %378 = vmatmul.mubr.bf16.gmra.mxu0 %v172
  %v379 = vpop.f32.mrf.mxu0
  %v380 = vadd.f32 %v90, %v379
  %v381 = vpop.f32.mrf.mxu0
  %v382 = vpop.f32.mrf.mxu0
  %v383 = vadd.f32 %v90, %v382
  %v384 = vpop.f32.mrf.mxu0
  %385 = vmatprep.mubr.bf16.mxu0 %v176
  %386 = vmatmul.mubr.bf16.gmra.mxu0 %v175
  %v387 = vpop.f32.mrf.mxu0
  %v388 = vadd.f32 %v90, %v387
  %v389 = vpop.f32.mrf.mxu0
  %v390 = vpop.f32.mrf.mxu0
  %v391 = vadd.f32 %v90, %v390
  %v392 = vpop.f32.mrf.mxu0
  %393 = vmatprep.mubr.bf16.mxu0 %v179
  %394 = vmatmul.mubr.bf16.gmra.mxu0 %v178
  %v395 = vpop.f32.mrf.mxu0
  %v396 = vadd.f32 %v90, %v395
  %v397 = vpop.f32.mrf.mxu0
  %v398 = vpop.f32.mrf.mxu0
  %v399 = vadd.f32 %v90, %v398
  %v400 = vpop.f32.mrf.mxu0
  %401 = vmatprep.mubr.bf16.mxu0 %v182
  %402 = vmatmul.mubr.bf16.gmra.mxu0 %v181
  %v403 = vpop.f32.mrf.mxu0
  %v404 = vadd.f32 %v90, %v403
  %v405 = vpop.f32.mrf.mxu0
  %v406 = vpop.f32.mrf.mxu0
  %v407 = vadd.f32 %v90, %v406
  %v408 = vpop.f32.mrf.mxu0
  %409 = vmatprep.mubr.bf16.mxu0 %v185
  %410 = vmatmul.mubr.bf16.gmra.mxu0 %v184
  %v411 = vpop.f32.mrf.mxu0
  %v412 = vadd.f32 %v90, %v411
  %v413 = vpop.f32.mrf.mxu0
  %v414 = vpop.f32.mrf.mxu0
  %v415 = vadd.f32 %v90, %v414
  %v416 = vpop.f32.mrf.mxu0
  %417 = vmatprep.mubr.bf16.mxu0 %v188
  %418 = vmatmul.mubr.bf16.gmra.mxu0 %v187
  %v419 = vpop.f32.mrf.mxu0
  %v420 = vadd.f32 %v90, %v419
  %v421 = vpop.f32.mrf.mxu0
  %v422 = vpop.f32.mrf.mxu0
  %v423 = vadd.f32 %v90, %v422
  %v424 = vpop.f32.mrf.mxu0
  %425 = vmatprep.mubr.bf16.mxu0 %v191
  %426 = vmatmul.mubr.bf16.gmra.mxu0 %v190
  %v427 = vpop.f32.mrf.mxu0
  %v428 = vadd.f32 %v90, %v427
  %v429 = vpop.f32.mrf.mxu0
  %v430 = vpop.f32.mrf.mxu0
  %v431 = vadd.f32 %v90, %v430
  %v432 = vpop.f32.mrf.mxu0
  %433 = vmatprep.mubr.bf16.mxu0 %v194
  %434 = vmatmul.mubr.bf16.gmra.mxu0 %v193
  %v435 = vpop.f32.mrf.mxu0
  %v436 = vadd.f32 %v90, %v435
  %v437 = vpop.f32.mrf.mxu0
  %v438 = vpop.f32.mrf.mxu0
  %v439 = vadd.f32 %v90, %v438
  %v440 = vpop.f32.mrf.mxu0
  %441 = vdwg.mxu0
  %442 = vmatprep.subr.bf16.mxu0 0
  %443 = vmatpush1.bf16.msra.mxu0 0
  %444 = vmatprep.subr.bf16.mxu0 0
  %445 = vmatpush1.bf16.msra.mxu0 0
  %446 = vmatprep.subr.bf16.mxu0 0
  %447 = vmatpush1.bf16.msra.mxu0 0
  %448 = vmatprep.subr.bf16.mxu0 0
  %449 = vmatpush1.bf16.msra.mxu0 0
  %450 = vmatprep.subr.bf16.mxu0 0
  %451 = vmatpush1.bf16.msra.mxu0 0
  %452 = vmatprep.subr.bf16.mxu0 0
  %453 = vmatpush1.bf16.msra.mxu0 0
  %454 = vmatprep.subr.bf16.mxu0 0
  %455 = vmatpush1.bf16.msra.mxu0 %v301
  %456 = vmatprep.subr.bf16.mxu0 0
  %457 = vmatpush1.bf16.msra.mxu0 %v300
  %458 = vmatprep.subr.bf16.mxu0 0
  %459 = vmatpush2.bf16.msra.mxu0 0
  %460 = vmatprep.subr.bf16.mxu0 0
  %461 = vmatpush2.bf16.msra.mxu0 0
  %462 = vmatprep.subr.bf16.mxu0 0
  %463 = vmatpush2.bf16.msra.mxu0 0
  %464 = vmatprep.subr.bf16.mxu0 0
  %465 = vmatpush2.bf16.msra.mxu0 0
  %466 = vmatprep.subr.bf16.mxu0 0
  %467 = vmatpush2.bf16.msra.mxu0 0
  %468 = vmatprep.subr.bf16.mxu0 0
  %469 = vmatpush2.bf16.msra.mxu0 0
  %470 = vmatprep.subr.bf16.mxu0 0
  %471 = vmatpush2.bf16.msra.mxu0 0
  %472 = vmatprep.subr.bf16.mxu0 0
  %473 = vmatpush2.bf16.msra.mxu0 0
  %474 = vmatprep.mubr.bf16.mxu0 0
  %475 = vmatmul.mubr.bf16.gmra.mxu0 %v322
  %v476 = vpop.f32.mrf.mxu0
  %v477 = vadd.f32 %v380, %v476
  %v478 = vpop.f32.mrf.mxu0
  %v479 = vpop.f32.mrf.mxu0
  %v480 = vadd.f32 %v383, %v479
  %v481 = vpop.f32.mrf.mxu0
  %482 = vmatprep.mubr.bf16.mxu0 0
  %483 = vmatmul.mubr.bf16.gmra.mxu0 %v325
  %v484 = vpop.f32.mrf.mxu0
  %v485 = vadd.f32 %v388, %v484
  %v486 = vpop.f32.mrf.mxu0
  %v487 = vpop.f32.mrf.mxu0
  %v488 = vadd.f32 %v391, %v487
  %v489 = vpop.f32.mrf.mxu0
  %490 = vmatprep.mubr.bf16.mxu0 0
  %491 = vmatmul.mubr.bf16.gmra.mxu0 %v328
  %v492 = vpop.f32.mrf.mxu0
  %v493 = vadd.f32 %v396, %v492
  %v494 = vpop.f32.mrf.mxu0
  %v495 = vpop.f32.mrf.mxu0
  %v496 = vadd.f32 %v399, %v495
  %v497 = vpop.f32.mrf.mxu0
  %498 = vmatprep.mubr.bf16.mxu0 0
  %499 = vmatmul.mubr.bf16.gmra.mxu0 %v331
  %v500 = vpop.f32.mrf.mxu0
  %v501 = vadd.f32 %v404, %v500
  %v502 = vpop.f32.mrf.mxu0
  %v503 = vpop.f32.mrf.mxu0
  %v504 = vadd.f32 %v407, %v503
  %v505 = vpop.f32.mrf.mxu0
  %506 = vmatprep.mubr.bf16.mxu0 0
  %507 = vmatmul.mubr.bf16.gmra.mxu0 %v334
  %v508 = vpop.f32.mrf.mxu0
  %v509 = vadd.f32 %v412, %v508
  %v510 = vpop.f32.mrf.mxu0
  %v511 = vpop.f32.mrf.mxu0
  %v512 = vadd.f32 %v415, %v511
  %v513 = vpop.f32.mrf.mxu0
  %514 = vmatprep.mubr.bf16.mxu0 0
  %515 = vmatmul.mubr.bf16.gmra.mxu0 %v337
  %v516 = vpop.f32.mrf.mxu0
  %v517 = vadd.f32 %v420, %v516
  %v518 = vpop.f32.mrf.mxu0
  %v519 = vpop.f32.mrf.mxu0
  %v520 = vadd.f32 %v423, %v519
  %v521 = vpop.f32.mrf.mxu0
  %522 = vmatprep.mubr.bf16.mxu0 0
  %523 = vmatmul.mubr.bf16.gmra.mxu0 %v340
  %v524 = vpop.f32.mrf.mxu0
  %v525 = vadd.f32 %v428, %v524
  %v526 = vpop.f32.mrf.mxu0
  %v527 = vpop.f32.mrf.mxu0
  %v528 = vadd.f32 %v431, %v527
  %v529 = vpop.f32.mrf.mxu0
  %530 = vmatprep.mubr.bf16.mxu0 0
  %531 = vmatmul.mubr.bf16.gmra.mxu0 %v343
  %v532 = vpop.f32.mrf.mxu0
  %v533 = vadd.f32 %v436, %v532
  %v534 = vpop.f32.mrf.mxu0
  %v535 = vpop.f32.mrf.mxu0
  %v536 = vadd.f32 %v439, %v535
  %v537 = vpop.f32.mrf.mxu0
  %538 = vdwg.mxu0
  %vm539 = vcmp.gt.f32.partialorder %v477, 0.0
  %vm540 = vcmp.gt.f32.partialorder %v480, 0.0
  %vm541 = vcmp.gt.f32.partialorder %v485, 0.0
  %vm542 = vcmp.gt.f32.partialorder %v488, 0.0
  %vm543 = vcmp.gt.f32.partialorder %v493, 0.0
  %vm544 = vcmp.gt.f32.partialorder %v496, 0.0
  %vm545 = vcmp.gt.f32.partialorder %v501, 0.0
  %vm546 = vcmp.gt.f32.partialorder %v504, 0.0
  %vm547 = vcmp.gt.f32.partialorder %v509, 0.0
  %vm548 = vcmp.gt.f32.partialorder %v512, 0.0
  %vm549 = vcmp.gt.f32.partialorder %v517, 0.0
  %vm550 = vcmp.gt.f32.partialorder %v520, 0.0
  %vm551 = vcmp.gt.f32.partialorder %v525, 0.0
  %vm552 = vcmp.gt.f32.partialorder %v528, 0.0
  %vm553 = vcmp.gt.f32.partialorder %v533, 0.0
  %vm554 = vcmp.gt.f32.partialorder %v536, 0.0
  %v555 = vmul.f32 %v477, 0.2
  %v556 = vmul.f32 %v480, 0.2
  %v557 = vmul.f32 %v485, 0.2
  %v558 = vmul.f32 %v488, 0.2
  %v559 = vmul.f32 %v493, 0.2
  %v560 = vmul.f32 %v496, 0.2
  %v561 = vmul.f32 %v501, 0.2
  %v562 = vmul.f32 %v504, 0.2
  %v563 = vmul.f32 %v509, 0.2
  %v564 = vmul.f32 %v512, 0.2
  %v565 = vmul.f32 %v517, 0.2
  %v566 = vmul.f32 %v520, 0.2
  %v567 = vmul.f32 %v525, 0.2
  %v568 = vmul.f32 %v528, 0.2
  %v569 = vmul.f32 %v533, 0.2
  %v570 = vmul.f32 %v536, 0.2
  %v571 = vsel %vm539, %v477, %v555
  %v572 = vsel %vm540, %v480, %v556
  %v573 = vsel %vm541, %v485, %v557
  %v574 = vsel %vm542, %v488, %v558
  %v575 = vsel %vm543, %v493, %v559
  %v576 = vsel %vm544, %v496, %v560
  %v577 = vsel %vm545, %v501, %v561
  %v578 = vsel %vm546, %v504, %v562
  %v579 = vsel %vm547, %v509, %v563
  %v580 = vsel %vm548, %v512, %v564
  %v581 = vsel %vm549, %v517, %v565
  %v582 = vsel %vm550, %v520, %v566
  %v583 = vsel %vm551, %v525, %v567
  %v584 = vsel %vm552, %v528, %v568
  %v585 = vsel %vm553, %v533, %v569
  %v586 = vsel %vm554, %v536, %v570
  %vm587 = vcmask 523264
  %588 = vst.msk [vmem:[%s3] sm:$0xff] %vm587, %v571
  %589 = vst.msk [vmem:[%s3 + $0x8] sm:$0xff] %vm587, %v572
  %590 = vst.msk [vmem:[%s3 + $0x10] sm:$0xff] %vm587, %v573
  %591 = vst.msk [vmem:[%s3 + $0x18] sm:$0xff] %vm587, %v574
  %592 = vst.msk [vmem:[%s3 + $0x20] sm:$0xff] %vm587, %v575
  %593 = vst.msk [vmem:[%s3 + $0x28] sm:$0xff] %vm587, %v576
  %594 = vst.msk [vmem:[%s3 + $0x30] sm:$0xff] %vm587, %v577
  %595 = vst.msk [vmem:[%s3 + $0x38] sm:$0xff] %vm587, %v578
  %596 = vst.msk [vmem:[%s3 + $0x40] sm:$0xff] %vm587, %v579
  %597 = vst.msk [vmem:[%s3 + $0x48] sm:$0xff] %vm587, %v580
  %598 = vst.msk [vmem:[%s3 + $0x50] sm:$0xff] %vm587, %v581
  %599 = vst.msk [vmem:[%s3 + $0x58] sm:$0xff] %vm587, %v582
  %600 = vst.msk [vmem:[%s3 + $0x60] sm:$0xff] %vm587, %v583
  %601 = vst.msk [vmem:[%s3 + $0x68] sm:$0xff] %vm587, %v584
  %602 = vst.msk [vmem:[%s3 + $0x70] sm:$0xff] %vm587, %v585
  %603 = vst.msk [vmem:[%s3 + $0x78] sm:$0xff] %vm587, %v586
  %v604 = vsel %vm587, %v571, 0.0
  %v605 = vsel %vm587, %v572, 0.0
  %v606 = vadd.f32 %v604, %v605
  %v607 = vsel %vm587, %v573, 0.0
  %v608 = vadd.f32 %v606, %v607
  %v609 = vsel %vm587, %v574, 0.0
  %v610 = vadd.f32 %v608, %v609
  %v611 = vsel %vm587, %v575, 0.0
  %v612 = vadd.f32 %v610, %v611
  %v613 = vsel %vm587, %v576, 0.0
  %v614 = vadd.f32 %v612, %v613
  %v615 = vsel %vm587, %v577, 0.0
  %v616 = vadd.f32 %v614, %v615
  %v617 = vsel %vm587, %v578, 0.0
  %v618 = vadd.f32 %v616, %v617
  %v619 = vsel %vm587, %v579, 0.0
  %v620 = vadd.f32 %v618, %v619
  %v621 = vsel %vm587, %v580, 0.0
  %v622 = vadd.f32 %v620, %v621
  %v623 = vsel %vm587, %v581, 0.0
  %v624 = vadd.f32 %v622, %v623
  %v625 = vsel %vm587, %v582, 0.0
  %v626 = vadd.f32 %v624, %v625
  %v627 = vsel %vm587, %v583, 0.0
  %v628 = vadd.f32 %v626, %v627
  %v629 = vsel %vm587, %v584, 0.0
  %v630 = vadd.f32 %v628, %v629
  %v631 = vsel %vm587, %v585, 0.0
  %v632 = vadd.f32 %v630, %v631
  %v633 = vsel %vm587, %v586, 0.0
  %v634 = vadd.f32 %v632, %v633
  %v635 = vrot.slane %v634, 4
  %v636 = vadd.f32 %v634, %v635
  %v637 = vrot.slane %v636, 2
  %v638 = vadd.f32 %v636, %v637
  %v639 = vrot.slane %v638, 1
  %v640 = vadd.f32 %v638, %v639
  %v641 = vmul.f32 %v571, %v571
  %v642 = vmul.f32 %v572, %v572
  %v643 = vmul.f32 %v573, %v573
  %v644 = vmul.f32 %v574, %v574
  %v645 = vmul.f32 %v575, %v575
  %v646 = vmul.f32 %v576, %v576
  %v647 = vmul.f32 %v577, %v577
  %v648 = vmul.f32 %v578, %v578
  %v649 = vmul.f32 %v579, %v579
  %v650 = vmul.f32 %v580, %v580
  %v651 = vmul.f32 %v581, %v581
  %v652 = vmul.f32 %v582, %v582
  %v653 = vmul.f32 %v583, %v583
  %v654 = vmul.f32 %v584, %v584
  %v655 = vmul.f32 %v585, %v585
  %v656 = vmul.f32 %v586, %v586
  %v657 = vsel %vm587, %v641, 0.0
  %v658 = vsel %vm587, %v642, 0.0
  %v659 = vadd.f32 %v657, %v658
  %v660 = vsel %vm587, %v643, 0.0
  %v661 = vadd.f32 %v659, %v660
  %v662 = vsel %vm587, %v644, 0.0
  %v663 = vadd.f32 %v661, %v662
  %v664 = vsel %vm587, %v645, 0.0
  %v665 = vadd.f32 %v663, %v664
  %v666 = vsel %vm587, %v646, 0.0
  %v667 = vadd.f32 %v665, %v666
  %v668 = vsel %vm587, %v647, 0.0
  %v669 = vadd.f32 %v667, %v668
  %v670 = vsel %vm587, %v648, 0.0
  %v671 = vadd.f32 %v669, %v670
  %v672 = vsel %vm587, %v649, 0.0
  %v673 = vadd.f32 %v671, %v672
  %v674 = vsel %vm587, %v650, 0.0
  %v675 = vadd.f32 %v673, %v674
  %v676 = vsel %vm587, %v651, 0.0
  %v677 = vadd.f32 %v675, %v676
  %v678 = vsel %vm587, %v652, 0.0
  %v679 = vadd.f32 %v677, %v678
  %v680 = vsel %vm587, %v653, 0.0
  %v681 = vadd.f32 %v679, %v680
  %v682 = vsel %vm587, %v654, 0.0
  %v683 = vadd.f32 %v681, %v682
  %v684 = vsel %vm587, %v655, 0.0
  %v685 = vadd.f32 %v683, %v684
  %v686 = vsel %vm587, %v656, 0.0
  %v687 = vadd.f32 %v685, %v686
  %v688 = vrot.slane %v687, 4
  %v689 = vadd.f32 %v687, %v688
  %v690 = vrot.slane %v689, 2
  %v691 = vadd.f32 %v689, %v690
  %v692 = vrot.slane %v691, 1
  %v693 = vadd.f32 %v691, %v692
  %p694 = scmp.eq.s32.totalorder 0, 0
  // Predicated region
  $region14: #{discriminator_forward.13} parent=0 // pred_check
    %p695 = pneg %p694
  $region15: #{discriminator_forward.13} parent=0 // pred_check_branch
    %697 = sbr.rel (%p695) target = $region17
  $region16: #{discriminator_forward.13} parent=0 // pred_region
    %vm698 = vcmask 517120
    %699 = vst.msk [vmem:[%s4] sm:$0x3] %vm698, 0.0
  $region17: #{discriminator_forward.13} parent=0 // pred_fallthru
    _
  %v700 = vld [vmem:[%s4] sm:$0x3]
  %vm701 = vcmask 1040384
  %v702 = vsel %vm701, %v640, %v693
  %v703 = vadd.f32 %v700, %v702
  %vm704 = vcmask 517120
  %705 = vst.msk [vmem:[%s4] sm:$0x3] %vm704, %v703
  // Predicated region
  $region18: #{discriminator_forward.13} parent=0 // pred_check
    _
  $region19: #{discriminator_forward.13} parent=0 // pred_check_branch
    %707 = sbr.rel (0) target = $region21
  $region20: #{discriminator_forward.13} parent=0 // pred_region
    _
  $region21: #{discriminator_forward.13} parent=0 // pred_fallthru
    _
  // Predicated region
  $region22: #{discriminator_forward.13} parent=0 // pred_check
    _
  $region23: #{discriminator_forward.13} parent=0 // pred_check_branch
    %709 = sbr.rel (0) target = $region25
  $region24: #{discriminator_forward.13} parent=0 // pred_region
    _
  $region25: #{discriminator_forward.13} parent=0 // pred_fallthru
    _
  // Predicated region
  $region26: #{discriminator_forward.13} parent=0 // pred_check
    _
  $region27: #{discriminator_forward.13} parent=0 // pred_check_branch
    %711 = sbr.rel (0) target = $region29
  $region28: #{discriminator_forward.13} parent=0 // pred_region
    _
  $region29: #{discriminator_forward.13} parent=0 // pred_fallthru
    _
  // Predicated region
  $region30: #{discriminator_forward.13} parent=0 // pred_check
    _
  $region31: #{discriminator_forward.13} parent=0 // pred_check_branch
    %713 = sbr.rel (0) target = $region33
  $region32: #{discriminator_forward.13} parent=0 // pred_region
    _
  $region33: #{discriminator_forward.13} parent=0 // pred_fallthru
    _

// kernel: discriminator_forward.15
$region0: #{discriminator_forward.15}
  #allocation0 [shape = 'u32[]', space=smem, size = 0x4, offset = 0x4, fixed_abs, tag = 'smem constant byte address 0x4 - core index']
  #allocation1 [shape = 'u32[144,128]{1,0:T(1,128)}', space=vmem, size = 0x12000, scoped, tag = 'internal scratch']
  %s0 = inlined_call_operand.vmem [shape: bf16[32,576], index: 0, kind: input, shape index: {}]
  %s1 = inlined_call_operand.vmem [shape: bf16[576,128], index: 1, kind: input, shape index: {}]
  %s2 = inlined_call_operand.vmem [shape: f32[1,128], index: 2, kind: input, shape index: {}]
  %s3 = inlined_call_operand.vmem [shape: f32[32,128], index: 3, kind: output, shape index: {0}]
  %s4 = inlined_call_operand.vmem [shape: f32[2,128], index: 4, kind: output, shape index: {1}]
  %5 = xla_tuple %s3, %s4
  %s6 = sld [smem:[#allocation0]]
  $region34: #{discriminator_forward.15} parent=0
    _
  %s8 = ssub.s32 1, %s6
  %s9 = scalar_select 0, %s8, %s6
  // Predicated region
  $region2: #{discriminator_forward.15} parent=0 // pred_check
    _
  $region3: #{discriminator_forward.15} parent=0 // pred_check_branch
    %11 = sbr.rel (0) target = $region5
  $region4: #{discriminator_forward.15} parent=0 // pred_region
    _
  $region5: #{discriminator_forward.15} parent=0 // pred_fallthru
    _
  // Predicated region
  $region6: #{discriminator_forward.15} parent=0 // pred_check
    _
  $region7: #{discriminator_forward.15} parent=0 // pred_check_branch
    %13 = sbr.rel (0) target = $region9
  $region8: #{discriminator_forward.15} parent=0 // pred_region
    _
  $region9: #{discriminator_forward.15} parent=0 // pred_fallthru
    _
  // Predicated region
  $region10: #{discriminator_forward.15} parent=0 // pred_check
    _
  $region11: #{discriminator_forward.15} parent=0 // pred_check_branch
    %15 = sbr.rel (0) target = $region13
  $region12: #{discriminator_forward.15} parent=0 // pred_region
    _
  $region13: #{discriminator_forward.15} parent=0 // pred_fallthru
    _
  %v17 = vld [vmem:[%s0] sm:$0xff]
  %v18 = vld [vmem:[%s0 + $0x8] sm:$0xff]
  %v19 = vld [vmem:[%s0 + $0x10] sm:$0xf]
  %v20 = vld [vmem:[%s0 + $0x14] sm:$0xff]
  %v21 = vld [vmem:[%s0 + $0x1c] sm:$0xff]
  %v22 = vld [vmem:[%s0 + $0x24] sm:$0xf]
  %v23 = vld [vmem:[%s0 + $0x28] sm:$0xff]
  %v24 = vld [vmem:[%s0 + $0x30] sm:$0xff]
  %v25 = vld [vmem:[%s0 + $0x38] sm:$0xf]
  %v26 = vld [vmem:[%s0 + $0x3c] sm:$0xff]
  %v27 = vld [vmem:[%s0 + $0x44] sm:$0xff]
  %v28 = vld [vmem:[%s0 + $0x4c] sm:$0xf]
  %v29 = vld [vmem:[%s1] sm:$0xf]
  %v30 = vld [vmem:[%s1 + $0x4] sm:$0xf]
  %v31 = vld [vmem:[%s1 + $0x8] sm:$0xf]
  %v32 = vld [vmem:[%s1 + $0xc] sm:$0xf]
  %v33 = vld [vmem:[%s1 + $0x10] sm:$0xf]
  %v34 = vld [vmem:[%s1 + $0x14] sm:$0xf]
  %v35 = vld [vmem:[%s1 + $0x18] sm:$0xf]
  %v36 = vld [vmem:[%s1 + $0x1c] sm:$0xf]
  %v37 = vld [vmem:[%s1 + $0x20] sm:$0xf]
  %v38 = vld [vmem:[%s1 + $0x24] sm:$0xf]
  %v39 = vld [vmem:[%s1 + $0x28] sm:$0xf]
  %v40 = vld [vmem:[%s1 + $0x2c] sm:$0xf]
  %v41 = vld [vmem:[%s1 + $0x30] sm:$0xf]
  %v42 = vld [vmem:[%s1 + $0x34] sm:$0xf]
  %v43 = vld [vmem:[%s1 + $0x38] sm:$0xf]
  %v44 = vld [vmem:[%s1 + $0x3c] sm:$0xf]
  %v45 = vld [vmem:[%s1 + $0x40] sm:$0xf]
  %v46 = vld [vmem:[%s1 + $0x44] sm:$0xf]
  %v47 = vld [vmem:[%s1 + $0x48] sm:$0xf]
  %v48 = vld [vmem:[%s1 + $0x4c] sm:$0xf]
  %v49 = vld [vmem:[%s1 + $0x50] sm:$0xf]
  %v50 = vld [vmem:[%s1 + $0x54] sm:$0xf]
  %v51 = vld [vmem:[%s1 + $0x58] sm:$0xf]
  %v52 = vld [vmem:[%s1 + $0x5c] sm:$0xf]
  %v53 = vld [vmem:[%s1 + $0x60] sm:$0xf]
  %v54 = vld [vmem:[%s1 + $0x64] sm:$0xf]
  %v55 = vld [vmem:[%s1 + $0x68] sm:$0xf]
  %v56 = vld [vmem:[%s1 + $0x6c] sm:$0xf]
  %v57 = vld [vmem:[%s1 + $0x70] sm:$0xf]
  %v58 = vld [vmem:[%s1 + $0x74] sm:$0xf]
  %v59 = vld [vmem:[%s1 + $0x78] sm:$0xf]
  %v60 = vld [vmem:[%s1 + $0x7c] sm:$0xf]
  %v61 = vld [vmem:[%s1 + $0x80] sm:$0xf]
  %v62 = vld [vmem:[%s1 + $0x84] sm:$0xf]
  %v63 = vld [vmem:[%s1 + $0x88] sm:$0xf]
  %v64 = vld [vmem:[%s1 + $0x8c] sm:$0xf]
  %v65 = vld [vmem:[%s1 + $0x90] sm:$0xf]
  %v66 = vld [vmem:[%s1 + $0x94] sm:$0xf]
  %v67 = vld [vmem:[%s1 + $0x98] sm:$0xf]
  %v68 = vld [vmem:[%s1 + $0x9c] sm:$0xf]
  %v69 = vld [vmem:[%s1 + $0xa0] sm:$0xf]
  %v70 = vld [vmem:[%s1 + $0xa4] sm:$0xf]
  %v71 = vld [vmem:[%s1 + $0xa8] sm:$0xf]
  %v72 = vld [vmem:[%s1 + $0xac] sm:$0xf]
  %v73 = vld [vmem:[%s1 + $0xb0] sm:$0xf]
  %v74 = vld [vmem:[%s1 + $0xb4] sm:$0xf]
  %v75 = vld [vmem:[%s1 + $0xb8] sm:$0xf]
  %v76 = vld [vmem:[%s1 + $0xbc] sm:$0xf]
  %v77 = vld [vmem:[%s1 + $0xc0] sm:$0xf]
  %v78 = vld [vmem:[%s1 + $0xc4] sm:$0xf]
  %v79 = vld [vmem:[%s1 + $0xc8] sm:$0xf]
  %v80 = vld [vmem:[%s1 + $0xcc] sm:$0xf]
  %v81 = vld [vmem:[%s1 + $0xd0] sm:$0xf]
  %v82 = vld [vmem:[%s1 + $0xd4] sm:$0xf]
  %v83 = vld [vmem:[%s1 + $0xd8] sm:$0xf]
  %v84 = vld [vmem:[%s1 + $0xdc] sm:$0xf]
  %v85 = vld [vmem:[%s1 + $0xe0] sm:$0xf]
  %v86 = vld [vmem:[%s1 + $0xe4] sm:$0xf]
  %v87 = vld [vmem:[%s1 + $0xe8] sm:$0xf]
  %v88 = vld [vmem:[%s1 + $0xec] sm:$0xf]
  %v89 = vld [vmem:[%s1 + $0xf0] sm:$0xf]
  %v90 = vld [vmem:[%s1 + $0xf4] sm:$0xf]
  %v91 = vld [vmem:[%s1 + $0xf8] sm:$0xf]
  %v92 = vld [vmem:[%s1 + $0xfc] sm:$0xf]
  %v93 = vld [vmem:[%s1 + $0x100] sm:$0xf]
  %v94 = vld [vmem:[%s1 + $0x104] sm:$0xf]
  %v95 = vld [vmem:[%s1 + $0x108] sm:$0xf]
  %v96 = vld [vmem:[%s1 + $0x10c] sm:$0xf]
  %v97 = vld [vmem:[%s1 + $0x110] sm:$0xf]
  %v98 = vld [vmem:[%s1 + $0x114] sm:$0xf]
  %v99 = vld [vmem:[%s1 + $0x118] sm:$0xf]
  %v100 = vld [vmem:[%s1 + $0x11c] sm:$0xf]
  %v101 = vld [vmem:[%s2] sm:$0x1]
  %v103 = vlaneseq
  %v104 = vshrl.u32 %v103, 7
  %v105 = vsub.s32 0, %v104
  %v106 = vrot.slane %v101, %v105
  %v120 = vunpack.c.l.b16 %v17
  %v121 = vunpack.c.h.b16 %v17
  %v122 = vunpack.c.l.b16 %v18
  %v123 = vunpack.c.h.b16 %v18
  %v124 = vunpack.c.l.b16 %v19
  %v125 = vunpack.c.l.b16 %v20
  %v126 = vunpack.c.h.b16 %v20
  %v127 = vunpack.c.l.b16 %v21
  %v128 = vunpack.c.h.b16 %v21
  %v129 = vunpack.c.l.b16 %v22
  %v130 = vunpack.c.l.b16 %v23
  %v131 = vunpack.c.h.b16 %v23
  %v132 = vunpack.c.l.b16 %v24
  %v133 = vunpack.c.h.b16 %v24
  %v134 = vunpack.c.l.b16 %v25
  %v135 = vunpack.c.l.b16 %v26
  %v136 = vunpack.c.h.b16 %v26
  %v137 = vunpack.c.l.b16 %v27
  %v138 = vunpack.c.h.b16 %v27
  %v139 = vunpack.c.l.b16 %v28
  %v140 = vpack.c.b16 %v125, %v120
  %v141 = vpack.c.b16 %v126, %v121
  %v142 = vpack.c.b16 %v127, %v122
  %v143 = vpack.c.b16 %v128, %v123
  %v144 = vpack.c.b16 %v129, %v124
  %v145 = vpack.c.b16 %v135, %v130
  %v146 = vpack.c.b16 %v136, %v131
  %v147 = vpack.c.b16 %v137, %v132
  %v148 = vpack.c.b16 %v138, %v133
  %v149 = vpack.c.b16 %v139, %v134
  %v230 = vunpack.c.l.b16 %v29
  %v231 = vunpack.c.l.b16 %v30
  %v232 = vunpack.c.l.b16 %v31
  %v233 = vunpack.c.l.b16 %v32
  %v234 = vunpack.c.l.b16 %v33
  %v235 = vunpack.c.l.b16 %v34
  %v236 = vunpack.c.l.b16 %v35
  %v237 = vunpack.c.l.b16 %v36
  %v238 = vunpack.c.l.b16 %v37
  %v239 = vunpack.c.l.b16 %v38
  %v240 = vunpack.c.l.b16 %v39
  %v241 = vunpack.c.l.b16 %v40
  %v242 = vunpack.c.l.b16 %v41
  %v243 = vunpack.c.l.b16 %v42
  %v244 = vunpack.c.l.b16 %v43
  %v245 = vunpack.c.l.b16 %v44
  %v246 = vunpack.c.l.b16 %v45
  %v247 = vunpack.c.l.b16 %v46
  %v248 = vunpack.c.l.b16 %v47
  %v249 = vunpack.c.l.b16 %v48
  %v250 = vunpack.c.l.b16 %v49
  %v251 = vunpack.c.l.b16 %v50
  %v252 = vunpack.c.l.b16 %v51
  %v253 = vunpack.c.l.b16 %v52
  %v254 = vunpack.c.l.b16 %v53
  %v255 = vunpack.c.l.b16 %v54
  %v256 = vunpack.c.l.b16 %v55
  %v257 = vunpack.c.l.b16 %v56
  %v258 = vunpack.c.l.b16 %v57
  %v259 = vunpack.c.l.b16 %v58
  %v260 = vunpack.c.l.b16 %v59
  %v261 = vunpack.c.l.b16 %v60
  %v262 = vunpack.c.l.b16 %v61
  %v263 = vunpack.c.l.b16 %v62
  %v264 = vunpack.c.l.b16 %v63
  %v265 = vunpack.c.l.b16 %v64
  %v266 = vunpack.c.l.b16 %v65
  %v267 = vunpack.c.l.b16 %v66
  %v268 = vunpack.c.l.b16 %v67
  %v269 = vunpack.c.l.b16 %v68
  %v270 = vunpack.c.l.b16 %v69
  %v271 = vunpack.c.l.b16 %v70
  %v272 = vunpack.c.l.b16 %v71
  %v273 = vunpack.c.l.b16 %v72
  %v274 = vunpack.c.l.b16 %v73
  %v275 = vunpack.c.l.b16 %v74
  %v276 = vunpack.c.l.b16 %v75
  %v277 = vunpack.c.l.b16 %v76
  %v278 = vunpack.c.l.b16 %v77
  %v279 = vunpack.c.l.b16 %v78
  %v280 = vunpack.c.l.b16 %v79
  %v281 = vunpack.c.l.b16 %v80
  %v282 = vunpack.c.l.b16 %v81
  %v283 = vunpack.c.l.b16 %v82
  %v284 = vunpack.c.l.b16 %v83
  %v285 = vunpack.c.l.b16 %v84
  %v286 = vunpack.c.l.b16 %v85
  %v287 = vunpack.c.l.b16 %v86
  %v288 = vunpack.c.l.b16 %v87
  %v289 = vunpack.c.l.b16 %v88
  %v290 = vunpack.c.l.b16 %v89
  %v291 = vunpack.c.l.b16 %v90
  %v292 = vunpack.c.l.b16 %v91
  %v293 = vunpack.c.l.b16 %v92
  %v294 = vunpack.c.l.b16 %v93
  %v295 = vunpack.c.l.b16 %v94
  %v296 = vunpack.c.l.b16 %v95
  %v297 = vunpack.c.l.b16 %v96
  %v298 = vunpack.c.l.b16 %v97
  %v299 = vunpack.c.l.b16 %v98
  %v300 = vunpack.c.l.b16 %v99
  %v301 = vunpack.c.l.b16 %v100
  %v302 = vpack.c.b16 %v231, %v230
  %v303 = vpack.c.b16 %v233, %v232
  %v304 = vpack.c.b16 %v235, %v234
  %v305 = vpack.c.b16 %v237, %v236
  %v306 = vpack.c.b16 %v239, %v238
  %v307 = vpack.c.b16 %v241, %v240
  %v308 = vpack.c.b16 %v243, %v242
  %v309 = vpack.c.b16 %v245, %v244
  %v310 = vpack.c.b16 %v247, %v246
  %v311 = vpack.c.b16 %v249, %v248
  %v312 = vpack.c.b16 %v251, %v250
  %v313 = vpack.c.b16 %v253, %v252
  %v314 = vpack.c.b16 %v255, %v254
  %v315 = vpack.c.b16 %v257, %v256
  %v316 = vpack.c.b16 %v259, %v258
  %v317 = vpack.c.b16 %v261, %v260
  %v318 = vpack.c.b16 %v263, %v262
  %v319 = vpack.c.b16 %v265, %v264
  %v320 = vpack.c.b16 %v267, %v266
  %v321 = vpack.c.b16 %v269, %v268
  %v322 = vpack.c.b16 %v271, %v270
  %v323 = vpack.c.b16 %v273, %v272
  %v324 = vpack.c.b16 %v275, %v274
  %v325 = vpack.c.b16 %v277, %v276
  %v326 = vpack.c.b16 %v279, %v278
  %v327 = vpack.c.b16 %v281, %v280
  %v328 = vpack.c.b16 %v283, %v282
  %v329 = vpack.c.b16 %v285, %v284
  %v330 = vpack.c.b16 %v287, %v286
  %v331 = vpack.c.b16 %v289, %v288
  %v332 = vpack.c.b16 %v291, %v290
  %v333 = vpack.c.b16 %v293, %v292
  %v334 = vpack.c.b16 %v295, %v294
  %v335 = vpack.c.b16 %v297, %v296
  %v336 = vpack.c.b16 %v299, %v298
  %v337 = vpack.c.b16 %v301, %v300
  %vm374 = vcmask 523264
  %v376 = vsel %vm374, %v144, 0
  %v379 = vsel %vm374, %v149, 0
  %381 = vmatprep.subr.bf16.mxu0 0
  %382 = vmatpush1.bf16.msra.mxu0 %v309
  %383 = vmatprep.subr.bf16.mxu0 0
  %384 = vmatpush1.bf16.msra.mxu0 %v308
  %385 = vmatprep.subr.bf16.mxu0 0
  %386 = vmatpush1.bf16.msra.mxu0 %v307
  %387 = vmatprep.subr.bf16.mxu0 0
  %388 = vmatpush1.bf16.msra.mxu0 %v306
  %389 = vmatprep.subr.bf16.mxu0 0
  %390 = vmatpush1.bf16.msra.mxu0 %v305
  %391 = vmatprep.subr.bf16.mxu0 0
  %392 = vmatpush1.bf16.msra.mxu0 %v304
  %393 = vmatprep.subr.bf16.mxu0 0
  %394 = vmatpush1.bf16.msra.mxu0 %v303
  %395 = vmatprep.subr.bf16.mxu0 0
  %396 = vmatpush1.bf16.msra.mxu0 %v302
  %397 = vmatprep.subr.bf16.mxu0 0
  %398 = vmatpush2.bf16.msra.mxu0 %v317
  %399 = vmatprep.subr.bf16.mxu0 0
  %400 = vmatpush2.bf16.msra.mxu0 %v316
  %401 = vmatprep.subr.bf16.mxu0 0
  %402 = vmatpush2.bf16.msra.mxu0 %v315
  %403 = vmatprep.subr.bf16.mxu0 0
  %404 = vmatpush2.bf16.msra.mxu0 %v314
  %405 = vmatprep.subr.bf16.mxu0 0
  %406 = vmatpush2.bf16.msra.mxu0 %v313
  %407 = vmatprep.subr.bf16.mxu0 0
  %408 = vmatpush2.bf16.msra.mxu0 %v312
  %409 = vmatprep.subr.bf16.mxu0 0
  %410 = vmatpush2.bf16.msra.mxu0 %v311
  %411 = vmatprep.subr.bf16.mxu0 0
  %412 = vmatpush2.bf16.msra.mxu0 %v310
  %413 = vmatprep.mubr.bf16.mxu0 %v141
  %414 = vmatmul.mubr.bf16.gmra.mxu0 %v140
  %v415 = vpop.f32.mrf.mxu0
  %v416 = vadd.f32 %v106, %v415
  %v417 = vpop.f32.mrf.mxu0
  %v418 = vpop.f32.mrf.mxu0
  %v419 = vadd.f32 %v106, %v418
  %v420 = vpop.f32.mrf.mxu0
  %421 = vmatprep.mubr.bf16.mxu0 %v146
  %422 = vmatmul.mubr.bf16.gmra.mxu0 %v145
  %v423 = vpop.f32.mrf.mxu0
  %v424 = vadd.f32 %v106, %v423
  %v425 = vpop.f32.mrf.mxu0
  %v426 = vpop.f32.mrf.mxu0
  %v427 = vadd.f32 %v106, %v426
  %v428 = vpop.f32.mrf.mxu0
  %429 = vdwg.mxu0
  %430 = vmatprep.subr.bf16.mxu0 0
  %431 = vmatpush1.bf16.msra.mxu0 %v325
  %432 = vmatprep.subr.bf16.mxu0 0
  %433 = vmatpush1.bf16.msra.mxu0 %v324
  %434 = vmatprep.subr.bf16.mxu0 0
  %435 = vmatpush1.bf16.msra.mxu0 %v323
  %436 = vmatprep.subr.bf16.mxu0 0
  %437 = vmatpush1.bf16.msra.mxu0 %v322
  %438 = vmatprep.subr.bf16.mxu0 0
  %439 = vmatpush1.bf16.msra.mxu0 %v321
  %440 = vmatprep.subr.bf16.mxu0 0
  %441 = vmatpush1.bf16.msra.mxu0 %v320
  %442 = vmatprep.subr.bf16.mxu0 0
  %443 = vmatpush1.bf16.msra.mxu0 %v319
  %444 = vmatprep.subr.bf16.mxu0 0
  %445 = vmatpush1.bf16.msra.mxu0 %v318
  %446 = vmatprep.subr.bf16.mxu0 0
  %447 = vmatpush2.bf16.msra.mxu0 %v333
  %448 = vmatprep.subr.bf16.mxu0 0
  %449 = vmatpush2.bf16.msra.mxu0 %v332
  %450 = vmatprep.subr.bf16.mxu0 0
  %451 = vmatpush2.bf16.msra.mxu0 %v331
  %452 = vmatprep.subr.bf16.mxu0 0
  %453 = vmatpush2.bf16.msra.mxu0 %v330
  %454 = vmatprep.subr.bf16.mxu0 0
  %455 = vmatpush2.bf16.msra.mxu0 %v329
  %456 = vmatprep.subr.bf16.mxu0 0
  %457 = vmatpush2.bf16.msra.mxu0 %v328
  %458 = vmatprep.subr.bf16.mxu0 0
  %459 = vmatpush2.bf16.msra.mxu0 %v327
  %460 = vmatprep.subr.bf16.mxu0 0
  %461 = vmatpush2.bf16.msra.mxu0 %v326
  %462 = vmatprep.mubr.bf16.mxu0 %v143
  %463 = vmatmul.mubr.bf16.gmra.mxu0 %v142
  %v464 = vpop.f32.mrf.mxu0
  %v465 = vadd.f32 %v416, %v464
  %v466 = vpop.f32.mrf.mxu0
  %v467 = vpop.f32.mrf.mxu0
  %v468 = vadd.f32 %v419, %v467
  %v469 = vpop.f32.mrf.mxu0
  %470 = vmatprep.mubr.bf16.mxu0 %v148
  %471 = vmatmul.mubr.bf16.gmra.mxu0 %v147
  %v472 = vpop.f32.mrf.mxu0
  %v473 = vadd.f32 %v424, %v472
  %v474 = vpop.f32.mrf.mxu0
  %v475 = vpop.f32.mrf.mxu0
  %v476 = vadd.f32 %v427, %v475
  %v477 = vpop.f32.mrf.mxu0
  %478 = vdwg.mxu0
  %479 = vmatprep.subr.bf16.mxu0 0
  %480 = vmatpush1.bf16.msra.mxu0 0
  %481 = vmatprep.subr.bf16.mxu0 0
  %482 = vmatpush1.bf16.msra.mxu0 0
  %483 = vmatprep.subr.bf16.mxu0 0
  %484 = vmatpush1.bf16.msra.mxu0 0
  %485 = vmatprep.subr.bf16.mxu0 0
  %486 = vmatpush1.bf16.msra.mxu0 0
  %487 = vmatprep.subr.bf16.mxu0 0
  %488 = vmatpush1.bf16.msra.mxu0 %v337
  %489 = vmatprep.subr.bf16.mxu0 0
  %490 = vmatpush1.bf16.msra.mxu0 %v336
  %491 = vmatprep.subr.bf16.mxu0 0
  %492 = vmatpush1.bf16.msra.mxu0 %v335
  %493 = vmatprep.subr.bf16.mxu0 0
  %494 = vmatpush1.bf16.msra.mxu0 %v334
  %495 = vmatprep.subr.bf16.mxu0 0
  %496 = vmatpush2.bf16.msra.mxu0 0
  %497 = vmatprep.subr.bf16.mxu0 0
  %498 = vmatpush2.bf16.msra.mxu0 0
  %499 = vmatprep.subr.bf16.mxu0 0
  %500 = vmatpush2.bf16.msra.mxu0 0
  %501 = vmatprep.subr.bf16.mxu0 0
  %502 = vmatpush2.bf16.msra.mxu0 0
  %503 = vmatprep.subr.bf16.mxu0 0
  %504 = vmatpush2.bf16.msra.mxu0 0
  %505 = vmatprep.subr.bf16.mxu0 0
  %506 = vmatpush2.bf16.msra.mxu0 0
  %507 = vmatprep.subr.bf16.mxu0 0
  %508 = vmatpush2.bf16.msra.mxu0 0
  %509 = vmatprep.subr.bf16.mxu0 0
  %510 = vmatpush2.bf16.msra.mxu0 0
  %511 = vmatprep.mubr.bf16.mxu0 0
  %512 = vmatmul.mubr.bf16.gmra.mxu0 %v376
  %v513 = vpop.f32.mrf.mxu0
  %v514 = vadd.f32 %v465, %v513
  %v515 = vpop.f32.mrf.mxu0
  %v516 = vpop.f32.mrf.mxu0
  %v517 = vadd.f32 %v468, %v516
  %v518 = vpop.f32.mrf.mxu0
  %519 = vmatprep.mubr.bf16.mxu0 0
  %520 = vmatmul.mubr.bf16.gmra.mxu0 %v379
  %v521 = vpop.f32.mrf.mxu0
  %v522 = vadd.f32 %v473, %v521
  %v523 = vpop.f32.mrf.mxu0
  %v524 = vpop.f32.mrf.mxu0
  %v525 = vadd.f32 %v476, %v524
  %v526 = vpop.f32.mrf.mxu0
  %527 = vdwg.mxu0
  %vm528 = vcmp.gt.f32.partialorder %v514, 0.0
  %vm529 = vcmp.gt.f32.partialorder %v517, 0.0
  %vm530 = vcmp.gt.f32.partialorder %v522, 0.0
  %vm531 = vcmp.gt.f32.partialorder %v525, 0.0
  %v532 = vmul.f32 %v514, 0.2
  %v533 = vmul.f32 %v517, 0.2
  %v534 = vmul.f32 %v522, 0.2
  %v535 = vmul.f32 %v525, 0.2
  %v536 = vsel %vm528, %v514, %v532
  %v537 = vsel %vm529, %v517, %v533
  %v538 = vsel %vm530, %v522, %v534
  %v539 = vsel %vm531, %v525, %v535
  %540 = vst [vmem:[%s3] sm:$0xff] %v536
  %541 = vst [vmem:[%s3 + $0x8] sm:$0xff] %v537
  %542 = vst [vmem:[%s3 + $0x10] sm:$0xff] %v538
  %543 = vst [vmem:[%s3 + $0x18] sm:$0xff] %v539
  %v544 = vadd.f32 %v536, %v537
  %v545 = vadd.f32 %v544, %v538
  %v546 = vadd.f32 %v545, %v539
  %v547 = vrot.slane %v546, 4
  %v548 = vadd.f32 %v546, %v547
  %v549 = vrot.slane %v548, 2
  %v550 = vadd.f32 %v548, %v549
  %v551 = vrot.slane %v550, 1
  %v552 = vadd.f32 %v550, %v551
  %v553 = vmul.f32 %v536, %v536
  %v554 = vmul.f32 %v537, %v537
  %v555 = vmul.f32 %v538, %v538
  %v556 = vmul.f32 %v539, %v539
  %v557 = vadd.f32 %v553, %v554
  %v558 = vadd.f32 %v557, %v555
  %v559 = vadd.f32 %v558, %v556
  %v560 = vrot.slane %v559, 4
  %v561 = vadd.f32 %v559, %v560
  %v562 = vrot.slane %v561, 2
  %v563 = vadd.f32 %v561, %v562
  %v564 = vrot.slane %v563, 1
  %v565 = vadd.f32 %v563, %v564
  %p566 = scmp.eq.s32.totalorder 0, 0
  // Predicated region
  $region14: #{discriminator_forward.15} parent=0 // pred_check
    %p567 = pneg %p566
  $region15: #{discriminator_forward.15} parent=0 // pred_check_branch
    %569 = sbr.rel (%p567) target = $region17
  $region16: #{discriminator_forward.15} parent=0 // pred_region
    %570 = vst [vmem:[%s4] sm:$0x3] 0.0
  $region17: #{discriminator_forward.15} parent=0 // pred_fallthru
    _
  %v571 = vld [vmem:[%s4] sm:$0x3]
  %vm572 = vcmask 1040384
  %v573 = vsel %vm572, %v552, %v565
  %v574 = vadd.f32 %v571, %v573
  %575 = vst [vmem:[%s4] sm:$0x3] %v574
  // Predicated region
  $region18: #{discriminator_forward.15} parent=0 // pred_check
    _
  $region19: #{discriminator_forward.15} parent=0 // pred_check_branch
    %577 = sbr.rel (0) target = $region21
  $region20: #{discriminator_forward.15} parent=0 // pred_region
    _
  $region21: #{discriminator_forward.15} parent=0 // pred_fallthru
    _
  // Predicated region
  $region22: #{discriminator_forward.15} parent=0 // pred_check
    _
  $region23: #{discriminator_forward.15} parent=0 // pred_check_branch
    %579 = sbr.rel (0) target = $region25
  $region24: #{discriminator_forward.15} parent=0 // pred_region
    _
  $region25: #{discriminator_forward.15} parent=0 // pred_fallthru
    _
  // Predicated region
  $region26: #{discriminator_forward.15} parent=0 // pred_check
    _
  $region27: #{discriminator_forward.15} parent=0 // pred_check_branch
    %581 = sbr.rel (0) target = $region29
  $region28: #{discriminator_forward.15} parent=0 // pred_region
    _
  $region29: #{discriminator_forward.15} parent=0 // pred_fallthru
    _
  // Predicated region
  $region30: #{discriminator_forward.15} parent=0 // pred_check
    _
  $region31: #{discriminator_forward.15} parent=0 // pred_check_branch
    %583 = sbr.rel (0) target = $region33
  $region32: #{discriminator_forward.15} parent=0 // pred_region
    _
  $region33: #{discriminator_forward.15} parent=0 // pred_fallthru
    _

// kernel: discriminator_forward.16
$region0: #{discriminator_forward.16}
  #allocation0 [shape = 'u32[]', space=smem, size = 0x4, offset = 0x4, fixed_abs, tag = 'smem constant byte address 0x4 - core index']
  #allocation1 [shape = 'u32[144,128]{1,0:T(1,128)}', space=vmem, size = 0x12000, scoped, tag = 'internal scratch']
  %s0 = inlined_call_operand.vmem [shape: f32[32,128], index: 0, kind: input, shape index: {}]
  %s1 = inlined_call_operand.vmem [shape: f32[2,128], index: 1, kind: input, shape index: {}]
  %s2 = inlined_call_operand.vmem [shape: f32[1,128], index: 2, kind: input, shape index: {}]
  %s3 = inlined_call_operand.vmem [shape: f32[1,128], index: 3, kind: input, shape index: {}]
  %s4 = inlined_call_operand.vmem [shape: bf16[32,128], index: 4, kind: output, shape index: {}]
  %s5 = sld [smem:[#allocation0]]
  $region26: #{discriminator_forward.16} parent=0
    _
  %s7 = ssub.s32 1, %s5
  %s8 = scalar_select 0, %s7, %s5
  // Predicated region
  $region2: #{discriminator_forward.16} parent=0 // pred_check
    _
  $region3: #{discriminator_forward.16} parent=0 // pred_check_branch
    %10 = sbr.rel (0) target = $region5
  $region4: #{discriminator_forward.16} parent=0 // pred_region
    _
  $region5: #{discriminator_forward.16} parent=0 // pred_fallthru
    _
  // Predicated region
  $region6: #{discriminator_forward.16} parent=0 // pred_check
    _
  $region7: #{discriminator_forward.16} parent=0 // pred_check_branch
    %12 = sbr.rel (0) target = $region9
  $region8: #{discriminator_forward.16} parent=0 // pred_region
    _
  $region9: #{discriminator_forward.16} parent=0 // pred_fallthru
    _
  // Predicated region
  $region10: #{discriminator_forward.16} parent=0 // pred_check
    _
  $region11: #{discriminator_forward.16} parent=0 // pred_check_branch
    %14 = sbr.rel (0) target = $region13
  $region12: #{discriminator_forward.16} parent=0 // pred_region
    _
  $region13: #{discriminator_forward.16} parent=0 // pred_fallthru
    _
  // Predicated region
  $region14: #{discriminator_forward.16} parent=0 // pred_check
    _
  $region15: #{discriminator_forward.16} parent=0 // pred_check_branch
    %16 = sbr.rel (0) target = $region17
  $region16: #{discriminator_forward.16} parent=0 // pred_region
    _
  $region17: #{discriminator_forward.16} parent=0 // pred_fallthru
    _
  %v17 = vld [vmem:[%s1] sm:$0x3]
  %v18 = vmul.f32 %v17, 0.03125
  %v19 = vmul.f32 %v18, %v18
  %v21 = vrot.slane %v19, 7
  %v23 = vsub.f32 %v18, %v21
  %v24 = vadd.f32 %v23, 0.8
  %v25 = vrsqrt.pop %v24
  %v26 = vld [vmem:[%s0] sm:$0xff]
  %v27 = vld [vmem:[%s0 + $0x8] sm:$0xff]
  %v28 = vld [vmem:[%s0 + $0x10] sm:$0xff]
  %v29 = vld [vmem:[%s0 + $0x18] sm:$0xff]
  %v30 = vlaneseq
  %v31 = vshrl.u32 %v30, 7
  %v32 = vsub.s32 0, %v31
  %v33 = vrot.slane %v18, %v32
  %v34 = vsub.f32 %v26, %v33
  %v35 = vsub.f32 %v27, %v33
  %v36 = vsub.f32 %v28, %v33
  %v37 = vsub.f32 %v29, %v33
  %v38 = vlaneseq
  %v39 = vshrl.u32 %v38, 7
  %v40 = vsub.s32 1, %v39
  %v41 = vrot.slane %v25, %v40
  %v42 = vmul.f32 %v34, %v41
  %v43 = vmul.f32 %v35, %v41
  %v44 = vmul.f32 %v36, %v41
  %v45 = vmul.f32 %v37, %v41
  %v46 = vld [vmem:[%s2] sm:$0x1]
  %v48 = vlaneseq
  %v49 = vshrl.u32 %v48, 7
  %v50 = vsub.s32 0, %v49
  %v51 = vrot.slane %v46, %v50
  %v53 = vmul.f32 %v42, %v51
  %v54 = vmul.f32 %v43, %v51
  %v55 = vmul.f32 %v44, %v51
  %v56 = vmul.f32 %v45, %v51
  %v57 = vld [vmem:[%s3] sm:$0x1]
  %v59 = vlaneseq
  %v60 = vshrl.u32 %v59, 7
  %v61 = vsub.s32 0, %v60
  %v62 = vrot.slane %v57, %v61
  %v64 = vadd.f32 %v53, %v62
  %v65 = vadd.f32 %v54, %v62
  %v66 = vadd.f32 %v55, %v62
  %v67 = vadd.f32 %v56, %v62
  %v68 = vpack.c.bf16 %v65, %v64
  %v69 = vpack.c.bf16 %v67, %v66
  %v72 = vunpack.c.l.b16 %v68
  %v73 = vunpack.c.h.b16 %v68
  %v74 = vunpack.c.l.b16 %v69
  %v75 = vunpack.c.h.b16 %v69
  %v76 = vpack.c.b16 %v72, %v72
  %v77 = vpack.c.b16 %v73, %v73
  %v78 = vpack.c.b16 %v74, %v74
  %v79 = vpack.c.b16 %v75, %v75
  %84 = vst [vmem:[%s4] sm:$0xf] %v76
  %85 = vst [vmem:[%s4 + $0x4] sm:$0xf] %v77
  %86 = vst [vmem:[%s4 + $0x8] sm:$0xf] %v78
  %87 = vst [vmem:[%s4 + $0xc] sm:$0xf] %v79
  // Predicated region
  $region18: #{discriminator_forward.16} parent=0 // pred_check
    _
  $region19: #{discriminator_forward.16} parent=0 // pred_check_branch
    %89 = sbr.rel (0) target = $region21
  $region20: #{discriminator_forward.16} parent=0 // pred_region
    _
  $region21: #{discriminator_forward.16} parent=0 // pred_fallthru
    _
  // Predicated region
  $region22: #{discriminator_forward.16} parent=0 // pred_check
    _
  $region23: #{discriminator_forward.16} parent=0 // pred_check_branch
    %91 = sbr.rel (0) target = $region25
  $region24: #{discriminator_forward.16} parent=0 // pred_region
    _
  $region25: #{discriminator_forward.16} parent=0 // pred_fallthru
    _

// kernel: discriminator_forward.18
$region0: #{discriminator_forward.18}
  #allocation0 [shape = 'u32[]', space=smem, size = 0x4, offset = 0x4, fixed_abs, tag = 'smem constant byte address 0x4 - core index']
  #allocation1 [shape = 'u32[144,128]{1,0:T(1,128)}', space=vmem, size = 0x12000, scoped, tag = 'internal scratch']
  %s0 = inlined_call_operand.vmem [shape: f32[8,256], index: 0, kind: input, shape index: {}]
  %s1 = inlined_call_operand.vmem [shape: f32[2,256], index: 1, kind: input, shape index: {}]
  %s2 = inlined_call_operand.vmem [shape: f32[1,256], index: 2, kind: input, shape index: {}]
  %s3 = inlined_call_operand.vmem [shape: f32[1,256], index: 3, kind: input, shape index: {}]
  %s4 = inlined_call_operand.vmem [shape: bf16[8,256], index: 4, kind: output, shape index: {}]
  %s5 = sld [smem:[#allocation0]]
  $region26: #{discriminator_forward.18} parent=0
    _
  %s7 = ssub.s32 1, %s5
  %s8 = scalar_select 0, %s7, %s5
  // Predicated region
  $region2: #{discriminator_forward.18} parent=0 // pred_check
    _
  $region3: #{discriminator_forward.18} parent=0 // pred_check_branch
    %10 = sbr.rel (0) target = $region5
  $region4: #{discriminator_forward.18} parent=0 // pred_region
    _
  $region5: #{discriminator_forward.18} parent=0 // pred_fallthru
    _
  // Predicated region
  $region6: #{discriminator_forward.18} parent=0 // pred_check
    _
  $region7: #{discriminator_forward.18} parent=0 // pred_check_branch
    %12 = sbr.rel (0) target = $region9
  $region8: #{discriminator_forward.18} parent=0 // pred_region
    _
  $region9: #{discriminator_forward.18} parent=0 // pred_fallthru
    _
  // Predicated region
  $region10: #{discriminator_forward.18} parent=0 // pred_check
    _
  $region11: #{discriminator_forward.18} parent=0 // pred_check_branch
    %14 = sbr.rel (0) target = $region13
  $region12: #{discriminator_forward.18} parent=0 // pred_region
    _
  $region13: #{discriminator_forward.18} parent=0 // pred_fallthru
    _
  // Predicated region
  $region14: #{discriminator_forward.18} parent=0 // pred_check
    _
  $region15: #{discriminator_forward.18} parent=0 // pred_check_branch
    %16 = sbr.rel (0) target = $region17
  $region16: #{discriminator_forward.18} parent=0 // pred_region
    _
  $region17: #{discriminator_forward.18} parent=0 // pred_fallthru
    _
  %v17 = vld [vmem:[%s1] sm:$0xf]
  %v18 = vmul.f32 %v17, 0.125
  %v19 = vmul.f32 %v18, %v18
  %v21 = vrot.slane %v19, 7
  %v23 = vsub.f32 %v18, %v21
  %v24 = vadd.f32 %v23, 0.8
  %v25 = vrsqrt.pop %v24
  %v26 = vld [vmem:[%s0] sm:$0xff]
  %v27 = vld [vmem:[%s0 + $0x8] sm:$0xff]
  %v29 = vlaneseq
  %v30 = vshrl.u32 %v29, 7
  %v31 = vsub.s32 0, %v30
  %v32 = vrot.slane %v18, %v31
  %v33 = vlaneseq
  %v34 = vshrl.u32 %v33, 7
  %v35 = vsub.s32 2, %v34
  %v36 = vrot.slane %v18, %v35
  %v39 = vlaneseq
  %v40 = vshrl.u32 %v39, 7
  %v41 = vsub.s32 0, %v40
  %v42 = vrot.slane %v32, %v41
  %v43 = vlaneseq
  %v44 = vshrl.u32 %v43, 7
  %v45 = vsub.s32 0, %v44
  %v46 = vrot.slane %v36, %v45
  %v47 = vsub.f32 %v26, %v42
  %v48 = vsub.f32 %v27, %v46
  %v50 = vlaneseq
  %v51 = vshrl.u32 %v50, 7
  %v52 = vsub.s32 1, %v51
  %v53 = vrot.slane %v25, %v52
  %v54 = vlaneseq
  %v55 = vshrl.u32 %v54, 7
  %v56 = vsub.s32 3, %v55
  %v57 = vrot.slane %v25, %v56
  %v60 = vlaneseq
  %v61 = vshrl.u32 %v60, 7
  %v62 = vsub.s32 1, %v61
  %v63 = vrot.slane %v53, %v62
  %v64 = vlaneseq
  %v65 = vshrl.u32 %v64, 7
  %v66 = vsub.s32 1, %v65
  %v67 = vrot.slane %v57, %v66
  %v68 = vmul.f32 %v47, %v63
  %v69 = vmul.f32 %v48, %v67
  %v70 = vld [vmem:[%s2] sm:$0x3]
  %v72 = vlaneseq
  %v73 = vshrl.u32 %v72, 7
  %v74 = vsub.s32 0, %v73
  %v75 = vrot.slane %v70, %v74
  %v76 = vlaneseq
  %v77 = vshrl.u32 %v76, 7
  %v78 = vsub.s32 1, %v77
  %v79 = vrot.slane %v70, %v78
  %v82 = vmul.f32 %v68, %v75
  %v83 = vmul.f32 %v69, %v79
  %v84 = vld [vmem:[%s3] sm:$0x3]
  %v86 = vlaneseq
  %v87 = vshrl.u32 %v86, 7
  %v88 = vsub.s32 0, %v87
  %v89 = vrot.slane %v84, %v88
  %v90 = vlaneseq
  %v91 = vshrl.u32 %v90, 7
  %v92 = vsub.s32 1, %v91
  %v93 = vrot.slane %v84, %v92
  %v96 = vadd.f32 %v82, %v89
  %v97 = vadd.f32 %v83, %v93
  %v98 = vpack.c.bf16 %v96, %v96
  %v99 = vpack.c.bf16 %v97, %v97
  %v102 = vunpack.c.l.b16 %v98
  %v103 = vunpack.c.l.b16 %v99
  %v104 = vpack.c.b16 %v103, %v102
  %106 = vst [vmem:[%s4] sm:$0xff] %v104
  // Predicated region
  $region18: #{discriminator_forward.18} parent=0 // pred_check
    _
  $region19: #{discriminator_forward.18} parent=0 // pred_check_branch
    %108 = sbr.rel (0) target = $region21
  $region20: #{discriminator_forward.18} parent=0 // pred_region
    _
  $region21: #{discriminator_forward.18} parent=0 // pred_fallthru
    _
  // Predicated region
  $region22: #{discriminator_forward.18} parent=0 // pred_check
    _
  $region23: #{discriminator_forward.18} parent=0 // pred_check_branch
    %110 = sbr.rel (0) target = $region25
  $region24: #{discriminator_forward.18} parent=0 // pred_region
    _
  $region25: #{discriminator_forward.18} parent=0 // pred_fallthru
    _

// kernel: discriminator_forward.20
$region0: #{discriminator_forward.20}
  #allocation0 [shape = 'u32[]', space=smem, size = 0x4, offset = 0x4, fixed_abs, tag = 'smem constant byte address 0x4 - core index']
  #allocation1 [shape = 'u32[144,128]{1,0:T(1,128)}', space=vmem, size = 0x12000, scoped, tag = 'internal scratch']
  %s0 = inlined_call_operand.vmem [shape: f32[8,512], index: 0, kind: input, shape index: {}]
  %s1 = inlined_call_operand.vmem [shape: f32[2,512], index: 1, kind: input, shape index: {}]
  %s2 = inlined_call_operand.vmem [shape: f32[1,512], index: 2, kind: input, shape index: {}]
  %s3 = inlined_call_operand.vmem [shape: f32[1,512], index: 3, kind: input, shape index: {}]
  %s4 = inlined_call_operand.vmem [shape: bf16[8,512], index: 4, kind: output, shape index: {}]
  %s5 = sld [smem:[#allocation0]]
  $region26: #{discriminator_forward.20} parent=0
    _
  %s7 = ssub.s32 1, %s5
  %s8 = scalar_select 0, %s7, %s5
  // Predicated region
  $region2: #{discriminator_forward.20} parent=0 // pred_check
    _
  $region3: #{discriminator_forward.20} parent=0 // pred_check_branch
    %10 = sbr.rel (0) target = $region5
  $region4: #{discriminator_forward.20} parent=0 // pred_region
    _
  $region5: #{discriminator_forward.20} parent=0 // pred_fallthru
    _
  // Predicated region
  $region6: #{discriminator_forward.20} parent=0 // pred_check
    _
  $region7: #{discriminator_forward.20} parent=0 // pred_check_branch
    %12 = sbr.rel (0) target = $region9
  $region8: #{discriminator_forward.20} parent=0 // pred_region
    _
  $region9: #{discriminator_forward.20} parent=0 // pred_fallthru
    _
  // Predicated region
  $region10: #{discriminator_forward.20} parent=0 // pred_check
    _
  $region11: #{discriminator_forward.20} parent=0 // pred_check_branch
    %14 = sbr.rel (0) target = $region13
  $region12: #{discriminator_forward.20} parent=0 // pred_region
    _
  $region13: #{discriminator_forward.20} parent=0 // pred_fallthru
    _
  // Predicated region
  $region14: #{discriminator_forward.20} parent=0 // pred_check
    _
  $region15: #{discriminator_forward.20} parent=0 // pred_check_branch
    %16 = sbr.rel (0) target = $region17
  $region16: #{discriminator_forward.20} parent=0 // pred_region
    _
  $region17: #{discriminator_forward.20} parent=0 // pred_fallthru
    _
  %v17 = vld [vmem:[%s1] sm:$0xff]
  %v18 = vmul.f32 %v17, 0.5
  %v19 = vmul.f32 %v18, %v18
  %v21 = vrot.slane %v19, 7
  %v23 = vsub.f32 %v18, %v21
  %v24 = vadd.f32 %v23, 0.8
  %v25 = vrsqrt.pop %v24
  %v26 = vld [vmem:[%s0] sm:$0xff]
  %v27 = vld [vmem:[%s0 + $0x8] sm:$0xff]
  %v28 = vld [vmem:[%s0 + $0x10] sm:$0xff]
  %v29 = vld [vmem:[%s0 + $0x18] sm:$0xff]
  %v31 = vlaneseq
  %v32 = vshrl.u32 %v31, 7
  %v33 = vsub.s32 0, %v32
  %v34 = vrot.slane %v18, %v33
  %v35 = vlaneseq
  %v36 = vshrl.u32 %v35, 7
  %v37 = vsub.s32 2, %v36
  %v38 = vrot.slane %v18, %v37
  %v39 = vlaneseq
  %v40 = vshrl.u32 %v39, 7
  %v41 = vsub.s32 4, %v40
  %v42 = vrot.slane %v18, %v41
  %v43 = vlaneseq
  %v44 = vshrl.u32 %v43, 7
  %v45 = vsub.s32 6, %v44
  %v46 = vrot.slane %v18, %v45
  %v51 = vlaneseq
  %v52 = vshrl.u32 %v51, 7
  %v53 = vsub.s32 0, %v52
  %v54 = vrot.slane %v34, %v53
  %v55 = vlaneseq
  %v56 = vshrl.u32 %v55, 7
  %v57 = vsub.s32 0, %v56
  %v58 = vrot.slane %v38, %v57
  %v59 = vlaneseq
  %v60 = vshrl.u32 %v59, 7
  %v61 = vsub.s32 0, %v60
  %v62 = vrot.slane %v42, %v61
  %v63 = vlaneseq
  %v64 = vshrl.u32 %v63, 7
  %v65 = vsub.s32 0, %v64
  %v66 = vrot.slane %v46, %v65
  %v67 = vsub.f32 %v26, %v54
  %v68 = vsub.f32 %v27, %v58
  %v69 = vsub.f32 %v28, %v62
  %v70 = vsub.f32 %v29, %v66
  %v72 = vlaneseq
  %v73 = vshrl.u32 %v72, 7
  %v74 = vsub.s32 1, %v73
  %v75 = vrot.slane %v25, %v74
  %v76 = vlaneseq
  %v77 = vshrl.u32 %v76, 7
  %v78 = vsub.s32 3, %v77
  %v79 = vrot.slane %v25, %v78
  %v80 = vlaneseq
  %v81 = vshrl.u32 %v80, 7
  %v82 = vsub.s32 5, %v81
  %v83 = vrot.slane %v25, %v82
  %v84 = vlaneseq
  %v85 = vshrl.u32 %v84, 7
  %v86 = vsub.s32 7, %v85
  %v87 = vrot.slane %v25, %v86
  %v92 = vlaneseq
  %v93 = vshrl.u32 %v92, 7
  %v94 = vsub.s32 1, %v93
  %v95 = vrot.slane %v75, %v94
  %v96 = vlaneseq
  %v97 = vshrl.u32 %v96, 7
  %v98 = vsub.s32 1, %v97
  %v99 = vrot.slane %v79, %v98
  %v100 = vlaneseq
  %v101 = vshrl.u32 %v100, 7
  %v102 = vsub.s32 1, %v101
  %v103 = vrot.slane %v83, %v102
  %v104 = vlaneseq
  %v105 = vshrl.u32 %v104, 7
  %v106 = vsub.s32 1, %v105
  %v107 = vrot.slane %v87, %v106
  %v108 = vmul.f32 %v67, %v95
  %v109 = vmul.f32 %v68, %v99
  %v110 = vmul.f32 %v69, %v103
  %v111 = vmul.f32 %v70, %v107
  %v112 = vld [vmem:[%s2] sm:$0xf]
  %v114 = vlaneseq
  %v115 = vshrl.u32 %v114, 7
  %v116 = vsub.s32 0, %v115
  %v117 = vrot.slane %v112, %v116
  %v118 = vlaneseq
  %v119 = vshrl.u32 %v118, 7
  %v120 = vsub.s32 1, %v119
  %v121 = vrot.slane %v112, %v120
  %v122 = vlaneseq
  %v123 = vshrl.u32 %v122, 7
  %v124 = vsub.s32 2, %v123
  %v125 = vrot.slane %v112, %v124
  %v126 = vlaneseq
  %v127 = vshrl.u32 %v126, 7
  %v128 = vsub.s32 3, %v127
  %v129 = vrot.slane %v112, %v128
  %v134 = vmul.f32 %v108, %v117
  %v135 = vmul.f32 %v109, %v121
  %v136 = vmul.f32 %v110, %v125
  %v137 = vmul.f32 %v111, %v129
  %v138 = vld [vmem:[%s3] sm:$0xf]
  %v140 = vlaneseq
  %v141 = vshrl.u32 %v140, 7
  %v142 = vsub.s32 0, %v141
  %v143 = vrot.slane %v138, %v142
  %v144 = vlaneseq
  %v145 = vshrl.u32 %v144, 7
  %v146 = vsub.s32 1, %v145
  %v147 = vrot.slane %v138, %v146
  %v148 = vlaneseq
  %v149 = vshrl.u32 %v148, 7
  %v150 = vsub.s32 2, %v149
  %v151 = vrot.slane %v138, %v150
  %v152 = vlaneseq
  %v153 = vshrl.u32 %v152, 7
  %v154 = vsub.s32 3, %v153
  %v155 = vrot.slane %v138, %v154
  %v160 = vadd.f32 %v134, %v143
  %v161 = vadd.f32 %v135, %v147
  %v162 = vadd.f32 %v136, %v151
  %v163 = vadd.f32 %v137, %v155
  %v164 = vpack.c.bf16 %v160, %v160
  %v165 = vpack.c.bf16 %v161, %v161
  %v166 = vpack.c.bf16 %v162, %v162
  %v167 = vpack.c.bf16 %v163, %v163
  %v172 = vunpack.c.l.b16 %v164
  %v173 = vunpack.c.l.b16 %v165
  %v174 = vunpack.c.l.b16 %v166
  %v175 = vunpack.c.l.b16 %v167
  %v176 = vpack.c.b16 %v173, %v172
  %v177 = vpack.c.b16 %v175, %v174
  %180 = vst [vmem:[%s4] sm:$0xff] %v176
  %181 = vst [vmem:[%s4 + $0x8] sm:$0xff] %v177
  // Predicated region
  $region18: #{discriminator_forward.20} parent=0 // pred_check
    _
  $region19: #{discriminator_forward.20} parent=0 // pred_check_branch
    %183 = sbr.rel (0) target = $region21
  $region20: #{discriminator_forward.20} parent=0 // pred_region
    _
  $region21: #{discriminator_forward.20} parent=0 // pred_fallthru
    _
  // Predicated region
  $region22: #{discriminator_forward.20} parent=0 // pred_check
    _
  $region23: #{discriminator_forward.20} parent=0 // pred_check_branch
    %185 = sbr.rel (0) target = $region25
  $region24: #{discriminator_forward.20} parent=0 // pred_region
    _
  $region25: #{discriminator_forward.20} parent=0 // pred_fallthru
    _

// kernel: discriminator_forward.17
$region0: #{discriminator_forward.17}
  #allocation0 [shape = 'u32[]', space=smem, size = 0x4, offset = 0x4, fixed_abs, tag = 'smem constant byte address 0x4 - core index']
  #allocation1 [shape = 'u32[144,128]{1,0:T(1,128)}', space=vmem, size = 0x12000, scoped, tag = 'internal scratch']
  %s0 = inlined_call_operand.vmem [shape: bf16[8,1152], index: 0, kind: input, shape index: {}]
  %s1 = inlined_call_operand.vmem [shape: bf16[1152,256], index: 1, kind: input, shape index: {}]
  %s2 = inlined_call_operand.vmem [shape: f32[1,256], index: 2, kind: input, shape index: {}]
  %s3 = inlined_call_operand.vmem [shape: f32[8,256], index: 3, kind: output, shape index: {0}]
  %s4 = inlined_call_operand.vmem [shape: f32[2,256], index: 4, kind: output, shape index: {1}]
  %5 = xla_tuple %s3, %s4
  %s6 = sld [smem:[#allocation0]]
  $region34: #{discriminator_forward.17} parent=0
    _
  %s8 = ssub.s32 1, %s6
  %s9 = scalar_select 0, %s8, %s6
  // Predicated region
  $region2: #{discriminator_forward.17} parent=0 // pred_check
    _
  $region3: #{discriminator_forward.17} parent=0 // pred_check_branch
    %11 = sbr.rel (0) target = $region5
  $region4: #{discriminator_forward.17} parent=0 // pred_region
    _
  $region5: #{discriminator_forward.17} parent=0 // pred_fallthru
    _
  // Predicated region
  $region6: #{discriminator_forward.17} parent=0 // pred_check
    _
  $region7: #{discriminator_forward.17} parent=0 // pred_check_branch
    %13 = sbr.rel (0) target = $region9
  $region8: #{discriminator_forward.17} parent=0 // pred_region
    _
  $region9: #{discriminator_forward.17} parent=0 // pred_fallthru
    _
  // Predicated region
  $region10: #{discriminator_forward.17} parent=0 // pred_check
    _
  $region11: #{discriminator_forward.17} parent=0 // pred_check_branch
    %15 = sbr.rel (0) target = $region13
  $region12: #{discriminator_forward.17} parent=0 // pred_region
    _
  $region13: #{discriminator_forward.17} parent=0 // pred_fallthru
    _
  %v17 = vld [vmem:[%s0] sm:$0xff]
  %v18 = vld [vmem:[%s0 + $0x8] sm:$0xff]
  %v19 = vld [vmem:[%s0 + $0x10] sm:$0xff]
  %v20 = vld [vmem:[%s0 + $0x18] sm:$0xff]
  %v21 = vld [vmem:[%s0 + $0x20] sm:$0xf]
  %v22 = vld [vmem:[%s1] sm:$0xff]
  %v23 = vld [vmem:[%s1 + $0x8] sm:$0xff]
  %v24 = vld [vmem:[%s1 + $0x10] sm:$0xff]
  %v25 = vld [vmem:[%s1 + $0x18] sm:$0xff]
  %v26 = vld [vmem:[%s1 + $0x20] sm:$0xff]
  %v27 = vld [vmem:[%s1 + $0x28] sm:$0xff]
  %v28 = vld [vmem:[%s1 + $0x30] sm:$0xff]
  %v29 = vld [vmem:[%s1 + $0x38] sm:$0xff]
  %v30 = vld [vmem:[%s1 + $0x40] sm:$0xff]
  %v31 = vld [vmem:[%s1 + $0x48] sm:$0xff]
  %v32 = vld [vmem:[%s1 + $0x50] sm:$0xff]
  %v33 = vld [vmem:[%s1 + $0x58] sm:$0xff]
  %v34 = vld [vmem:[%s1 + $0x60] sm:$0xff]
  %v35 = vld [vmem:[%s1 + $0x68] sm:$0xff]
  %v36 = vld [vmem:[%s1 + $0x70] sm:$0xff]
  %v37 = vld [vmem:[%s1 + $0x78] sm:$0xff]
  %v38 = vld [vmem:[%s1 + $0x80] sm:$0xff]
  %v39 = vld [vmem:[%s1 + $0x88] sm:$0xff]
  %v40 = vld [vmem:[%s1 + $0x90] sm:$0xff]
  %v41 = vld [vmem:[%s1 + $0x98] sm:$0xff]
  %v42 = vld [vmem:[%s1 + $0xa0] sm:$0xff]
  %v43 = vld [vmem:[%s1 + $0xa8] sm:$0xff]
  %v44 = vld [vmem:[%s1 + $0xb0] sm:$0xff]
  %v45 = vld [vmem:[%s1 + $0xb8] sm:$0xff]
  %v46 = vld [vmem:[%s1 + $0xc0] sm:$0xff]
  %v47 = vld [vmem:[%s1 + $0xc8] sm:$0xff]
  %v48 = vld [vmem:[%s1 + $0xd0] sm:$0xff]
  %v49 = vld [vmem:[%s1 + $0xd8] sm:$0xff]
  %v50 = vld [vmem:[%s1 + $0xe0] sm:$0xff]
  %v51 = vld [vmem:[%s1 + $0xe8] sm:$0xff]
  %v52 = vld [vmem:[%s1 + $0xf0] sm:$0xff]
  %v53 = vld [vmem:[%s1 + $0xf8] sm:$0xff]
  %v54 = vld [vmem:[%s1 + $0x100] sm:$0xff]
  %v55 = vld [vmem:[%s1 + $0x108] sm:$0xff]
  %v56 = vld [vmem:[%s1 + $0x110] sm:$0xff]
  %v57 = vld [vmem:[%s1 + $0x118] sm:$0xff]
  %v58 = vld [vmem:[%s1 + $0x120] sm:$0xff]
  %v59 = vld [vmem:[%s1 + $0x128] sm:$0xff]
  %v60 = vld [vmem:[%s1 + $0x130] sm:$0xff]
  %v61 = vld [vmem:[%s1 + $0x138] sm:$0xff]
  %v62 = vld [vmem:[%s1 + $0x140] sm:$0xff]
  %v63 = vld [vmem:[%s1 + $0x148] sm:$0xff]
  %v64 = vld [vmem:[%s1 + $0x150] sm:$0xff]
  %v65 = vld [vmem:[%s1 + $0x158] sm:$0xff]
  %v66 = vld [vmem:[%s1 + $0x160] sm:$0xff]
  %v67 = vld [vmem:[%s1 + $0x168] sm:$0xff]
  %v68 = vld [vmem:[%s1 + $0x170] sm:$0xff]
  %v69 = vld [vmem:[%s1 + $0x178] sm:$0xff]
  %v70 = vld [vmem:[%s1 + $0x180] sm:$0xff]
  %v71 = vld [vmem:[%s1 + $0x188] sm:$0xff]
  %v72 = vld [vmem:[%s1 + $0x190] sm:$0xff]
  %v73 = vld [vmem:[%s1 + $0x198] sm:$0xff]
  %v74 = vld [vmem:[%s1 + $0x1a0] sm:$0xff]
  %v75 = vld [vmem:[%s1 + $0x1a8] sm:$0xff]
  %v76 = vld [vmem:[%s1 + $0x1b0] sm:$0xff]
  %v77 = vld [vmem:[%s1 + $0x1b8] sm:$0xff]
  %v78 = vld [vmem:[%s1 + $0x1c0] sm:$0xff]
  %v79 = vld [vmem:[%s1 + $0x1c8] sm:$0xff]
  %v80 = vld [vmem:[%s1 + $0x1d0] sm:$0xff]
  %v81 = vld [vmem:[%s1 + $0x1d8] sm:$0xff]
  %v82 = vld [vmem:[%s1 + $0x1e0] sm:$0xff]
  %v83 = vld [vmem:[%s1 + $0x1e8] sm:$0xff]
  %v84 = vld [vmem:[%s1 + $0x1f0] sm:$0xff]
  %v85 = vld [vmem:[%s1 + $0x1f8] sm:$0xff]
  %v86 = vld [vmem:[%s1 + $0x200] sm:$0xff]
  %v87 = vld [vmem:[%s1 + $0x208] sm:$0xff]
  %v88 = vld [vmem:[%s1 + $0x210] sm:$0xff]
  %v89 = vld [vmem:[%s1 + $0x218] sm:$0xff]
  %v90 = vld [vmem:[%s1 + $0x220] sm:$0xff]
  %v91 = vld [vmem:[%s1 + $0x228] sm:$0xff]
  %v92 = vld [vmem:[%s1 + $0x230] sm:$0xff]
  %v93 = vld [vmem:[%s1 + $0x238] sm:$0xff]
  %v94 = vld [vmem:[%s1 + $0x240] sm:$0xff]
  %v95 = vld [vmem:[%s1 + $0x248] sm:$0xff]
  %v96 = vld [vmem:[%s1 + $0x250] sm:$0xff]
  %v97 = vld [vmem:[%s1 + $0x258] sm:$0xff]
  %v98 = vld [vmem:[%s1 + $0x260] sm:$0xff]
  %v99 = vld [vmem:[%s1 + $0x268] sm:$0xff]
  %v100 = vld [vmem:[%s1 + $0x270] sm:$0xff]
  %v101 = vld [vmem:[%s1 + $0x278] sm:$0xff]
  %v102 = vld [vmem:[%s1 + $0x280] sm:$0xff]
  %v103 = vld [vmem:[%s1 + $0x288] sm:$0xff]
  %v104 = vld [vmem:[%s1 + $0x290] sm:$0xff]
  %v105 = vld [vmem:[%s1 + $0x298] sm:$0xff]
  %v106 = vld [vmem:[%s1 + $0x2a0] sm:$0xff]
  %v107 = vld [vmem:[%s1 + $0x2a8] sm:$0xff]
  %v108 = vld [vmem:[%s1 + $0x2b0] sm:$0xff]
  %v109 = vld [vmem:[%s1 + $0x2b8] sm:$0xff]
  %v110 = vld [vmem:[%s1 + $0x2c0] sm:$0xff]
  %v111 = vld [vmem:[%s1 + $0x2c8] sm:$0xff]
  %v112 = vld [vmem:[%s1 + $0x2d0] sm:$0xff]
  %v113 = vld [vmem:[%s1 + $0x2d8] sm:$0xff]
  %v114 = vld [vmem:[%s1 + $0x2e0] sm:$0xff]
  %v115 = vld [vmem:[%s1 + $0x2e8] sm:$0xff]
  %v116 = vld [vmem:[%s1 + $0x2f0] sm:$0xff]
  %v117 = vld [vmem:[%s1 + $0x2f8] sm:$0xff]
  %v118 = vld [vmem:[%s1 + $0x300] sm:$0xff]
  %v119 = vld [vmem:[%s1 + $0x308] sm:$0xff]
  %v120 = vld [vmem:[%s1 + $0x310] sm:$0xff]
  %v121 = vld [vmem:[%s1 + $0x318] sm:$0xff]
  %v122 = vld [vmem:[%s1 + $0x320] sm:$0xff]
  %v123 = vld [vmem:[%s1 + $0x328] sm:$0xff]
  %v124 = vld [vmem:[%s1 + $0x330] sm:$0xff]
  %v125 = vld [vmem:[%s1 + $0x338] sm:$0xff]
  %v126 = vld [vmem:[%s1 + $0x340] sm:$0xff]
  %v127 = vld [vmem:[%s1 + $0x348] sm:$0xff]
  %v128 = vld [vmem:[%s1 + $0x350] sm:$0xff]
  %v129 = vld [vmem:[%s1 + $0x358] sm:$0xff]
  %v130 = vld [vmem:[%s1 + $0x360] sm:$0xff]
  %v131 = vld [vmem:[%s1 + $0x368] sm:$0xff]
  %v132 = vld [vmem:[%s1 + $0x370] sm:$0xff]
  %v133 = vld [vmem:[%s1 + $0x378] sm:$0xff]
  %v134 = vld [vmem:[%s1 + $0x380] sm:$0xff]
  %v135 = vld [vmem:[%s1 + $0x388] sm:$0xff]
  %v136 = vld [vmem:[%s1 + $0x390] sm:$0xff]
  %v137 = vld [vmem:[%s1 + $0x398] sm:$0xff]
  %v138 = vld [vmem:[%s1 + $0x3a0] sm:$0xff]
  %v139 = vld [vmem:[%s1 + $0x3a8] sm:$0xff]
  %v140 = vld [vmem:[%s1 + $0x3b0] sm:$0xff]
  %v141 = vld [vmem:[%s1 + $0x3b8] sm:$0xff]
  %v142 = vld [vmem:[%s1 + $0x3c0] sm:$0xff]
  %v143 = vld [vmem:[%s1 + $0x3c8] sm:$0xff]
  %v144 = vld [vmem:[%s1 + $0x3d0] sm:$0xff]
  %v145 = vld [vmem:[%s1 + $0x3d8] sm:$0xff]
  %v146 = vld [vmem:[%s1 + $0x3e0] sm:$0xff]
  %v147 = vld [vmem:[%s1 + $0x3e8] sm:$0xff]
  %v148 = vld [vmem:[%s1 + $0x3f0] sm:$0xff]
  %v149 = vld [vmem:[%s1 + $0x3f8] sm:$0xff]
  %v150 = vld [vmem:[%s1 + $0x400] sm:$0xff]
  %v151 = vld [vmem:[%s1 + $0x408] sm:$0xff]
  %v152 = vld [vmem:[%s1 + $0x410] sm:$0xff]
  %v153 = vld [vmem:[%s1 + $0x418] sm:$0xff]
  %v154 = vld [vmem:[%s1 + $0x420] sm:$0xff]
  %v155 = vld [vmem:[%s1 + $0x428] sm:$0xff]
  %v156 = vld [vmem:[%s1 + $0x430] sm:$0xff]
  %v157 = vld [vmem:[%s1 + $0x438] sm:$0xff]
  %v158 = vld [vmem:[%s1 + $0x440] sm:$0xff]
  %v159 = vld [vmem:[%s1 + $0x448] sm:$0xff]
  %v160 = vld [vmem:[%s1 + $0x450] sm:$0xff]
  %v161 = vld [vmem:[%s1 + $0x458] sm:$0xff]
  %v162 = vld [vmem:[%s1 + $0x460] sm:$0xff]
  %v163 = vld [vmem:[%s1 + $0x468] sm:$0xff]
  %v164 = vld [vmem:[%s1 + $0x470] sm:$0xff]
  %v165 = vld [vmem:[%s1 + $0x478] sm:$0xff]
  %v166 = vld [vmem:[%s2] sm:$0x3]
  %v168 = vlaneseq
  %v169 = vshrl.u32 %v168, 7
  %v170 = vsub.s32 0, %v169
  %v171 = vrot.slane %v166, %v170
  %v172 = vlaneseq
  %v173 = vshrl.u32 %v172, 7
  %v174 = vsub.s32 1, %v173
  %v175 = vrot.slane %v166, %v174
  %v183 = vunpack.c.l.b16 %v17
  %v184 = vunpack.c.h.b16 %v17
  %v185 = vunpack.c.l.b16 %v18
  %v186 = vunpack.c.h.b16 %v18
  %v187 = vunpack.c.l.b16 %v19
  %v188 = vunpack.c.h.b16 %v19
  %v189 = vunpack.c.l.b16 %v20
  %v190 = vunpack.c.h.b16 %v20
  %v191 = vunpack.c.l.b16 %v21
  %v192 = vpack.c.b16 %v183, %v183
  %v193 = vpack.c.b16 %v184, %v184
  %v194 = vpack.c.b16 %v185, %v185
  %v195 = vpack.c.b16 %v186, %v186
  %v196 = vpack.c.b16 %v187, %v187
  %v197 = vpack.c.b16 %v188, %v188
  %v198 = vpack.c.b16 %v189, %v189
  %v199 = vpack.c.b16 %v190, %v190
  %v200 = vpack.c.b16 %v191, %v191
  %v354 = vunpack.c.l.b16 %v22
  %v355 = vunpack.c.h.b16 %v22
  %v356 = vunpack.c.l.b16 %v23
  %v357 = vunpack.c.h.b16 %v23
  %v358 = vunpack.c.l.b16 %v24
  %v359 = vunpack.c.h.b16 %v24
  %v360 = vunpack.c.l.b16 %v25
  %v361 = vunpack.c.h.b16 %v25
  %v362 = vunpack.c.l.b16 %v26
  %v363 = vunpack.c.h.b16 %v26
  %v364 = vunpack.c.l.b16 %v27
  %v365 = vunpack.c.h.b16 %v27
  %v366 = vunpack.c.l.b16 %v28
  %v367 = vunpack.c.h.b16 %v28
  %v368 = vunpack.c.l.b16 %v29
  %v369 = vunpack.c.h.b16 %v29
  %v370 = vunpack.c.l.b16 %v30
  %v371 = vunpack.c.h.b16 %v30
  %v372 = vunpack.c.l.b16 %v31
  %v373 = vunpack.c.h.b16 %v31
  %v374 = vunpack.c.l.b16 %v32
  %v375 = vunpack.c.h.b16 %v32
  %v376 = vunpack.c.l.b16 %v33
  %v377 = vunpack.c.h.b16 %v33
  %v378 = vunpack.c.l.b16 %v34
  %v379 = vunpack.c.h.b16 %v34
  %v380 = vunpack.c.l.b16 %v35
  %v381 = vunpack.c.h.b16 %v35
  %v382 = vunpack.c.l.b16 %v36
  %v383 = vunpack.c.h.b16 %v36
  %v384 = vunpack.c.l.b16 %v37
  %v385 = vunpack.c.h.b16 %v37
  %v386 = vunpack.c.l.b16 %v38
  %v387 = vunpack.c.h.b16 %v38
  %v388 = vunpack.c.l.b16 %v39
  %v389 = vunpack.c.h.b16 %v39
  %v390 = vunpack.c.l.b16 %v40
  %v391 = vunpack.c.h.b16 %v40
  %v392 = vunpack.c.l.b16 %v41
  %v393 = vunpack.c.h.b16 %v41
  %v394 = vunpack.c.l.b16 %v42
  %v395 = vunpack.c.h.b16 %v42
  %v396 = vunpack.c.l.b16 %v43
  %v397 = vunpack.c.h.b16 %v43
  %v398 = vunpack.c.l.b16 %v44
  %v399 = vunpack.c.h.b16 %v44
  %v400 = vunpack.c.l.b16 %v45
  %v401 = vunpack.c.h.b16 %v45
  %v402 = vunpack.c.l.b16 %v46
  %v403 = vunpack.c.h.b16 %v46
  %v404 = vunpack.c.l.b16 %v47
  %v405 = vunpack.c.h.b16 %v47
  %v406 = vunpack.c.l.b16 %v48
  %v407 = vunpack.c.h.b16 %v48
  %v408 = vunpack.c.l.b16 %v49
  %v409 = vunpack.c.h.b16 %v49
  %v410 = vunpack.c.l.b16 %v50
  %v411 = vunpack.c.h.b16 %v50
  %v412 = vunpack.c.l.b16 %v51
  %v413 = vunpack.c.h.b16 %v51
  %v414 = vunpack.c.l.b16 %v52
  %v415 = vunpack.c.h.b16 %v52
  %v416 = vunpack.c.l.b16 %v53
  %v417 = vunpack.c.h.b16 %v53
  %v418 = vunpack.c.l.b16 %v54
  %v419 = vunpack.c.h.b16 %v54
  %v420 = vunpack.c.l.b16 %v55
  %v421 = vunpack.c.h.b16 %v55
  %v422 = vunpack.c.l.b16 %v56
  %v423 = vunpack.c.h.b16 %v56
  %v424 = vunpack.c.l.b16 %v57
  %v425 = vunpack.c.h.b16 %v57
  %v426 = vunpack.c.l.b16 %v58
  %v427 = vunpack.c.h.b16 %v58
  %v428 = vunpack.c.l.b16 %v59
  %v429 = vunpack.c.h.b16 %v59
  %v430 = vunpack.c.l.b16 %v60
  %v431 = vunpack.c.h.b16 %v60
  %v432 = vunpack.c.l.b16 %v61
  %v433 = vunpack.c.h.b16 %v61
  %v434 = vunpack.c.l.b16 %v62
  %v435 = vunpack.c.h.b16 %v62
  %v436 = vunpack.c.l.b16 %v63
  %v437 = vunpack.c.h.b16 %v63
  %v438 = vunpack.c.l.b16 %v64
  %v439 = vunpack.c.h.b16 %v64
  %v440 = vunpack.c.l.b16 %v65
  %v441 = vunpack.c.h.b16 %v65
  %v442 = vunpack.c.l.b16 %v66
  %v443 = vunpack.c.h.b16 %v66
  %v444 = vunpack.c.l.b16 %v67
  %v445 = vunpack.c.h.b16 %v67
  %v446 = vunpack.c.l.b16 %v68
  %v447 = vunpack.c.h.b16 %v68
  %v448 = vunpack.c.l.b16 %v69
  %v449 = vunpack.c.h.b16 %v69
  %v450 = vunpack.c.l.b16 %v70
  %v451 = vunpack.c.h.b16 %v70
  %v452 = vunpack.c.l.b16 %v71
  %v453 = vunpack.c.h.b16 %v71
  %v454 = vunpack.c.l.b16 %v72
  %v455 = vunpack.c.h.b16 %v72
  %v456 = vunpack.c.l.b16 %v73
  %v457 = vunpack.c.h.b16 %v73
  %v458 = vunpack.c.l.b16 %v74
  %v459 = vunpack.c.h.b16 %v74
  %v460 = vunpack.c.l.b16 %v75
  %v461 = vunpack.c.h.b16 %v75
  %v462 = vunpack.c.l.b16 %v76
  %v463 = vunpack.c.h.b16 %v76
  %v464 = vunpack.c.l.b16 %v77
  %v465 = vunpack.c.h.b16 %v77
  %v466 = vunpack.c.l.b16 %v78
  %v467 = vunpack.c.h.b16 %v78
  %v468 = vunpack.c.l.b16 %v79
  %v469 = vunpack.c.h.b16 %v79
  %v470 = vunpack.c.l.b16 %v80
  %v471 = vunpack.c.h.b16 %v80
  %v472 = vunpack.c.l.b16 %v81
  %v473 = vunpack.c.h.b16 %v81
  %v474 = vunpack.c.l.b16 %v82
  %v475 = vunpack.c.h.b16 %v82
  %v476 = vunpack.c.l.b16 %v83
  %v477 = vunpack.c.h.b16 %v83
  %v478 = vunpack.c.l.b16 %v84
  %v479 = vunpack.c.h.b16 %v84
  %v480 = vunpack.c.l.b16 %v85
  %v481 = vunpack.c.h.b16 %v85
  %v482 = vunpack.c.l.b16 %v86
  %v483 = vunpack.c.h.b16 %v86
  %v484 = vunpack.c.l.b16 %v87
  %v485 = vunpack.c.h.b16 %v87
  %v486 = vunpack.c.l.b16 %v88
  %v487 = vunpack.c.h.b16 %v88
  %v488 = vunpack.c.l.b16 %v89
  %v489 = vunpack.c.h.b16 %v89
  %v490 = vunpack.c.l.b16 %v90
  %v491 = vunpack.c.h.b16 %v90
  %v492 = vunpack.c.l.b16 %v91
  %v493 = vunpack.c.h.b16 %v91
  %v494 = vunpack.c.l.b16 %v92
  %v495 = vunpack.c.h.b16 %v92
  %v496 = vunpack.c.l.b16 %v93
  %v497 = vunpack.c.h.b16 %v93
  %v498 = vunpack.c.l.b16 %v94
  %v499 = vunpack.c.h.b16 %v94
  %v500 = vunpack.c.l.b16 %v95
  %v501 = vunpack.c.h.b16 %v95
  %v502 = vunpack.c.l.b16 %v96
  %v503 = vunpack.c.h.b16 %v96
  %v504 = vunpack.c.l.b16 %v97
  %v505 = vunpack.c.h.b16 %v97
  %v506 = vunpack.c.l.b16 %v98
  %v507 = vunpack.c.h.b16 %v98
  %v508 = vunpack.c.l.b16 %v99
  %v509 = vunpack.c.h.b16 %v99
  %v510 = vunpack.c.l.b16 %v100
  %v511 = vunpack.c.h.b16 %v100
  %v512 = vunpack.c.l.b16 %v101
  %v513 = vunpack.c.h.b16 %v101
  %v514 = vunpack.c.l.b16 %v102
  %v515 = vunpack.c.h.b16 %v102
  %v516 = vunpack.c.l.b16 %v103
  %v517 = vunpack.c.h.b16 %v103
  %v518 = vunpack.c.l.b16 %v104
  %v519 = vunpack.c.h.b16 %v104
  %v520 = vunpack.c.l.b16 %v105
  %v521 = vunpack.c.h.b16 %v105
  %v522 = vunpack.c.l.b16 %v106
  %v523 = vunpack.c.h.b16 %v106
  %v524 = vunpack.c.l.b16 %v107
  %v525 = vunpack.c.h.b16 %v107
  %v526 = vunpack.c.l.b16 %v108
  %v527 = vunpack.c.h.b16 %v108
  %v528 = vunpack.c.l.b16 %v109
  %v529 = vunpack.c.h.b16 %v109
  %v530 = vunpack.c.l.b16 %v110
  %v531 = vunpack.c.h.b16 %v110
  %v532 = vunpack.c.l.b16 %v111
  %v533 = vunpack.c.h.b16 %v111
  %v534 = vunpack.c.l.b16 %v112
  %v535 = vunpack.c.h.b16 %v112
  %v536 = vunpack.c.l.b16 %v113
  %v537 = vunpack.c.h.b16 %v113
  %v538 = vunpack.c.l.b16 %v114
  %v539 = vunpack.c.h.b16 %v114
  %v540 = vunpack.c.l.b16 %v115
  %v541 = vunpack.c.h.b16 %v115
  %v542 = vunpack.c.l.b16 %v116
  %v543 = vunpack.c.h.b16 %v116
  %v544 = vunpack.c.l.b16 %v117
  %v545 = vunpack.c.h.b16 %v117
  %v546 = vunpack.c.l.b16 %v118
  %v547 = vunpack.c.h.b16 %v118
  %v548 = vunpack.c.l.b16 %v119
  %v549 = vunpack.c.h.b16 %v119
  %v550 = vunpack.c.l.b16 %v120
  %v551 = vunpack.c.h.b16 %v120
  %v552 = vunpack.c.l.b16 %v121
  %v553 = vunpack.c.h.b16 %v121
  %v554 = vunpack.c.l.b16 %v122
  %v555 = vunpack.c.h.b16 %v122
  %v556 = vunpack.c.l.b16 %v123
  %v557 = vunpack.c.h.b16 %v123
  %v558 = vunpack.c.l.b16 %v124
  %v559 = vunpack.c.h.b16 %v124
  %v560 = vunpack.c.l.b16 %v125
  %v561 = vunpack.c.h.b16 %v125
  %v562 = vunpack.c.l.b16 %v126
  %v563 = vunpack.c.h.b16 %v126
  %v564 = vunpack.c.l.b16 %v127
  %v565 = vunpack.c.h.b16 %v127
  %v566 = vunpack.c.l.b16 %v128
  %v567 = vunpack.c.h.b16 %v128
  %v568 = vunpack.c.l.b16 %v129
  %v569 = vunpack.c.h.b16 %v129
  %v570 = vunpack.c.l.b16 %v130
  %v571 = vunpack.c.h.b16 %v130
  %v572 = vunpack.c.l.b16 %v131
  %v573 = vunpack.c.h.b16 %v131
  %v574 = vunpack.c.l.b16 %v132
  %v575 = vunpack.c.h.b16 %v132
  %v576 = vunpack.c.l.b16 %v133
  %v577 = vunpack.c.h.b16 %v133
  %v578 = vunpack.c.l.b16 %v134
  %v579 = vunpack.c.h.b16 %v134
  %v580 = vunpack.c.l.b16 %v135
  %v581 = vunpack.c.h.b16 %v135
  %v582 = vunpack.c.l.b16 %v136
  %v583 = vunpack.c.h.b16 %v136
  %v584 = vunpack.c.l.b16 %v137
  %v585 = vunpack.c.h.b16 %v137
  %v586 = vunpack.c.l.b16 %v138
  %v587 = vunpack.c.h.b16 %v138
  %v588 = vunpack.c.l.b16 %v139
  %v589 = vunpack.c.h.b16 %v139
  %v590 = vunpack.c.l.b16 %v140
  %v591 = vunpack.c.h.b16 %v140
  %v592 = vunpack.c.l.b16 %v141
  %v593 = vunpack.c.h.b16 %v141
  %v594 = vunpack.c.l.b16 %v142
  %v595 = vunpack.c.h.b16 %v142
  %v596 = vunpack.c.l.b16 %v143
  %v597 = vunpack.c.h.b16 %v143
  %v598 = vunpack.c.l.b16 %v144
  %v599 = vunpack.c.h.b16 %v144
  %v600 = vunpack.c.l.b16 %v145
  %v601 = vunpack.c.h.b16 %v145
  %v602 = vunpack.c.l.b16 %v146
  %v603 = vunpack.c.h.b16 %v146
  %v604 = vunpack.c.l.b16 %v147
  %v605 = vunpack.c.h.b16 %v147
  %v606 = vunpack.c.l.b16 %v148
  %v607 = vunpack.c.h.b16 %v148
  %v608 = vunpack.c.l.b16 %v149
  %v609 = vunpack.c.h.b16 %v149
  %v610 = vunpack.c.l.b16 %v150
  %v611 = vunpack.c.h.b16 %v150
  %v612 = vunpack.c.l.b16 %v151
  %v613 = vunpack.c.h.b16 %v151
  %v614 = vunpack.c.l.b16 %v152
  %v615 = vunpack.c.h.b16 %v152
  %v616 = vunpack.c.l.b16 %v153
  %v617 = vunpack.c.h.b16 %v153
  %v618 = vunpack.c.l.b16 %v154
  %v619 = vunpack.c.h.b16 %v154
  %v620 = vunpack.c.l.b16 %v155
  %v621 = vunpack.c.h.b16 %v155
  %v622 = vunpack.c.l.b16 %v156
  %v623 = vunpack.c.h.b16 %v156
  %v624 = vunpack.c.l.b16 %v157
  %v625 = vunpack.c.h.b16 %v157
  %v626 = vunpack.c.l.b16 %v158
  %v627 = vunpack.c.h.b16 %v158
  %v628 = vunpack.c.l.b16 %v159
  %v629 = vunpack.c.h.b16 %v159
  %v630 = vunpack.c.l.b16 %v160
  %v631 = vunpack.c.h.b16 %v160
  %v632 = vunpack.c.l.b16 %v161
  %v633 = vunpack.c.h.b16 %v161
  %v634 = vunpack.c.l.b16 %v162
  %v635 = vunpack.c.h.b16 %v162
  %v636 = vunpack.c.l.b16 %v163
  %v637 = vunpack.c.h.b16 %v163
  %v638 = vunpack.c.l.b16 %v164
  %v639 = vunpack.c.h.b16 %v164
  %v640 = vunpack.c.l.b16 %v165
  %v641 = vunpack.c.h.b16 %v165
  %v642 = vpack.c.b16 %v356, %v354
  %v643 = vpack.c.b16 %v357, %v355
  %v644 = vpack.c.b16 %v360, %v358
  %v645 = vpack.c.b16 %v361, %v359
  %v646 = vpack.c.b16 %v364, %v362
  %v647 = vpack.c.b16 %v365, %v363
  %v648 = vpack.c.b16 %v368, %v366
  %v649 = vpack.c.b16 %v369, %v367
  %v650 = vpack.c.b16 %v372, %v370
  %v651 = vpack.c.b16 %v373, %v371
  %v652 = vpack.c.b16 %v376, %v374
  %v653 = vpack.c.b16 %v377, %v375
  %v654 = vpack.c.b16 %v380, %v378
  %v655 = vpack.c.b16 %v381, %v379
  %v656 = vpack.c.b16 %v384, %v382
  %v657 = vpack.c.b16 %v385, %v383
  %v658 = vpack.c.b16 %v388, %v386
  %v659 = vpack.c.b16 %v389, %v387
  %v660 = vpack.c.b16 %v392, %v390
  %v661 = vpack.c.b16 %v393, %v391
  %v662 = vpack.c.b16 %v396, %v394
  %v663 = vpack.c.b16 %v397, %v395
  %v664 = vpack.c.b16 %v400, %v398
  %v665 = vpack.c.b16 %v401, %v399
  %v666 = vpack.c.b16 %v404, %v402
  %v667 = vpack.c.b16 %v405, %v403
  %v668 = vpack.c.b16 %v408, %v406
  %v669 = vpack.c.b16 %v409, %v407
  %v670 = vpack.c.b16 %v412, %v410
  %v671 = vpack.c.b16 %v413, %v411
  %v672 = vpack.c.b16 %v416, %v414
  %v673 = vpack.c.b16 %v417, %v415
  %v674 = vpack.c.b16 %v420, %v418
  %v675 = vpack.c.b16 %v421, %v419
  %v676 = vpack.c.b16 %v424, %v422
  %v677 = vpack.c.b16 %v425, %v423
  %v678 = vpack.c.b16 %v428, %v426
  %v679 = vpack.c.b16 %v429, %v427
  %v680 = vpack.c.b16 %v432, %v430
  %v681 = vpack.c.b16 %v433, %v431
  %v682 = vpack.c.b16 %v436, %v434
  %v683 = vpack.c.b16 %v437, %v435
  %v684 = vpack.c.b16 %v440, %v438
  %v685 = vpack.c.b16 %v441, %v439
  %v686 = vpack.c.b16 %v444, %v442
  %v687 = vpack.c.b16 %v445, %v443
  %v688 = vpack.c.b16 %v448, %v446
  %v689 = vpack.c.b16 %v449, %v447
  %v690 = vpack.c.b16 %v452, %v450
  %v691 = vpack.c.b16 %v453, %v451
  %v692 = vpack.c.b16 %v456, %v454
  %v693 = vpack.c.b16 %v457, %v455
  %v694 = vpack.c.b16 %v460, %v458
  %v695 = vpack.c.b16 %v461, %v459
  %v696 = vpack.c.b16 %v464, %v462
  %v697 = vpack.c.b16 %v465, %v463
  %v698 = vpack.c.b16 %v468, %v466
  %v699 = vpack.c.b16 %v469, %v467
  %v700 = vpack.c.b16 %v472, %v470
  %v701 = vpack.c.b16 %v473, %v471
  %v702 = vpack.c.b16 %v476, %v474
  %v703 = vpack.c.b16 %v477, %v475
  %v704 = vpack.c.b16 %v480, %v478
  %v705 = vpack.c.b16 %v481, %v479
  %v706 = vpack.c.b16 %v484, %v482
  %v707 = vpack.c.b16 %v485, %v483
  %v708 = vpack.c.b16 %v488, %v486
  %v709 = vpack.c.b16 %v489, %v487
  %v710 = vpack.c.b16 %v492, %v490
  %v711 = vpack.c.b16 %v493, %v491
  %v712 = vpack.c.b16 %v496, %v494
  %v713 = vpack.c.b16 %v497, %v495
  %v714 = vpack.c.b16 %v500, %v498
  %v715 = vpack.c.b16 %v501, %v499
  %v716 = vpack.c.b16 %v504, %v502
  %v717 = vpack.c.b16 %v505, %v503
  %v718 = vpack.c.b16 %v508, %v506
  %v719 = vpack.c.b16 %v509, %v507
  %v720 = vpack.c.b16 %v512, %v510
  %v721 = vpack.c.b16 %v513, %v511
  %v722 = vpack.c.b16 %v516, %v514
  %v723 = vpack.c.b16 %v517, %v515
  %v724 = vpack.c.b16 %v520, %v518
  %v725 = vpack.c.b16 %v521, %v519
  %v726 = vpack.c.b16 %v524, %v522
  %v727 = vpack.c.b16 %v525, %v523
  %v728 = vpack.c.b16 %v528, %v526
  %v729 = vpack.c.b16 %v529, %v527
  %v730 = vpack.c.b16 %v532, %v530
  %v731 = vpack.c.b16 %v533, %v531
  %v732 = vpack.c.b16 %v536, %v534
  %v733 = vpack.c.b16 %v537, %v535
  %v734 = vpack.c.b16 %v540, %v538
  %v735 = vpack.c.b16 %v541, %v539
  %v736 = vpack.c.b16 %v544, %v542
  %v737 = vpack.c.b16 %v545, %v543
  %v738 = vpack.c.b16 %v548, %v546
  %v739 = vpack.c.b16 %v549, %v547
  %v740 = vpack.c.b16 %v552, %v550
  %v741 = vpack.c.b16 %v553, %v551
  %v742 = vpack.c.b16 %v556, %v554
  %v743 = vpack.c.b16 %v557, %v555
  %v744 = vpack.c.b16 %v560, %v558
  %v745 = vpack.c.b16 %v561, %v559
  %v746 = vpack.c.b16 %v564, %v562
  %v747 = vpack.c.b16 %v565, %v563
  %v748 = vpack.c.b16 %v568, %v566
  %v749 = vpack.c.b16 %v569, %v567
  %v750 = vpack.c.b16 %v572, %v570
  %v751 = vpack.c.b16 %v573, %v571
  %v752 = vpack.c.b16 %v576, %v574
  %v753 = vpack.c.b16 %v577, %v575
  %v754 = vpack.c.b16 %v580, %v578
  %v755 = vpack.c.b16 %v581, %v579
  %v756 = vpack.c.b16 %v584, %v582
  %v757 = vpack.c.b16 %v585, %v583
  %v758 = vpack.c.b16 %v588, %v586
  %v759 = vpack.c.b16 %v589, %v587
  %v760 = vpack.c.b16 %v592, %v590
  %v761 = vpack.c.b16 %v593, %v591
  %v762 = vpack.c.b16 %v596, %v594
  %v763 = vpack.c.b16 %v597, %v595
  %v764 = vpack.c.b16 %v600, %v598
  %v765 = vpack.c.b16 %v601, %v599
  %v766 = vpack.c.b16 %v604, %v602
  %v767 = vpack.c.b16 %v605, %v603
  %v768 = vpack.c.b16 %v608, %v606
  %v769 = vpack.c.b16 %v609, %v607
  %v770 = vpack.c.b16 %v612, %v610
  %v771 = vpack.c.b16 %v613, %v611
  %v772 = vpack.c.b16 %v616, %v614
  %v773 = vpack.c.b16 %v617, %v615
  %v774 = vpack.c.b16 %v620, %v618
  %v775 = vpack.c.b16 %v621, %v619
  %v776 = vpack.c.b16 %v624, %v622
  %v777 = vpack.c.b16 %v625, %v623
  %v778 = vpack.c.b16 %v628, %v626
  %v779 = vpack.c.b16 %v629, %v627
  %v780 = vpack.c.b16 %v632, %v630
  %v781 = vpack.c.b16 %v633, %v631
  %v782 = vpack.c.b16 %v636, %v634
  %v783 = vpack.c.b16 %v637, %v635
  %v784 = vpack.c.b16 %v640, %v638
  %v785 = vpack.c.b16 %v641, %v639
  %930 = vmatprep.subr.bf16.mxu0 %v657
  %931 = vmatpush1.bf16.msra.mxu0 %v656
  %932 = vmatprep.subr.bf16.mxu0 %v655
  %933 = vmatpush1.bf16.msra.mxu0 %v654
  %934 = vmatprep.subr.bf16.mxu0 %v653
  %935 = vmatpush1.bf16.msra.mxu0 %v652
  %936 = vmatprep.subr.bf16.mxu0 %v651
  %937 = vmatpush1.bf16.msra.mxu0 %v650
  %938 = vmatprep.subr.bf16.mxu0 %v649
  %939 = vmatpush1.bf16.msra.mxu0 %v648
  %940 = vmatprep.subr.bf16.mxu0 %v647
  %941 = vmatpush1.bf16.msra.mxu0 %v646
  %942 = vmatprep.subr.bf16.mxu0 %v645
  %943 = vmatpush1.bf16.msra.mxu0 %v644
  %944 = vmatprep.subr.bf16.mxu0 %v643
  %945 = vmatpush1.bf16.msra.mxu0 %v642
  %946 = vmatprep.subr.bf16.mxu0 %v673
  %947 = vmatpush2.bf16.msra.mxu0 %v672
  %948 = vmatprep.subr.bf16.mxu0 %v671
  %949 = vmatpush2.bf16.msra.mxu0 %v670
  %950 = vmatprep.subr.bf16.mxu0 %v669
  %951 = vmatpush2.bf16.msra.mxu0 %v668
  %952 = vmatprep.subr.bf16.mxu0 %v667
  %953 = vmatpush2.bf16.msra.mxu0 %v666
  %954 = vmatprep.subr.bf16.mxu0 %v665
  %955 = vmatpush2.bf16.msra.mxu0 %v664
  %956 = vmatprep.subr.bf16.mxu0 %v663
  %957 = vmatpush2.bf16.msra.mxu0 %v662
  %958 = vmatprep.subr.bf16.mxu0 %v661
  %959 = vmatpush2.bf16.msra.mxu0 %v660
  %960 = vmatprep.subr.bf16.mxu0 %v659
  %961 = vmatpush2.bf16.msra.mxu0 %v658
  %962 = vmatprep.mubr.bf16.mxu0 %v193
  %963 = vmatmul.mubr.bf16.gmra.mxu0 %v192
  %v964 = vpop.f32.mrf.mxu0
  %v965 = vadd.f32 %v171, %v964
  %v966 = vpop.f32.mrf.mxu0
  %v967 = vadd.f32 %v175, %v966
  %v968 = vpop.f32.mrf.mxu0
  %v969 = vpop.f32.mrf.mxu0
  %970 = vdwg.mxu0
  %971 = vmatprep.subr.bf16.mxu0 %v689
  %972 = vmatpush1.bf16.msra.mxu0 %v688
  %973 = vmatprep.subr.bf16.mxu0 %v687
  %974 = vmatpush1.bf16.msra.mxu0 %v686
  %975 = vmatprep.subr.bf16.mxu0 %v685
  %976 = vmatpush1.bf16.msra.mxu0 %v684
  %977 = vmatprep.subr.bf16.mxu0 %v683
  %978 = vmatpush1.bf16.msra.mxu0 %v682
  %979 = vmatprep.subr.bf16.mxu0 %v681
  %980 = vmatpush1.bf16.msra.mxu0 %v680
  %981 = vmatprep.subr.bf16.mxu0 %v679
  %982 = vmatpush1.bf16.msra.mxu0 %v678
  %983 = vmatprep.subr.bf16.mxu0 %v677
  %984 = vmatpush1.bf16.msra.mxu0 %v676
  %985 = vmatprep.subr.bf16.mxu0 %v675
  %986 = vmatpush1.bf16.msra.mxu0 %v674
  %987 = vmatprep.subr.bf16.mxu0 %v705
  %988 = vmatpush2.bf16.msra.mxu0 %v704
  %989 = vmatprep.subr.bf16.mxu0 %v703
  %990 = vmatpush2.bf16.msra.mxu0 %v702
  %991 = vmatprep.subr.bf16.mxu0 %v701
  %992 = vmatpush2.bf16.msra.mxu0 %v700
  %993 = vmatprep.subr.bf16.mxu0 %v699
  %994 = vmatpush2.bf16.msra.mxu0 %v698
  %995 = vmatprep.subr.bf16.mxu0 %v697
  %996 = vmatpush2.bf16.msra.mxu0 %v696
  %997 = vmatprep.subr.bf16.mxu0 %v695
  %998 = vmatpush2.bf16.msra.mxu0 %v694
  %999 = vmatprep.subr.bf16.mxu0 %v693
  %1000 = vmatpush2.bf16.msra.mxu0 %v692
  %1001 = vmatprep.subr.bf16.mxu0 %v691
  %1002 = vmatpush2.bf16.msra.mxu0 %v690
  %1003 = vmatprep.mubr.bf16.mxu0 %v195
  %1004 = vmatmul.mubr.bf16.gmra.mxu0 %v194
  %v1005 = vpop.f32.mrf.mxu0
  %v1006 = vadd.f32 %v965, %v1005
  %v1007 = vpop.f32.mrf.mxu0
  %v1008 = vadd.f32 %v967, %v1007
  %v1009 = vpop.f32.mrf.mxu0
  %v1010 = vpop.f32.mrf.mxu0
  %1011 = vdwg.mxu0
  %1012 = vmatprep.subr.bf16.mxu0 %v721
  %1013 = vmatpush1.bf16.msra.mxu0 %v720
  %1014 = vmatprep.subr.bf16.mxu0 %v719
  %1015 = vmatpush1.bf16.msra.mxu0 %v718
  %1016 = vmatprep.subr.bf16.mxu0 %v717
  %1017 = vmatpush1.bf16.msra.mxu0 %v716
  %1018 = vmatprep.subr.bf16.mxu0 %v715
  %1019 = vmatpush1.bf16.msra.mxu0 %v714
  %1020 = vmatprep.subr.bf16.mxu0 %v713
  %1021 = vmatpush1.bf16.msra.mxu0 %v712
  %1022 = vmatprep.subr.bf16.mxu0 %v711
  %1023 = vmatpush1.bf16.msra.mxu0 %v710
  %1024 = vmatprep.subr.bf16.mxu0 %v709
  %1025 = vmatpush1.bf16.msra.mxu0 %v708
  %1026 = vmatprep.subr.bf16.mxu0 %v707
  %1027 = vmatpush1.bf16.msra.mxu0 %v706
  %1028 = vmatprep.subr.bf16.mxu0 %v737
  %1029 = vmatpush2.bf16.msra.mxu0 %v736
  %1030 = vmatprep.subr.bf16.mxu0 %v735
  %1031 = vmatpush2.bf16.msra.mxu0 %v734
  %1032 = vmatprep.subr.bf16.mxu0 %v733
  %1033 = vmatpush2.bf16.msra.mxu0 %v732
  %1034 = vmatprep.subr.bf16.mxu0 %v731
  %1035 = vmatpush2.bf16.msra.mxu0 %v730
  %1036 = vmatprep.subr.bf16.mxu0 %v729
  %1037 = vmatpush2.bf16.msra.mxu0 %v728
  %1038 = vmatprep.subr.bf16.mxu0 %v727
  %1039 = vmatpush2.bf16.msra.mxu0 %v726
  %1040 = vmatprep.subr.bf16.mxu0 %v725
  %1041 = vmatpush2.bf16.msra.mxu0 %v724
  %1042 = vmatprep.subr.bf16.mxu0 %v723
  %1043 = vmatpush2.bf16.msra.mxu0 %v722
  %1044 = vmatprep.mubr.bf16.mxu0 %v197
  %1045 = vmatmul.mubr.bf16.gmra.mxu0 %v196
  %v1046 = vpop.f32.mrf.mxu0
  %v1047 = vadd.f32 %v1006, %v1046
  %v1048 = vpop.f32.mrf.mxu0
  %v1049 = vadd.f32 %v1008, %v1048
  %v1050 = vpop.f32.mrf.mxu0
  %v1051 = vpop.f32.mrf.mxu0
  %1052 = vdwg.mxu0
  %1053 = vmatprep.subr.bf16.mxu0 %v753
  %1054 = vmatpush1.bf16.msra.mxu0 %v752
  %1055 = vmatprep.subr.bf16.mxu0 %v751
  %1056 = vmatpush1.bf16.msra.mxu0 %v750
  %1057 = vmatprep.subr.bf16.mxu0 %v749
  %1058 = vmatpush1.bf16.msra.mxu0 %v748
  %1059 = vmatprep.subr.bf16.mxu0 %v747
  %1060 = vmatpush1.bf16.msra.mxu0 %v746
  %1061 = vmatprep.subr.bf16.mxu0 %v745
  %1062 = vmatpush1.bf16.msra.mxu0 %v744
  %1063 = vmatprep.subr.bf16.mxu0 %v743
  %1064 = vmatpush1.bf16.msra.mxu0 %v742
  %1065 = vmatprep.subr.bf16.mxu0 %v741
  %1066 = vmatpush1.bf16.msra.mxu0 %v740
  %1067 = vmatprep.subr.bf16.mxu0 %v739
  %1068 = vmatpush1.bf16.msra.mxu0 %v738
  %1069 = vmatprep.subr.bf16.mxu0 %v769
  %1070 = vmatpush2.bf16.msra.mxu0 %v768
  %1071 = vmatprep.subr.bf16.mxu0 %v767
  %1072 = vmatpush2.bf16.msra.mxu0 %v766
  %1073 = vmatprep.subr.bf16.mxu0 %v765
  %1074 = vmatpush2.bf16.msra.mxu0 %v764
  %1075 = vmatprep.subr.bf16.mxu0 %v763
  %1076 = vmatpush2.bf16.msra.mxu0 %v762
  %1077 = vmatprep.subr.bf16.mxu0 %v761
  %1078 = vmatpush2.bf16.msra.mxu0 %v760
  %1079 = vmatprep.subr.bf16.mxu0 %v759
  %1080 = vmatpush2.bf16.msra.mxu0 %v758
  %1081 = vmatprep.subr.bf16.mxu0 %v757
  %1082 = vmatpush2.bf16.msra.mxu0 %v756
  %1083 = vmatprep.subr.bf16.mxu0 %v755
  %1084 = vmatpush2.bf16.msra.mxu0 %v754
  %1085 = vmatprep.mubr.bf16.mxu0 %v199
  %1086 = vmatmul.mubr.bf16.gmra.mxu0 %v198
  %v1087 = vpop.f32.mrf.mxu0
  %v1088 = vadd.f32 %v1047, %v1087
  %v1089 = vpop.f32.mrf.mxu0
  %v1090 = vadd.f32 %v1049, %v1089
  %v1091 = vpop.f32.mrf.mxu0
  %v1092 = vpop.f32.mrf.mxu0
  %1093 = vdwg.mxu0
  %1094 = vmatprep.subr.bf16.mxu0 %v785
  %1095 = vmatpush1.bf16.msra.mxu0 %v784
  %1096 = vmatprep.subr.bf16.mxu0 %v783
  %1097 = vmatpush1.bf16.msra.mxu0 %v782
  %1098 = vmatprep.subr.bf16.mxu0 %v781
  %1099 = vmatpush1.bf16.msra.mxu0 %v780
  %1100 = vmatprep.subr.bf16.mxu0 %v779
  %1101 = vmatpush1.bf16.msra.mxu0 %v778
  %1102 = vmatprep.subr.bf16.mxu0 %v777
  %1103 = vmatpush1.bf16.msra.mxu0 %v776
  %1104 = vmatprep.subr.bf16.mxu0 %v775
  %1105 = vmatpush1.bf16.msra.mxu0 %v774
  %1106 = vmatprep.subr.bf16.mxu0 %v773
  %1107 = vmatpush1.bf16.msra.mxu0 %v772
  %1108 = vmatprep.subr.bf16.mxu0 %v771
  %1109 = vmatpush1.bf16.msra.mxu0 %v770
  %1110 = vmatprep.subr.bf16.mxu0 0
  %1111 = vmatpush2.bf16.msra.mxu0 0
  %1112 = vmatprep.subr.bf16.mxu0 0
  %1113 = vmatpush2.bf16.msra.mxu0 0
  %1114 = vmatprep.subr.bf16.mxu0 0
  %1115 = vmatpush2.bf16.msra.mxu0 0
  %1116 = vmatprep.subr.bf16.mxu0 0
  %1117 = vmatpush2.bf16.msra.mxu0 0
  %1118 = vmatprep.subr.bf16.mxu0 0
  %1119 = vmatpush2.bf16.msra.mxu0 0
  %1120 = vmatprep.subr.bf16.mxu0 0
  %1121 = vmatpush2.bf16.msra.mxu0 0
  %1122 = vmatprep.subr.bf16.mxu0 0
  %1123 = vmatpush2.bf16.msra.mxu0 0
  %1124 = vmatprep.subr.bf16.mxu0 0
  %1125 = vmatpush2.bf16.msra.mxu0 0
  %1126 = vmatprep.mubr.bf16.mxu0 0
  %1127 = vmatmul.mubr.bf16.gmra.mxu0 %v200
  %v1128 = vpop.f32.mrf.mxu0
  %v1129 = vadd.f32 %v1088, %v1128
  %v1130 = vpop.f32.mrf.mxu0
  %v1131 = vadd.f32 %v1090, %v1130
  %v1132 = vpop.f32.mrf.mxu0
  %v1133 = vpop.f32.mrf.mxu0
  %1134 = vdwg.mxu0
  %vm1135 = vcmp.gt.f32.partialorder %v1129, 0.0
  %vm1136 = vcmp.gt.f32.partialorder %v1131, 0.0
  %v1137 = vmul.f32 %v1129, 0.2
  %v1138 = vmul.f32 %v1131, 0.2
  %v1139 = vsel %vm1135, %v1129, %v1137
  %v1140 = vsel %vm1136, %v1131, %v1138
  %1141 = vst [vmem:[%s3] sm:$0xff] %v1139
  %1142 = vst [vmem:[%s3 + $0x8] sm:$0xff] %v1140
  %v1143 = vrot.slane %v1139, 4
  %v1144 = vadd.f32 %v1139, %v1143
  %v1145 = vrot.slane %v1144, 2
  %v1146 = vadd.f32 %v1144, %v1145
  %v1147 = vrot.slane %v1146, 1
  %v1148 = vadd.f32 %v1146, %v1147
  %v1149 = vrot.slane %v1140, 4
  %v1150 = vadd.f32 %v1140, %v1149
  %v1151 = vrot.slane %v1150, 2
  %v1152 = vadd.f32 %v1150, %v1151
  %v1153 = vrot.slane %v1152, 1
  %v1154 = vadd.f32 %v1152, %v1153
  %v1155 = vmul.f32 %v1139, %v1139
  %v1156 = vmul.f32 %v1140, %v1140
  %v1157 = vrot.slane %v1155, 4
  %v1158 = vadd.f32 %v1155, %v1157
  %v1159 = vrot.slane %v1158, 2
  %v1160 = vadd.f32 %v1158, %v1159
  %v1161 = vrot.slane %v1160, 1
  %v1162 = vadd.f32 %v1160, %v1161
  %v1163 = vrot.slane %v1156, 4
  %v1164 = vadd.f32 %v1156, %v1163
  %v1165 = vrot.slane %v1164, 2
  %v1166 = vadd.f32 %v1164, %v1165
  %v1167 = vrot.slane %v1166, 1
  %v1168 = vadd.f32 %v1166, %v1167
  %p1169 = scmp.eq.s32.totalorder 0, 0
  // Predicated region
  $region14: #{discriminator_forward.17} parent=0 // pred_check
    %p1170 = pneg %p1169
  $region15: #{discriminator_forward.17} parent=0 // pred_check_branch
    %1172 = sbr.rel (%p1170) target = $region17
  $region16: #{discriminator_forward.17} parent=0 // pred_region
    %1173 = vst [vmem:[%s4] sm:$0xf] 0.0
  $region17: #{discriminator_forward.17} parent=0 // pred_fallthru
    _
  %v1174 = vld [vmem:[%s4] sm:$0xf]
  %vm1175 = vcmask 1040384
  %v1176 = vsel %vm1175, %v1148, %v1162
  %v1177 = vsel %vm1175, %v1154, %v1168
  %v1180 = vcombine.low %v1176, %v1177
  %v1182 = vunpack.c.l.s4 1983009808
  %v1183 = vunpack.c.0.s8 %v1182
  %v1184 = vlaneseq
  %v1185 = vshrl.u32 %v1184, 7
  %v1186 = vsub.s32 %v1183, %v1185
  %v1187 = vrot.slane %v1180, %v1186
  %v1189 = vadd.f32 %v1174, %v1187
  %1190 = vst [vmem:[%s4] sm:$0xf] %v1189
  // Predicated region
  $region18: #{discriminator_forward.17} parent=0 // pred_check
    _
  $region19: #{discriminator_forward.17} parent=0 // pred_check_branch
    %1192 = sbr.rel (0) target = $region21
  $region20: #{discriminator_forward.17} parent=0 // pred_region
    _
  $region21: #{discriminator_forward.17} parent=0 // pred_fallthru
    _
  // Predicated region
  $region22: #{discriminator_forward.17} parent=0 // pred_check
    _
  $region23: #{discriminator_forward.17} parent=0 // pred_check_branch
    %1194 = sbr.rel (0) target = $region25
  $region24: #{discriminator_forward.17} parent=0 // pred_region
    _
  $region25: #{discriminator_forward.17} parent=0 // pred_fallthru
    _
  // Predicated region
  $region26: #{discriminator_forward.17} parent=0 // pred_check
    _
  $region27: #{discriminator_forward.17} parent=0 // pred_check_branch
    %1196 = sbr.rel (0) target = $region29
  $region28: #{discriminator_forward.17} parent=0 // pred_region
    _
  $region29: #{discriminator_forward.17} parent=0 // pred_fallthru
    _
  // Predicated region
  $region30: #{discriminator_forward.17} parent=0 // pred_check
    _
  $region31: #{discriminator_forward.17} parent=0 // pred_check_branch
    %1198 = sbr.rel (0) target = $region33
  $region32: #{discriminator_forward.17} parent=0 // pred_region
    _
  $region33: #{discriminator_forward.17} parent=0 // pred_fallthru
    _

// kernel: discriminator_forward.21
$region0: #{discriminator_forward.21}
  #allocation0 [shape = 'u32[]', space=smem, size = 0x4, offset = 0x4, fixed_abs, tag = 'smem constant byte address 0x4 - core index']
  #allocation1 [shape = 'u32[144,128]{1,0:T(1,128)}', space=vmem, size = 0x12000, scoped, tag = 'internal scratch']
  #allocation2 [shape = 'f32[1,1]{1,0:T(1,128)S(1)}', space=vmem, size = 0x200, scoped, tag = 'scoped memory for discriminator_forward.21']
  %s0 = inlined_call_operand.vmem [shape: bf16[2,512], index: 0, kind: input, shape index: {}]
  %s1 = inlined_call_operand.vmem [shape: f32[1,512], index: 1, kind: input, shape index: {}]
  %s2 = inlined_call_operand.<no memory space> [shape: f32[1,1], index: 2, kind: input, shape index: {}]
  %s3 = inlined_call_operand.vmem [shape: f32[2,1], index: 3, kind: output, shape index: {}]
  %s4 = sld [smem:[#allocation0]]
  $region22: #{discriminator_forward.21} parent=0
    _
  %s6 = ssub.s32 1, %s4
  %s7 = scalar_select 0, %s6, %s4
  %v8 = vstv %s2
  %9 = vst [vmem:[#allocation2] sm:$0x1] %v8
  // Predicated region
  $region2: #{discriminator_forward.21} parent=0 // pred_check
    _
  $region3: #{discriminator_forward.21} parent=0 // pred_check_branch
    %11 = sbr.rel (0) target = $region5
  $region4: #{discriminator_forward.21} parent=0 // pred_region
    _
  $region5: #{discriminator_forward.21} parent=0 // pred_fallthru
    _
  // Predicated region
  $region6: #{discriminator_forward.21} parent=0 // pred_check
    _
  $region7: #{discriminator_forward.21} parent=0 // pred_check_branch
    %13 = sbr.rel (0) target = $region9
  $region8: #{discriminator_forward.21} parent=0 // pred_region
    _
  $region9: #{discriminator_forward.21} parent=0 // pred_fallthru
    _
  // Predicated region
  $region10: #{discriminator_forward.21} parent=0 // pred_check
    _
  $region11: #{discriminator_forward.21} parent=0 // pred_check_branch
    %15 = sbr.rel (0) target = $region13
  $region12: #{discriminator_forward.21} parent=0 // pred_region
    _
  $region13: #{discriminator_forward.21} parent=0 // pred_fallthru
    _
  %v16 = vld [vmem:[%s0] sm:$0xf]
  %v17 = vunpack.c.l.bf16 %v16
  %v18 = vld [vmem:[%s1] sm:$0xf]
  %v20 = vlaneseq
  %v21 = vshrl.u32 %v20, 7
  %v22 = vsub.s32 0, %v21
  %v23 = vrot.slane %v18, %v22
  %v24 = vlaneseq
  %v25 = vshrl.u32 %v24, 7
  %v26 = vsub.s32 1, %v25
  %v27 = vrot.slane %v18, %v26
  %v28 = vlaneseq
  %v29 = vshrl.u32 %v28, 7
  %v30 = vsub.s32 2, %v29
  %v31 = vrot.slane %v18, %v30
  %v32 = vlaneseq
  %v33 = vshrl.u32 %v32, 7
  %v34 = vsub.s32 3, %v33
  %v35 = vrot.slane %v18, %v34
  %v36 = vcombine.low %v23, %v27
  %v37 = vcombine.low %v31, %v35
  %v39 = vunpack.c.l.s4 1983009808
  %v40 = vunpack.c.0.s8 %v39
  %v41 = vlaneseq
  %v42 = vshrl.u32 %v41, 7
  %v43 = vsub.s32 %v40, %v42
  %v44 = vrot.slane %v36, %v43
  %v46 = vunpack.c.l.s4 1983009808
  %v47 = vunpack.c.0.s8 %v46
  %v48 = vlaneseq
  %v49 = vshrl.u32 %v48, 7
  %v50 = vsub.s32 %v47, %v49
  %v51 = vrot.slane %v37, %v50
  %v52 = vcombine.low %v44, %v51
  %v54 = vmul.f32 %v17, %v52
  %v56 = vcombine.high %v54, %v54
  %v58 = vunpack.c.l.s4 1983009808
  %v59 = vunpack.c.0.s8 %v58
  %v60 = vlaneseq
  %v61 = vshrl.u32 %v60, 7
  %v62 = vsub.s32 %v59, %v61
  %v63 = vrot.slane %v54, %v62
  %v65 = vunpack.c.l.s4 1983009808
  %v66 = vunpack.c.0.s8 %v65
  %v67 = vlaneseq
  %v68 = vshrl.u32 %v67, 7
  %v69 = vsub.s32 %v66, %v68
  %v70 = vrot.slane %v56, %v69
  %v71 = vcombine.high %v63, %v63
  %v72 = vcombine.high %v70, %v70
  %vm77 = vcmask 1041408
  %v78 = vsel %vm77, %v63, 0.0
  %v79 = vsel %vm77, %v71, 0.0
  %v80 = vadd.f32 %v78, %v79
  %v81 = vsel %vm77, %v70, 0.0
  %v82 = vadd.f32 %v80, %v81
  %v83 = vsel %vm77, %v72, 0.0
  %v84 = vadd.f32 %v82, %v83
  %85 = vadd.xlane.f32.xlu0 %v84
  %v86 = vpop.xlane.xlu0 %85
  %v87 = vld [vmem:[#allocation2] sm:$0x1]
  %v89 = vlaneseq
  %v90 = vshrl.u32 %v89, 7
  %v91 = vsub.s32 0, %v90
  %v92 = vrot.slane %v87, %v91
  %v94 = vadd.f32 %v86, %v92
  %v95 = vsub.f32 0.0, %v94
  %v96 = vmul.f32 %v95, 1.442695
  %v97 = vpow.pop %v96
  %v98 = vadd.f32 %v97, 1.0
  %v99 = vrcp.pop %v98
  %v100 = vmul.f32 1.0, %v99
  %vm101 = vcmask 1024
  %102 = vst.msk [vmem:[%s3] sm:$0x3] %vm101, %v100
  // Predicated region
  $region14: #{discriminator_forward.21} parent=0 // pred_check
    _
  $region15: #{discriminator_forward.21} parent=0 // pred_check_branch
    %104 = sbr.rel (0) target = $region17
  $region16: #{discriminator_forward.21} parent=0 // pred_region
    _
  $region17: #{discriminator_forward.21} parent=0 // pred_fallthru
    _
  // Predicated region
  $region18: #{discriminator_forward.21} parent=0 // pred_check
    _
  $region19: #{discriminator_forward.21} parent=0 // pred_check_branch
    %106 = sbr.rel (0) target = $region21
  $region20: #{discriminator_forward.21} parent=0 // pred_region
    _
  $region21: #{discriminator_forward.21} parent=0 // pred_fallthru
    _

// kernel: discriminator_forward.19
$region0: #{discriminator_forward.19}
  #allocation0 [shape = 'u32[]', space=smem, size = 0x4, offset = 0x4, fixed_abs, tag = 'smem constant byte address 0x4 - core index']
  #allocation1 [shape = 'u32[144,128]{1,0:T(1,128)}', space=vmem, size = 0x12000, scoped, tag = 'internal scratch']
  %s0 = inlined_call_operand.vmem [shape: bf16[8,2304], index: 0, kind: input, shape index: {}]
  %s1 = inlined_call_operand.vmem [shape: bf16[2304,512], index: 1, kind: input, shape index: {}]
  %s2 = inlined_call_operand.vmem [shape: f32[1,512], index: 2, kind: input, shape index: {}]
  %s3 = inlined_call_operand.vmem [shape: f32[8,512], index: 3, kind: output, shape index: {0}]
  %s4 = inlined_call_operand.vmem [shape: f32[2,512], index: 4, kind: output, shape index: {1}]
  %5 = xla_tuple %s3, %s4
  %s6 = sld [smem:[#allocation0]]
  $region34: #{discriminator_forward.19} parent=0
    _
  %s8 = ssub.s32 1, %s6
  %s9 = scalar_select 0, %s8, %s6
  // Predicated region
  $region2: #{discriminator_forward.19} parent=0 // pred_check
    _
  $region3: #{discriminator_forward.19} parent=0 // pred_check_branch
    %11 = sbr.rel (0) target = $region5
  $region4: #{discriminator_forward.19} parent=0 // pred_region
    _
  $region5: #{discriminator_forward.19} parent=0 // pred_fallthru
    _
  // Predicated region
  $region6: #{discriminator_forward.19} parent=0 // pred_check
    _
  $region7: #{discriminator_forward.19} parent=0 // pred_check_branch
    %13 = sbr.rel (0) target = $region9
  $region8: #{discriminator_forward.19} parent=0 // pred_region
    _
  $region9: #{discriminator_forward.19} parent=0 // pred_fallthru
    _
  // Predicated region
  $region10: #{discriminator_forward.19} parent=0 // pred_check
    _
  $region11: #{discriminator_forward.19} parent=0 // pred_check_branch
    %15 = sbr.rel (0) target = $region13
  $region12: #{discriminator_forward.19} parent=0 // pred_region
    _
  $region13: #{discriminator_forward.19} parent=0 // pred_fallthru
    _
  %v16 = vld [vmem:[%s0] sm:$0xff]
  %v17 = vld [vmem:[%s0 + $0x8] sm:$0xff]
  %v18 = vld [vmem:[%s0 + $0x10] sm:$0xff]
  %v19 = vld [vmem:[%s0 + $0x18] sm:$0xff]
  %v20 = vld [vmem:[%s0 + $0x20] sm:$0xff]
  %v21 = vld [vmem:[%s0 + $0x28] sm:$0xff]
  %v22 = vld [vmem:[%s0 + $0x30] sm:$0xff]
  %v23 = vld [vmem:[%s0 + $0x38] sm:$0xff]
  %v24 = vld [vmem:[%s0 + $0x40] sm:$0xff]
  %v25 = vld [vmem:[%s1] sm:$0xff]
  %v26 = vld [vmem:[%s1 + $0x8] sm:$0xff]
  %v27 = vld [vmem:[%s1 + $0x10] sm:$0xff]
  %v28 = vld [vmem:[%s1 + $0x18] sm:$0xff]
  %v29 = vld [vmem:[%s1 + $0x20] sm:$0xff]
  %v30 = vld [vmem:[%s1 + $0x28] sm:$0xff]
  %v31 = vld [vmem:[%s1 + $0x30] sm:$0xff]
  %v32 = vld [vmem:[%s1 + $0x38] sm:$0xff]
  %v33 = vld [vmem:[%s1 + $0x40] sm:$0xff]
  %v34 = vld [vmem:[%s1 + $0x48] sm:$0xff]
  %v35 = vld [vmem:[%s1 + $0x50] sm:$0xff]
  %v36 = vld [vmem:[%s1 + $0x58] sm:$0xff]
  %v37 = vld [vmem:[%s1 + $0x60] sm:$0xff]
  %v38 = vld [vmem:[%s1 + $0x68] sm:$0xff]
  %v39 = vld [vmem:[%s1 + $0x70] sm:$0xff]
  %v40 = vld [vmem:[%s1 + $0x78] sm:$0xff]
  %v41 = vld [vmem:[%s1 + $0x80] sm:$0xff]
  %v42 = vld [vmem:[%s1 + $0x88] sm:$0xff]
  %v43 = vld [vmem:[%s1 + $0x90] sm:$0xff]
  %v44 = vld [vmem:[%s1 + $0x98] sm:$0xff]
  %v45 = vld [vmem:[%s1 + $0xa0] sm:$0xff]
  %v46 = vld [vmem:[%s1 + $0xa8] sm:$0xff]
  %v47 = vld [vmem:[%s1 + $0xb0] sm:$0xff]
  %v48 = vld [vmem:[%s1 + $0xb8] sm:$0xff]
  %v49 = vld [vmem:[%s1 + $0xc0] sm:$0xff]
  %v50 = vld [vmem:[%s1 + $0xc8] sm:$0xff]
  %v51 = vld [vmem:[%s1 + $0xd0] sm:$0xff]
  %v52 = vld [vmem:[%s1 + $0xd8] sm:$0xff]
  %v53 = vld [vmem:[%s1 + $0xe0] sm:$0xff]
  %v54 = vld [vmem:[%s1 + $0xe8] sm:$0xff]
  %v55 = vld [vmem:[%s1 + $0xf0] sm:$0xff]
  %v56 = vld [vmem:[%s1 + $0xf8] sm:$0xff]
  %v57 = vld [vmem:[%s1 + $0x100] sm:$0xff]
  %v58 = vld [vmem:[%s1 + $0x108] sm:$0xff]
  %v59 = vld [vmem:[%s1 + $0x110] sm:$0xff]
  %v60 = vld [vmem:[%s1 + $0x118] sm:$0xff]
  %v61 = vld [vmem:[%s1 + $0x120] sm:$0xff]
  %v62 = vld [vmem:[%s1 + $0x128] sm:$0xff]
  %v63 = vld [vmem:[%s1 + $0x130] sm:$0xff]
  %v64 = vld [vmem:[%s1 + $0x138] sm:$0xff]
  %v65 = vld [vmem:[%s1 + $0x140] sm:$0xff]
  %v66 = vld [vmem:[%s1 + $0x148] sm:$0xff]
  %v67 = vld [vmem:[%s1 + $0x150] sm:$0xff]
  %v68 = vld [vmem:[%s1 + $0x158] sm:$0xff]
  %v69 = vld [vmem:[%s1 + $0x160] sm:$0xff]
  %v70 = vld [vmem:[%s1 + $0x168] sm:$0xff]
  %v71 = vld [vmem:[%s1 + $0x170] sm:$0xff]
  %v72 = vld [vmem:[%s1 + $0x178] sm:$0xff]
  %v73 = vld [vmem:[%s1 + $0x180] sm:$0xff]
  %v74 = vld [vmem:[%s1 + $0x188] sm:$0xff]
  %v75 = vld [vmem:[%s1 + $0x190] sm:$0xff]
  %v76 = vld [vmem:[%s1 + $0x198] sm:$0xff]
  %v77 = vld [vmem:[%s1 + $0x1a0] sm:$0xff]
  %v78 = vld [vmem:[%s1 + $0x1a8] sm:$0xff]
  %v79 = vld [vmem:[%s1 + $0x1b0] sm:$0xff]
  %v80 = vld [vmem:[%s1 + $0x1b8] sm:$0xff]
  %v81 = vld [vmem:[%s1 + $0x1c0] sm:$0xff]
  %v82 = vld [vmem:[%s1 + $0x1c8] sm:$0xff]
  %v83 = vld [vmem:[%s1 + $0x1d0] sm:$0xff]
  %v84 = vld [vmem:[%s1 + $0x1d8] sm:$0xff]
  %v85 = vld [vmem:[%s1 + $0x1e0] sm:$0xff]
  %v86 = vld [vmem:[%s1 + $0x1e8] sm:$0xff]
  %v87 = vld [vmem:[%s1 + $0x1f0] sm:$0xff]
  %v88 = vld [vmem:[%s1 + $0x1f8] sm:$0xff]
  %v89 = vld [vmem:[%s1 + $0x200] sm:$0xff]
  %v90 = vld [vmem:[%s1 + $0x208] sm:$0xff]
  %v91 = vld [vmem:[%s1 + $0x210] sm:$0xff]
  %v92 = vld [vmem:[%s1 + $0x218] sm:$0xff]
  %v93 = vld [vmem:[%s1 + $0x220] sm:$0xff]
  %v94 = vld [vmem:[%s1 + $0x228] sm:$0xff]
  %v95 = vld [vmem:[%s1 + $0x230] sm:$0xff]
  %v96 = vld [vmem:[%s1 + $0x238] sm:$0xff]
  %v97 = vld [vmem:[%s1 + $0x240] sm:$0xff]
  %v98 = vld [vmem:[%s1 + $0x248] sm:$0xff]
  %v99 = vld [vmem:[%s1 + $0x250] sm:$0xff]
  %v100 = vld [vmem:[%s1 + $0x258] sm:$0xff]
  %v101 = vld [vmem:[%s1 + $0x260] sm:$0xff]
  %v102 = vld [vmem:[%s1 + $0x268] sm:$0xff]
  %v103 = vld [vmem:[%s1 + $0x270] sm:$0xff]
  %v104 = vld [vmem:[%s1 + $0x278] sm:$0xff]
  %v105 = vld [vmem:[%s1 + $0x280] sm:$0xff]
  %v106 = vld [vmem:[%s1 + $0x288] sm:$0xff]
  %v107 = vld [vmem:[%s1 + $0x290] sm:$0xff]
  %v108 = vld [vmem:[%s1 + $0x298] sm:$0xff]
  %v109 = vld [vmem:[%s1 + $0x2a0] sm:$0xff]
  %v110 = vld [vmem:[%s1 + $0x2a8] sm:$0xff]
  %v111 = vld [vmem:[%s1 + $0x2b0] sm:$0xff]
  %v112 = vld [vmem:[%s1 + $0x2b8] sm:$0xff]
  %v113 = vld [vmem:[%s1 + $0x2c0] sm:$0xff]
  %v114 = vld [vmem:[%s1 + $0x2c8] sm:$0xff]
  %v115 = vld [vmem:[%s1 + $0x2d0] sm:$0xff]
  %v116 = vld [vmem:[%s1 + $0x2d8] sm:$0xff]
  %v117 = vld [vmem:[%s1 + $0x2e0] sm:$0xff]
  %v118 = vld [vmem:[%s1 + $0x2e8] sm:$0xff]
  %v119 = vld [vmem:[%s1 + $0x2f0] sm:$0xff]
  %v120 = vld [vmem:[%s1 + $0x2f8] sm:$0xff]
  %v121 = vld [vmem:[%s1 + $0x300] sm:$0xff]
  %v122 = vld [vmem:[%s1 + $0x308] sm:$0xff]
  %v123 = vld [vmem:[%s1 + $0x310] sm:$0xff]
  %v124 = vld [vmem:[%s1 + $0x318] sm:$0xff]
  %v125 = vld [vmem:[%s1 + $0x320] sm:$0xff]
  %v126 = vld [vmem:[%s1 + $0x328] sm:$0xff]
  %v127 = vld [vmem:[%s1 + $0x330] sm:$0xff]
  %v128 = vld [vmem:[%s1 + $0x338] sm:$0xff]
  %v129 = vld [vmem:[%s1 + $0x340] sm:$0xff]
  %v130 = vld [vmem:[%s1 + $0x348] sm:$0xff]
  %v131 = vld [vmem:[%s1 + $0x350] sm:$0xff]
  %v132 = vld [vmem:[%s1 + $0x358] sm:$0xff]
  %v133 = vld [vmem:[%s1 + $0x360] sm:$0xff]
  %v134 = vld [vmem:[%s1 + $0x368] sm:$0xff]
  %v135 = vld [vmem:[%s1 + $0x370] sm:$0xff]
  %v136 = vld [vmem:[%s1 + $0x378] sm:$0xff]
  %v137 = vld [vmem:[%s1 + $0x380] sm:$0xff]
  %v138 = vld [vmem:[%s1 + $0x388] sm:$0xff]
  %v139 = vld [vmem:[%s1 + $0x390] sm:$0xff]
  %v140 = vld [vmem:[%s1 + $0x398] sm:$0xff]
  %v141 = vld [vmem:[%s1 + $0x3a0] sm:$0xff]
  %v142 = vld [vmem:[%s1 + $0x3a8] sm:$0xff]
  %v143 = vld [vmem:[%s1 + $0x3b0] sm:$0xff]
  %v144 = vld [vmem:[%s1 + $0x3b8] sm:$0xff]
  %v145 = vld [vmem:[%s1 + $0x3c0] sm:$0xff]
  %v146 = vld [vmem:[%s1 + $0x3c8] sm:$0xff]
  %v147 = vld [vmem:[%s1 + $0x3d0] sm:$0xff]
  %v148 = vld [vmem:[%s1 + $0x3d8] sm:$0xff]
  %v149 = vld [vmem:[%s1 + $0x3e0] sm:$0xff]
  %v150 = vld [vmem:[%s1 + $0x3e8] sm:$0xff]
  %v151 = vld [vmem:[%s1 + $0x3f0] sm:$0xff]
  %v152 = vld [vmem:[%s1 + $0x3f8] sm:$0xff]
  %v153 = vld [vmem:[%s1 + $0x400] sm:$0xff]
  %v154 = vld [vmem:[%s1 + $0x408] sm:$0xff]
  %v155 = vld [vmem:[%s1 + $0x410] sm:$0xff]
  %v156 = vld [vmem:[%s1 + $0x418] sm:$0xff]
  %v157 = vld [vmem:[%s1 + $0x420] sm:$0xff]
  %v158 = vld [vmem:[%s1 + $0x428] sm:$0xff]
  %v159 = vld [vmem:[%s1 + $0x430] sm:$0xff]
  %v160 = vld [vmem:[%s1 + $0x438] sm:$0xff]
  %v161 = vld [vmem:[%s1 + $0x440] sm:$0xff]
  %v162 = vld [vmem:[%s1 + $0x448] sm:$0xff]
  %v163 = vld [vmem:[%s1 + $0x450] sm:$0xff]
  %v164 = vld [vmem:[%s1 + $0x458] sm:$0xff]
  %v165 = vld [vmem:[%s1 + $0x460] sm:$0xff]
  %v166 = vld [vmem:[%s1 + $0x468] sm:$0xff]
  %v167 = vld [vmem:[%s1 + $0x470] sm:$0xff]
  %v168 = vld [vmem:[%s1 + $0x478] sm:$0xff]
  %v169 = vld [vmem:[%s1 + $0x480] sm:$0xff]
  %v170 = vld [vmem:[%s1 + $0x488] sm:$0xff]
  %v171 = vld [vmem:[%s1 + $0x490] sm:$0xff]
  %v172 = vld [vmem:[%s1 + $0x498] sm:$0xff]
  %v173 = vld [vmem:[%s1 + $0x4a0] sm:$0xff]
  %v174 = vld [vmem:[%s1 + $0x4a8] sm:$0xff]
  %v175 = vld [vmem:[%s1 + $0x4b0] sm:$0xff]
  %v176 = vld [vmem:[%s1 + $0x4b8] sm:$0xff]
  %v177 = vld [vmem:[%s1 + $0x4c0] sm:$0xff]
  %v178 = vld [vmem:[%s1 + $0x4c8] sm:$0xff]
  %v179 = vld [vmem:[%s1 + $0x4d0] sm:$0xff]
  %v180 = vld [vmem:[%s1 + $0x4d8] sm:$0xff]
  %v181 = vld [vmem:[%s1 + $0x4e0] sm:$0xff]
  %v182 = vld [vmem:[%s1 + $0x4e8] sm:$0xff]
  %v183 = vld [vmem:[%s1 + $0x4f0] sm:$0xff]
  %v184 = vld [vmem:[%s1 + $0x4f8] sm:$0xff]
  %v185 = vld [vmem:[%s1 + $0x500] sm:$0xff]
  %v186 = vld [vmem:[%s1 + $0x508] sm:$0xff]
  %v187 = vld [vmem:[%s1 + $0x510] sm:$0xff]
  %v188 = vld [vmem:[%s1 + $0x518] sm:$0xff]
  %v189 = vld [vmem:[%s1 + $0x520] sm:$0xff]
  %v190 = vld [vmem:[%s1 + $0x528] sm:$0xff]
  %v191 = vld [vmem:[%s1 + $0x530] sm:$0xff]
  %v192 = vld [vmem:[%s1 + $0x538] sm:$0xff]
  %v193 = vld [vmem:[%s1 + $0x540] sm:$0xff]
  %v194 = vld [vmem:[%s1 + $0x548] sm:$0xff]
  %v195 = vld [vmem:[%s1 + $0x550] sm:$0xff]
  %v196 = vld [vmem:[%s1 + $0x558] sm:$0xff]
  %v197 = vld [vmem:[%s1 + $0x560] sm:$0xff]
  %v198 = vld [vmem:[%s1 + $0x568] sm:$0xff]
  %v199 = vld [vmem:[%s1 + $0x570] sm:$0xff]
  %v200 = vld [vmem:[%s1 + $0x578] sm:$0xff]
  %v201 = vld [vmem:[%s1 + $0x580] sm:$0xff]
  %v202 = vld [vmem:[%s1 + $0x588] sm:$0xff]
  %v203 = vld [vmem:[%s1 + $0x590] sm:$0xff]
  %v204 = vld [vmem:[%s1 + $0x598] sm:$0xff]
  %v205 = vld [vmem:[%s1 + $0x5a0] sm:$0xff]
  %v206 = vld [vmem:[%s1 + $0x5a8] sm:$0xff]
  %v207 = vld [vmem:[%s1 + $0x5b0] sm:$0xff]
  %v208 = vld [vmem:[%s1 + $0x5b8] sm:$0xff]
  %v209 = vld [vmem:[%s1 + $0x5c0] sm:$0xff]
  %v210 = vld [vmem:[%s1 + $0x5c8] sm:$0xff]
  %v211 = vld [vmem:[%s1 + $0x5d0] sm:$0xff]
  %v212 = vld [vmem:[%s1 + $0x5d8] sm:$0xff]
  %v213 = vld [vmem:[%s1 + $0x5e0] sm:$0xff]
  %v214 = vld [vmem:[%s1 + $0x5e8] sm:$0xff]
  %v215 = vld [vmem:[%s1 + $0x5f0] sm:$0xff]
  %v216 = vld [vmem:[%s1 + $0x5f8] sm:$0xff]
  %v217 = vld [vmem:[%s1 + $0x600] sm:$0xff]
  %v218 = vld [vmem:[%s1 + $0x608] sm:$0xff]
  %v219 = vld [vmem:[%s1 + $0x610] sm:$0xff]
  %v220 = vld [vmem:[%s1 + $0x618] sm:$0xff]
  %v221 = vld [vmem:[%s1 + $0x620] sm:$0xff]
  %v222 = vld [vmem:[%s1 + $0x628] sm:$0xff]
  %v223 = vld [vmem:[%s1 + $0x630] sm:$0xff]
  %v224 = vld [vmem:[%s1 + $0x638] sm:$0xff]
  %v225 = vld [vmem:[%s1 + $0x640] sm:$0xff]
  %v226 = vld [vmem:[%s1 + $0x648] sm:$0xff]
  %v227 = vld [vmem:[%s1 + $0x650] sm:$0xff]
  %v228 = vld [vmem:[%s1 + $0x658] sm:$0xff]
  %v229 = vld [vmem:[%s1 + $0x660] sm:$0xff]
  %v230 = vld [vmem:[%s1 + $0x668] sm:$0xff]
  %v231 = vld [vmem:[%s1 + $0x670] sm:$0xff]
  %v232 = vld [vmem:[%s1 + $0x678] sm:$0xff]
  %v233 = vld [vmem:[%s1 + $0x680] sm:$0xff]
  %v234 = vld [vmem:[%s1 + $0x688] sm:$0xff]
  %v235 = vld [vmem:[%s1 + $0x690] sm:$0xff]
  %v236 = vld [vmem:[%s1 + $0x698] sm:$0xff]
  %v237 = vld [vmem:[%s1 + $0x6a0] sm:$0xff]
  %v238 = vld [vmem:[%s1 + $0x6a8] sm:$0xff]
  %v239 = vld [vmem:[%s1 + $0x6b0] sm:$0xff]
  %v240 = vld [vmem:[%s1 + $0x6b8] sm:$0xff]
  %v241 = vld [vmem:[%s1 + $0x6c0] sm:$0xff]
  %v242 = vld [vmem:[%s1 + $0x6c8] sm:$0xff]
  %v243 = vld [vmem:[%s1 + $0x6d0] sm:$0xff]
  %v244 = vld [vmem:[%s1 + $0x6d8] sm:$0xff]
  %v245 = vld [vmem:[%s1 + $0x6e0] sm:$0xff]
  %v246 = vld [vmem:[%s1 + $0x6e8] sm:$0xff]
  %v247 = vld [vmem:[%s1 + $0x6f0] sm:$0xff]
  %v248 = vld [vmem:[%s1 + $0x6f8] sm:$0xff]
  %v249 = vld [vmem:[%s1 + $0x700] sm:$0xff]
  %v250 = vld [vmem:[%s1 + $0x708] sm:$0xff]
  %v251 = vld [vmem:[%s1 + $0x710] sm:$0xff]
  %v252 = vld [vmem:[%s1 + $0x718] sm:$0xff]
  %v253 = vld [vmem:[%s1 + $0x720] sm:$0xff]
  %v254 = vld [vmem:[%s1 + $0x728] sm:$0xff]
  %v255 = vld [vmem:[%s1 + $0x730] sm:$0xff]
  %v256 = vld [vmem:[%s1 + $0x738] sm:$0xff]
  %v257 = vld [vmem:[%s1 + $0x740] sm:$0xff]
  %v258 = vld [vmem:[%s1 + $0x748] sm:$0xff]
  %v259 = vld [vmem:[%s1 + $0x750] sm:$0xff]
  %v260 = vld [vmem:[%s1 + $0x758] sm:$0xff]
  %v261 = vld [vmem:[%s1 + $0x760] sm:$0xff]
  %v262 = vld [vmem:[%s1 + $0x768] sm:$0xff]
  %v263 = vld [vmem:[%s1 + $0x770] sm:$0xff]
  %v264 = vld [vmem:[%s1 + $0x778] sm:$0xff]
  %v265 = vld [vmem:[%s1 + $0x780] sm:$0xff]
  %v266 = vld [vmem:[%s1 + $0x788] sm:$0xff]
  %v267 = vld [vmem:[%s1 + $0x790] sm:$0xff]
  %v268 = vld [vmem:[%s1 + $0x798] sm:$0xff]
  %v269 = vld [vmem:[%s1 + $0x7a0] sm:$0xff]
  %v270 = vld [vmem:[%s1 + $0x7a8] sm:$0xff]
  %v271 = vld [vmem:[%s1 + $0x7b0] sm:$0xff]
  %v272 = vld [vmem:[%s1 + $0x7b8] sm:$0xff]
  %v273 = vld [vmem:[%s1 + $0x7c0] sm:$0xff]
  %v274 = vld [vmem:[%s1 + $0x7c8] sm:$0xff]
  %v275 = vld [vmem:[%s1 + $0x7d0] sm:$0xff]
  %v276 = vld [vmem:[%s1 + $0x7d8] sm:$0xff]
  %v277 = vld [vmem:[%s1 + $0x7e0] sm:$0xff]
  %v278 = vld [vmem:[%s1 + $0x7e8] sm:$0xff]
  %v279 = vld [vmem:[%s1 + $0x7f0] sm:$0xff]
  %v280 = vld [vmem:[%s1 + $0x7f8] sm:$0xff]
  %v281 = vld [vmem:[%s1 + $0x800] sm:$0xff]
  %v282 = vld [vmem:[%s1 + $0x808] sm:$0xff]
  %v283 = vld [vmem:[%s1 + $0x810] sm:$0xff]
  %v284 = vld [vmem:[%s1 + $0x818] sm:$0xff]
  %v285 = vld [vmem:[%s1 + $0x820] sm:$0xff]
  %v286 = vld [vmem:[%s1 + $0x828] sm:$0xff]
  %v287 = vld [vmem:[%s1 + $0x830] sm:$0xff]
  %v288 = vld [vmem:[%s1 + $0x838] sm:$0xff]
  %v289 = vld [vmem:[%s1 + $0x840] sm:$0xff]
  %v290 = vld [vmem:[%s1 + $0x848] sm:$0xff]
  %v291 = vld [vmem:[%s1 + $0x850] sm:$0xff]
  %v292 = vld [vmem:[%s1 + $0x858] sm:$0xff]
  %v293 = vld [vmem:[%s1 + $0x860] sm:$0xff]
  %v294 = vld [vmem:[%s1 + $0x868] sm:$0xff]
  %v295 = vld [vmem:[%s1 + $0x870] sm:$0xff]
  %v296 = vld [vmem:[%s1 + $0x878] sm:$0xff]
  %v297 = vld [vmem:[%s1 + $0x880] sm:$0xff]
  %v298 = vld [vmem:[%s1 + $0x888] sm:$0xff]
  %v299 = vld [vmem:[%s1 + $0x890] sm:$0xff]
  %v300 = vld [vmem:[%s1 + $0x898] sm:$0xff]
  %v301 = vld [vmem:[%s1 + $0x8a0] sm:$0xff]
  %v302 = vld [vmem:[%s1 + $0x8a8] sm:$0xff]
  %v303 = vld [vmem:[%s1 + $0x8b0] sm:$0xff]
  %v304 = vld [vmem:[%s1 + $0x8b8] sm:$0xff]
  %v305 = vld [vmem:[%s1 + $0x8c0] sm:$0xff]
  %v306 = vld [vmem:[%s1 + $0x8c8] sm:$0xff]
  %v307 = vld [vmem:[%s1 + $0x8d0] sm:$0xff]
  %v308 = vld [vmem:[%s1 + $0x8d8] sm:$0xff]
  %v309 = vld [vmem:[%s1 + $0x8e0] sm:$0xff]
  %v310 = vld [vmem:[%s1 + $0x8e8] sm:$0xff]
  %v311 = vld [vmem:[%s1 + $0x8f0] sm:$0xff]
  %v312 = vld [vmem:[%s1 + $0x8f8] sm:$0xff]
  %v313 = vld [vmem:[%s1 + $0x900] sm:$0xff]
  %v314 = vld [vmem:[%s1 + $0x908] sm:$0xff]
  %v315 = vld [vmem:[%s1 + $0x910] sm:$0xff]
  %v316 = vld [vmem:[%s1 + $0x918] sm:$0xff]
  %v317 = vld [vmem:[%s1 + $0x920] sm:$0xff]
  %v318 = vld [vmem:[%s1 + $0x928] sm:$0xff]
  %v319 = vld [vmem:[%s1 + $0x930] sm:$0xff]
  %v320 = vld [vmem:[%s1 + $0x938] sm:$0xff]
  %v321 = vld [vmem:[%s1 + $0x940] sm:$0xff]
  %v322 = vld [vmem:[%s1 + $0x948] sm:$0xff]
  %v323 = vld [vmem:[%s1 + $0x950] sm:$0xff]
  %v324 = vld [vmem:[%s1 + $0x958] sm:$0xff]
  %v325 = vld [vmem:[%s1 + $0x960] sm:$0xff]
  %v326 = vld [vmem:[%s1 + $0x968] sm:$0xff]
  %v327 = vld [vmem:[%s1 + $0x970] sm:$0xff]
  %v328 = vld [vmem:[%s1 + $0x978] sm:$0xff]
  %v329 = vld [vmem:[%s1 + $0x980] sm:$0xff]
  %v330 = vld [vmem:[%s1 + $0x988] sm:$0xff]
  %v331 = vld [vmem:[%s1 + $0x990] sm:$0xff]
  %v332 = vld [vmem:[%s1 + $0x998] sm:$0xff]
  %v333 = vld [vmem:[%s1 + $0x9a0] sm:$0xff]
  %v334 = vld [vmem:[%s1 + $0x9a8] sm:$0xff]
  %v335 = vld [vmem:[%s1 + $0x9b0] sm:$0xff]
  %v336 = vld [vmem:[%s1 + $0x9b8] sm:$0xff]
  %v337 = vld [vmem:[%s1 + $0x9c0] sm:$0xff]
  %v338 = vld [vmem:[%s1 + $0x9c8] sm:$0xff]
  %v339 = vld [vmem:[%s1 + $0x9d0] sm:$0xff]
  %v340 = vld [vmem:[%s1 + $0x9d8] sm:$0xff]
  %v341 = vld [vmem:[%s1 + $0x9e0] sm:$0xff]
  %v342 = vld [vmem:[%s1 + $0x9e8] sm:$0xff]
  %v343 = vld [vmem:[%s1 + $0x9f0] sm:$0xff]
  %v344 = vld [vmem:[%s1 + $0x9f8] sm:$0xff]
  %v345 = vld [vmem:[%s1 + $0xa00] sm:$0xff]
  %v346 = vld [vmem:[%s1 + $0xa08] sm:$0xff]
  %v347 = vld [vmem:[%s1 + $0xa10] sm:$0xff]
  %v348 = vld [vmem:[%s1 + $0xa18] sm:$0xff]
  %v349 = vld [vmem:[%s1 + $0xa20] sm:$0xff]
  %v350 = vld [vmem:[%s1 + $0xa28] sm:$0xff]
  %v351 = vld [vmem:[%s1 + $0xa30] sm:$0xff]
  %v352 = vld [vmem:[%s1 + $0xa38] sm:$0xff]
  %v353 = vld [vmem:[%s1 + $0xa40] sm:$0xff]
  %v354 = vld [vmem:[%s1 + $0xa48] sm:$0xff]
  %v355 = vld [vmem:[%s1 + $0xa50] sm:$0xff]
  %v356 = vld [vmem:[%s1 + $0xa58] sm:$0xff]
  %v357 = vld [vmem:[%s1 + $0xa60] sm:$0xff]
  %v358 = vld [vmem:[%s1 + $0xa68] sm:$0xff]
  %v359 = vld [vmem:[%s1 + $0xa70] sm:$0xff]
  %v360 = vld [vmem:[%s1 + $0xa78] sm:$0xff]
  %v361 = vld [vmem:[%s1 + $0xa80] sm:$0xff]
  %v362 = vld [vmem:[%s1 + $0xa88] sm:$0xff]
  %v363 = vld [vmem:[%s1 + $0xa90] sm:$0xff]
  %v364 = vld [vmem:[%s1 + $0xa98] sm:$0xff]
  %v365 = vld [vmem:[%s1 + $0xaa0] sm:$0xff]
  %v366 = vld [vmem:[%s1 + $0xaa8] sm:$0xff]
  %v367 = vld [vmem:[%s1 + $0xab0] sm:$0xff]
  %v368 = vld [vmem:[%s1 + $0xab8] sm:$0xff]
  %v369 = vld [vmem:[%s1 + $0xac0] sm:$0xff]
  %v370 = vld [vmem:[%s1 + $0xac8] sm:$0xff]
  %v371 = vld [vmem:[%s1 + $0xad0] sm:$0xff]
  %v372 = vld [vmem:[%s1 + $0xad8] sm:$0xff]
  %v373 = vld [vmem:[%s1 + $0xae0] sm:$0xff]
  %v374 = vld [vmem:[%s1 + $0xae8] sm:$0xff]
  %v375 = vld [vmem:[%s1 + $0xaf0] sm:$0xff]
  %v376 = vld [vmem:[%s1 + $0xaf8] sm:$0xff]
  %v377 = vld [vmem:[%s1 + $0xb00] sm:$0xff]
  %v378 = vld [vmem:[%s1 + $0xb08] sm:$0xff]
  %v379 = vld [vmem:[%s1 + $0xb10] sm:$0xff]
  %v380 = vld [vmem:[%s1 + $0xb18] sm:$0xff]
  %v381 = vld [vmem:[%s1 + $0xb20] sm:$0xff]
  %v382 = vld [vmem:[%s1 + $0xb28] sm:$0xff]
  %v383 = vld [vmem:[%s1 + $0xb30] sm:$0xff]
  %v384 = vld [vmem:[%s1 + $0xb38] sm:$0xff]
  %v385 = vld [vmem:[%s1 + $0xb40] sm:$0xff]
  %v386 = vld [vmem:[%s1 + $0xb48] sm:$0xff]
  %v387 = vld [vmem:[%s1 + $0xb50] sm:$0xff]
  %v388 = vld [vmem:[%s1 + $0xb58] sm:$0xff]
  %v389 = vld [vmem:[%s1 + $0xb60] sm:$0xff]
  %v390 = vld [vmem:[%s1 + $0xb68] sm:$0xff]
  %v391 = vld [vmem:[%s1 + $0xb70] sm:$0xff]
  %v392 = vld [vmem:[%s1 + $0xb78] sm:$0xff]
  %v393 = vld [vmem:[%s1 + $0xb80] sm:$0xff]
  %v394 = vld [vmem:[%s1 + $0xb88] sm:$0xff]
  %v395 = vld [vmem:[%s1 + $0xb90] sm:$0xff]
  %v396 = vld [vmem:[%s1 + $0xb98] sm:$0xff]
  %v397 = vld [vmem:[%s1 + $0xba0] sm:$0xff]
  %v398 = vld [vmem:[%s1 + $0xba8] sm:$0xff]
  %v399 = vld [vmem:[%s1 + $0xbb0] sm:$0xff]
  %v400 = vld [vmem:[%s1 + $0xbb8] sm:$0xff]
  %v401 = vld [vmem:[%s1 + $0xbc0] sm:$0xff]
  %v402 = vld [vmem:[%s1 + $0xbc8] sm:$0xff]
  %v403 = vld [vmem:[%s1 + $0xbd0] sm:$0xff]
  %v404 = vld [vmem:[%s1 + $0xbd8] sm:$0xff]
  %v405 = vld [vmem:[%s1 + $0xbe0] sm:$0xff]
  %v406 = vld [vmem:[%s1 + $0xbe8] sm:$0xff]
  %v407 = vld [vmem:[%s1 + $0xbf0] sm:$0xff]
  %v408 = vld [vmem:[%s1 + $0xbf8] sm:$0xff]
  %v409 = vld [vmem:[%s1 + $0xc00] sm:$0xff]
  %v410 = vld [vmem:[%s1 + $0xc08] sm:$0xff]
  %v411 = vld [vmem:[%s1 + $0xc10] sm:$0xff]
  %v412 = vld [vmem:[%s1 + $0xc18] sm:$0xff]
  %v413 = vld [vmem:[%s1 + $0xc20] sm:$0xff]
  %v414 = vld [vmem:[%s1 + $0xc28] sm:$0xff]
  %v415 = vld [vmem:[%s1 + $0xc30] sm:$0xff]
  %v416 = vld [vmem:[%s1 + $0xc38] sm:$0xff]
  %v417 = vld [vmem:[%s1 + $0xc40] sm:$0xff]
  %v418 = vld [vmem:[%s1 + $0xc48] sm:$0xff]
  %v419 = vld [vmem:[%s1 + $0xc50] sm:$0xff]
  %v420 = vld [vmem:[%s1 + $0xc58] sm:$0xff]
  %v421 = vld [vmem:[%s1 + $0xc60] sm:$0xff]
  %v422 = vld [vmem:[%s1 + $0xc68] sm:$0xff]
  %v423 = vld [vmem:[%s1 + $0xc70] sm:$0xff]
  %v424 = vld [vmem:[%s1 + $0xc78] sm:$0xff]
  %v425 = vld [vmem:[%s1 + $0xc80] sm:$0xff]
  %v426 = vld [vmem:[%s1 + $0xc88] sm:$0xff]
  %v427 = vld [vmem:[%s1 + $0xc90] sm:$0xff]
  %v428 = vld [vmem:[%s1 + $0xc98] sm:$0xff]
  %v429 = vld [vmem:[%s1 + $0xca0] sm:$0xff]
  %v430 = vld [vmem:[%s1 + $0xca8] sm:$0xff]
  %v431 = vld [vmem:[%s1 + $0xcb0] sm:$0xff]
  %v432 = vld [vmem:[%s1 + $0xcb8] sm:$0xff]
  %v433 = vld [vmem:[%s1 + $0xcc0] sm:$0xff]
  %v434 = vld [vmem:[%s1 + $0xcc8] sm:$0xff]
  %v435 = vld [vmem:[%s1 + $0xcd0] sm:$0xff]
  %v436 = vld [vmem:[%s1 + $0xcd8] sm:$0xff]
  %v437 = vld [vmem:[%s1 + $0xce0] sm:$0xff]
  %v438 = vld [vmem:[%s1 + $0xce8] sm:$0xff]
  %v439 = vld [vmem:[%s1 + $0xcf0] sm:$0xff]
  %v440 = vld [vmem:[%s1 + $0xcf8] sm:$0xff]
  %v441 = vld [vmem:[%s1 + $0xd00] sm:$0xff]
  %v442 = vld [vmem:[%s1 + $0xd08] sm:$0xff]
  %v443 = vld [vmem:[%s1 + $0xd10] sm:$0xff]
  %v444 = vld [vmem:[%s1 + $0xd18] sm:$0xff]
  %v445 = vld [vmem:[%s1 + $0xd20] sm:$0xff]
  %v446 = vld [vmem:[%s1 + $0xd28] sm:$0xff]
  %v447 = vld [vmem:[%s1 + $0xd30] sm:$0xff]
  %v448 = vld [vmem:[%s1 + $0xd38] sm:$0xff]
  %v449 = vld [vmem:[%s1 + $0xd40] sm:$0xff]
  %v450 = vld [vmem:[%s1 + $0xd48] sm:$0xff]
  %v451 = vld [vmem:[%s1 + $0xd50] sm:$0xff]
  %v452 = vld [vmem:[%s1 + $0xd58] sm:$0xff]
  %v453 = vld [vmem:[%s1 + $0xd60] sm:$0xff]
  %v454 = vld [vmem:[%s1 + $0xd68] sm:$0xff]
  %v455 = vld [vmem:[%s1 + $0xd70] sm:$0xff]
  %v456 = vld [vmem:[%s1 + $0xd78] sm:$0xff]
  %v457 = vld [vmem:[%s1 + $0xd80] sm:$0xff]
  %v458 = vld [vmem:[%s1 + $0xd88] sm:$0xff]
  %v459 = vld [vmem:[%s1 + $0xd90] sm:$0xff]
  %v460 = vld [vmem:[%s1 + $0xd98] sm:$0xff]
  %v461 = vld [vmem:[%s1 + $0xda0] sm:$0xff]
  %v462 = vld [vmem:[%s1 + $0xda8] sm:$0xff]
  %v463 = vld [vmem:[%s1 + $0xdb0] sm:$0xff]
  %v464 = vld [vmem:[%s1 + $0xdb8] sm:$0xff]
  %v465 = vld [vmem:[%s1 + $0xdc0] sm:$0xff]
  %v466 = vld [vmem:[%s1 + $0xdc8] sm:$0xff]
  %v467 = vld [vmem:[%s1 + $0xdd0] sm:$0xff]
  %v468 = vld [vmem:[%s1 + $0xdd8] sm:$0xff]
  %v469 = vld [vmem:[%s1 + $0xde0] sm:$0xff]
  %v470 = vld [vmem:[%s1 + $0xde8] sm:$0xff]
  %v471 = vld [vmem:[%s1 + $0xdf0] sm:$0xff]
  %v472 = vld [vmem:[%s1 + $0xdf8] sm:$0xff]
  %v473 = vld [vmem:[%s1 + $0xe00] sm:$0xff]
  %v474 = vld [vmem:[%s1 + $0xe08] sm:$0xff]
  %v475 = vld [vmem:[%s1 + $0xe10] sm:$0xff]
  %v476 = vld [vmem:[%s1 + $0xe18] sm:$0xff]
  %v477 = vld [vmem:[%s1 + $0xe20] sm:$0xff]
  %v478 = vld [vmem:[%s1 + $0xe28] sm:$0xff]
  %v479 = vld [vmem:[%s1 + $0xe30] sm:$0xff]
  %v480 = vld [vmem:[%s1 + $0xe38] sm:$0xff]
  %v481 = vld [vmem:[%s1 + $0xe40] sm:$0xff]
  %v482 = vld [vmem:[%s1 + $0xe48] sm:$0xff]
  %v483 = vld [vmem:[%s1 + $0xe50] sm:$0xff]
  %v484 = vld [vmem:[%s1 + $0xe58] sm:$0xff]
  %v485 = vld [vmem:[%s1 + $0xe60] sm:$0xff]
  %v486 = vld [vmem:[%s1 + $0xe68] sm:$0xff]
  %v487 = vld [vmem:[%s1 + $0xe70] sm:$0xff]
  %v488 = vld [vmem:[%s1 + $0xe78] sm:$0xff]
  %v489 = vld [vmem:[%s1 + $0xe80] sm:$0xff]
  %v490 = vld [vmem:[%s1 + $0xe88] sm:$0xff]
  %v491 = vld [vmem:[%s1 + $0xe90] sm:$0xff]
  %v492 = vld [vmem:[%s1 + $0xe98] sm:$0xff]
  %v493 = vld [vmem:[%s1 + $0xea0] sm:$0xff]
  %v494 = vld [vmem:[%s1 + $0xea8] sm:$0xff]
  %v495 = vld [vmem:[%s1 + $0xeb0] sm:$0xff]
  %v496 = vld [vmem:[%s1 + $0xeb8] sm:$0xff]
  %v497 = vld [vmem:[%s1 + $0xec0] sm:$0xff]
  %v498 = vld [vmem:[%s1 + $0xec8] sm:$0xff]
  %v499 = vld [vmem:[%s1 + $0xed0] sm:$0xff]
  %v500 = vld [vmem:[%s1 + $0xed8] sm:$0xff]
  %v501 = vld [vmem:[%s1 + $0xee0] sm:$0xff]
  %v502 = vld [vmem:[%s1 + $0xee8] sm:$0xff]
  %v503 = vld [vmem:[%s1 + $0xef0] sm:$0xff]
  %v504 = vld [vmem:[%s1 + $0xef8] sm:$0xff]
  %v505 = vld [vmem:[%s1 + $0xf00] sm:$0xff]
  %v506 = vld [vmem:[%s1 + $0xf08] sm:$0xff]
  %v507 = vld [vmem:[%s1 + $0xf10] sm:$0xff]
  %v508 = vld [vmem:[%s1 + $0xf18] sm:$0xff]
  %v509 = vld [vmem:[%s1 + $0xf20] sm:$0xff]
  %v510 = vld [vmem:[%s1 + $0xf28] sm:$0xff]
  %v511 = vld [vmem:[%s1 + $0xf30] sm:$0xff]
  %v512 = vld [vmem:[%s1 + $0xf38] sm:$0xff]
  %v513 = vld [vmem:[%s1 + $0xf40] sm:$0xff]
  %v514 = vld [vmem:[%s1 + $0xf48] sm:$0xff]
  %v515 = vld [vmem:[%s1 + $0xf50] sm:$0xff]
  %v516 = vld [vmem:[%s1 + $0xf58] sm:$0xff]
  %v517 = vld [vmem:[%s1 + $0xf60] sm:$0xff]
  %v518 = vld [vmem:[%s1 + $0xf68] sm:$0xff]
  %v519 = vld [vmem:[%s1 + $0xf70] sm:$0xff]
  %v520 = vld [vmem:[%s1 + $0xf78] sm:$0xff]
  %v521 = vld [vmem:[%s1 + $0xf80] sm:$0xff]
  %v522 = vld [vmem:[%s1 + $0xf88] sm:$0xff]
  %v523 = vld [vmem:[%s1 + $0xf90] sm:$0xff]
  %v524 = vld [vmem:[%s1 + $0xf98] sm:$0xff]
  %v525 = vld [vmem:[%s1 + $0xfa0] sm:$0xff]
  %v526 = vld [vmem:[%s1 + $0xfa8] sm:$0xff]
  %v527 = vld [vmem:[%s1 + $0xfb0] sm:$0xff]
  %v528 = vld [vmem:[%s1 + $0xfb8] sm:$0xff]
  %v529 = vld [vmem:[%s1 + $0xfc0] sm:$0xff]
  %v530 = vld [vmem:[%s1 + $0xfc8] sm:$0xff]
  %v531 = vld [vmem:[%s1 + $0xfd0] sm:$0xff]
  %v532 = vld [vmem:[%s1 + $0xfd8] sm:$0xff]
  %v533 = vld [vmem:[%s1 + $0xfe0] sm:$0xff]
  %v534 = vld [vmem:[%s1 + $0xfe8] sm:$0xff]
  %v535 = vld [vmem:[%s1 + $0xff0] sm:$0xff]
  %v536 = vld [vmem:[%s1 + $0xff8] sm:$0xff]
  %v537 = vld [vmem:[%s1 + $0x1000] sm:$0xff]
  %v538 = vld [vmem:[%s1 + $0x1008] sm:$0xff]
  %v539 = vld [vmem:[%s1 + $0x1010] sm:$0xff]
  %v540 = vld [vmem:[%s1 + $0x1018] sm:$0xff]
  %v541 = vld [vmem:[%s1 + $0x1020] sm:$0xff]
  %v542 = vld [vmem:[%s1 + $0x1028] sm:$0xff]
  %v543 = vld [vmem:[%s1 + $0x1030] sm:$0xff]
  %v544 = vld [vmem:[%s1 + $0x1038] sm:$0xff]
  %v545 = vld [vmem:[%s1 + $0x1040] sm:$0xff]
  %v546 = vld [vmem:[%s1 + $0x1048] sm:$0xff]
  %v547 = vld [vmem:[%s1 + $0x1050] sm:$0xff]
  %v548 = vld [vmem:[%s1 + $0x1058] sm:$0xff]
  %v549 = vld [vmem:[%s1 + $0x1060] sm:$0xff]
  %v550 = vld [vmem:[%s1 + $0x1068] sm:$0xff]
  %v551 = vld [vmem:[%s1 + $0x1070] sm:$0xff]
  %v552 = vld [vmem:[%s1 + $0x1078] sm:$0xff]
  %v553 = vld [vmem:[%s1 + $0x1080] sm:$0xff]
  %v554 = vld [vmem:[%s1 + $0x1088] sm:$0xff]
  %v555 = vld [vmem:[%s1 + $0x1090] sm:$0xff]
  %v556 = vld [vmem:[%s1 + $0x1098] sm:$0xff]
  %v557 = vld [vmem:[%s1 + $0x10a0] sm:$0xff]
  %v558 = vld [vmem:[%s1 + $0x10a8] sm:$0xff]
  %v559 = vld [vmem:[%s1 + $0x10b0] sm:$0xff]
  %v560 = vld [vmem:[%s1 + $0x10b8] sm:$0xff]
  %v561 = vld [vmem:[%s1 + $0x10c0] sm:$0xff]
  %v562 = vld [vmem:[%s1 + $0x10c8] sm:$0xff]
  %v563 = vld [vmem:[%s1 + $0x10d0] sm:$0xff]
  %v564 = vld [vmem:[%s1 + $0x10d8] sm:$0xff]
  %v565 = vld [vmem:[%s1 + $0x10e0] sm:$0xff]
  %v566 = vld [vmem:[%s1 + $0x10e8] sm:$0xff]
  %v567 = vld [vmem:[%s1 + $0x10f0] sm:$0xff]
  %v568 = vld [vmem:[%s1 + $0x10f8] sm:$0xff]
  %v569 = vld [vmem:[%s1 + $0x1100] sm:$0xff]
  %v570 = vld [vmem:[%s1 + $0x1108] sm:$0xff]
  %v571 = vld [vmem:[%s1 + $0x1110] sm:$0xff]
  %v572 = vld [vmem:[%s1 + $0x1118] sm:$0xff]
  %v573 = vld [vmem:[%s1 + $0x1120] sm:$0xff]
  %v574 = vld [vmem:[%s1 + $0x1128] sm:$0xff]
  %v575 = vld [vmem:[%s1 + $0x1130] sm:$0xff]
  %v576 = vld [vmem:[%s1 + $0x1138] sm:$0xff]
  %v577 = vld [vmem:[%s1 + $0x1140] sm:$0xff]
  %v578 = vld [vmem:[%s1 + $0x1148] sm:$0xff]
  %v579 = vld [vmem:[%s1 + $0x1150] sm:$0xff]
  %v580 = vld [vmem:[%s1 + $0x1158] sm:$0xff]
  %v581 = vld [vmem:[%s1 + $0x1160] sm:$0xff]
  %v582 = vld [vmem:[%s1 + $0x1168] sm:$0xff]
  %v583 = vld [vmem:[%s1 + $0x1170] sm:$0xff]
  %v584 = vld [vmem:[%s1 + $0x1178] sm:$0xff]
  %v585 = vld [vmem:[%s1 + $0x1180] sm:$0xff]
  %v586 = vld [vmem:[%s1 + $0x1188] sm:$0xff]
  %v587 = vld [vmem:[%s1 + $0x1190] sm:$0xff]
  %v588 = vld [vmem:[%s1 + $0x1198] sm:$0xff]
  %v589 = vld [vmem:[%s1 + $0x11a0] sm:$0xff]
  %v590 = vld [vmem:[%s1 + $0x11a8] sm:$0xff]
  %v591 = vld [vmem:[%s1 + $0x11b0] sm:$0xff]
  %v592 = vld [vmem:[%s1 + $0x11b8] sm:$0xff]
  %v593 = vld [vmem:[%s1 + $0x11c0] sm:$0xff]
  %v594 = vld [vmem:[%s1 + $0x11c8] sm:$0xff]
  %v595 = vld [vmem:[%s1 + $0x11d0] sm:$0xff]
  %v596 = vld [vmem:[%s1 + $0x11d8] sm:$0xff]
  %v597 = vld [vmem:[%s1 + $0x11e0] sm:$0xff]
  %v598 = vld [vmem:[%s1 + $0x11e8] sm:$0xff]
  %v599 = vld [vmem:[%s1 + $0x11f0] sm:$0xff]
  %v600 = vld [vmem:[%s1 + $0x11f8] sm:$0xff]
  %v601 = vld [vmem:[%s2] sm:$0xf]
  %v603 = vlaneseq
  %v604 = vshrl.u32 %v603, 7
  %v605 = vsub.s32 0, %v604
  %v606 = vrot.slane %v601, %v605
  %v607 = vlaneseq
  %v608 = vshrl.u32 %v607, 7
  %v609 = vsub.s32 1, %v608
  %v610 = vrot.slane %v601, %v609
  %v611 = vlaneseq
  %v612 = vshrl.u32 %v611, 7
  %v613 = vsub.s32 2, %v612
  %v614 = vrot.slane %v601, %v613
  %v615 = vlaneseq
  %v616 = vshrl.u32 %v615, 7
  %v617 = vsub.s32 3, %v616
  %v618 = vrot.slane %v601, %v617
  %v632 = vunpack.c.l.b16 %v16
  %v633 = vunpack.c.h.b16 %v16
  %v634 = vunpack.c.l.b16 %v17
  %v635 = vunpack.c.h.b16 %v17
  %v636 = vunpack.c.l.b16 %v18
  %v637 = vunpack.c.h.b16 %v18
  %v638 = vunpack.c.l.b16 %v19
  %v639 = vunpack.c.h.b16 %v19
  %v640 = vunpack.c.l.b16 %v20
  %v641 = vunpack.c.h.b16 %v20
  %v642 = vunpack.c.l.b16 %v21
  %v643 = vunpack.c.h.b16 %v21
  %v644 = vunpack.c.l.b16 %v22
  %v645 = vunpack.c.h.b16 %v22
  %v646 = vunpack.c.l.b16 %v23
  %v647 = vunpack.c.h.b16 %v23
  %v648 = vunpack.c.l.b16 %v24
  %v649 = vunpack.c.h.b16 %v24
  %v650 = vpack.c.b16 %v632, %v632
  %v651 = vpack.c.b16 %v633, %v633
  %v652 = vpack.c.b16 %v634, %v634
  %v653 = vpack.c.b16 %v635, %v635
  %v654 = vpack.c.b16 %v636, %v636
  %v655 = vpack.c.b16 %v637, %v637
  %v656 = vpack.c.b16 %v638, %v638
  %v657 = vpack.c.b16 %v639, %v639
  %v658 = vpack.c.b16 %v640, %v640
  %v659 = vpack.c.b16 %v641, %v641
  %v660 = vpack.c.b16 %v642, %v642
  %v661 = vpack.c.b16 %v643, %v643
  %v662 = vpack.c.b16 %v644, %v644
  %v663 = vpack.c.b16 %v645, %v645
  %v664 = vpack.c.b16 %v646, %v646
  %v665 = vpack.c.b16 %v647, %v647
  %v666 = vpack.c.b16 %v648, %v648
  %v667 = vpack.c.b16 %v649, %v649
  %v1262 = vunpack.c.l.b16 %v25
  %v1263 = vunpack.c.h.b16 %v25
  %v1264 = vunpack.c.l.b16 %v26
  %v1265 = vunpack.c.h.b16 %v26
  %v1266 = vunpack.c.l.b16 %v27
  %v1267 = vunpack.c.h.b16 %v27
  %v1268 = vunpack.c.l.b16 %v28
  %v1269 = vunpack.c.h.b16 %v28
  %v1270 = vunpack.c.l.b16 %v29
  %v1271 = vunpack.c.h.b16 %v29
  %v1272 = vunpack.c.l.b16 %v30
  %v1273 = vunpack.c.h.b16 %v30
  %v1274 = vunpack.c.l.b16 %v31
  %v1275 = vunpack.c.h.b16 %v31
  %v1276 = vunpack.c.l.b16 %v32
  %v1277 = vunpack.c.h.b16 %v32
  %v1278 = vunpack.c.l.b16 %v33
  %v1279 = vunpack.c.h.b16 %v33
  %v1280 = vunpack.c.l.b16 %v34
  %v1281 = vunpack.c.h.b16 %v34
  %v1282 = vunpack.c.l.b16 %v35
  %v1283 = vunpack.c.h.b16 %v35
  %v1284 = vunpack.c.l.b16 %v36
  %v1285 = vunpack.c.h.b16 %v36
  %v1286 = vunpack.c.l.b16 %v37
  %v1287 = vunpack.c.h.b16 %v37
  %v1288 = vunpack.c.l.b16 %v38
  %v1289 = vunpack.c.h.b16 %v38
  %v1290 = vunpack.c.l.b16 %v39
  %v1291 = vunpack.c.h.b16 %v39
  %v1292 = vunpack.c.l.b16 %v40
  %v1293 = vunpack.c.h.b16 %v40
  %v1294 = vunpack.c.l.b16 %v41
  %v1295 = vunpack.c.h.b16 %v41
  %v1296 = vunpack.c.l.b16 %v42
  %v1297 = vunpack.c.h.b16 %v42
  %v1298 = vunpack.c.l.b16 %v43
  %v1299 = vunpack.c.h.b16 %v43
  %v1300 = vunpack.c.l.b16 %v44
  %v1301 = vunpack.c.h.b16 %v44
  %v1302 = vunpack.c.l.b16 %v45
  %v1303 = vunpack.c.h.b16 %v45
  %v1304 = vunpack.c.l.b16 %v46
  %v1305 = vunpack.c.h.b16 %v46
  %v1306 = vunpack.c.l.b16 %v47
  %v1307 = vunpack.c.h.b16 %v47
  %v1308 = vunpack.c.l.b16 %v48
  %v1309 = vunpack.c.h.b16 %v48
  %v1310 = vunpack.c.l.b16 %v49
  %v1311 = vunpack.c.h.b16 %v49
  %v1312 = vunpack.c.l.b16 %v50
  %v1313 = vunpack.c.h.b16 %v50
  %v1314 = vunpack.c.l.b16 %v51
  %v1315 = vunpack.c.h.b16 %v51
  %v1316 = vunpack.c.l.b16 %v52
  %v1317 = vunpack.c.h.b16 %v52
  %v1318 = vunpack.c.l.b16 %v53
  %v1319 = vunpack.c.h.b16 %v53
  %v1320 = vunpack.c.l.b16 %v54
  %v1321 = vunpack.c.h.b16 %v54
  %v1322 = vunpack.c.l.b16 %v55
  %v1323 = vunpack.c.h.b16 %v55
  %v1324 = vunpack.c.l.b16 %v56
  %v1325 = vunpack.c.h.b16 %v56
  %v1326 = vunpack.c.l.b16 %v57
  %v1327 = vunpack.c.h.b16 %v57
  %v1328 = vunpack.c.l.b16 %v58
  %v1329 = vunpack.c.h.b16 %v58
  %v1330 = vunpack.c.l.b16 %v59
  %v1331 = vunpack.c.h.b16 %v59
  %v1332 = vunpack.c.l.b16 %v60
  %v1333 = vunpack.c.h.b16 %v60
  %v1334 = vunpack.c.l.b16 %v61
  %v1335 = vunpack.c.h.b16 %v61
  %v1336 = vunpack.c.l.b16 %v62
  %v1337 = vunpack.c.h.b16 %v62
  %v1338 = vunpack.c.l.b16 %v63
  %v1339 = vunpack.c.h.b16 %v63
  %v1340 = vunpack.c.l.b16 %v64
  %v1341 = vunpack.c.h.b16 %v64
  %v1342 = vunpack.c.l.b16 %v65
  %v1343 = vunpack.c.h.b16 %v65
  %v1344 = vunpack.c.l.b16 %v66
  %v1345 = vunpack.c.h.b16 %v66
  %v1346 = vunpack.c.l.b16 %v67
  %v1347 = vunpack.c.h.b16 %v67
  %v1348 = vunpack.c.l.b16 %v68
  %v1349 = vunpack.c.h.b16 %v68
  %v1350 = vunpack.c.l.b16 %v69
  %v1351 = vunpack.c.h.b16 %v69
  %v1352 = vunpack.c.l.b16 %v70
  %v1353 = vunpack.c.h.b16 %v70
  %v1354 = vunpack.c.l.b16 %v71
  %v1355 = vunpack.c.h.b16 %v71
  %v1356 = vunpack.c.l.b16 %v72
  %v1357 = vunpack.c.h.b16 %v72
  %v1358 = vunpack.c.l.b16 %v73
  %v1359 = vunpack.c.h.b16 %v73
  %v1360 = vunpack.c.l.b16 %v74
  %v1361 = vunpack.c.h.b16 %v74
  %v1362 = vunpack.c.l.b16 %v75
  %v1363 = vunpack.c.h.b16 %v75
  %v1364 = vunpack.c.l.b16 %v76
  %v1365 = vunpack.c.h.b16 %v76
  %v1366 = vunpack.c.l.b16 %v77
  %v1367 = vunpack.c.h.b16 %v77
  %v1368 = vunpack.c.l.b16 %v78
  %v1369 = vunpack.c.h.b16 %v78
  %v1370 = vunpack.c.l.b16 %v79
  %v1371 = vunpack.c.h.b16 %v79
  %v1372 = vunpack.c.l.b16 %v80
  %v1373 = vunpack.c.h.b16 %v80
  %v1374 = vunpack.c.l.b16 %v81
  %v1375 = vunpack.c.h.b16 %v81
  %v1376 = vunpack.c.l.b16 %v82
  %v1377 = vunpack.c.h.b16 %v82
  %v1378 = vunpack.c.l.b16 %v83
  %v1379 = vunpack.c.h.b16 %v83
  %v1380 = vunpack.c.l.b16 %v84
  %v1381 = vunpack.c.h.b16 %v84
  %v1382 = vunpack.c.l.b16 %v85
  %v1383 = vunpack.c.h.b16 %v85
  %v1384 = vunpack.c.l.b16 %v86
  %v1385 = vunpack.c.h.b16 %v86
  %v1386 = vunpack.c.l.b16 %v87
  %v1387 = vunpack.c.h.b16 %v87
  %v1388 = vunpack.c.l.b16 %v88
  %v1389 = vunpack.c.h.b16 %v88
  %v1390 = vunpack.c.l.b16 %v89
  %v1391 = vunpack.c.h.b16 %v89
  %v1392 = vunpack.c.l.b16 %v90
  %v1393 = vunpack.c.h.b16 %v90
  %v1394 = vunpack.c.l.b16 %v91
  %v1395 = vunpack.c.h.b16 %v91
  %v1396 = vunpack.c.l.b16 %v92
  %v1397 = vunpack.c.h.b16 %v92
  %v1398 = vunpack.c.l.b16 %v93
  %v1399 = vunpack.c.h.b16 %v93
  %v1400 = vunpack.c.l.b16 %v94
  %v1401 = vunpack.c.h.b16 %v94
  %v1402 = vunpack.c.l.b16 %v95
  %v1403 = vunpack.c.h.b16 %v95
  %v1404 = vunpack.c.l.b16 %v96
  %v1405 = vunpack.c.h.b16 %v96
  %v1406 = vunpack.c.l.b16 %v97
  %v1407 = vunpack.c.h.b16 %v97
  %v1408 = vunpack.c.l.b16 %v98
  %v1409 = vunpack.c.h.b16 %v98
  %v1410 = vunpack.c.l.b16 %v99
  %v1411 = vunpack.c.h.b16 %v99
  %v1412 = vunpack.c.l.b16 %v100
  %v1413 = vunpack.c.h.b16 %v100
  %v1414 = vunpack.c.l.b16 %v101
  %v1415 = vunpack.c.h.b16 %v101
  %v1416 = vunpack.c.l.b16 %v102
  %v1417 = vunpack.c.h.b16 %v102
  %v1418 = vunpack.c.l.b16 %v103
  %v1419 = vunpack.c.h.b16 %v103
  %v1420 = vunpack.c.l.b16 %v104
  %v1421 = vunpack.c.h.b16 %v104
  %v1422 = vunpack.c.l.b16 %v105
  %v1423 = vunpack.c.h.b16 %v105
  %v1424 = vunpack.c.l.b16 %v106
  %v1425 = vunpack.c.h.b16 %v106
  %v1426 = vunpack.c.l.b16 %v107
  %v1427 = vunpack.c.h.b16 %v107
  %v1428 = vunpack.c.l.b16 %v108
  %v1429 = vunpack.c.h.b16 %v108
  %v1430 = vunpack.c.l.b16 %v109
  %v1431 = vunpack.c.h.b16 %v109
  %v1432 = vunpack.c.l.b16 %v110
  %v1433 = vunpack.c.h.b16 %v110
  %v1434 = vunpack.c.l.b16 %v111
  %v1435 = vunpack.c.h.b16 %v111
  %v1436 = vunpack.c.l.b16 %v112
  %v1437 = vunpack.c.h.b16 %v112
  %v1438 = vunpack.c.l.b16 %v113
  %v1439 = vunpack.c.h.b16 %v113
  %v1440 = vunpack.c.l.b16 %v114
  %v1441 = vunpack.c.h.b16 %v114
  %v1442 = vunpack.c.l.b16 %v115
  %v1443 = vunpack.c.h.b16 %v115
  %v1444 = vunpack.c.l.b16 %v116
  %v1445 = vunpack.c.h.b16 %v116
  %v1446 = vunpack.c.l.b16 %v117
  %v1447 = vunpack.c.h.b16 %v117
  %v1448 = vunpack.c.l.b16 %v118
  %v1449 = vunpack.c.h.b16 %v118
  %v1450 = vunpack.c.l.b16 %v119
  %v1451 = vunpack.c.h.b16 %v119
  %v1452 = vunpack.c.l.b16 %v120
  %v1453 = vunpack.c.h.b16 %v120
  %v1454 = vunpack.c.l.b16 %v121
  %v1455 = vunpack.c.h.b16 %v121
  %v1456 = vunpack.c.l.b16 %v122
  %v1457 = vunpack.c.h.b16 %v122
  %v1458 = vunpack.c.l.b16 %v123
  %v1459 = vunpack.c.h.b16 %v123
  %v1460 = vunpack.c.l.b16 %v124
  %v1461 = vunpack.c.h.b16 %v124
  %v1462 = vunpack.c.l.b16 %v125
  %v1463 = vunpack.c.h.b16 %v125
  %v1464 = vunpack.c.l.b16 %v126
  %v1465 = vunpack.c.h.b16 %v126
  %v1466 = vunpack.c.l.b16 %v127
  %v1467 = vunpack.c.h.b16 %v127
  %v1468 = vunpack.c.l.b16 %v128
  %v1469 = vunpack.c.h.b16 %v128
  %v1470 = vunpack.c.l.b16 %v129
  %v1471 = vunpack.c.h.b16 %v129
  %v1472 = vunpack.c.l.b16 %v130
  %v1473 = vunpack.c.h.b16 %v130
  %v1474 = vunpack.c.l.b16 %v131
  %v1475 = vunpack.c.h.b16 %v131
  %v1476 = vunpack.c.l.b16 %v132
  %v1477 = vunpack.c.h.b16 %v132
  %v1478 = vunpack.c.l.b16 %v133
  %v1479 = vunpack.c.h.b16 %v133
  %v1480 = vunpack.c.l.b16 %v134
  %v1481 = vunpack.c.h.b16 %v134
  %v1482 = vunpack.c.l.b16 %v135
  %v1483 = vunpack.c.h.b16 %v135
  %v1484 = vunpack.c.l.b16 %v136
  %v1485 = vunpack.c.h.b16 %v136
  %v1486 = vunpack.c.l.b16 %v137
  %v1487 = vunpack.c.h.b16 %v137
  %v1488 = vunpack.c.l.b16 %v138
  %v1489 = vunpack.c.h.b16 %v138
  %v1490 = vunpack.c.l.b16 %v139
  %v1491 = vunpack.c.h.b16 %v139
  %v1492 = vunpack.c.l.b16 %v140
  %v1493 = vunpack.c.h.b16 %v140
  %v1494 = vunpack.c.l.b16 %v141
  %v1495 = vunpack.c.h.b16 %v141
  %v1496 = vunpack.c.l.b16 %v142
  %v1497 = vunpack.c.h.b16 %v142
  %v1498 = vunpack.c.l.b16 %v143
  %v1499 = vunpack.c.h.b16 %v143
  %v1500 = vunpack.c.l.b16 %v144
  %v1501 = vunpack.c.h.b16 %v144
  %v1502 = vunpack.c.l.b16 %v145
  %v1503 = vunpack.c.h.b16 %v145
  %v1504 = vunpack.c.l.b16 %v146
  %v1505 = vunpack.c.h.b16 %v146
  %v1506 = vunpack.c.l.b16 %v147
  %v1507 = vunpack.c.h.b16 %v147
  %v1508 = vunpack.c.l.b16 %v148
  %v1509 = vunpack.c.h.b16 %v148
  %v1510 = vunpack.c.l.b16 %v149
  %v1511 = vunpack.c.h.b16 %v149
  %v1512 = vunpack.c.l.b16 %v150
  %v1513 = vunpack.c.h.b16 %v150
  %v1514 = vunpack.c.l.b16 %v151
  %v1515 = vunpack.c.h.b16 %v151
  %v1516 = vunpack.c.l.b16 %v152
  %v1517 = vunpack.c.h.b16 %v152
  %v1518 = vunpack.c.l.b16 %v153
  %v1519 = vunpack.c.h.b16 %v153
  %v1520 = vunpack.c.l.b16 %v154
  %v1521 = vunpack.c.h.b16 %v154
  %v1522 = vunpack.c.l.b16 %v155
  %v1523 = vunpack.c.h.b16 %v155
  %v1524 = vunpack.c.l.b16 %v156
  %v1525 = vunpack.c.h.b16 %v156
  %v1526 = vunpack.c.l.b16 %v157
  %v1527 = vunpack.c.h.b16 %v157
  %v1528 = vunpack.c.l.b16 %v158
  %v1529 = vunpack.c.h.b16 %v158
  %v1530 = vunpack.c.l.b16 %v159
  %v1531 = vunpack.c.h.b16 %v159
  %v1532 = vunpack.c.l.b16 %v160
  %v1533 = vunpack.c.h.b16 %v160
  %v1534 = vunpack.c.l.b16 %v161
  %v1535 = vunpack.c.h.b16 %v161
  %v1536 = vunpack.c.l.b16 %v162
  %v1537 = vunpack.c.h.b16 %v162
  %v1538 = vunpack.c.l.b16 %v163
  %v1539 = vunpack.c.h.b16 %v163
  %v1540 = vunpack.c.l.b16 %v164
  %v1541 = vunpack.c.h.b16 %v164
  %v1542 = vunpack.c.l.b16 %v165
  %v1543 = vunpack.c.h.b16 %v165
  %v1544 = vunpack.c.l.b16 %v166
  %v1545 = vunpack.c.h.b16 %v166
  %v1546 = vunpack.c.l.b16 %v167
  %v1547 = vunpack.c.h.b16 %v167
  %v1548 = vunpack.c.l.b16 %v168
  %v1549 = vunpack.c.h.b16 %v168
  %v1550 = vunpack.c.l.b16 %v169
  %v1551 = vunpack.c.h.b16 %v169
  %v1552 = vunpack.c.l.b16 %v170
  %v1553 = vunpack.c.h.b16 %v170
  %v1554 = vunpack.c.l.b16 %v171
  %v1555 = vunpack.c.h.b16 %v171
  %v1556 = vunpack.c.l.b16 %v172
  %v1557 = vunpack.c.h.b16 %v172
  %v1558 = vunpack.c.l.b16 %v173
  %v1559 = vunpack.c.h.b16 %v173
  %v1560 = vunpack.c.l.b16 %v174
  %v1561 = vunpack.c.h.b16 %v174
  %v1562 = vunpack.c.l.b16 %v175
  %v1563 = vunpack.c.h.b16 %v175
  %v1564 = vunpack.c.l.b16 %v176
  %v1565 = vunpack.c.h.b16 %v176
  %v1566 = vunpack.c.l.b16 %v177
  %v1567 = vunpack.c.h.b16 %v177
  %v1568 = vunpack.c.l.b16 %v178
  %v1569 = vunpack.c.h.b16 %v178
  %v1570 = vunpack.c.l.b16 %v179
  %v1571 = vunpack.c.h.b16 %v179
  %v1572 = vunpack.c.l.b16 %v180
  %v1573 = vunpack.c.h.b16 %v180
  %v1574 = vunpack.c.l.b16 %v181
  %v1575 = vunpack.c.h.b16 %v181
  %v1576 = vunpack.c.l.b16 %v182
  %v1577 = vunpack.c.h.b16 %v182
  %v1578 = vunpack.c.l.b16 %v183
  %v1579 = vunpack.c.h.b16 %v183
  %v1580 = vunpack.c.l.b16 %v184
  %v1581 = vunpack.c.h.b16 %v184
  %v1582 = vunpack.c.l.b16 %v185
  %v1583 = vunpack.c.h.b16 %v185
  %v1584 = vunpack.c.l.b16 %v186
  %v1585 = vunpack.c.h.b16 %v186
  %v1586 = vunpack.c.l.b16 %v187
  %v1587 = vunpack.c.h.b16 %v187
  %v1588 = vunpack.c.l.b16 %v188
  %v1589 = vunpack.c.h.b16 %v188
  %v1590 = vunpack.c.l.b16 %v189
  %v1591 = vunpack.c.h.b16 %v189
  %v1592 = vunpack.c.l.b16 %v190
  %v1593 = vunpack.c.h.b16 %v190
  %v1594 = vunpack.c.l.b16 %v191
  %v1595 = vunpack.c.h.b16 %v191
  %v1596 = vunpack.c.l.b16 %v192
  %v1597 = vunpack.c.h.b16 %v192
  %v1598 = vunpack.c.l.b16 %v193
  %v1599 = vunpack.c.h.b16 %v193
  %v1600 = vunpack.c.l.b16 %v194
  %v1601 = vunpack.c.h.b16 %v194
  %v1602 = vunpack.c.l.b16 %v195
  %v1603 = vunpack.c.h.b16 %v195
  %v1604 = vunpack.c.l.b16 %v196
  %v1605 = vunpack.c.h.b16 %v196
  %v1606 = vunpack.c.l.b16 %v197
  %v1607 = vunpack.c.h.b16 %v197
  %v1608 = vunpack.c.l.b16 %v198
  %v1609 = vunpack.c.h.b16 %v198
  %v1610 = vunpack.c.l.b16 %v199
  %v1611 = vunpack.c.h.b16 %v199
  %v1612 = vunpack.c.l.b16 %v200
  %v1613 = vunpack.c.h.b16 %v200
  %v1614 = vunpack.c.l.b16 %v201
  %v1615 = vunpack.c.h.b16 %v201
  %v1616 = vunpack.c.l.b16 %v202
  %v1617 = vunpack.c.h.b16 %v202
  %v1618 = vunpack.c.l.b16 %v203
  %v1619 = vunpack.c.h.b16 %v203
  %v1620 = vunpack.c.l.b16 %v204
  %v1621 = vunpack.c.h.b16 %v204
  %v1622 = vunpack.c.l.b16 %v205
  %v1623 = vunpack.c.h.b16 %v205
  %v1624 = vunpack.c.l.b16 %v206
  %v1625 = vunpack.c.h.b16 %v206
  %v1626 = vunpack.c.l.b16 %v207
  %v1627 = vunpack.c.h.b16 %v207
  %v1628 = vunpack.c.l.b16 %v208
  %v1629 = vunpack.c.h.b16 %v208
  %v1630 = vunpack.c.l.b16 %v209
  %v1631 = vunpack.c.h.b16 %v209
  %v1632 = vunpack.c.l.b16 %v210
  %v1633 = vunpack.c.h.b16 %v210
  %v1634 = vunpack.c.l.b16 %v211
  %v1635 = vunpack.c.h.b16 %v211
  %v1636 = vunpack.c.l.b16 %v212
  %v1637 = vunpack.c.h.b16 %v212
  %v1638 = vunpack.c.l.b16 %v213
  %v1639 = vunpack.c.h.b16 %v213
  %v1640 = vunpack.c.l.b16 %v214
  %v1641 = vunpack.c.h.b16 %v214
  %v1642 = vunpack.c.l.b16 %v215
  %v1643 = vunpack.c.h.b16 %v215
  %v1644 = vunpack.c.l.b16 %v216
  %v1645 = vunpack.c.h.b16 %v216
  %v1646 = vunpack.c.l.b16 %v217
  %v1647 = vunpack.c.h.b16 %v217
  %v1648 = vunpack.c.l.b16 %v218
  %v1649 = vunpack.c.h.b16 %v218
  %v1650 = vunpack.c.l.b16 %v219
  %v1651 = vunpack.c.h.b16 %v219
  %v1652 = vunpack.c.l.b16 %v220
  %v1653 = vunpack.c.h.b16 %v220
  %v1654 = vunpack.c.l.b16 %v221
  %v1655 = vunpack.c.h.b16 %v221
  %v1656 = vunpack.c.l.b16 %v222
  %v1657 = vunpack.c.h.b16 %v222
  %v1658 = vunpack.c.l.b16 %v223
  %v1659 = vunpack.c.h.b16 %v223
  %v1660 = vunpack.c.l.b16 %v224
  %v1661 = vunpack.c.h.b16 %v224
  %v1662 = vunpack.c.l.b16 %v225
  %v1663 = vunpack.c.h.b16 %v225
  %v1664 = vunpack.c.l.b16 %v226
  %v1665 = vunpack.c.h.b16 %v226
  %v1666 = vunpack.c.l.b16 %v227
  %v1667 = vunpack.c.h.b16 %v227
  %v1668 = vunpack.c.l.b16 %v228
  %v1669 = vunpack.c.h.b16 %v228
  %v1670 = vunpack.c.l.b16 %v229
  %v1671 = vunpack.c.h.b16 %v229
  %v1672 = vunpack.c.l.b16 %v230
  %v1673 = vunpack.c.h.b16 %v230
  %v1674 = vunpack.c.l.b16 %v231
  %v1675 = vunpack.c.h.b16 %v231
  %v1676 = vunpack.c.l.b16 %v232
  %v1677 = vunpack.c.h.b16 %v232
  %v1678 = vunpack.c.l.b16 %v233
  %v1679 = vunpack.c.h.b16 %v233
  %v1680 = vunpack.c.l.b16 %v234
  %v1681 = vunpack.c.h.b16 %v234
  %v1682 = vunpack.c.l.b16 %v235
  %v1683 = vunpack.c.h.b16 %v235
  %v1684 = vunpack.c.l.b16 %v236
  %v1685 = vunpack.c.h.b16 %v236
  %v1686 = vunpack.c.l.b16 %v237
  %v1687 = vunpack.c.h.b16 %v237
  %v1688 = vunpack.c.l.b16 %v238
  %v1689 = vunpack.c.h.b16 %v238
  %v1690 = vunpack.c.l.b16 %v239
  %v1691 = vunpack.c.h.b16 %v239
  %v1692 = vunpack.c.l.b16 %v240
  %v1693 = vunpack.c.h.b16 %v240
  %v1694 = vunpack.c.l.b16 %v241
  %v1695 = vunpack.c.h.b16 %v241
  %v1696 = vunpack.c.l.b16 %v242
  %v1697 = vunpack.c.h.b16 %v242
  %v1698 = vunpack.c.l.b16 %v243
  %v1699 = vunpack.c.h.b16 %v243
  %v1700 = vunpack.c.l.b16 %v244
  %v1701 = vunpack.c.h.b16 %v244
  %v1702 = vunpack.c.l.b16 %v245
  %v1703 = vunpack.c.h.b16 %v245
  %v1704 = vunpack.c.l.b16 %v246
  %v1705 = vunpack.c.h.b16 %v246
  %v1706 = vunpack.c.l.b16 %v247
  %v1707 = vunpack.c.h.b16 %v247
  %v1708 = vunpack.c.l.b16 %v248
  %v1709 = vunpack.c.h.b16 %v248
  %v1710 = vunpack.c.l.b16 %v249
  %v1711 = vunpack.c.h.b16 %v249
  %v1712 = vunpack.c.l.b16 %v250
  %v1713 = vunpack.c.h.b16 %v250
  %v1714 = vunpack.c.l.b16 %v251
  %v1715 = vunpack.c.h.b16 %v251
  %v1716 = vunpack.c.l.b16 %v252
  %v1717 = vunpack.c.h.b16 %v252
  %v1718 = vunpack.c.l.b16 %v253
  %v1719 = vunpack.c.h.b16 %v253
  %v1720 = vunpack.c.l.b16 %v254
  %v1721 = vunpack.c.h.b16 %v254
  %v1722 = vunpack.c.l.b16 %v255
  %v1723 = vunpack.c.h.b16 %v255
  %v1724 = vunpack.c.l.b16 %v256
  %v1725 = vunpack.c.h.b16 %v256
  %v1726 = vunpack.c.l.b16 %v257
  %v1727 = vunpack.c.h.b16 %v257
  %v1728 = vunpack.c.l.b16 %v258
  %v1729 = vunpack.c.h.b16 %v258
  %v1730 = vunpack.c.l.b16 %v259
  %v1731 = vunpack.c.h.b16 %v259
  %v1732 = vunpack.c.l.b16 %v260
  %v1733 = vunpack.c.h.b16 %v260
  %v1734 = vunpack.c.l.b16 %v261
  %v1735 = vunpack.c.h.b16 %v261
  %v1736 = vunpack.c.l.b16 %v262
  %v1737 = vunpack.c.h.b16 %v262
  %v1738 = vunpack.c.l.b16 %v263
  %v1739 = vunpack.c.h.b16 %v263
  %v1740 = vunpack.c.l.b16 %v264
  %v1741 = vunpack.c.h.b16 %v264
  %v1742 = vunpack.c.l.b16 %v265
  %v1743 = vunpack.c.h.b16 %v265
  %v1744 = vunpack.c.l.b16 %v266
  %v1745 = vunpack.c.h.b16 %v266
  %v1746 = vunpack.c.l.b16 %v267
  %v1747 = vunpack.c.h.b16 %v267
  %v1748 = vunpack.c.l.b16 %v268
  %v1749 = vunpack.c.h.b16 %v268
  %v1750 = vunpack.c.l.b16 %v269
  %v1751 = vunpack.c.h.b16 %v269
  %v1752 = vunpack.c.l.b16 %v270
  %v1753 = vunpack.c.h.b16 %v270
  %v1754 = vunpack.c.l.b16 %v271
  %v1755 = vunpack.c.h.b16 %v271
  %v1756 = vunpack.c.l.b16 %v272
  %v1757 = vunpack.c.h.b16 %v272
  %v1758 = vunpack.c.l.b16 %v273
  %v1759 = vunpack.c.h.b16 %v273
  %v1760 = vunpack.c.l.b16 %v274
  %v1761 = vunpack.c.h.b16 %v274
  %v1762 = vunpack.c.l.b16 %v275
  %v1763 = vunpack.c.h.b16 %v275
  %v1764 = vunpack.c.l.b16 %v276
  %v1765 = vunpack.c.h.b16 %v276
  %v1766 = vunpack.c.l.b16 %v277
  %v1767 = vunpack.c.h.b16 %v277
  %v1768 = vunpack.c.l.b16 %v278
  %v1769 = vunpack.c.h.b16 %v278
  %v1770 = vunpack.c.l.b16 %v279
  %v1771 = vunpack.c.h.b16 %v279
  %v1772 = vunpack.c.l.b16 %v280
  %v1773 = vunpack.c.h.b16 %v280
  %v1774 = vunpack.c.l.b16 %v281
  %v1775 = vunpack.c.h.b16 %v281
  %v1776 = vunpack.c.l.b16 %v282
  %v1777 = vunpack.c.h.b16 %v282
  %v1778 = vunpack.c.l.b16 %v283
  %v1779 = vunpack.c.h.b16 %v283
  %v1780 = vunpack.c.l.b16 %v284
  %v1781 = vunpack.c.h.b16 %v284
  %v1782 = vunpack.c.l.b16 %v285
  %v1783 = vunpack.c.h.b16 %v285
  %v1784 = vunpack.c.l.b16 %v286
  %v1785 = vunpack.c.h.b16 %v286
  %v1786 = vunpack.c.l.b16 %v287
  %v1787 = vunpack.c.h.b16 %v287
  %v1788 = vunpack.c.l.b16 %v288
  %v1789 = vunpack.c.h.b16 %v288
  %v1790 = vunpack.c.l.b16 %v289
  %v1791 = vunpack.c.h.b16 %v289
  %v1792 = vunpack.c.l.b16 %v290
  %v1793 = vunpack.c.h.b16 %v290
  %v1794 = vunpack.c.l.b16 %v291
  %v1795 = vunpack.c.h.b16 %v291
  %v1796 = vunpack.c.l.b16 %v292
  %v1797 = vunpack.c.h.b16 %v292
  %v1798 = vunpack.c.l.b16 %v293
  %v1799 = vunpack.c.h.b16 %v293
  %v1800 = vunpack.c.l.b16 %v294
  %v1801 = vunpack.c.h.b16 %v294
  %v1802 = vunpack.c.l.b16 %v295
  %v1803 = vunpack.c.h.b16 %v295
  %v1804 = vunpack.c.l.b16 %v296
  %v1805 = vunpack.c.h.b16 %v296
  %v1806 = vunpack.c.l.b16 %v297
  %v1807 = vunpack.c.h.b16 %v297
  %v1808 = vunpack.c.l.b16 %v298
  %v1809 = vunpack.c.h.b16 %v298
  %v1810 = vunpack.c.l.b16 %v299
  %v1811 = vunpack.c.h.b16 %v299
  %v1812 = vunpack.c.l.b16 %v300
  %v1813 = vunpack.c.h.b16 %v300
  %v1814 = vunpack.c.l.b16 %v301
  %v1815 = vunpack.c.h.b16 %v301
  %v1816 = vunpack.c.l.b16 %v302
  %v1817 = vunpack.c.h.b16 %v302
  %v1818 = vunpack.c.l.b16 %v303
  %v1819 = vunpack.c.h.b16 %v303
  %v1820 = vunpack.c.l.b16 %v304
  %v1821 = vunpack.c.h.b16 %v304
  %v1822 = vunpack.c.l.b16 %v305
  %v1823 = vunpack.c.h.b16 %v305
  %v1824 = vunpack.c.l.b16 %v306
  %v1825 = vunpack.c.h.b16 %v306
  %v1826 = vunpack.c.l.b16 %v307
  %v1827 = vunpack.c.h.b16 %v307
  %v1828 = vunpack.c.l.b16 %v308
  %v1829 = vunpack.c.h.b16 %v308
  %v1830 = vunpack.c.l.b16 %v309
  %v1831 = vunpack.c.h.b16 %v309
  %v1832 = vunpack.c.l.b16 %v310
  %v1833 = vunpack.c.h.b16 %v310
  %v1834 = vunpack.c.l.b16 %v311
  %v1835 = vunpack.c.h.b16 %v311
  %v1836 = vunpack.c.l.b16 %v312
  %v1837 = vunpack.c.h.b16 %v312
  %v1838 = vunpack.c.l.b16 %v313
  %v1839 = vunpack.c.h.b16 %v313
  %v1840 = vunpack.c.l.b16 %v314
  %v1841 = vunpack.c.h.b16 %v314
  %v1842 = vunpack.c.l.b16 %v315
  %v1843 = vunpack.c.h.b16 %v315
  %v1844 = vunpack.c.l.b16 %v316
  %v1845 = vunpack.c.h.b16 %v316
  %v1846 = vunpack.c.l.b16 %v317
  %v1847 = vunpack.c.h.b16 %v317
  %v1848 = vunpack.c.l.b16 %v318
  %v1849 = vunpack.c.h.b16 %v318
  %v1850 = vunpack.c.l.b16 %v319
  %v1851 = vunpack.c.h.b16 %v319
  %v1852 = vunpack.c.l.b16 %v320
  %v1853 = vunpack.c.h.b16 %v320
  %v1854 = vunpack.c.l.b16 %v321
  %v1855 = vunpack.c.h.b16 %v321
  %v1856 = vunpack.c.l.b16 %v322
  %v1857 = vunpack.c.h.b16 %v322
  %v1858 = vunpack.c.l.b16 %v323
  %v1859 = vunpack.c.h.b16 %v323
  %v1860 = vunpack.c.l.b16 %v324
  %v1861 = vunpack.c.h.b16 %v324
  %v1862 = vunpack.c.l.b16 %v325
  %v1863 = vunpack.c.h.b16 %v325
  %v1864 = vunpack.c.l.b16 %v326
  %v1865 = vunpack.c.h.b16 %v326
  %v1866 = vunpack.c.l.b16 %v327
  %v1867 = vunpack.c.h.b16 %v327
  %v1868 = vunpack.c.l.b16 %v328
  %v1869 = vunpack.c.h.b16 %v328
  %v1870 = vunpack.c.l.b16 %v329
  %v1871 = vunpack.c.h.b16 %v329
  %v1872 = vunpack.c.l.b16 %v330
  %v1873 = vunpack.c.h.b16 %v330
  %v1874 = vunpack.c.l.b16 %v331
  %v1875 = vunpack.c.h.b16 %v331
  %v1876 = vunpack.c.l.b16 %v332
  %v1877 = vunpack.c.h.b16 %v332
  %v1878 = vunpack.c.l.b16 %v333
  %v1879 = vunpack.c.h.b16 %v333
  %v1880 = vunpack.c.l.b16 %v334
  %v1881 = vunpack.c.h.b16 %v334
  %v1882 = vunpack.c.l.b16 %v335
  %v1883 = vunpack.c.h.b16 %v335
  %v1884 = vunpack.c.l.b16 %v336
  %v1885 = vunpack.c.h.b16 %v336
  %v1886 = vunpack.c.l.b16 %v337
  %v1887 = vunpack.c.h.b16 %v337
  %v1888 = vunpack.c.l.b16 %v338
  %v1889 = vunpack.c.h.b16 %v338
  %v1890 = vunpack.c.l.b16 %v339
  %v1891 = vunpack.c.h.b16 %v339
  %v1892 = vunpack.c.l.b16 %v340
  %v1893 = vunpack.c.h.b16 %v340
  %v1894 = vunpack.c.l.b16 %v341
  %v1895 = vunpack.c.h.b16 %v341
  %v1896 = vunpack.c.l.b16 %v342
  %v1897 = vunpack.c.h.b16 %v342
  %v1898 = vunpack.c.l.b16 %v343
  %v1899 = vunpack.c.h.b16 %v343
  %v1900 = vunpack.c.l.b16 %v344
  %v1901 = vunpack.c.h.b16 %v344
  %v1902 = vunpack.c.l.b16 %v345
  %v1903 = vunpack.c.h.b16 %v345
  %v1904 = vunpack.c.l.b16 %v346
  %v1905 = vunpack.c.h.b16 %v346
  %v1906 = vunpack.c.l.b16 %v347
  %v1907 = vunpack.c.h.b16 %v347
  %v1908 = vunpack.c.l.b16 %v348
  %v1909 = vunpack.c.h.b16 %v348
  %v1910 = vunpack.c.l.b16 %v349
  %v1911 = vunpack.c.h.b16 %v349
  %v1912 = vunpack.c.l.b16 %v350
  %v1913 = vunpack.c.h.b16 %v350
  %v1914 = vunpack.c.l.b16 %v351
  %v1915 = vunpack.c.h.b16 %v351
  %v1916 = vunpack.c.l.b16 %v352
  %v1917 = vunpack.c.h.b16 %v352
  %v1918 = vunpack.c.l.b16 %v353
  %v1919 = vunpack.c.h.b16 %v353
  %v1920 = vunpack.c.l.b16 %v354
  %v1921 = vunpack.c.h.b16 %v354
  %v1922 = vunpack.c.l.b16 %v355
  %v1923 = vunpack.c.h.b16 %v355
  %v1924 = vunpack.c.l.b16 %v356
  %v1925 = vunpack.c.h.b16 %v356
  %v1926 = vunpack.c.l.b16 %v357
  %v1927 = vunpack.c.h.b16 %v357
  %v1928 = vunpack.c.l.b16 %v358
  %v1929 = vunpack.c.h.b16 %v358
  %v1930 = vunpack.c.l.b16 %v359
  %v1931 = vunpack.c.h.b16 %v359
  %v1932 = vunpack.c.l.b16 %v360
  %v1933 = vunpack.c.h.b16 %v360
  %v1934 = vunpack.c.l.b16 %v361
  %v1935 = vunpack.c.h.b16 %v361
  %v1936 = vunpack.c.l.b16 %v362
  %v1937 = vunpack.c.h.b16 %v362
  %v1938 = vunpack.c.l.b16 %v363
  %v1939 = vunpack.c.h.b16 %v363
  %v1940 = vunpack.c.l.b16 %v364
  %v1941 = vunpack.c.h.b16 %v364
  %v1942 = vunpack.c.l.b16 %v365
  %v1943 = vunpack.c.h.b16 %v365
  %v1944 = vunpack.c.l.b16 %v366
  %v1945 = vunpack.c.h.b16 %v366
  %v1946 = vunpack.c.l.b16 %v367
  %v1947 = vunpack.c.h.b16 %v367
  %v1948 = vunpack.c.l.b16 %v368
  %v1949 = vunpack.c.h.b16 %v368
  %v1950 = vunpack.c.l.b16 %v369
  %v1951 = vunpack.c.h.b16 %v369
  %v1952 = vunpack.c.l.b16 %v370
  %v1953 = vunpack.c.h.b16 %v370
  %v1954 = vunpack.c.l.b16 %v371
  %v1955 = vunpack.c.h.b16 %v371
  %v1956 = vunpack.c.l.b16 %v372
  %v1957 = vunpack.c.h.b16 %v372
  %v1958 = vunpack.c.l.b16 %v373
  %v1959 = vunpack.c.h.b16 %v373
  %v1960 = vunpack.c.l.b16 %v374
  %v1961 = vunpack.c.h.b16 %v374
  %v1962 = vunpack.c.l.b16 %v375
  %v1963 = vunpack.c.h.b16 %v375
  %v1964 = vunpack.c.l.b16 %v376
  %v1965 = vunpack.c.h.b16 %v376
  %v1966 = vunpack.c.l.b16 %v377
  %v1967 = vunpack.c.h.b16 %v377
  %v1968 = vunpack.c.l.b16 %v378
  %v1969 = vunpack.c.h.b16 %v378
  %v1970 = vunpack.c.l.b16 %v379
  %v1971 = vunpack.c.h.b16 %v379
  %v1972 = vunpack.c.l.b16 %v380
  %v1973 = vunpack.c.h.b16 %v380
  %v1974 = vunpack.c.l.b16 %v381
  %v1975 = vunpack.c.h.b16 %v381
  %v1976 = vunpack.c.l.b16 %v382
  %v1977 = vunpack.c.h.b16 %v382
  %v1978 = vunpack.c.l.b16 %v383
  %v1979 = vunpack.c.h.b16 %v383
  %v1980 = vunpack.c.l.b16 %v384
  %v1981 = vunpack.c.h.b16 %v384
  %v1982 = vunpack.c.l.b16 %v385
  %v1983 = vunpack.c.h.b16 %v385
  %v1984 = vunpack.c.l.b16 %v386
  %v1985 = vunpack.c.h.b16 %v386
  %v1986 = vunpack.c.l.b16 %v387
  %v1987 = vunpack.c.h.b16 %v387
  %v1988 = vunpack.c.l.b16 %v388
  %v1989 = vunpack.c.h.b16 %v388
  %v1990 = vunpack.c.l.b16 %v389
  %v1991 = vunpack.c.h.b16 %v389
  %v1992 = vunpack.c.l.b16 %v390
  %v1993 = vunpack.c.h.b16 %v390
  %v1994 = vunpack.c.l.b16 %v391
  %v1995 = vunpack.c.h.b16 %v391
  %v1996 = vunpack.c.l.b16 %v392
  %v1997 = vunpack.c.h.b16 %v392
  %v1998 = vunpack.c.l.b16 %v393
  %v1999 = vunpack.c.h.b16 %v393
  %v2000 = vunpack.c.l.b16 %v394
  %v2001 = vunpack.c.h.b16 %v394
  %v2002 = vunpack.c.l.b16 %v395
  %v2003 = vunpack.c.h.b16 %v395
  %v2004 = vunpack.c.l.b16 %v396
  %v2005 = vunpack.c.h.b16 %v396
  %v2006 = vunpack.c.l.b16 %v397
  %v2007 = vunpack.c.h.b16 %v397
  %v2008 = vunpack.c.l.b16 %v398
  %v2009 = vunpack.c.h.b16 %v398
  %v2010 = vunpack.c.l.b16 %v399
  %v2011 = vunpack.c.h.b16 %v399
  %v2012 = vunpack.c.l.b16 %v400
  %v2013 = vunpack.c.h.b16 %v400
  %v2014 = vunpack.c.l.b16 %v401
  %v2015 = vunpack.c.h.b16 %v401
  %v2016 = vunpack.c.l.b16 %v402
  %v2017 = vunpack.c.h.b16 %v402
  %v2018 = vunpack.c.l.b16 %v403
  %v2019 = vunpack.c.h.b16 %v403
  %v2020 = vunpack.c.l.b16 %v404
  %v2021 = vunpack.c.h.b16 %v404
  %v2022 = vunpack.c.l.b16 %v405
  %v2023 = vunpack.c.h.b16 %v405
  %v2024 = vunpack.c.l.b16 %v406
  %v2025 = vunpack.c.h.b16 %v406
  %v2026 = vunpack.c.l.b16 %v407
  %v2027 = vunpack.c.h.b16 %v407
  %v2028 = vunpack.c.l.b16 %v408
  %v2029 = vunpack.c.h.b16 %v408
  %v2030 = vunpack.c.l.b16 %v409
  %v2031 = vunpack.c.h.b16 %v409
  %v2032 = vunpack.c.l.b16 %v410
  %v2033 = vunpack.c.h.b16 %v410
  %v2034 = vunpack.c.l.b16 %v411
  %v2035 = vunpack.c.h.b16 %v411
  %v2036 = vunpack.c.l.b16 %v412
  %v2037 = vunpack.c.h.b16 %v412
  %v2038 = vunpack.c.l.b16 %v413
  %v2039 = vunpack.c.h.b16 %v413
  %v2040 = vunpack.c.l.b16 %v414
  %v2041 = vunpack.c.h.b16 %v414
  %v2042 = vunpack.c.l.b16 %v415
  %v2043 = vunpack.c.h.b16 %v415
  %v2044 = vunpack.c.l.b16 %v416
  %v2045 = vunpack.c.h.b16 %v416
  %v2046 = vunpack.c.l.b16 %v417
  %v2047 = vunpack.c.h.b16 %v417
  %v2048 = vunpack.c.l.b16 %v418
  %v2049 = vunpack.c.h.b16 %v418
  %v2050 = vunpack.c.l.b16 %v419
  %v2051 = vunpack.c.h.b16 %v419
  %v2052 = vunpack.c.l.b16 %v420
  %v2053 = vunpack.c.h.b16 %v420
  %v2054 = vunpack.c.l.b16 %v421
  %v2055 = vunpack.c.h.b16 %v421
  %v2056 = vunpack.c.l.b16 %v422
  %v2057 = vunpack.c.h.b16 %v422
  %v2058 = vunpack.c.l.b16 %v423
  %v2059 = vunpack.c.h.b16 %v423
  %v2060 = vunpack.c.l.b16 %v424
  %v2061 = vunpack.c.h.b16 %v424
  %v2062 = vunpack.c.l.b16 %v425
  %v2063 = vunpack.c.h.b16 %v425
  %v2064 = vunpack.c.l.b16 %v426
  %v2065 = vunpack.c.h.b16 %v426
  %v2066 = vunpack.c.l.b16 %v427
  %v2067 = vunpack.c.h.b16 %v427
  %v2068 = vunpack.c.l.b16 %v428
  %v2069 = vunpack.c.h.b16 %v428
  %v2070 = vunpack.c.l.b16 %v429
  %v2071 = vunpack.c.h.b16 %v429
  %v2072 = vunpack.c.l.b16 %v430
  %v2073 = vunpack.c.h.b16 %v430
  %v2074 = vunpack.c.l.b16 %v431
  %v2075 = vunpack.c.h.b16 %v431
  %v2076 = vunpack.c.l.b16 %v432
  %v2077 = vunpack.c.h.b16 %v432
  %v2078 = vunpack.c.l.b16 %v433
  %v2079 = vunpack.c.h.b16 %v433
  %v2080 = vunpack.c.l.b16 %v434
  %v2081 = vunpack.c.h.b16 %v434
  %v2082 = vunpack.c.l.b16 %v435
  %v2083 = vunpack.c.h.b16 %v435
  %v2084 = vunpack.c.l.b16 %v436
  %v2085 = vunpack.c.h.b16 %v436
  %v2086 = vunpack.c.l.b16 %v437
  %v2087 = vunpack.c.h.b16 %v437
  %v2088 = vunpack.c.l.b16 %v438
  %v2089 = vunpack.c.h.b16 %v438
  %v2090 = vunpack.c.l.b16 %v439
  %v2091 = vunpack.c.h.b16 %v439
  %v2092 = vunpack.c.l.b16 %v440
  %v2093 = vunpack.c.h.b16 %v440
  %v2094 = vunpack.c.l.b16 %v441
  %v2095 = vunpack.c.h.b16 %v441
  %v2096 = vunpack.c.l.b16 %v442
  %v2097 = vunpack.c.h.b16 %v442
  %v2098 = vunpack.c.l.b16 %v443
  %v2099 = vunpack.c.h.b16 %v443
  %v2100 = vunpack.c.l.b16 %v444
  %v2101 = vunpack.c.h.b16 %v444
  %v2102 = vunpack.c.l.b16 %v445
  %v2103 = vunpack.c.h.b16 %v445
  %v2104 = vunpack.c.l.b16 %v446
  %v2105 = vunpack.c.h.b16 %v446
  %v2106 = vunpack.c.l.b16 %v447
  %v2107 = vunpack.c.h.b16 %v447
  %v2108 = vunpack.c.l.b16 %v448
  %v2109 = vunpack.c.h.b16 %v448
  %v2110 = vunpack.c.l.b16 %v449
  %v2111 = vunpack.c.h.b16 %v449
  %v2112 = vunpack.c.l.b16 %v450
  %v2113 = vunpack.c.h.b16 %v450
  %v2114 = vunpack.c.l.b16 %v451
  %v2115 = vunpack.c.h.b16 %v451
  %v2116 = vunpack.c.l.b16 %v452
  %v2117 = vunpack.c.h.b16 %v452
  %v2118 = vunpack.c.l.b16 %v453
  %v2119 = vunpack.c.h.b16 %v453
  %v2120 = vunpack.c.l.b16 %v454
  %v2121 = vunpack.c.h.b16 %v454
  %v2122 = vunpack.c.l.b16 %v455
  %v2123 = vunpack.c.h.b16 %v455
  %v2124 = vunpack.c.l.b16 %v456
  %v2125 = vunpack.c.h.b16 %v456
  %v2126 = vunpack.c.l.b16 %v457
  %v2127 = vunpack.c.h.b16 %v457
  %v2128 = vunpack.c.l.b16 %v458
  %v2129 = vunpack.c.h.b16 %v458
  %v2130 = vunpack.c.l.b16 %v459
  %v2131 = vunpack.c.h.b16 %v459
  %v2132 = vunpack.c.l.b16 %v460
  %v2133 = vunpack.c.h.b16 %v460
  %v2134 = vunpack.c.l.b16 %v461
  %v2135 = vunpack.c.h.b16 %v461
  %v2136 = vunpack.c.l.b16 %v462
  %v2137 = vunpack.c.h.b16 %v462
  %v2138 = vunpack.c.l.b16 %v463
  %v2139 = vunpack.c.h.b16 %v463
  %v2140 = vunpack.c.l.b16 %v464
  %v2141 = vunpack.c.h.b16 %v464
  %v2142 = vunpack.c.l.b16 %v465
  %v2143 = vunpack.c.h.b16 %v465
  %v2144 = vunpack.c.l.b16 %v466
  %v2145 = vunpack.c.h.b16 %v466
  %v2146 = vunpack.c.l.b16 %v467
  %v2147 = vunpack.c.h.b16 %v467
  %v2148 = vunpack.c.l.b16 %v468
  %v2149 = vunpack.c.h.b16 %v468
  %v2150 = vunpack.c.l.b16 %v469
  %v2151 = vunpack.c.h.b16 %v469
  %v2152 = vunpack.c.l.b16 %v470
  %v2153 = vunpack.c.h.b16 %v470
  %v2154 = vunpack.c.l.b16 %v471
  %v2155 = vunpack.c.h.b16 %v471
  %v2156 = vunpack.c.l.b16 %v472
  %v2157 = vunpack.c.h.b16 %v472
  %v2158 = vunpack.c.l.b16 %v473
  %v2159 = vunpack.c.h.b16 %v473
  %v2160 = vunpack.c.l.b16 %v474
  %v2161 = vunpack.c.h.b16 %v474
  %v2162 = vunpack.c.l.b16 %v475
  %v2163 = vunpack.c.h.b16 %v475
  %v2164 = vunpack.c.l.b16 %v476
  %v2165 = vunpack.c.h.b16 %v476
  %v2166 = vunpack.c.l.b16 %v477
  %v2167 = vunpack.c.h.b16 %v477
  %v2168 = vunpack.c.l.b16 %v478
  %v2169 = vunpack.c.h.b16 %v478
  %v2170 = vunpack.c.l.b16 %v479
  %v2171 = vunpack.c.h.b16 %v479
  %v2172 = vunpack.c.l.b16 %v480
  %v2173 = vunpack.c.h.b16 %v480
  %v2174 = vunpack.c.l.b16 %v481
  %v2175 = vunpack.c.h.b16 %v481
  %v2176 = vunpack.c.l.b16 %v482
  %v2177 = vunpack.c.h.b16 %v482
  %v2178 = vunpack.c.l.b16 %v483
  %v2179 = vunpack.c.h.b16 %v483
  %v2180 = vunpack.c.l.b16 %v484
  %v2181 = vunpack.c.h.b16 %v484
  %v2182 = vunpack.c.l.b16 %v485
  %v2183 = vunpack.c.h.b16 %v485
  %v2184 = vunpack.c.l.b16 %v486
  %v2185 = vunpack.c.h.b16 %v486
  %v2186 = vunpack.c.l.b16 %v487
  %v2187 = vunpack.c.h.b16 %v487
  %v2188 = vunpack.c.l.b16 %v488
  %v2189 = vunpack.c.h.b16 %v488
  %v2190 = vunpack.c.l.b16 %v489
  %v2191 = vunpack.c.h.b16 %v489
  %v2192 = vunpack.c.l.b16 %v490
  %v2193 = vunpack.c.h.b16 %v490
  %v2194 = vunpack.c.l.b16 %v491
  %v2195 = vunpack.c.h.b16 %v491
  %v2196 = vunpack.c.l.b16 %v492
  %v2197 = vunpack.c.h.b16 %v492
  %v2198 = vunpack.c.l.b16 %v493
  %v2199 = vunpack.c.h.b16 %v493
  %v2200 = vunpack.c.l.b16 %v494
  %v2201 = vunpack.c.h.b16 %v494
  %v2202 = vunpack.c.l.b16 %v495
  %v2203 = vunpack.c.h.b16 %v495
  %v2204 = vunpack.c.l.b16 %v496
  %v2205 = vunpack.c.h.b16 %v496
  %v2206 = vunpack.c.l.b16 %v497
  %v2207 = vunpack.c.h.b16 %v497
  %v2208 = vunpack.c.l.b16 %v498
  %v2209 = vunpack.c.h.b16 %v498
  %v2210 = vunpack.c.l.b16 %v499
  %v2211 = vunpack.c.h.b16 %v499
  %v2212 = vunpack.c.l.b16 %v500
  %v2213 = vunpack.c.h.b16 %v500
  %v2214 = vunpack.c.l.b16 %v501
  %v2215 = vunpack.c.h.b16 %v501
  %v2216 = vunpack.c.l.b16 %v502
  %v2217 = vunpack.c.h.b16 %v502
  %v2218 = vunpack.c.l.b16 %v503
  %v2219 = vunpack.c.h.b16 %v503
  %v2220 = vunpack.c.l.b16 %v504
  %v2221 = vunpack.c.h.b16 %v504
  %v2222 = vunpack.c.l.b16 %v505
  %v2223 = vunpack.c.h.b16 %v505
  %v2224 = vunpack.c.l.b16 %v506
  %v2225 = vunpack.c.h.b16 %v506
  %v2226 = vunpack.c.l.b16 %v507
  %v2227 = vunpack.c.h.b16 %v507
  %v2228 = vunpack.c.l.b16 %v508
  %v2229 = vunpack.c.h.b16 %v508
  %v2230 = vunpack.c.l.b16 %v509
  %v2231 = vunpack.c.h.b16 %v509
  %v2232 = vunpack.c.l.b16 %v510
  %v2233 = vunpack.c.h.b16 %v510
  %v2234 = vunpack.c.l.b16 %v511
  %v2235 = vunpack.c.h.b16 %v511
  %v2236 = vunpack.c.l.b16 %v512
  %v2237 = vunpack.c.h.b16 %v512
  %v2238 = vunpack.c.l.b16 %v513
  %v2239 = vunpack.c.h.b16 %v513
  %v2240 = vunpack.c.l.b16 %v514
  %v2241 = vunpack.c.h.b16 %v514
  %v2242 = vunpack.c.l.b16 %v515
  %v2243 = vunpack.c.h.b16 %v515
  %v2244 = vunpack.c.l.b16 %v516
  %v2245 = vunpack.c.h.b16 %v516
  %v2246 = vunpack.c.l.b16 %v517
  %v2247 = vunpack.c.h.b16 %v517
  %v2248 = vunpack.c.l.b16 %v518
  %v2249 = vunpack.c.h.b16 %v518
  %v2250 = vunpack.c.l.b16 %v519
  %v2251 = vunpack.c.h.b16 %v519
  %v2252 = vunpack.c.l.b16 %v520
  %v2253 = vunpack.c.h.b16 %v520
  %v2254 = vunpack.c.l.b16 %v521
  %v2255 = vunpack.c.h.b16 %v521
  %v2256 = vunpack.c.l.b16 %v522
  %v2257 = vunpack.c.h.b16 %v522
  %v2258 = vunpack.c.l.b16 %v523
  %v2259 = vunpack.c.h.b16 %v523
  %v2260 = vunpack.c.l.b16 %v524
  %v2261 = vunpack.c.h.b16 %v524
  %v2262 = vunpack.c.l.b16 %v525
  %v2263 = vunpack.c.h.b16 %v525
  %v2264 = vunpack.c.l.b16 %v526
  %v2265 = vunpack.c.h.b16 %v526
  %v2266 = vunpack.c.l.b16 %v527
  %v2267 = vunpack.c.h.b16 %v527
  %v2268 = vunpack.c.l.b16 %v528
  %v2269 = vunpack.c.h.b16 %v528
  %v2270 = vunpack.c.l.b16 %v529
  %v2271 = vunpack.c.h.b16 %v529
  %v2272 = vunpack.c.l.b16 %v530
  %v2273 = vunpack.c.h.b16 %v530
  %v2274 = vunpack.c.l.b16 %v531
  %v2275 = vunpack.c.h.b16 %v531
  %v2276 = vunpack.c.l.b16 %v532
  %v2277 = vunpack.c.h.b16 %v532
  %v2278 = vunpack.c.l.b16 %v533
  %v2279 = vunpack.c.h.b16 %v533
  %v2280 = vunpack.c.l.b16 %v534
  %v2281 = vunpack.c.h.b16 %v534
  %v2282 = vunpack.c.l.b16 %v535
  %v2283 = vunpack.c.h.b16 %v535
  %v2284 = vunpack.c.l.b16 %v536
  %v2285 = vunpack.c.h.b16 %v536
  %v2286 = vunpack.c.l.b16 %v537
  %v2287 = vunpack.c.h.b16 %v537
  %v2288 = vunpack.c.l.b16 %v538
  %v2289 = vunpack.c.h.b16 %v538
  %v2290 = vunpack.c.l.b16 %v539
  %v2291 = vunpack.c.h.b16 %v539
  %v2292 = vunpack.c.l.b16 %v540
  %v2293 = vunpack.c.h.b16 %v540
  %v2294 = vunpack.c.l.b16 %v541
  %v2295 = vunpack.c.h.b16 %v541
  %v2296 = vunpack.c.l.b16 %v542
  %v2297 = vunpack.c.h.b16 %v542
  %v2298 = vunpack.c.l.b16 %v543
  %v2299 = vunpack.c.h.b16 %v543
  %v2300 = vunpack.c.l.b16 %v544
  %v2301 = vunpack.c.h.b16 %v544
  %v2302 = vunpack.c.l.b16 %v545
  %v2303 = vunpack.c.h.b16 %v545
  %v2304 = vunpack.c.l.b16 %v546
  %v2305 = vunpack.c.h.b16 %v546
  %v2306 = vunpack.c.l.b16 %v547
  %v2307 = vunpack.c.h.b16 %v547
  %v2308 = vunpack.c.l.b16 %v548
  %v2309 = vunpack.c.h.b16 %v548
  %v2310 = vunpack.c.l.b16 %v549
  %v2311 = vunpack.c.h.b16 %v549
  %v2312 = vunpack.c.l.b16 %v550
  %v2313 = vunpack.c.h.b16 %v550
  %v2314 = vunpack.c.l.b16 %v551
  %v2315 = vunpack.c.h.b16 %v551
  %v2316 = vunpack.c.l.b16 %v552
  %v2317 = vunpack.c.h.b16 %v552
  %v2318 = vunpack.c.l.b16 %v553
  %v2319 = vunpack.c.h.b16 %v553
  %v2320 = vunpack.c.l.b16 %v554
  %v2321 = vunpack.c.h.b16 %v554
  %v2322 = vunpack.c.l.b16 %v555
  %v2323 = vunpack.c.h.b16 %v555
  %v2324 = vunpack.c.l.b16 %v556
  %v2325 = vunpack.c.h.b16 %v556
  %v2326 = vunpack.c.l.b16 %v557
  %v2327 = vunpack.c.h.b16 %v557
  %v2328 = vunpack.c.l.b16 %v558
  %v2329 = vunpack.c.h.b16 %v558
  %v2330 = vunpack.c.l.b16 %v559
  %v2331 = vunpack.c.h.b16 %v559
  %v2332 = vunpack.c.l.b16 %v560
  %v2333 = vunpack.c.h.b16 %v560
  %v2334 = vunpack.c.l.b16 %v561
  %v2335 = vunpack.c.h.b16 %v561
  %v2336 = vunpack.c.l.b16 %v562
  %v2337 = vunpack.c.h.b16 %v562
  %v2338 = vunpack.c.l.b16 %v563
  %v2339 = vunpack.c.h.b16 %v563
  %v2340 = vunpack.c.l.b16 %v564
  %v2341 = vunpack.c.h.b16 %v564
  %v2342 = vunpack.c.l.b16 %v565
  %v2343 = vunpack.c.h.b16 %v565
  %v2344 = vunpack.c.l.b16 %v566
  %v2345 = vunpack.c.h.b16 %v566
  %v2346 = vunpack.c.l.b16 %v567
  %v2347 = vunpack.c.h.b16 %v567
  %v2348 = vunpack.c.l.b16 %v568
  %v2349 = vunpack.c.h.b16 %v568
  %v2350 = vunpack.c.l.b16 %v569
  %v2351 = vunpack.c.h.b16 %v569
  %v2352 = vunpack.c.l.b16 %v570
  %v2353 = vunpack.c.h.b16 %v570
  %v2354 = vunpack.c.l.b16 %v571
  %v2355 = vunpack.c.h.b16 %v571
  %v2356 = vunpack.c.l.b16 %v572
  %v2357 = vunpack.c.h.b16 %v572
  %v2358 = vunpack.c.l.b16 %v573
  %v2359 = vunpack.c.h.b16 %v573
  %v2360 = vunpack.c.l.b16 %v574
  %v2361 = vunpack.c.h.b16 %v574
  %v2362 = vunpack.c.l.b16 %v575
  %v2363 = vunpack.c.h.b16 %v575
  %v2364 = vunpack.c.l.b16 %v576
  %v2365 = vunpack.c.h.b16 %v576
  %v2366 = vunpack.c.l.b16 %v577
  %v2367 = vunpack.c.h.b16 %v577
  %v2368 = vunpack.c.l.b16 %v578
  %v2369 = vunpack.c.h.b16 %v578
  %v2370 = vunpack.c.l.b16 %v579
  %v2371 = vunpack.c.h.b16 %v579
  %v2372 = vunpack.c.l.b16 %v580
  %v2373 = vunpack.c.h.b16 %v580
  %v2374 = vunpack.c.l.b16 %v581
  %v2375 = vunpack.c.h.b16 %v581
  %v2376 = vunpack.c.l.b16 %v582
  %v2377 = vunpack.c.h.b16 %v582
  %v2378 = vunpack.c.l.b16 %v583
  %v2379 = vunpack.c.h.b16 %v583
  %v2380 = vunpack.c.l.b16 %v584
  %v2381 = vunpack.c.h.b16 %v584
  %v2382 = vunpack.c.l.b16 %v585
  %v2383 = vunpack.c.h.b16 %v585
  %v2384 = vunpack.c.l.b16 %v586
  %v2385 = vunpack.c.h.b16 %v586
  %v2386 = vunpack.c.l.b16 %v587
  %v2387 = vunpack.c.h.b16 %v587
  %v2388 = vunpack.c.l.b16 %v588
  %v2389 = vunpack.c.h.b16 %v588
  %v2390 = vunpack.c.l.b16 %v589
  %v2391 = vunpack.c.h.b16 %v589
  %v2392 = vunpack.c.l.b16 %v590
  %v2393 = vunpack.c.h.b16 %v590
  %v2394 = vunpack.c.l.b16 %v591
  %v2395 = vunpack.c.h.b16 %v591
  %v2396 = vunpack.c.l.b16 %v592
  %v2397 = vunpack.c.h.b16 %v592
  %v2398 = vunpack.c.l.b16 %v593
  %v2399 = vunpack.c.h.b16 %v593
  %v2400 = vunpack.c.l.b16 %v594
  %v2401 = vunpack.c.h.b16 %v594
  %v2402 = vunpack.c.l.b16 %v595
  %v2403 = vunpack.c.h.b16 %v595
  %v2404 = vunpack.c.l.b16 %v596
  %v2405 = vunpack.c.h.b16 %v596
  %v2406 = vunpack.c.l.b16 %v597
  %v2407 = vunpack.c.h.b16 %v597
  %v2408 = vunpack.c.l.b16 %v598
  %v2409 = vunpack.c.h.b16 %v598
  %v2410 = vunpack.c.l.b16 %v599
  %v2411 = vunpack.c.h.b16 %v599
  %v2412 = vunpack.c.l.b16 %v600
  %v2413 = vunpack.c.h.b16 %v600
  %v2414 = vpack.c.b16 %v1266, %v1262
  %v2415 = vpack.c.b16 %v1267, %v1263
  %v2416 = vpack.c.b16 %v1268, %v1264
  %v2417 = vpack.c.b16 %v1269, %v1265
  %v2418 = vpack.c.b16 %v1274, %v1270
  %v2419 = vpack.c.b16 %v1275, %v1271
  %v2420 = vpack.c.b16 %v1276, %v1272
  %v2421 = vpack.c.b16 %v1277, %v1273
  %v2422 = vpack.c.b16 %v1282, %v1278
  %v2423 = vpack.c.b16 %v1283, %v1279
  %v2424 = vpack.c.b16 %v1284, %v1280
  %v2425 = vpack.c.b16 %v1285, %v1281
  %v2426 = vpack.c.b16 %v1290, %v1286
  %v2427 = vpack.c.b16 %v1291, %v1287
  %v2428 = vpack.c.b16 %v1292, %v1288
  %v2429 = vpack.c.b16 %v1293, %v1289
  %v2430 = vpack.c.b16 %v1298, %v1294
  %v2431 = vpack.c.b16 %v1299, %v1295
  %v2432 = vpack.c.b16 %v1300, %v1296
  %v2433 = vpack.c.b16 %v1301, %v1297
  %v2434 = vpack.c.b16 %v1306, %v1302
  %v2435 = vpack.c.b16 %v1307, %v1303
  %v2436 = vpack.c.b16 %v1308, %v1304
  %v2437 = vpack.c.b16 %v1309, %v1305
  %v2438 = vpack.c.b16 %v1314, %v1310
  %v2439 = vpack.c.b16 %v1315, %v1311
  %v2440 = vpack.c.b16 %v1316, %v1312
  %v2441 = vpack.c.b16 %v1317, %v1313
  %v2442 = vpack.c.b16 %v1322, %v1318
  %v2443 = vpack.c.b16 %v1323, %v1319
  %v2444 = vpack.c.b16 %v1324, %v1320
  %v2445 = vpack.c.b16 %v1325, %v1321
  %v2446 = vpack.c.b16 %v1330, %v1326
  %v2447 = vpack.c.b16 %v1331, %v1327
  %v2448 = vpack.c.b16 %v1332, %v1328
  %v2449 = vpack.c.b16 %v1333, %v1329
  %v2450 = vpack.c.b16 %v1338, %v1334
  %v2451 = vpack.c.b16 %v1339, %v1335
  %v2452 = vpack.c.b16 %v1340, %v1336
  %v2453 = vpack.c.b16 %v1341, %v1337
  %v2454 = vpack.c.b16 %v1346, %v1342
  %v2455 = vpack.c.b16 %v1347, %v1343
  %v2456 = vpack.c.b16 %v1348, %v1344
  %v2457 = vpack.c.b16 %v1349, %v1345
  %v2458 = vpack.c.b16 %v1354, %v1350
  %v2459 = vpack.c.b16 %v1355, %v1351
  %v2460 = vpack.c.b16 %v1356, %v1352
  %v2461 = vpack.c.b16 %v1357, %v1353
  %v2462 = vpack.c.b16 %v1362, %v1358
  %v2463 = vpack.c.b16 %v1363, %v1359
  %v2464 = vpack.c.b16 %v1364, %v1360
  %v2465 = vpack.c.b16 %v1365, %v1361
  %v2466 = vpack.c.b16 %v1370, %v1366
  %v2467 = vpack.c.b16 %v1371, %v1367
  %v2468 = vpack.c.b16 %v1372, %v1368
  %v2469 = vpack.c.b16 %v1373, %v1369
  %v2470 = vpack.c.b16 %v1378, %v1374
  %v2471 = vpack.c.b16 %v1379, %v1375
  %v2472 = vpack.c.b16 %v1380, %v1376
  %v2473 = vpack.c.b16 %v1381, %v1377
  %v2474 = vpack.c.b16 %v1386, %v1382
  %v2475 = vpack.c.b16 %v1387, %v1383
  %v2476 = vpack.c.b16 %v1388, %v1384
  %v2477 = vpack.c.b16 %v1389, %v1385
  %v2478 = vpack.c.b16 %v1394, %v1390
  %v2479 = vpack.c.b16 %v1395, %v1391
  %v2480 = vpack.c.b16 %v1396, %v1392
  %v2481 = vpack.c.b16 %v1397, %v1393
  %v2482 = vpack.c.b16 %v1402, %v1398
  %v2483 = vpack.c.b16 %v1403, %v1399
  %v2484 = vpack.c.b16 %v1404, %v1400
  %v2485 = vpack.c.b16 %v1405, %v1401
  %v2486 = vpack.c.b16 %v1410, %v1406
  %v2487 = vpack.c.b16 %v1411, %v1407
  %v2488 = vpack.c.b16 %v1412, %v1408
  %v2489 = vpack.c.b16 %v1413, %v1409
  %v2490 = vpack.c.b16 %v1418, %v1414
  %v2491 = vpack.c.b16 %v1419, %v1415
  %v2492 = vpack.c.b16 %v1420, %v1416
  %v2493 = vpack.c.b16 %v1421, %v1417
  %v2494 = vpack.c.b16 %v1426, %v1422
  %v2495 = vpack.c.b16 %v1427, %v1423
  %v2496 = vpack.c.b16 %v1428, %v1424
  %v2497 = vpack.c.b16 %v1429, %v1425
  %v2498 = vpack.c.b16 %v1434, %v1430
  %v2499 = vpack.c.b16 %v1435, %v1431
  %v2500 = vpack.c.b16 %v1436, %v1432
  %v2501 = vpack.c.b16 %v1437, %v1433
  %v2502 = vpack.c.b16 %v1442, %v1438
  %v2503 = vpack.c.b16 %v1443, %v1439
  %v2504 = vpack.c.b16 %v1444, %v1440
  %v2505 = vpack.c.b16 %v1445, %v1441
  %v2506 = vpack.c.b16 %v1450, %v1446
  %v2507 = vpack.c.b16 %v1451, %v1447
  %v2508 = vpack.c.b16 %v1452, %v1448
  %v2509 = vpack.c.b16 %v1453, %v1449
  %v2510 = vpack.c.b16 %v1458, %v1454
  %v2511 = vpack.c.b16 %v1459, %v1455
  %v2512 = vpack.c.b16 %v1460, %v1456
  %v2513 = vpack.c.b16 %v1461, %v1457
  %v2514 = vpack.c.b16 %v1466, %v1462
  %v2515 = vpack.c.b16 %v1467, %v1463
  %v2516 = vpack.c.b16 %v1468, %v1464
  %v2517 = vpack.c.b16 %v1469, %v1465
  %v2518 = vpack.c.b16 %v1474, %v1470
  %v2519 = vpack.c.b16 %v1475, %v1471
  %v2520 = vpack.c.b16 %v1476, %v1472
  %v2521 = vpack.c.b16 %v1477, %v1473
  %v2522 = vpack.c.b16 %v1482, %v1478
  %v2523 = vpack.c.b16 %v1483, %v1479
  %v2524 = vpack.c.b16 %v1484, %v1480
  %v2525 = vpack.c.b16 %v1485, %v1481
  %v2526 = vpack.c.b16 %v1490, %v1486
  %v2527 = vpack.c.b16 %v1491, %v1487
  %v2528 = vpack.c.b16 %v1492, %v1488
  %v2529 = vpack.c.b16 %v1493, %v1489
  %v2530 = vpack.c.b16 %v1498, %v1494
  %v2531 = vpack.c.b16 %v1499, %v1495
  %v2532 = vpack.c.b16 %v1500, %v1496
  %v2533 = vpack.c.b16 %v1501, %v1497
  %v2534 = vpack.c.b16 %v1506, %v1502
  %v2535 = vpack.c.b16 %v1507, %v1503
  %v2536 = vpack.c.b16 %v1508, %v1504
  %v2537 = vpack.c.b16 %v1509, %v1505
  %v2538 = vpack.c.b16 %v1514, %v1510
  %v2539 = vpack.c.b16 %v1515, %v1511
  %v2540 = vpack.c.b16 %v1516, %v1512
  %v2541 = vpack.c.b16 %v1517, %v1513
  %v2542 = vpack.c.b16 %v1522, %v1518
  %v2543 = vpack.c.b16 %v1523, %v1519
  %v2544 = vpack.c.b16 %v1524, %v1520
  %v2545 = vpack.c.b16 %v1525, %v1521
  %v2546 = vpack.c.b16 %v1530, %v1526
  %v2547 = vpack.c.b16 %v1531, %v1527
  %v2548 = vpack.c.b16 %v1532, %v1528
  %v2549 = vpack.c.b16 %v1533, %v1529
  %v2550 = vpack.c.b16 %v1538, %v1534
  %v2551 = vpack.c.b16 %v1539, %v1535
  %v2552 = vpack.c.b16 %v1540, %v1536
  %v2553 = vpack.c.b16 %v1541, %v1537
  %v2554 = vpack.c.b16 %v1546, %v1542
  %v2555 = vpack.c.b16 %v1547, %v1543
  %v2556 = vpack.c.b16 %v1548, %v1544
  %v2557 = vpack.c.b16 %v1549, %v1545
  %v2558 = vpack.c.b16 %v1554, %v1550
  %v2559 = vpack.c.b16 %v1555, %v1551
  %v2560 = vpack.c.b16 %v1556, %v1552
  %v2561 = vpack.c.b16 %v1557, %v1553
  %v2562 = vpack.c.b16 %v1562, %v1558
  %v2563 = vpack.c.b16 %v1563, %v1559
  %v2564 = vpack.c.b16 %v1564, %v1560
  %v2565 = vpack.c.b16 %v1565, %v1561
  %v2566 = vpack.c.b16 %v1570, %v1566
  %v2567 = vpack.c.b16 %v1571, %v1567
  %v2568 = vpack.c.b16 %v1572, %v1568
  %v2569 = vpack.c.b16 %v1573, %v1569
  %v2570 = vpack.c.b16 %v1578, %v1574
  %v2571 = vpack.c.b16 %v1579, %v1575
  %v2572 = vpack.c.b16 %v1580, %v1576
  %v2573 = vpack.c.b16 %v1581, %v1577
  %v2574 = vpack.c.b16 %v1586, %v1582
  %v2575 = vpack.c.b16 %v1587, %v1583
  %v2576 = vpack.c.b16 %v1588, %v1584
  %v2577 = vpack.c.b16 %v1589, %v1585
  %v2578 = vpack.c.b16 %v1594, %v1590
  %v2579 = vpack.c.b16 %v1595, %v1591
  %v2580 = vpack.c.b16 %v1596, %v1592
  %v2581 = vpack.c.b16 %v1597, %v1593
  %v2582 = vpack.c.b16 %v1602, %v1598
  %v2583 = vpack.c.b16 %v1603, %v1599
  %v2584 = vpack.c.b16 %v1604, %v1600
  %v2585 = vpack.c.b16 %v1605, %v1601
  %v2586 = vpack.c.b16 %v1610, %v1606
  %v2587 = vpack.c.b16 %v1611, %v1607
  %v2588 = vpack.c.b16 %v1612, %v1608
  %v2589 = vpack.c.b16 %v1613, %v1609
  %v2590 = vpack.c.b16 %v1618, %v1614
  %v2591 = vpack.c.b16 %v1619, %v1615
  %v2592 = vpack.c.b16 %v1620, %v1616
  %v2593 = vpack.c.b16 %v1621, %v1617
  %v2594 = vpack.c.b16 %v1626, %v1622
  %v2595 = vpack.c.b16 %v1627, %v1623
  %v2596 = vpack.c.b16 %v1628, %v1624
  %v2597 = vpack.c.b16 %v1629, %v1625
  %v2598 = vpack.c.b16 %v1634, %v1630
  %v2599 = vpack.c.b16 %v1635, %v1631
  %v2600 = vpack.c.b16 %v1636, %v1632
  %v2601 = vpack.c.b16 %v1637, %v1633
  %v2602 = vpack.c.b16 %v1642, %v1638
  %v2603 = vpack.c.b16 %v1643, %v1639
  %v2604 = vpack.c.b16 %v1644, %v1640
  %v2605 = vpack.c.b16 %v1645, %v1641
  %v2606 = vpack.c.b16 %v1650, %v1646
  %v2607 = vpack.c.b16 %v1651, %v1647
  %v2608 = vpack.c.b16 %v1652, %v1648
  %v2609 = vpack.c.b16 %v1653, %v1649
  %v2610 = vpack.c.b16 %v1658, %v1654
  %v2611 = vpack.c.b16 %v1659, %v1655
  %v2612 = vpack.c.b16 %v1660, %v1656
  %v2613 = vpack.c.b16 %v1661, %v1657
  %v2614 = vpack.c.b16 %v1666, %v1662
  %v2615 = vpack.c.b16 %v1667, %v1663
  %v2616 = vpack.c.b16 %v1668, %v1664
  %v2617 = vpack.c.b16 %v1669, %v1665
  %v2618 = vpack.c.b16 %v1674, %v1670
  %v2619 = vpack.c.b16 %v1675, %v1671
  %v2620 = vpack.c.b16 %v1676, %v1672
  %v2621 = vpack.c.b16 %v1677, %v1673
  %v2622 = vpack.c.b16 %v1682, %v1678
  %v2623 = vpack.c.b16 %v1683, %v1679
  %v2624 = vpack.c.b16 %v1684, %v1680
  %v2625 = vpack.c.b16 %v1685, %v1681
  %v2626 = vpack.c.b16 %v1690, %v1686
  %v2627 = vpack.c.b16 %v1691, %v1687
  %v2628 = vpack.c.b16 %v1692, %v1688
  %v2629 = vpack.c.b16 %v1693, %v1689
  %v2630 = vpack.c.b16 %v1698, %v1694
  %v2631 = vpack.c.b16 %v1699, %v1695
  %v2632 = vpack.c.b16 %v1700, %v1696
  %v2633 = vpack.c.b16 %v1701, %v1697
  %v2634 = vpack.c.b16 %v1706, %v1702
  %v2635 = vpack.c.b16 %v1707, %v1703
  %v2636 = vpack.c.b16 %v1708, %v1704
  %v2637 = vpack.c.b16 %v1709, %v1705
  %v2638 = vpack.c.b16 %v1714, %v1710
  %v2639 = vpack.c.b16 %v1715, %v1711
  %v2640 = vpack.c.b16 %v1716, %v1712
  %v2641 = vpack.c.b16 %v1717, %v1713
  %v2642 = vpack.c.b16 %v1722, %v1718
  %v2643 = vpack.c.b16 %v1723, %v1719
  %v2644 = vpack.c.b16 %v1724, %v1720
  %v2645 = vpack.c.b16 %v1725, %v1721
  %v2646 = vpack.c.b16 %v1730, %v1726
  %v2647 = vpack.c.b16 %v1731, %v1727
  %v2648 = vpack.c.b16 %v1732, %v1728
  %v2649 = vpack.c.b16 %v1733, %v1729
  %v2650 = vpack.c.b16 %v1738, %v1734
  %v2651 = vpack.c.b16 %v1739, %v1735
  %v2652 = vpack.c.b16 %v1740, %v1736
  %v2653 = vpack.c.b16 %v1741, %v1737
  %v2654 = vpack.c.b16 %v1746, %v1742
  %v2655 = vpack.c.b16 %v1747, %v1743
  %v2656 = vpack.c.b16 %v1748, %v1744
  %v2657 = vpack.c.b16 %v1749, %v1745
  %v2658 = vpack.c.b16 %v1754, %v1750
  %v2659 = vpack.c.b16 %v1755, %v1751
  %v2660 = vpack.c.b16 %v1756, %v1752
  %v2661 = vpack.c.b16 %v1757, %v1753
  %v2662 = vpack.c.b16 %v1762, %v1758
  %v2663 = vpack.c.b16 %v1763, %v1759
  %v2664 = vpack.c.b16 %v1764, %v1760
  %v2665 = vpack.c.b16 %v1765, %v1761
  %v2666 = vpack.c.b16 %v1770, %v1766
  %v2667 = vpack.c.b16 %v1771, %v1767
  %v2668 = vpack.c.b16 %v1772, %v1768
  %v2669 = vpack.c.b16 %v1773, %v1769
  %v2670 = vpack.c.b16 %v1778, %v1774
  %v2671 = vpack.c.b16 %v1779, %v1775
  %v2672 = vpack.c.b16 %v1780, %v1776
  %v2673 = vpack.c.b16 %v1781, %v1777
  %v2674 = vpack.c.b16 %v1786, %v1782
  %v2675 = vpack.c.b16 %v1787, %v1783
  %v2676 = vpack.c.b16 %v1788, %v1784
  %v2677 = vpack.c.b16 %v1789, %v1785
  %v2678 = vpack.c.b16 %v1794, %v1790
  %v2679 = vpack.c.b16 %v1795, %v1791
  %v2680 = vpack.c.b16 %v1796, %v1792
  %v2681 = vpack.c.b16 %v1797, %v1793
  %v2682 = vpack.c.b16 %v1802, %v1798
  %v2683 = vpack.c.b16 %v1803, %v1799
  %v2684 = vpack.c.b16 %v1804, %v1800
  %v2685 = vpack.c.b16 %v1805, %v1801
  %v2686 = vpack.c.b16 %v1810, %v1806
  %v2687 = vpack.c.b16 %v1811, %v1807
  %v2688 = vpack.c.b16 %v1812, %v1808
  %v2689 = vpack.c.b16 %v1813, %v1809
  %v2690 = vpack.c.b16 %v1818, %v1814
  %v2691 = vpack.c.b16 %v1819, %v1815
  %v2692 = vpack.c.b16 %v1820, %v1816
  %v2693 = vpack.c.b16 %v1821, %v1817
  %v2694 = vpack.c.b16 %v1826, %v1822
  %v2695 = vpack.c.b16 %v1827, %v1823
  %v2696 = vpack.c.b16 %v1828, %v1824
  %v2697 = vpack.c.b16 %v1829, %v1825
  %v2698 = vpack.c.b16 %v1834, %v1830
  %v2699 = vpack.c.b16 %v1835, %v1831
  %v2700 = vpack.c.b16 %v1836, %v1832
  %v2701 = vpack.c.b16 %v1837, %v1833
  %v2702 = vpack.c.b16 %v1842, %v1838
  %v2703 = vpack.c.b16 %v1843, %v1839
  %v2704 = vpack.c.b16 %v1844, %v1840
  %v2705 = vpack.c.b16 %v1845, %v1841
  %v2706 = vpack.c.b16 %v1850, %v1846
  %v2707 = vpack.c.b16 %v1851, %v1847
  %v2708 = vpack.c.b16 %v1852, %v1848
  %v2709 = vpack.c.b16 %v1853, %v1849
  %v2710 = vpack.c.b16 %v1858, %v1854
  %v2711 = vpack.c.b16 %v1859, %v1855
  %v2712 = vpack.c.b16 %v1860, %v1856
  %v2713 = vpack.c.b16 %v1861, %v1857
  %v2714 = vpack.c.b16 %v1866, %v1862
  %v2715 = vpack.c.b16 %v1867, %v1863
  %v2716 = vpack.c.b16 %v1868, %v1864
  %v2717 = vpack.c.b16 %v1869, %v1865
  %v2718 = vpack.c.b16 %v1874, %v1870
  %v2719 = vpack.c.b16 %v1875, %v1871
  %v2720 = vpack.c.b16 %v1876, %v1872
  %v2721 = vpack.c.b16 %v1877, %v1873
  %v2722 = vpack.c.b16 %v1882, %v1878
  %v2723 = vpack.c.b16 %v1883, %v1879
  %v2724 = vpack.c.b16 %v1884, %v1880
  %v2725 = vpack.c.b16 %v1885, %v1881
  %v2726 = vpack.c.b16 %v1890, %v1886
  %v2727 = vpack.c.b16 %v1891, %v1887
  %v2728 = vpack.c.b16 %v1892, %v1888
  %v2729 = vpack.c.b16 %v1893, %v1889
  %v2730 = vpack.c.b16 %v1898, %v1894
  %v2731 = vpack.c.b16 %v1899, %v1895
  %v2732 = vpack.c.b16 %v1900, %v1896
  %v2733 = vpack.c.b16 %v1901, %v1897
  %v2734 = vpack.c.b16 %v1906, %v1902
  %v2735 = vpack.c.b16 %v1907, %v1903
  %v2736 = vpack.c.b16 %v1908, %v1904
  %v2737 = vpack.c.b16 %v1909, %v1905
  %v2738 = vpack.c.b16 %v1914, %v1910
  %v2739 = vpack.c.b16 %v1915, %v1911
  %v2740 = vpack.c.b16 %v1916, %v1912
  %v2741 = vpack.c.b16 %v1917, %v1913
  %v2742 = vpack.c.b16 %v1922, %v1918
  %v2743 = vpack.c.b16 %v1923, %v1919
  %v2744 = vpack.c.b16 %v1924, %v1920
  %v2745 = vpack.c.b16 %v1925, %v1921
  %v2746 = vpack.c.b16 %v1930, %v1926
  %v2747 = vpack.c.b16 %v1931, %v1927
  %v2748 = vpack.c.b16 %v1932, %v1928
  %v2749 = vpack.c.b16 %v1933, %v1929
  %v2750 = vpack.c.b16 %v1938, %v1934
  %v2751 = vpack.c.b16 %v1939, %v1935
  %v2752 = vpack.c.b16 %v1940, %v1936
  %v2753 = vpack.c.b16 %v1941, %v1937
  %v2754 = vpack.c.b16 %v1946, %v1942
  %v2755 = vpack.c.b16 %v1947, %v1943
  %v2756 = vpack.c.b16 %v1948, %v1944
  %v2757 = vpack.c.b16 %v1949, %v1945
  %v2758 = vpack.c.b16 %v1954, %v1950
  %v2759 = vpack.c.b16 %v1955, %v1951
  %v2760 = vpack.c.b16 %v1956, %v1952
  %v2761 = vpack.c.b16 %v1957, %v1953
  %v2762 = vpack.c.b16 %v1962, %v1958
  %v2763 = vpack.c.b16 %v1963, %v1959
  %v2764 = vpack.c.b16 %v1964, %v1960
  %v2765 = vpack.c.b16 %v1965, %v1961
  %v2766 = vpack.c.b16 %v1970, %v1966
  %v2767 = vpack.c.b16 %v1971, %v1967
  %v2768 = vpack.c.b16 %v1972, %v1968
  %v2769 = vpack.c.b16 %v1973, %v1969
  %v2770 = vpack.c.b16 %v1978, %v1974
  %v2771 = vpack.c.b16 %v1979, %v1975
  %v2772 = vpack.c.b16 %v1980, %v1976
  %v2773 = vpack.c.b16 %v1981, %v1977
  %v2774 = vpack.c.b16 %v1986, %v1982
  %v2775 = vpack.c.b16 %v1987, %v1983
  %v2776 = vpack.c.b16 %v1988, %v1984
  %v2777 = vpack.c.b16 %v1989, %v1985
  %v2778 = vpack.c.b16 %v1994, %v1990
  %v2779 = vpack.c.b16 %v1995, %v1991
  %v2780 = vpack.c.b16 %v1996, %v1992
  %v2781 = vpack.c.b16 %v1997, %v1993
  %v2782 = vpack.c.b16 %v2002, %v1998
  %v2783 = vpack.c.b16 %v2003, %v1999
  %v2784 = vpack.c.b16 %v2004, %v2000
  %v2785 = vpack.c.b16 %v2005, %v2001
  %v2786 = vpack.c.b16 %v2010, %v2006
  %v2787 = vpack.c.b16 %v2011, %v2007
  %v2788 = vpack.c.b16 %v2012, %v2008
  %v2789 = vpack.c.b16 %v2013, %v2009
  %v2790 = vpack.c.b16 %v2018, %v2014
  %v2791 = vpack.c.b16 %v2019, %v2015
  %v2792 = vpack.c.b16 %v2020, %v2016
  %v2793 = vpack.c.b16 %v2021, %v2017
  %v2794 = vpack.c.b16 %v2026, %v2022
  %v2795 = vpack.c.b16 %v2027, %v2023
  %v2796 = vpack.c.b16 %v2028, %v2024
  %v2797 = vpack.c.b16 %v2029, %v2025
  %v2798 = vpack.c.b16 %v2034, %v2030
  %v2799 = vpack.c.b16 %v2035, %v2031
  %v2800 = vpack.c.b16 %v2036, %v2032
  %v2801 = vpack.c.b16 %v2037, %v2033
  %v2802 = vpack.c.b16 %v2042, %v2038
  %v2803 = vpack.c.b16 %v2043, %v2039
  %v2804 = vpack.c.b16 %v2044, %v2040
  %v2805 = vpack.c.b16 %v2045, %v2041
  %v2806 = vpack.c.b16 %v2050, %v2046
  %v2807 = vpack.c.b16 %v2051, %v2047
  %v2808 = vpack.c.b16 %v2052, %v2048
  %v2809 = vpack.c.b16 %v2053, %v2049
  %v2810 = vpack.c.b16 %v2058, %v2054
  %v2811 = vpack.c.b16 %v2059, %v2055
  %v2812 = vpack.c.b16 %v2060, %v2056
  %v2813 = vpack.c.b16 %v2061, %v2057
  %v2814 = vpack.c.b16 %v2066, %v2062
  %v2815 = vpack.c.b16 %v2067, %v2063
  %v2816 = vpack.c.b16 %v2068, %v2064
  %v2817 = vpack.c.b16 %v2069, %v2065
  %v2818 = vpack.c.b16 %v2074, %v2070
  %v2819 = vpack.c.b16 %v2075, %v2071
  %v2820 = vpack.c.b16 %v2076, %v2072
  %v2821 = vpack.c.b16 %v2077, %v2073
  %v2822 = vpack.c.b16 %v2082, %v2078
  %v2823 = vpack.c.b16 %v2083, %v2079
  %v2824 = vpack.c.b16 %v2084, %v2080
  %v2825 = vpack.c.b16 %v2085, %v2081
  %v2826 = vpack.c.b16 %v2090, %v2086
  %v2827 = vpack.c.b16 %v2091, %v2087
  %v2828 = vpack.c.b16 %v2092, %v2088
  %v2829 = vpack.c.b16 %v2093, %v2089
  %v2830 = vpack.c.b16 %v2098, %v2094
  %v2831 = vpack.c.b16 %v2099, %v2095
  %v2832 = vpack.c.b16 %v2100, %v2096
  %v2833 = vpack.c.b16 %v2101, %v2097
  %v2834 = vpack.c.b16 %v2106, %v2102
  %v2835 = vpack.c.b16 %v2107, %v2103
  %v2836 = vpack.c.b16 %v2108, %v2104
  %v2837 = vpack.c.b16 %v2109, %v2105
  %v2838 = vpack.c.b16 %v2114, %v2110
  %v2839 = vpack.c.b16 %v2115, %v2111
  %v2840 = vpack.c.b16 %v2116, %v2112
  %v2841 = vpack.c.b16 %v2117, %v2113
  %v2842 = vpack.c.b16 %v2122, %v2118
  %v2843 = vpack.c.b16 %v2123, %v2119
  %v2844 = vpack.c.b16 %v2124, %v2120
  %v2845 = vpack.c.b16 %v2125, %v2121
  %v2846 = vpack.c.b16 %v2130, %v2126
  %v2847 = vpack.c.b16 %v2131, %v2127
  %v2848 = vpack.c.b16 %v2132, %v2128
  %v2849 = vpack.c.b16 %v2133, %v2129
  %v2850 = vpack.c.b16 %v2138, %v2134
  %v2851 = vpack.c.b16 %v2139, %v2135
  %v2852 = vpack.c.b16 %v2140, %v2136
  %v2853 = vpack.c.b16 %v2141, %v2137
  %v2854 = vpack.c.b16 %v2146, %v2142
  %v2855 = vpack.c.b16 %v2147, %v2143
  %v2856 = vpack.c.b16 %v2148, %v2144
  %v2857 = vpack.c.b16 %v2149, %v2145
  %v2858 = vpack.c.b16 %v2154, %v2150
  %v2859 = vpack.c.b16 %v2155, %v2151
  %v2860 = vpack.c.b16 %v2156, %v2152
  %v2861 = vpack.c.b16 %v2157, %v2153
  %v2862 = vpack.c.b16 %v2162, %v2158
  %v2863 = vpack.c.b16 %v2163, %v2159
  %v2864 = vpack.c.b16 %v2164, %v2160
  %v2865 = vpack.c.b16 %v2165, %v2161
  %v2866 = vpack.c.b16 %v2170, %v2166
  %v2867 = vpack.c.b16 %v2171, %v2167
  %v2868 = vpack.c.b16 %v2172, %v2168
  %v2869 = vpack.c.b16 %v2173, %v2169
  %v2870 = vpack.c.b16 %v2178, %v2174
  %v2871 = vpack.c.b16 %v2179, %v2175
  %v2872 = vpack.c.b16 %v2180, %v2176
  %v2873 = vpack.c.b16 %v2181, %v2177
  %v2874 = vpack.c.b16 %v2186, %v2182
  %v2875 = vpack.c.b16 %v2187, %v2183
  %v2876 = vpack.c.b16 %v2188, %v2184
  %v2877 = vpack.c.b16 %v2189, %v2185
  %v2878 = vpack.c.b16 %v2194, %v2190
  %v2879 = vpack.c.b16 %v2195, %v2191
  %v2880 = vpack.c.b16 %v2196, %v2192
  %v2881 = vpack.c.b16 %v2197, %v2193
  %v2882 = vpack.c.b16 %v2202, %v2198
  %v2883 = vpack.c.b16 %v2203, %v2199
  %v2884 = vpack.c.b16 %v2204, %v2200
  %v2885 = vpack.c.b16 %v2205, %v2201
  %v2886 = vpack.c.b16 %v2210, %v2206
  %v2887 = vpack.c.b16 %v2211, %v2207
  %v2888 = vpack.c.b16 %v2212, %v2208
  %v2889 = vpack.c.b16 %v2213, %v2209
  %v2890 = vpack.c.b16 %v2218, %v2214
  %v2891 = vpack.c.b16 %v2219, %v2215
  %v2892 = vpack.c.b16 %v2220, %v2216
  %v2893 = vpack.c.b16 %v2221, %v2217
  %v2894 = vpack.c.b16 %v2226, %v2222
  %v2895 = vpack.c.b16 %v2227, %v2223
  %v2896 = vpack.c.b16 %v2228, %v2224
  %v2897 = vpack.c.b16 %v2229, %v2225
  %v2898 = vpack.c.b16 %v2234, %v2230
  %v2899 = vpack.c.b16 %v2235, %v2231
  %v2900 = vpack.c.b16 %v2236, %v2232
  %v2901 = vpack.c.b16 %v2237, %v2233
  %v2902 = vpack.c.b16 %v2242, %v2238
  %v2903 = vpack.c.b16 %v2243, %v2239
  %v2904 = vpack.c.b16 %v2244, %v2240
  %v2905 = vpack.c.b16 %v2245, %v2241
  %v2906 = vpack.c.b16 %v2250, %v2246
  %v2907 = vpack.c.b16 %v2251, %v2247
  %v2908 = vpack.c.b16 %v2252, %v2248
  %v2909 = vpack.c.b16 %v2253, %v2249
  %v2910 = vpack.c.b16 %v2258, %v2254
  %v2911 = vpack.c.b16 %v2259, %v2255
  %v2912 = vpack.c.b16 %v2260, %v2256
  %v2913 = vpack.c.b16 %v2261, %v2257
  %v2914 = vpack.c.b16 %v2266, %v2262
  %v2915 = vpack.c.b16 %v2267, %v2263
  %v2916 = vpack.c.b16 %v2268, %v2264
  %v2917 = vpack.c.b16 %v2269, %v2265
  %v2918 = vpack.c.b16 %v2274, %v2270
  %v2919 = vpack.c.b16 %v2275, %v2271
  %v2920 = vpack.c.b16 %v2276, %v2272
  %v2921 = vpack.c.b16 %v2277, %v2273
  %v2922 = vpack.c.b16 %v2282, %v2278
  %v2923 = vpack.c.b16 %v2283, %v2279
  %v2924 = vpack.c.b16 %v2284, %v2280
  %v2925 = vpack.c.b16 %v2285, %v2281
  %v2926 = vpack.c.b16 %v2290, %v2286
  %v2927 = vpack.c.b16 %v2291, %v2287
  %v2928 = vpack.c.b16 %v2292, %v2288
  %v2929 = vpack.c.b16 %v2293, %v2289
  %v2930 = vpack.c.b16 %v2298, %v2294
  %v2931 = vpack.c.b16 %v2299, %v2295
  %v2932 = vpack.c.b16 %v2300, %v2296
  %v2933 = vpack.c.b16 %v2301, %v2297
  %v2934 = vpack.c.b16 %v2306, %v2302
  %v2935 = vpack.c.b16 %v2307, %v2303
  %v2936 = vpack.c.b16 %v2308, %v2304
  %v2937 = vpack.c.b16 %v2309, %v2305
  %v2938 = vpack.c.b16 %v2314, %v2310
  %v2939 = vpack.c.b16 %v2315, %v2311
  %v2940 = vpack.c.b16 %v2316, %v2312
  %v2941 = vpack.c.b16 %v2317, %v2313
  %v2942 = vpack.c.b16 %v2322, %v2318
  %v2943 = vpack.c.b16 %v2323, %v2319
  %v2944 = vpack.c.b16 %v2324, %v2320
  %v2945 = vpack.c.b16 %v2325, %v2321
  %v2946 = vpack.c.b16 %v2330, %v2326
  %v2947 = vpack.c.b16 %v2331, %v2327
  %v2948 = vpack.c.b16 %v2332, %v2328
  %v2949 = vpack.c.b16 %v2333, %v2329
  %v2950 = vpack.c.b16 %v2338, %v2334
  %v2951 = vpack.c.b16 %v2339, %v2335
  %v2952 = vpack.c.b16 %v2340, %v2336
  %v2953 = vpack.c.b16 %v2341, %v2337
  %v2954 = vpack.c.b16 %v2346, %v2342
  %v2955 = vpack.c.b16 %v2347, %v2343
  %v2956 = vpack.c.b16 %v2348, %v2344
  %v2957 = vpack.c.b16 %v2349, %v2345
  %v2958 = vpack.c.b16 %v2354, %v2350
  %v2959 = vpack.c.b16 %v2355, %v2351
  %v2960 = vpack.c.b16 %v2356, %v2352
  %v2961 = vpack.c.b16 %v2357, %v2353
  %v2962 = vpack.c.b16 %v2362, %v2358
  %v2963 = vpack.c.b16 %v2363, %v2359
  %v2964 = vpack.c.b16 %v2364, %v2360
  %v2965 = vpack.c.b16 %v2365, %v2361
  %v2966 = vpack.c.b16 %v2370, %v2366
  %v2967 = vpack.c.b16 %v2371, %v2367
  %v2968 = vpack.c.b16 %v2372, %v2368
  %v2969 = vpack.c.b16 %v2373, %v2369
  %v2970 = vpack.c.b16 %v2378, %v2374
  %v2971 = vpack.c.b16 %v2379, %v2375
  %v2972 = vpack.c.b16 %v2380, %v2376
  %v2973 = vpack.c.b16 %v2381, %v2377
  %v2974 = vpack.c.b16 %v2386, %v2382
  %v2975 = vpack.c.b16 %v2387, %v2383
  %v2976 = vpack.c.b16 %v2388, %v2384
  %v2977 = vpack.c.b16 %v2389, %v2385
  %v2978 = vpack.c.b16 %v2394, %v2390
  %v2979 = vpack.c.b16 %v2395, %v2391
  %v2980 = vpack.c.b16 %v2396, %v2392
  %v2981 = vpack.c.b16 %v2397, %v2393
  %v2982 = vpack.c.b16 %v2402, %v2398
  %v2983 = vpack.c.b16 %v2403, %v2399
  %v2984 = vpack.c.b16 %v2404, %v2400
  %v2985 = vpack.c.b16 %v2405, %v2401
  %v2986 = vpack.c.b16 %v2410, %v2406
  %v2987 = vpack.c.b16 %v2411, %v2407
  %v2988 = vpack.c.b16 %v2412, %v2408
  %v2989 = vpack.c.b16 %v2413, %v2409
  %3566 = vmatprep.subr.bf16.mxu0 %v2443
  %3567 = vmatpush1.bf16.msra.mxu0 %v2442
  %3568 = vmatprep.subr.bf16.mxu0 %v2439
  %3569 = vmatpush1.bf16.msra.mxu0 %v2438
  %3570 = vmatprep.subr.bf16.mxu0 %v2435
  %3571 = vmatpush1.bf16.msra.mxu0 %v2434
  %3572 = vmatprep.subr.bf16.mxu0 %v2431
  %3573 = vmatpush1.bf16.msra.mxu0 %v2430
  %3574 = vmatprep.subr.bf16.mxu0 %v2427
  %3575 = vmatpush1.bf16.msra.mxu0 %v2426
  %3576 = vmatprep.subr.bf16.mxu0 %v2423
  %3577 = vmatpush1.bf16.msra.mxu0 %v2422
  %3578 = vmatprep.subr.bf16.mxu0 %v2419
  %3579 = vmatpush1.bf16.msra.mxu0 %v2418
  %3580 = vmatprep.subr.bf16.mxu0 %v2415
  %3581 = vmatpush1.bf16.msra.mxu0 %v2414
  %3582 = vmatprep.subr.bf16.mxu0 %v2475
  %3583 = vmatpush2.bf16.msra.mxu0 %v2474
  %3584 = vmatprep.subr.bf16.mxu0 %v2471
  %3585 = vmatpush2.bf16.msra.mxu0 %v2470
  %3586 = vmatprep.subr.bf16.mxu0 %v2467
  %3587 = vmatpush2.bf16.msra.mxu0 %v2466
  %3588 = vmatprep.subr.bf16.mxu0 %v2463
  %3589 = vmatpush2.bf16.msra.mxu0 %v2462
  %3590 = vmatprep.subr.bf16.mxu0 %v2459
  %3591 = vmatpush2.bf16.msra.mxu0 %v2458
  %3592 = vmatprep.subr.bf16.mxu0 %v2455
  %3593 = vmatpush2.bf16.msra.mxu0 %v2454
  %3594 = vmatprep.subr.bf16.mxu0 %v2451
  %3595 = vmatpush2.bf16.msra.mxu0 %v2450
  %3596 = vmatprep.subr.bf16.mxu0 %v2447
  %3597 = vmatpush2.bf16.msra.mxu0 %v2446
  %3598 = vmatprep.mubr.bf16.mxu0 %v651
  %3599 = vmatmul.mubr.bf16.gmra.mxu0 %v650
  %v3600 = vpop.f32.mrf.mxu0
  %v3601 = vadd.f32 %v606, %v3600
  %v3602 = vpop.f32.mrf.mxu0
  %v3603 = vadd.f32 %v610, %v3602
  %v3604 = vpop.f32.mrf.mxu0
  %v3605 = vpop.f32.mrf.mxu0
  %3606 = vdwg.mxu0
  %3607 = vmatprep.subr.bf16.mxu0 %v2507
  %3608 = vmatpush1.bf16.msra.mxu0 %v2506
  %3609 = vmatprep.subr.bf16.mxu0 %v2503
  %3610 = vmatpush1.bf16.msra.mxu0 %v2502
  %3611 = vmatprep.subr.bf16.mxu0 %v2499
  %3612 = vmatpush1.bf16.msra.mxu0 %v2498
  %3613 = vmatprep.subr.bf16.mxu0 %v2495
  %3614 = vmatpush1.bf16.msra.mxu0 %v2494
  %3615 = vmatprep.subr.bf16.mxu0 %v2491
  %3616 = vmatpush1.bf16.msra.mxu0 %v2490
  %3617 = vmatprep.subr.bf16.mxu0 %v2487
  %3618 = vmatpush1.bf16.msra.mxu0 %v2486
  %3619 = vmatprep.subr.bf16.mxu0 %v2483
  %3620 = vmatpush1.bf16.msra.mxu0 %v2482
  %3621 = vmatprep.subr.bf16.mxu0 %v2479
  %3622 = vmatpush1.bf16.msra.mxu0 %v2478
  %3623 = vmatprep.subr.bf16.mxu0 %v2539
  %3624 = vmatpush2.bf16.msra.mxu0 %v2538
  %3625 = vmatprep.subr.bf16.mxu0 %v2535
  %3626 = vmatpush2.bf16.msra.mxu0 %v2534
  %3627 = vmatprep.subr.bf16.mxu0 %v2531
  %3628 = vmatpush2.bf16.msra.mxu0 %v2530
  %3629 = vmatprep.subr.bf16.mxu0 %v2527
  %3630 = vmatpush2.bf16.msra.mxu0 %v2526
  %3631 = vmatprep.subr.bf16.mxu0 %v2523
  %3632 = vmatpush2.bf16.msra.mxu0 %v2522
  %3633 = vmatprep.subr.bf16.mxu0 %v2519
  %3634 = vmatpush2.bf16.msra.mxu0 %v2518
  %3635 = vmatprep.subr.bf16.mxu0 %v2515
  %3636 = vmatpush2.bf16.msra.mxu0 %v2514
  %3637 = vmatprep.subr.bf16.mxu0 %v2511
  %3638 = vmatpush2.bf16.msra.mxu0 %v2510
  %3639 = vmatprep.mubr.bf16.mxu0 %v653
  %3640 = vmatmul.mubr.bf16.gmra.mxu0 %v652
  %v3641 = vpop.f32.mrf.mxu0
  %v3642 = vadd.f32 %v3601, %v3641
  %v3643 = vpop.f32.mrf.mxu0
  %v3644 = vadd.f32 %v3603, %v3643
  %v3645 = vpop.f32.mrf.mxu0
  %v3646 = vpop.f32.mrf.mxu0
  %3647 = vdwg.mxu0
  %3648 = vmatprep.subr.bf16.mxu0 %v2571
  %3649 = vmatpush1.bf16.msra.mxu0 %v2570
  %3650 = vmatprep.subr.bf16.mxu0 %v2567
  %3651 = vmatpush1.bf16.msra.mxu0 %v2566
  %3652 = vmatprep.subr.bf16.mxu0 %v2563
  %3653 = vmatpush1.bf16.msra.mxu0 %v2562
  %3654 = vmatprep.subr.bf16.mxu0 %v2559
  %3655 = vmatpush1.bf16.msra.mxu0 %v2558
  %3656 = vmatprep.subr.bf16.mxu0 %v2555
  %3657 = vmatpush1.bf16.msra.mxu0 %v2554
  %3658 = vmatprep.subr.bf16.mxu0 %v2551
  %3659 = vmatpush1.bf16.msra.mxu0 %v2550
  %3660 = vmatprep.subr.bf16.mxu0 %v2547
  %3661 = vmatpush1.bf16.msra.mxu0 %v2546
  %3662 = vmatprep.subr.bf16.mxu0 %v2543
  %3663 = vmatpush1.bf16.msra.mxu0 %v2542
  %3664 = vmatprep.subr.bf16.mxu0 %v2603
  %3665 = vmatpush2.bf16.msra.mxu0 %v2602
  %3666 = vmatprep.subr.bf16.mxu0 %v2599
  %3667 = vmatpush2.bf16.msra.mxu0 %v2598
  %3668 = vmatprep.subr.bf16.mxu0 %v2595
  %3669 = vmatpush2.bf16.msra.mxu0 %v2594
  %3670 = vmatprep.subr.bf16.mxu0 %v2591
  %3671 = vmatpush2.bf16.msra.mxu0 %v2590
  %3672 = vmatprep.subr.bf16.mxu0 %v2587
  %3673 = vmatpush2.bf16.msra.mxu0 %v2586
  %3674 = vmatprep.subr.bf16.mxu0 %v2583
  %3675 = vmatpush2.bf16.msra.mxu0 %v2582
  %3676 = vmatprep.subr.bf16.mxu0 %v2579
  %3677 = vmatpush2.bf16.msra.mxu0 %v2578
  %3678 = vmatprep.subr.bf16.mxu0 %v2575
  %3679 = vmatpush2.bf16.msra.mxu0 %v2574
  %3680 = vmatprep.mubr.bf16.mxu0 %v655
  %3681 = vmatmul.mubr.bf16.gmra.mxu0 %v654
  %v3682 = vpop.f32.mrf.mxu0
  %v3683 = vadd.f32 %v3642, %v3682
  %v3684 = vpop.f32.mrf.mxu0
  %v3685 = vadd.f32 %v3644, %v3684
  %v3686 = vpop.f32.mrf.mxu0
  %v3687 = vpop.f32.mrf.mxu0
  %3688 = vdwg.mxu0
  %3689 = vmatprep.subr.bf16.mxu0 %v2635
  %3690 = vmatpush1.bf16.msra.mxu0 %v2634
  %3691 = vmatprep.subr.bf16.mxu0 %v2631
  %3692 = vmatpush1.bf16.msra.mxu0 %v2630
  %3693 = vmatprep.subr.bf16.mxu0 %v2627
  %3694 = vmatpush1.bf16.msra.mxu0 %v2626
  %3695 = vmatprep.subr.bf16.mxu0 %v2623
  %3696 = vmatpush1.bf16.msra.mxu0 %v2622
  %3697 = vmatprep.subr.bf16.mxu0 %v2619
  %3698 = vmatpush1.bf16.msra.mxu0 %v2618
  %3699 = vmatprep.subr.bf16.mxu0 %v2615
  %3700 = vmatpush1.bf16.msra.mxu0 %v2614
  %3701 = vmatprep.subr.bf16.mxu0 %v2611
  %3702 = vmatpush1.bf16.msra.mxu0 %v2610
  %3703 = vmatprep.subr.bf16.mxu0 %v2607
  %3704 = vmatpush1.bf16.msra.mxu0 %v2606
  %3705 = vmatprep.subr.bf16.mxu0 %v2667
  %3706 = vmatpush2.bf16.msra.mxu0 %v2666
  %3707 = vmatprep.subr.bf16.mxu0 %v2663
  %3708 = vmatpush2.bf16.msra.mxu0 %v2662
  %3709 = vmatprep.subr.bf16.mxu0 %v2659
  %3710 = vmatpush2.bf16.msra.mxu0 %v2658
  %3711 = vmatprep.subr.bf16.mxu0 %v2655
  %3712 = vmatpush2.bf16.msra.mxu0 %v2654
  %3713 = vmatprep.subr.bf16.mxu0 %v2651
  %3714 = vmatpush2.bf16.msra.mxu0 %v2650
  %3715 = vmatprep.subr.bf16.mxu0 %v2647
  %3716 = vmatpush2.bf16.msra.mxu0 %v2646
  %3717 = vmatprep.subr.bf16.mxu0 %v2643
  %3718 = vmatpush2.bf16.msra.mxu0 %v2642
  %3719 = vmatprep.subr.bf16.mxu0 %v2639
  %3720 = vmatpush2.bf16.msra.mxu0 %v2638
  %3721 = vmatprep.mubr.bf16.mxu0 %v657
  %3722 = vmatmul.mubr.bf16.gmra.mxu0 %v656
  %v3723 = vpop.f32.mrf.mxu0
  %v3724 = vadd.f32 %v3683, %v3723
  %v3725 = vpop.f32.mrf.mxu0
  %v3726 = vadd.f32 %v3685, %v3725
  %v3727 = vpop.f32.mrf.mxu0
  %v3728 = vpop.f32.mrf.mxu0
  %3729 = vdwg.mxu0
  %3730 = vmatprep.subr.bf16.mxu0 %v2699
  %3731 = vmatpush1.bf16.msra.mxu0 %v2698
  %3732 = vmatprep.subr.bf16.mxu0 %v2695
  %3733 = vmatpush1.bf16.msra.mxu0 %v2694
  %3734 = vmatprep.subr.bf16.mxu0 %v2691
  %3735 = vmatpush1.bf16.msra.mxu0 %v2690
  %3736 = vmatprep.subr.bf16.mxu0 %v2687
  %3737 = vmatpush1.bf16.msra.mxu0 %v2686
  %3738 = vmatprep.subr.bf16.mxu0 %v2683
  %3739 = vmatpush1.bf16.msra.mxu0 %v2682
  %3740 = vmatprep.subr.bf16.mxu0 %v2679
  %3741 = vmatpush1.bf16.msra.mxu0 %v2678
  %3742 = vmatprep.subr.bf16.mxu0 %v2675
  %3743 = vmatpush1.bf16.msra.mxu0 %v2674
  %3744 = vmatprep.subr.bf16.mxu0 %v2671
  %3745 = vmatpush1.bf16.msra.mxu0 %v2670
  %3746 = vmatprep.subr.bf16.mxu0 %v2731
  %3747 = vmatpush2.bf16.msra.mxu0 %v2730
  %3748 = vmatprep.subr.bf16.mxu0 %v2727
  %3749 = vmatpush2.bf16.msra.mxu0 %v2726
  %3750 = vmatprep.subr.bf16.mxu0 %v2723
  %3751 = vmatpush2.bf16.msra.mxu0 %v2722
  %3752 = vmatprep.subr.bf16.mxu0 %v2719
  %3753 = vmatpush2.bf16.msra.mxu0 %v2718
  %3754 = vmatprep.subr.bf16.mxu0 %v2715
  %3755 = vmatpush2.bf16.msra.mxu0 %v2714
  %3756 = vmatprep.subr.bf16.mxu0 %v2711
  %3757 = vmatpush2.bf16.msra.mxu0 %v2710
  %3758 = vmatprep.subr.bf16.mxu0 %v2707
  %3759 = vmatpush2.bf16.msra.mxu0 %v2706
  %3760 = vmatprep.subr.bf16.mxu0 %v2703
  %3761 = vmatpush2.bf16.msra.mxu0 %v2702
  %3762 = vmatprep.mubr.bf16.mxu0 %v659
  %3763 = vmatmul.mubr.bf16.gmra.mxu0 %v658
  %v3764 = vpop.f32.mrf.mxu0
  %v3765 = vadd.f32 %v3724, %v3764
  %v3766 = vpop.f32.mrf.mxu0
  %v3767 = vadd.f32 %v3726, %v3766
  %v3768 = vpop.f32.mrf.mxu0
  %v3769 = vpop.f32.mrf.mxu0
  %3770 = vdwg.mxu0
  %3771 = vmatprep.subr.bf16.mxu0 %v2763
  %3772 = vmatpush1.bf16.msra.mxu0 %v2762
  %3773 = vmatprep.subr.bf16.mxu0 %v2759
  %3774 = vmatpush1.bf16.msra.mxu0 %v2758
  %3775 = vmatprep.subr.bf16.mxu0 %v2755
  %3776 = vmatpush1.bf16.msra.mxu0 %v2754
  %3777 = vmatprep.subr.bf16.mxu0 %v2751
  %3778 = vmatpush1.bf16.msra.mxu0 %v2750
  %3779 = vmatprep.subr.bf16.mxu0 %v2747
  %3780 = vmatpush1.bf16.msra.mxu0 %v2746
  %3781 = vmatprep.subr.bf16.mxu0 %v2743
  %3782 = vmatpush1.bf16.msra.mxu0 %v2742
  %3783 = vmatprep.subr.bf16.mxu0 %v2739
  %3784 = vmatpush1.bf16.msra.mxu0 %v2738
  %3785 = vmatprep.subr.bf16.mxu0 %v2735
  %3786 = vmatpush1.bf16.msra.mxu0 %v2734
  %3787 = vmatprep.subr.bf16.mxu0 %v2795
  %3788 = vmatpush2.bf16.msra.mxu0 %v2794
  %3789 = vmatprep.subr.bf16.mxu0 %v2791
  %3790 = vmatpush2.bf16.msra.mxu0 %v2790
  %3791 = vmatprep.subr.bf16.mxu0 %v2787
  %3792 = vmatpush2.bf16.msra.mxu0 %v2786
  %3793 = vmatprep.subr.bf16.mxu0 %v2783
  %3794 = vmatpush2.bf16.msra.mxu0 %v2782
  %3795 = vmatprep.subr.bf16.mxu0 %v2779
  %3796 = vmatpush2.bf16.msra.mxu0 %v2778
  %3797 = vmatprep.subr.bf16.mxu0 %v2775
  %3798 = vmatpush2.bf16.msra.mxu0 %v2774
  %3799 = vmatprep.subr.bf16.mxu0 %v2771
  %3800 = vmatpush2.bf16.msra.mxu0 %v2770
  %3801 = vmatprep.subr.bf16.mxu0 %v2767
  %3802 = vmatpush2.bf16.msra.mxu0 %v2766
  %3803 = vmatprep.mubr.bf16.mxu0 %v661
  %3804 = vmatmul.mubr.bf16.gmra.mxu0 %v660
  %v3805 = vpop.f32.mrf.mxu0
  %v3806 = vadd.f32 %v3765, %v3805
  %v3807 = vpop.f32.mrf.mxu0
  %v3808 = vadd.f32 %v3767, %v3807
  %v3809 = vpop.f32.mrf.mxu0
  %v3810 = vpop.f32.mrf.mxu0
  %3811 = vdwg.mxu0
  %3812 = vmatprep.subr.bf16.mxu0 %v2827
  %3813 = vmatpush1.bf16.msra.mxu0 %v2826
  %3814 = vmatprep.subr.bf16.mxu0 %v2823
  %3815 = vmatpush1.bf16.msra.mxu0 %v2822
  %3816 = vmatprep.subr.bf16.mxu0 %v2819
  %3817 = vmatpush1.bf16.msra.mxu0 %v2818
  %3818 = vmatprep.subr.bf16.mxu0 %v2815
  %3819 = vmatpush1.bf16.msra.mxu0 %v2814
  %3820 = vmatprep.subr.bf16.mxu0 %v2811
  %3821 = vmatpush1.bf16.msra.mxu0 %v2810
  %3822 = vmatprep.subr.bf16.mxu0 %v2807
  %3823 = vmatpush1.bf16.msra.mxu0 %v2806
  %3824 = vmatprep.subr.bf16.mxu0 %v2803
  %3825 = vmatpush1.bf16.msra.mxu0 %v2802
  %3826 = vmatprep.subr.bf16.mxu0 %v2799
  %3827 = vmatpush1.bf16.msra.mxu0 %v2798
  %3828 = vmatprep.subr.bf16.mxu0 %v2859
  %3829 = vmatpush2.bf16.msra.mxu0 %v2858
  %3830 = vmatprep.subr.bf16.mxu0 %v2855
  %3831 = vmatpush2.bf16.msra.mxu0 %v2854
  %3832 = vmatprep.subr.bf16.mxu0 %v2851
  %3833 = vmatpush2.bf16.msra.mxu0 %v2850
  %3834 = vmatprep.subr.bf16.mxu0 %v2847
  %3835 = vmatpush2.bf16.msra.mxu0 %v2846
  %3836 = vmatprep.subr.bf16.mxu0 %v2843
  %3837 = vmatpush2.bf16.msra.mxu0 %v2842
  %3838 = vmatprep.subr.bf16.mxu0 %v2839
  %3839 = vmatpush2.bf16.msra.mxu0 %v2838
  %3840 = vmatprep.subr.bf16.mxu0 %v2835
  %3841 = vmatpush2.bf16.msra.mxu0 %v2834
  %3842 = vmatprep.subr.bf16.mxu0 %v2831
  %3843 = vmatpush2.bf16.msra.mxu0 %v2830
  %3844 = vmatprep.mubr.bf16.mxu0 %v663
  %3845 = vmatmul.mubr.bf16.gmra.mxu0 %v662
  %v3846 = vpop.f32.mrf.mxu0
  %v3847 = vadd.f32 %v3806, %v3846
  %v3848 = vpop.f32.mrf.mxu0
  %v3849 = vadd.f32 %v3808, %v3848
  %v3850 = vpop.f32.mrf.mxu0
  %v3851 = vpop.f32.mrf.mxu0
  %3852 = vdwg.mxu0
  %3853 = vmatprep.subr.bf16.mxu0 %v2891
  %3854 = vmatpush1.bf16.msra.mxu0 %v2890
  %3855 = vmatprep.subr.bf16.mxu0 %v2887
  %3856 = vmatpush1.bf16.msra.mxu0 %v2886
  %3857 = vmatprep.subr.bf16.mxu0 %v2883
  %3858 = vmatpush1.bf16.msra.mxu0 %v2882
  %3859 = vmatprep.subr.bf16.mxu0 %v2879
  %3860 = vmatpush1.bf16.msra.mxu0 %v2878
  %3861 = vmatprep.subr.bf16.mxu0 %v2875
  %3862 = vmatpush1.bf16.msra.mxu0 %v2874
  %3863 = vmatprep.subr.bf16.mxu0 %v2871
  %3864 = vmatpush1.bf16.msra.mxu0 %v2870
  %3865 = vmatprep.subr.bf16.mxu0 %v2867
  %3866 = vmatpush1.bf16.msra.mxu0 %v2866
  %3867 = vmatprep.subr.bf16.mxu0 %v2863
  %3868 = vmatpush1.bf16.msra.mxu0 %v2862
  %3869 = vmatprep.subr.bf16.mxu0 %v2923
  %3870 = vmatpush2.bf16.msra.mxu0 %v2922
  %3871 = vmatprep.subr.bf16.mxu0 %v2919
  %3872 = vmatpush2.bf16.msra.mxu0 %v2918
  %3873 = vmatprep.subr.bf16.mxu0 %v2915
  %3874 = vmatpush2.bf16.msra.mxu0 %v2914
  %3875 = vmatprep.subr.bf16.mxu0 %v2911
  %3876 = vmatpush2.bf16.msra.mxu0 %v2910
  %3877 = vmatprep.subr.bf16.mxu0 %v2907
  %3878 = vmatpush2.bf16.msra.mxu0 %v2906
  %3879 = vmatprep.subr.bf16.mxu0 %v2903
  %3880 = vmatpush2.bf16.msra.mxu0 %v2902
  %3881 = vmatprep.subr.bf16.mxu0 %v2899
  %3882 = vmatpush2.bf16.msra.mxu0 %v2898
  %3883 = vmatprep.subr.bf16.mxu0 %v2895
  %3884 = vmatpush2.bf16.msra.mxu0 %v2894
  %3885 = vmatprep.mubr.bf16.mxu0 %v665
  %3886 = vmatmul.mubr.bf16.gmra.mxu0 %v664
  %v3887 = vpop.f32.mrf.mxu0
  %v3888 = vadd.f32 %v3847, %v3887
  %v3889 = vpop.f32.mrf.mxu0
  %v3890 = vadd.f32 %v3849, %v3889
  %v3891 = vpop.f32.mrf.mxu0
  %v3892 = vpop.f32.mrf.mxu0
  %3893 = vdwg.mxu0
  %3894 = vmatprep.subr.bf16.mxu0 %v2955
  %3895 = vmatpush1.bf16.msra.mxu0 %v2954
  %3896 = vmatprep.subr.bf16.mxu0 %v2951
  %3897 = vmatpush1.bf16.msra.mxu0 %v2950
  %3898 = vmatprep.subr.bf16.mxu0 %v2947
  %3899 = vmatpush1.bf16.msra.mxu0 %v2946
  %3900 = vmatprep.subr.bf16.mxu0 %v2943
  %3901 = vmatpush1.bf16.msra.mxu0 %v2942
  %3902 = vmatprep.subr.bf16.mxu0 %v2939
  %3903 = vmatpush1.bf16.msra.mxu0 %v2938
  %3904 = vmatprep.subr.bf16.mxu0 %v2935
  %3905 = vmatpush1.bf16.msra.mxu0 %v2934
  %3906 = vmatprep.subr.bf16.mxu0 %v2931
  %3907 = vmatpush1.bf16.msra.mxu0 %v2930
  %3908 = vmatprep.subr.bf16.mxu0 %v2927
  %3909 = vmatpush1.bf16.msra.mxu0 %v2926
  %3910 = vmatprep.subr.bf16.mxu0 %v2987
  %3911 = vmatpush2.bf16.msra.mxu0 %v2986
  %3912 = vmatprep.subr.bf16.mxu0 %v2983
  %3913 = vmatpush2.bf16.msra.mxu0 %v2982
  %3914 = vmatprep.subr.bf16.mxu0 %v2979
  %3915 = vmatpush2.bf16.msra.mxu0 %v2978
  %3916 = vmatprep.subr.bf16.mxu0 %v2975
  %3917 = vmatpush2.bf16.msra.mxu0 %v2974
  %3918 = vmatprep.subr.bf16.mxu0 %v2971
  %3919 = vmatpush2.bf16.msra.mxu0 %v2970
  %3920 = vmatprep.subr.bf16.mxu0 %v2967
  %3921 = vmatpush2.bf16.msra.mxu0 %v2966
  %3922 = vmatprep.subr.bf16.mxu0 %v2963
  %3923 = vmatpush2.bf16.msra.mxu0 %v2962
  %3924 = vmatprep.subr.bf16.mxu0 %v2959
  %3925 = vmatpush2.bf16.msra.mxu0 %v2958
  %3926 = vmatprep.mubr.bf16.mxu0 %v667
  %3927 = vmatmul.mubr.bf16.gmra.mxu0 %v666
  %v3928 = vpop.f32.mrf.mxu0
  %v3929 = vadd.f32 %v3888, %v3928
  %v3930 = vpop.f32.mrf.mxu0
  %v3931 = vadd.f32 %v3890, %v3930
  %v3932 = vpop.f32.mrf.mxu0
  %v3933 = vpop.f32.mrf.mxu0
  %3934 = vdwg.mxu0
  %3935 = vmatprep.subr.bf16.mxu0 %v2445
  %3936 = vmatpush1.bf16.msra.mxu0 %v2444
  %3937 = vmatprep.subr.bf16.mxu0 %v2441
  %3938 = vmatpush1.bf16.msra.mxu0 %v2440
  %3939 = vmatprep.subr.bf16.mxu0 %v2437
  %3940 = vmatpush1.bf16.msra.mxu0 %v2436
  %3941 = vmatprep.subr.bf16.mxu0 %v2433
  %3942 = vmatpush1.bf16.msra.mxu0 %v2432
  %3943 = vmatprep.subr.bf16.mxu0 %v2429
  %3944 = vmatpush1.bf16.msra.mxu0 %v2428
  %3945 = vmatprep.subr.bf16.mxu0 %v2425
  %3946 = vmatpush1.bf16.msra.mxu0 %v2424
  %3947 = vmatprep.subr.bf16.mxu0 %v2421
  %3948 = vmatpush1.bf16.msra.mxu0 %v2420
  %3949 = vmatprep.subr.bf16.mxu0 %v2417
  %3950 = vmatpush1.bf16.msra.mxu0 %v2416
  %3951 = vmatprep.subr.bf16.mxu0 %v2477
  %3952 = vmatpush2.bf16.msra.mxu0 %v2476
  %3953 = vmatprep.subr.bf16.mxu0 %v2473
  %3954 = vmatpush2.bf16.msra.mxu0 %v2472
  %3955 = vmatprep.subr.bf16.mxu0 %v2469
  %3956 = vmatpush2.bf16.msra.mxu0 %v2468
  %3957 = vmatprep.subr.bf16.mxu0 %v2465
  %3958 = vmatpush2.bf16.msra.mxu0 %v2464
  %3959 = vmatprep.subr.bf16.mxu0 %v2461
  %3960 = vmatpush2.bf16.msra.mxu0 %v2460
  %3961 = vmatprep.subr.bf16.mxu0 %v2457
  %3962 = vmatpush2.bf16.msra.mxu0 %v2456
  %3963 = vmatprep.subr.bf16.mxu0 %v2453
  %3964 = vmatpush2.bf16.msra.mxu0 %v2452
  %3965 = vmatprep.subr.bf16.mxu0 %v2449
  %3966 = vmatpush2.bf16.msra.mxu0 %v2448
  %3967 = vmatprep.mubr.bf16.mxu0 %v651
  %3968 = vmatmul.mubr.bf16.gmra.mxu0 %v650
  %v3969 = vpop.f32.mrf.mxu0
  %v3970 = vadd.f32 %v614, %v3969
  %v3971 = vpop.f32.mrf.mxu0
  %v3972 = vadd.f32 %v618, %v3971
  %v3973 = vpop.f32.mrf.mxu0
  %v3974 = vpop.f32.mrf.mxu0
  %3975 = vdwg.mxu0
  %3976 = vmatprep.subr.bf16.mxu0 %v2509
  %3977 = vmatpush1.bf16.msra.mxu0 %v2508
  %3978 = vmatprep.subr.bf16.mxu0 %v2505
  %3979 = vmatpush1.bf16.msra.mxu0 %v2504
  %3980 = vmatprep.subr.bf16.mxu0 %v2501
  %3981 = vmatpush1.bf16.msra.mxu0 %v2500
  %3982 = vmatprep.subr.bf16.mxu0 %v2497
  %3983 = vmatpush1.bf16.msra.mxu0 %v2496
  %3984 = vmatprep.subr.bf16.mxu0 %v2493
  %3985 = vmatpush1.bf16.msra.mxu0 %v2492
  %3986 = vmatprep.subr.bf16.mxu0 %v2489
  %3987 = vmatpush1.bf16.msra.mxu0 %v2488
  %3988 = vmatprep.subr.bf16.mxu0 %v2485
  %3989 = vmatpush1.bf16.msra.mxu0 %v2484
  %3990 = vmatprep.subr.bf16.mxu0 %v2481
  %3991 = vmatpush1.bf16.msra.mxu0 %v2480
  %3992 = vmatprep.subr.bf16.mxu0 %v2541
  %3993 = vmatpush2.bf16.msra.mxu0 %v2540
  %3994 = vmatprep.subr.bf16.mxu0 %v2537
  %3995 = vmatpush2.bf16.msra.mxu0 %v2536
  %3996 = vmatprep.subr.bf16.mxu0 %v2533
  %3997 = vmatpush2.bf16.msra.mxu0 %v2532
  %3998 = vmatprep.subr.bf16.mxu0 %v2529
  %3999 = vmatpush2.bf16.msra.mxu0 %v2528
  %4000 = vmatprep.subr.bf16.mxu0 %v2525
  %4001 = vmatpush2.bf16.msra.mxu0 %v2524
  %4002 = vmatprep.subr.bf16.mxu0 %v2521
  %4003 = vmatpush2.bf16.msra.mxu0 %v2520
  %4004 = vmatprep.subr.bf16.mxu0 %v2517
  %4005 = vmatpush2.bf16.msra.mxu0 %v2516
  %4006 = vmatprep.subr.bf16.mxu0 %v2513
  %4007 = vmatpush2.bf16.msra.mxu0 %v2512
  %4008 = vmatprep.mubr.bf16.mxu0 %v653
  %4009 = vmatmul.mubr.bf16.gmra.mxu0 %v652
  %v4010 = vpop.f32.mrf.mxu0
  %v4011 = vadd.f32 %v3970, %v4010
  %v4012 = vpop.f32.mrf.mxu0
  %v4013 = vadd.f32 %v3972, %v4012
  %v4014 = vpop.f32.mrf.mxu0
  %v4015 = vpop.f32.mrf.mxu0
  %4016 = vdwg.mxu0
  %4017 = vmatprep.subr.bf16.mxu0 %v2573
  %4018 = vmatpush1.bf16.msra.mxu0 %v2572
  %4019 = vmatprep.subr.bf16.mxu0 %v2569
  %4020 = vmatpush1.bf16.msra.mxu0 %v2568
  %4021 = vmatprep.subr.bf16.mxu0 %v2565
  %4022 = vmatpush1.bf16.msra.mxu0 %v2564
  %4023 = vmatprep.subr.bf16.mxu0 %v2561
  %4024 = vmatpush1.bf16.msra.mxu0 %v2560
  %4025 = vmatprep.subr.bf16.mxu0 %v2557
  %4026 = vmatpush1.bf16.msra.mxu0 %v2556
  %4027 = vmatprep.subr.bf16.mxu0 %v2553
  %4028 = vmatpush1.bf16.msra.mxu0 %v2552
  %4029 = vmatprep.subr.bf16.mxu0 %v2549
  %4030 = vmatpush1.bf16.msra.mxu0 %v2548
  %4031 = vmatprep.subr.bf16.mxu0 %v2545
  %4032 = vmatpush1.bf16.msra.mxu0 %v2544
  %4033 = vmatprep.subr.bf16.mxu0 %v2605
  %4034 = vmatpush2.bf16.msra.mxu0 %v2604
  %4035 = vmatprep.subr.bf16.mxu0 %v2601
  %4036 = vmatpush2.bf16.msra.mxu0 %v2600
  %4037 = vmatprep.subr.bf16.mxu0 %v2597
  %4038 = vmatpush2.bf16.msra.mxu0 %v2596
  %4039 = vmatprep.subr.bf16.mxu0 %v2593
  %4040 = vmatpush2.bf16.msra.mxu0 %v2592
  %4041 = vmatprep.subr.bf16.mxu0 %v2589
  %4042 = vmatpush2.bf16.msra.mxu0 %v2588
  %4043 = vmatprep.subr.bf16.mxu0 %v2585
  %4044 = vmatpush2.bf16.msra.mxu0 %v2584
  %4045 = vmatprep.subr.bf16.mxu0 %v2581
  %4046 = vmatpush2.bf16.msra.mxu0 %v2580
  %4047 = vmatprep.subr.bf16.mxu0 %v2577
  %4048 = vmatpush2.bf16.msra.mxu0 %v2576
  %4049 = vmatprep.mubr.bf16.mxu0 %v655
  %4050 = vmatmul.mubr.bf16.gmra.mxu0 %v654
  %v4051 = vpop.f32.mrf.mxu0
  %v4052 = vadd.f32 %v4011, %v4051
  %v4053 = vpop.f32.mrf.mxu0
  %v4054 = vadd.f32 %v4013, %v4053
  %v4055 = vpop.f32.mrf.mxu0
  %v4056 = vpop.f32.mrf.mxu0
  %4057 = vdwg.mxu0
  %4058 = vmatprep.subr.bf16.mxu0 %v2637
  %4059 = vmatpush1.bf16.msra.mxu0 %v2636
  %4060 = vmatprep.subr.bf16.mxu0 %v2633
  %4061 = vmatpush1.bf16.msra.mxu0 %v2632
  %4062 = vmatprep.subr.bf16.mxu0 %v2629
  %4063 = vmatpush1.bf16.msra.mxu0 %v2628
  %4064 = vmatprep.subr.bf16.mxu0 %v2625
  %4065 = vmatpush1.bf16.msra.mxu0 %v2624
  %4066 = vmatprep.subr.bf16.mxu0 %v2621
  %4067 = vmatpush1.bf16.msra.mxu0 %v2620
  %4068 = vmatprep.subr.bf16.mxu0 %v2617
  %4069 = vmatpush1.bf16.msra.mxu0 %v2616
  %4070 = vmatprep.subr.bf16.mxu0 %v2613
  %4071 = vmatpush1.bf16.msra.mxu0 %v2612
  %4072 = vmatprep.subr.bf16.mxu0 %v2609
  %4073 = vmatpush1.bf16.msra.mxu0 %v2608
  %4074 = vmatprep.subr.bf16.mxu0 %v2669
  %4075 = vmatpush2.bf16.msra.mxu0 %v2668
  %4076 = vmatprep.subr.bf16.mxu0 %v2665
  %4077 = vmatpush2.bf16.msra.mxu0 %v2664
  %4078 = vmatprep.subr.bf16.mxu0 %v2661
  %4079 = vmatpush2.bf16.msra.mxu0 %v2660
  %4080 = vmatprep.subr.bf16.mxu0 %v2657
  %4081 = vmatpush2.bf16.msra.mxu0 %v2656
  %4082 = vmatprep.subr.bf16.mxu0 %v2653
  %4083 = vmatpush2.bf16.msra.mxu0 %v2652
  %4084 = vmatprep.subr.bf16.mxu0 %v2649
  %4085 = vmatpush2.bf16.msra.mxu0 %v2648
  %4086 = vmatprep.subr.bf16.mxu0 %v2645
  %4087 = vmatpush2.bf16.msra.mxu0 %v2644
  %4088 = vmatprep.subr.bf16.mxu0 %v2641
  %4089 = vmatpush2.bf16.msra.mxu0 %v2640
  %4090 = vmatprep.mubr.bf16.mxu0 %v657
  %4091 = vmatmul.mubr.bf16.gmra.mxu0 %v656
  %v4092 = vpop.f32.mrf.mxu0
  %v4093 = vadd.f32 %v4052, %v4092
  %v4094 = vpop.f32.mrf.mxu0
  %v4095 = vadd.f32 %v4054, %v4094
  %v4096 = vpop.f32.mrf.mxu0
  %v4097 = vpop.f32.mrf.mxu0
  %4098 = vdwg.mxu0
  %4099 = vmatprep.subr.bf16.mxu0 %v2701
  %4100 = vmatpush1.bf16.msra.mxu0 %v2700
  %4101 = vmatprep.subr.bf16.mxu0 %v2697
  %4102 = vmatpush1.bf16.msra.mxu0 %v2696
  %4103 = vmatprep.subr.bf16.mxu0 %v2693
  %4104 = vmatpush1.bf16.msra.mxu0 %v2692
  %4105 = vmatprep.subr.bf16.mxu0 %v2689
  %4106 = vmatpush1.bf16.msra.mxu0 %v2688
  %4107 = vmatprep.subr.bf16.mxu0 %v2685
  %4108 = vmatpush1.bf16.msra.mxu0 %v2684
  %4109 = vmatprep.subr.bf16.mxu0 %v2681
  %4110 = vmatpush1.bf16.msra.mxu0 %v2680
  %4111 = vmatprep.subr.bf16.mxu0 %v2677
  %4112 = vmatpush1.bf16.msra.mxu0 %v2676
  %4113 = vmatprep.subr.bf16.mxu0 %v2673
  %4114 = vmatpush1.bf16.msra.mxu0 %v2672
  %4115 = vmatprep.subr.bf16.mxu0 %v2733
  %4116 = vmatpush2.bf16.msra.mxu0 %v2732
  %4117 = vmatprep.subr.bf16.mxu0 %v2729
  %4118 = vmatpush2.bf16.msra.mxu0 %v2728
  %4119 = vmatprep.subr.bf16.mxu0 %v2725
  %4120 = vmatpush2.bf16.msra.mxu0 %v2724
  %4121 = vmatprep.subr.bf16.mxu0 %v2721
  %4122 = vmatpush2.bf16.msra.mxu0 %v2720
  %4123 = vmatprep.subr.bf16.mxu0 %v2717
  %4124 = vmatpush2.bf16.msra.mxu0 %v2716
  %4125 = vmatprep.subr.bf16.mxu0 %v2713
  %4126 = vmatpush2.bf16.msra.mxu0 %v2712
  %4127 = vmatprep.subr.bf16.mxu0 %v2709
  %4128 = vmatpush2.bf16.msra.mxu0 %v2708
  %4129 = vmatprep.subr.bf16.mxu0 %v2705
  %4130 = vmatpush2.bf16.msra.mxu0 %v2704
  %4131 = vmatprep.mubr.bf16.mxu0 %v659
  %4132 = vmatmul.mubr.bf16.gmra.mxu0 %v658
  %v4133 = vpop.f32.mrf.mxu0
  %v4134 = vadd.f32 %v4093, %v4133
  %v4135 = vpop.f32.mrf.mxu0
  %v4136 = vadd.f32 %v4095, %v4135
  %v4137 = vpop.f32.mrf.mxu0
  %v4138 = vpop.f32.mrf.mxu0
  %4139 = vdwg.mxu0
  %4140 = vmatprep.subr.bf16.mxu0 %v2765
  %4141 = vmatpush1.bf16.msra.mxu0 %v2764
  %4142 = vmatprep.subr.bf16.mxu0 %v2761
  %4143 = vmatpush1.bf16.msra.mxu0 %v2760
  %4144 = vmatprep.subr.bf16.mxu0 %v2757
  %4145 = vmatpush1.bf16.msra.mxu0 %v2756
  %4146 = vmatprep.subr.bf16.mxu0 %v2753
  %4147 = vmatpush1.bf16.msra.mxu0 %v2752
  %4148 = vmatprep.subr.bf16.mxu0 %v2749
  %4149 = vmatpush1.bf16.msra.mxu0 %v2748
  %4150 = vmatprep.subr.bf16.mxu0 %v2745
  %4151 = vmatpush1.bf16.msra.mxu0 %v2744
  %4152 = vmatprep.subr.bf16.mxu0 %v2741
  %4153 = vmatpush1.bf16.msra.mxu0 %v2740
  %4154 = vmatprep.subr.bf16.mxu0 %v2737
  %4155 = vmatpush1.bf16.msra.mxu0 %v2736
  %4156 = vmatprep.subr.bf16.mxu0 %v2797
  %4157 = vmatpush2.bf16.msra.mxu0 %v2796
  %4158 = vmatprep.subr.bf16.mxu0 %v2793
  %4159 = vmatpush2.bf16.msra.mxu0 %v2792
  %4160 = vmatprep.subr.bf16.mxu0 %v2789
  %4161 = vmatpush2.bf16.msra.mxu0 %v2788
  %4162 = vmatprep.subr.bf16.mxu0 %v2785
  %4163 = vmatpush2.bf16.msra.mxu0 %v2784
  %4164 = vmatprep.subr.bf16.mxu0 %v2781
  %4165 = vmatpush2.bf16.msra.mxu0 %v2780
  %4166 = vmatprep.subr.bf16.mxu0 %v2777
  %4167 = vmatpush2.bf16.msra.mxu0 %v2776
  %4168 = vmatprep.subr.bf16.mxu0 %v2773
  %4169 = vmatpush2.bf16.msra.mxu0 %v2772
  %4170 = vmatprep.subr.bf16.mxu0 %v2769
  %4171 = vmatpush2.bf16.msra.mxu0 %v2768
  %4172 = vmatprep.mubr.bf16.mxu0 %v661
  %4173 = vmatmul.mubr.bf16.gmra.mxu0 %v660
  %v4174 = vpop.f32.mrf.mxu0
  %v4175 = vadd.f32 %v4134, %v4174
  %v4176 = vpop.f32.mrf.mxu0
  %v4177 = vadd.f32 %v4136, %v4176
  %v4178 = vpop.f32.mrf.mxu0
  %v4179 = vpop.f32.mrf.mxu0
  %4180 = vdwg.mxu0
  %4181 = vmatprep.subr.bf16.mxu0 %v2829
  %4182 = vmatpush1.bf16.msra.mxu0 %v2828
  %4183 = vmatprep.subr.bf16.mxu0 %v2825
  %4184 = vmatpush1.bf16.msra.mxu0 %v2824
  %4185 = vmatprep.subr.bf16.mxu0 %v2821
  %4186 = vmatpush1.bf16.msra.mxu0 %v2820
  %4187 = vmatprep.subr.bf16.mxu0 %v2817
  %4188 = vmatpush1.bf16.msra.mxu0 %v2816
  %4189 = vmatprep.subr.bf16.mxu0 %v2813
  %4190 = vmatpush1.bf16.msra.mxu0 %v2812
  %4191 = vmatprep.subr.bf16.mxu0 %v2809
  %4192 = vmatpush1.bf16.msra.mxu0 %v2808
  %4193 = vmatprep.subr.bf16.mxu0 %v2805
  %4194 = vmatpush1.bf16.msra.mxu0 %v2804
  %4195 = vmatprep.subr.bf16.mxu0 %v2801
  %4196 = vmatpush1.bf16.msra.mxu0 %v2800
  %4197 = vmatprep.subr.bf16.mxu0 %v2861
  %4198 = vmatpush2.bf16.msra.mxu0 %v2860
  %4199 = vmatprep.subr.bf16.mxu0 %v2857
  %4200 = vmatpush2.bf16.msra.mxu0 %v2856
  %4201 = vmatprep.subr.bf16.mxu0 %v2853
  %4202 = vmatpush2.bf16.msra.mxu0 %v2852
  %4203 = vmatprep.subr.bf16.mxu0 %v2849
  %4204 = vmatpush2.bf16.msra.mxu0 %v2848
  %4205 = vmatprep.subr.bf16.mxu0 %v2845
  %4206 = vmatpush2.bf16.msra.mxu0 %v2844
  %4207 = vmatprep.subr.bf16.mxu0 %v2841
  %4208 = vmatpush2.bf16.msra.mxu0 %v2840
  %4209 = vmatprep.subr.bf16.mxu0 %v2837
  %4210 = vmatpush2.bf16.msra.mxu0 %v2836
  %4211 = vmatprep.subr.bf16.mxu0 %v2833
  %4212 = vmatpush2.bf16.msra.mxu0 %v2832
  %4213 = vmatprep.mubr.bf16.mxu0 %v663
  %4214 = vmatmul.mubr.bf16.gmra.mxu0 %v662
  %v4215 = vpop.f32.mrf.mxu0
  %v4216 = vadd.f32 %v4175, %v4215
  %v4217 = vpop.f32.mrf.mxu0
  %v4218 = vadd.f32 %v4177, %v4217
  %v4219 = vpop.f32.mrf.mxu0
  %v4220 = vpop.f32.mrf.mxu0
  %4221 = vdwg.mxu0
  %4222 = vmatprep.subr.bf16.mxu0 %v2893
  %4223 = vmatpush1.bf16.msra.mxu0 %v2892
  %4224 = vmatprep.subr.bf16.mxu0 %v2889
  %4225 = vmatpush1.bf16.msra.mxu0 %v2888
  %4226 = vmatprep.subr.bf16.mxu0 %v2885
  %4227 = vmatpush1.bf16.msra.mxu0 %v2884
  %4228 = vmatprep.subr.bf16.mxu0 %v2881
  %4229 = vmatpush1.bf16.msra.mxu0 %v2880
  %4230 = vmatprep.subr.bf16.mxu0 %v2877
  %4231 = vmatpush1.bf16.msra.mxu0 %v2876
  %4232 = vmatprep.subr.bf16.mxu0 %v2873
  %4233 = vmatpush1.bf16.msra.mxu0 %v2872
  %4234 = vmatprep.subr.bf16.mxu0 %v2869
  %4235 = vmatpush1.bf16.msra.mxu0 %v2868
  %4236 = vmatprep.subr.bf16.mxu0 %v2865
  %4237 = vmatpush1.bf16.msra.mxu0 %v2864
  %4238 = vmatprep.subr.bf16.mxu0 %v2925
  %4239 = vmatpush2.bf16.msra.mxu0 %v2924
  %4240 = vmatprep.subr.bf16.mxu0 %v2921
  %4241 = vmatpush2.bf16.msra.mxu0 %v2920
  %4242 = vmatprep.subr.bf16.mxu0 %v2917
  %4243 = vmatpush2.bf16.msra.mxu0 %v2916
  %4244 = vmatprep.subr.bf16.mxu0 %v2913
  %4245 = vmatpush2.bf16.msra.mxu0 %v2912
  %4246 = vmatprep.subr.bf16.mxu0 %v2909
  %4247 = vmatpush2.bf16.msra.mxu0 %v2908
  %4248 = vmatprep.subr.bf16.mxu0 %v2905
  %4249 = vmatpush2.bf16.msra.mxu0 %v2904
  %4250 = vmatprep.subr.bf16.mxu0 %v2901
  %4251 = vmatpush2.bf16.msra.mxu0 %v2900
  %4252 = vmatprep.subr.bf16.mxu0 %v2897
  %4253 = vmatpush2.bf16.msra.mxu0 %v2896
  %4254 = vmatprep.mubr.bf16.mxu0 %v665
  %4255 = vmatmul.mubr.bf16.gmra.mxu0 %v664
  %v4256 = vpop.f32.mrf.mxu0
  %v4257 = vadd.f32 %v4216, %v4256
  %v4258 = vpop.f32.mrf.mxu0
  %v4259 = vadd.f32 %v4218, %v4258
  %v4260 = vpop.f32.mrf.mxu0
  %v4261 = vpop.f32.mrf.mxu0
  %4262 = vdwg.mxu0
  %4263 = vmatprep.subr.bf16.mxu0 %v2957
  %4264 = vmatpush1.bf16.msra.mxu0 %v2956
  %4265 = vmatprep.subr.bf16.mxu0 %v2953
  %4266 = vmatpush1.bf16.msra.mxu0 %v2952
  %4267 = vmatprep.subr.bf16.mxu0 %v2949
  %4268 = vmatpush1.bf16.msra.mxu0 %v2948
  %4269 = vmatprep.subr.bf16.mxu0 %v2945
  %4270 = vmatpush1.bf16.msra.mxu0 %v2944
  %4271 = vmatprep.subr.bf16.mxu0 %v2941
  %4272 = vmatpush1.bf16.msra.mxu0 %v2940
  %4273 = vmatprep.subr.bf16.mxu0 %v2937
  %4274 = vmatpush1.bf16.msra.mxu0 %v2936
  %4275 = vmatprep.subr.bf16.mxu0 %v2933
  %4276 = vmatpush1.bf16.msra.mxu0 %v2932
  %4277 = vmatprep.subr.bf16.mxu0 %v2929
  %4278 = vmatpush1.bf16.msra.mxu0 %v2928
  %4279 = vmatprep.subr.bf16.mxu0 %v2989
  %4280 = vmatpush2.bf16.msra.mxu0 %v2988
  %4281 = vmatprep.subr.bf16.mxu0 %v2985
  %4282 = vmatpush2.bf16.msra.mxu0 %v2984
  %4283 = vmatprep.subr.bf16.mxu0 %v2981
  %4284 = vmatpush2.bf16.msra.mxu0 %v2980
  %4285 = vmatprep.subr.bf16.mxu0 %v2977
  %4286 = vmatpush2.bf16.msra.mxu0 %v2976
  %4287 = vmatprep.subr.bf16.mxu0 %v2973
  %4288 = vmatpush2.bf16.msra.mxu0 %v2972
  %4289 = vmatprep.subr.bf16.mxu0 %v2969
  %4290 = vmatpush2.bf16.msra.mxu0 %v2968
  %4291 = vmatprep.subr.bf16.mxu0 %v2965
  %4292 = vmatpush2.bf16.msra.mxu0 %v2964
  %4293 = vmatprep.subr.bf16.mxu0 %v2961
  %4294 = vmatpush2.bf16.msra.mxu0 %v2960
  %4295 = vmatprep.mubr.bf16.mxu0 %v667
  %4296 = vmatmul.mubr.bf16.gmra.mxu0 %v666
  %v4297 = vpop.f32.mrf.mxu0
  %v4298 = vadd.f32 %v4257, %v4297
  %v4299 = vpop.f32.mrf.mxu0
  %v4300 = vadd.f32 %v4259, %v4299
  %v4301 = vpop.f32.mrf.mxu0
  %v4302 = vpop.f32.mrf.mxu0
  %4303 = vdwg.mxu0
  %vm4304 = vcmp.gt.f32.partialorder %v3929, 0.0
  %vm4305 = vcmp.gt.f32.partialorder %v3931, 0.0
  %vm4306 = vcmp.gt.f32.partialorder %v4298, 0.0
  %vm4307 = vcmp.gt.f32.partialorder %v4300, 0.0
  %v4308 = vmul.f32 %v3929, 0.2
  %v4309 = vmul.f32 %v3931, 0.2
  %v4310 = vmul.f32 %v4298, 0.2
  %v4311 = vmul.f32 %v4300, 0.2
  %v4312 = vsel %vm4304, %v3929, %v4308
  %v4313 = vsel %vm4305, %v3931, %v4309
  %v4314 = vsel %vm4306, %v4298, %v4310
  %v4315 = vsel %vm4307, %v4300, %v4311
  %4316 = vst [vmem:[%s3] sm:$0xff] %v4312
  %4317 = vst [vmem:[%s3 + $0x8] sm:$0xff] %v4313
  %4318 = vst [vmem:[%s3 + $0x10] sm:$0xff] %v4314
  %4319 = vst [vmem:[%s3 + $0x18] sm:$0xff] %v4315
  %v4320 = vlaneseq
  %v4321 = vshrl.u32 %v4320, 7
  %s4322 = smul.u32 0, 8
  %v4323 = vstv %s4322
  %v4324 = vadd.s32 %v4321, %v4323
  %vm4325 = vcmp.lt.s32.totalorder %v4324, 2
  %v4326 = vsel %vm4325, 1, 0
  %v4327 = vcvt.s32.f32 %v4326
  %v4328 = vmul.f32 %v4312, %v4327
  %v4329 = vmul.f32 %v4313, %v4327
  %v4330 = vmul.f32 %v4314, %v4327
  %v4331 = vmul.f32 %v4315, %v4327
  %v4332 = vrot.slane %v4328, 4
  %v4333 = vadd.f32 %v4328, %v4332
  %v4334 = vrot.slane %v4333, 2
  %v4335 = vadd.f32 %v4333, %v4334
  %v4336 = vrot.slane %v4335, 1
  %v4337 = vadd.f32 %v4335, %v4336
  %v4338 = vrot.slane %v4329, 4
  %v4339 = vadd.f32 %v4329, %v4338
  %v4340 = vrot.slane %v4339, 2
  %v4341 = vadd.f32 %v4339, %v4340
  %v4342 = vrot.slane %v4341, 1
  %v4343 = vadd.f32 %v4341, %v4342
  %v4344 = vrot.slane %v4330, 4
  %v4345 = vadd.f32 %v4330, %v4344
  %v4346 = vrot.slane %v4345, 2
  %v4347 = vadd.f32 %v4345, %v4346
  %v4348 = vrot.slane %v4347, 1
  %v4349 = vadd.f32 %v4347, %v4348
  %v4350 = vrot.slane %v4331, 4
  %v4351 = vadd.f32 %v4331, %v4350
  %v4352 = vrot.slane %v4351, 2
  %v4353 = vadd.f32 %v4351, %v4352
  %v4354 = vrot.slane %v4353, 1
  %v4355 = vadd.f32 %v4353, %v4354
  %v4356 = vmul.f32 %v4328, %v4328
  %v4357 = vmul.f32 %v4329, %v4329
  %v4358 = vmul.f32 %v4330, %v4330
  %v4359 = vmul.f32 %v4331, %v4331
  %v4360 = vrot.slane %v4356, 4
  %v4361 = vadd.f32 %v4356, %v4360
  %v4362 = vrot.slane %v4361, 2
  %v4363 = vadd.f32 %v4361, %v4362
  %v4364 = vrot.slane %v4363, 1
  %v4365 = vadd.f32 %v4363, %v4364
  %v4366 = vrot.slane %v4357, 4
  %v4367 = vadd.f32 %v4357, %v4366
  %v4368 = vrot.slane %v4367, 2
  %v4369 = vadd.f32 %v4367, %v4368
  %v4370 = vrot.slane %v4369, 1
  %v4371 = vadd.f32 %v4369, %v4370
  %v4372 = vrot.slane %v4358, 4
  %v4373 = vadd.f32 %v4358, %v4372
  %v4374 = vrot.slane %v4373, 2
  %v4375 = vadd.f32 %v4373, %v4374
  %v4376 = vrot.slane %v4375, 1
  %v4377 = vadd.f32 %v4375, %v4376
  %v4378 = vrot.slane %v4359, 4
  %v4379 = vadd.f32 %v4359, %v4378
  %v4380 = vrot.slane %v4379, 2
  %v4381 = vadd.f32 %v4379, %v4380
  %v4382 = vrot.slane %v4381, 1
  %v4383 = vadd.f32 %v4381, %v4382
  %p4384 = scmp.eq.s32.totalorder 0, 0
  // Predicated region
  $region14: #{discriminator_forward.19} parent=0 // pred_check
    %p4385 = pneg %p4384
  $region15: #{discriminator_forward.19} parent=0 // pred_check_branch
    %4387 = sbr.rel (%p4385) target = $region17
  $region16: #{discriminator_forward.19} parent=0 // pred_region
    %4388 = vst [vmem:[%s4] sm:$0xff] 0.0
  $region17: #{discriminator_forward.19} parent=0 // pred_fallthru
    _
  %v4389 = vld [vmem:[%s4] sm:$0xff]
  %vm4390 = vcmask 1040384
  %v4391 = vsel %vm4390, %v4337, %v4365
  %v4392 = vsel %vm4390, %v4343, %v4371
  %v4393 = vsel %vm4390, %v4349, %v4377
  %v4394 = vsel %vm4390, %v4355, %v4383
  %v4399 = vcombine.low %v4391, %v4392
  %v4400 = vcombine.low %v4393, %v4394
  %v4402 = vunpack.c.l.s4 1983009808
  %v4403 = vunpack.c.0.s8 %v4402
  %v4404 = vlaneseq
  %v4405 = vshrl.u32 %v4404, 7
  %v4406 = vsub.s32 %v4403, %v4405
  %v4407 = vrot.slane %v4399, %v4406
  %v4409 = vunpack.c.l.s4 1983009808
  %v4410 = vunpack.c.0.s8 %v4409
  %v4411 = vlaneseq
  %v4412 = vshrl.u32 %v4411, 7
  %v4413 = vsub.s32 %v4410, %v4412
  %v4414 = vrot.slane %v4400, %v4413
  %v4415 = vcombine.low %v4407, %v4414
  %v4417 = vadd.f32 %v4389, %v4415
  %4418 = vst [vmem:[%s4] sm:$0xff] %v4417
  // Predicated region
  $region18: #{discriminator_forward.19} parent=0 // pred_check
    _
  $region19: #{discriminator_forward.19} parent=0 // pred_check_branch
    %4420 = sbr.rel (0) target = $region21
  $region20: #{discriminator_forward.19} parent=0 // pred_region
    _
  $region21: #{discriminator_forward.19} parent=0 // pred_fallthru
    _
  // Predicated region
  $region22: #{discriminator_forward.19} parent=0 // pred_check
    _
  $region23: #{discriminator_forward.19} parent=0 // pred_check_branch
    %4422 = sbr.rel (0) target = $region25
  $region24: #{discriminator_forward.19} parent=0 // pred_region
    _
  $region25: #{discriminator_forward.19} parent=0 // pred_fallthru
    _
  // Predicated region
  $region26: #{discriminator_forward.19} parent=0 // pred_check
    _
  $region27: #{discriminator_forward.19} parent=0 // pred_check_branch
    %4424 = sbr.rel (0) target = $region29
  $region28: #{discriminator_forward.19} parent=0 // pred_region
    _
  $region29: #{discriminator_forward.19} parent=0 // pred_fallthru
    _
  // Predicated region
  $region30: #{discriminator_forward.19} parent=0 // pred_check
    _
  $region31: #{discriminator_forward.19} parent=0 // pred_check_branch
    %4426 = sbr.rel (0) target = $region33
  $region32: #{discriminator_forward.19} parent=0 // pred_region
    _
  $region33: #{discriminator_forward.19} parent=0 // pred_fallthru
    _

</llo_original>
